<compile_context>
chip_gen: v5e
topology: v5e:2x2
jax: 0.10.0
libtpu: 0.0.40
codegen_flags: <defaults>
</compile_context>

<pallas_src>
import functools
import math

import jax
import jax.numpy as jnp
from jax.experimental import pallas as pl
from jax.experimental.pallas import tpu as pltpu

# Keep the pure-JAX reference matmuls at full f32 precision so the correctness
# check below compares like-for-like with the in-kernel f32 MXU matmuls.
jax.config.update("jax_default_matmul_precision", "highest")


# ------------------------------ fused kernel --------------------------------

def selector_kernel(hw_ref, pos_ref, segv_ref, bias_ref, pmask_ref,
                    wqb_ref, wd_ref, wf_ref, wm_ref, o_ref,
                    *, num_head, layer_num):
    """One grid step = one block of Bt batch elements, fully VMEM-resident.

    hw_ref    [1, Bt*L, D]  word-embedding gather for this block (unscaled)
    pos_ref   [L, D]        positional embedding rows 0..L-1 (resident)
    segv_ref  [1, Bt, D]    segment embedding per batch element
    bias_ref  [1, MB, MB]   additive attention bias (block structure + key pads)
    pmask_ref [1, Bt*L, 1]  token mask for pooling (1 = real token, 0 = pad)
    wqb_ref   [H*D+MB, dk]  per-head Q/K/V projection weights + broadcast bias
    wd_ref    [D+F+8, D]    out-proj weight, FFN w2, 6 LayerNorm rows, b_attn, b2
    wf_ref    [D+1, F]      FFN w1 and b1
    wm_ref    [2D+1, 3]     Maxout weight (transposed; mean-part | max-part) + bias
    o_ref     [1, Bt, 1]
    """
    _, Mp, D = hw_ref.shape
    Bt = segv_ref.shape[1]
    L = Mp // Bt
    F = wf_ref.shape[1]
    H = num_head
    dk = D // H
    MB = H * Mp
    scale = jnp.float32(1.0 / math.sqrt(dk))
    neg_big = jnp.float32(-1e9)

    # ---- embedding tail: sqrt(D) scale + positional + segment adds (fused) ----
    posL = pos_ref[...]                                   # [L, D]
    segv = segv_ref[0]                                    # [Bt, D]
    h = hw_ref[0] * jnp.float32(math.sqrt(D))             # [Mp, D]
    h = jnp.concatenate(
        [h[b * L:(b + 1) * L, :] + posL + segv[b:b + 1, :] for b in range(Bt)],
        axis=0)                                           # [Mp, D]

    # ---- resident packed weights (loaded once per grid step) ----
    wqb = wqb_ref[...]
    bq = wqb[H * D:H * D + MB, :]           # projection bias, pre-broadcast [MB, dk]
    wd = wd_ref[...]
    w_out = wd[0:D, :]                      # attention output projection [D, D]
    w2 = wd[D:D + F, :]
    ln0_a = wd[D + F + 0:D + F + 1, :]
    ln0_b = wd[D + F + 1:D + F + 2, :]
    ln1_a = wd[D + F + 2:D + F + 3, :]
    ln1_b = wd[D + F + 3:D + F + 4, :]
    enc_a = wd[D + F + 4:D + F + 5, :]
    enc_b = wd[D + F + 5:D + F + 6, :]
    b_attn = wd[D + F + 6:D + F + 7, :]
    b2 = wd[D + F + 7:D + F + 8, :]
    wf = wf_ref[...]
    w1 = wf[0:D, :]
    b1 = wf[D:D + 1, :]
    attn_bias = bias_ref[0]                 # [MB, MB]

    def layer_norm(x, a, b):
        # torch-style: unbiased std, (std + eps) denominator, exact division.
        mean = jnp.mean(x, axis=-1, keepdims=True)
        var = jnp.sum((x - mean) ** 2, axis=-1, keepdims=True) * (1.0 / (D - 1))
        return a * (x - mean) / (jnp.sqrt(var) + 1e-6) + b

    def encoder_layer(_, x):
        # ---- sublayer 0: x + self_attn(norm(x)) ----
        xn = layer_norm(x, ln0_a, ln0_b)
        # q == k == v (clones() deepcopy => the 4 projection linears share weights
        # and receive identical inputs): project ONCE, head-major stacked along
        # sublanes so every (head, batch) block goes through one softmax pass.
        qs = jnp.concatenate(
            [jnp.dot(xn, wqb[hh * D:(hh + 1) * D, :],
                     preferred_element_type=jnp.float32) for hh in range(H)],
            axis=0) + bq                                               # [MB, dk]
        scores = jax.lax.dot_general(
            qs, qs, (((1,), (1,)), ((), ())),
            preferred_element_type=jnp.float32) * scale                # [MB, MB]
        scores = scores + attn_bias            # masks pads + off-diagonal blocks
        m = jnp.max(scores, axis=-1, keepdims=True)
        p = jnp.exp(scores - m)
        p = p / jnp.sum(p, axis=-1, keepdims=True)
        ctx = jnp.dot(p, qs, preferred_element_type=jnp.float32)       # [MB, dk]
        # output projection: sublane slices of ctx against sublane-aligned row
        # slices of w_out -- no lane slicing, no lane-axis head concat.
        attn = jnp.dot(ctx[0:Mp, :], w_out[0:dk, :],
                       preferred_element_type=jnp.float32)
        for hh in range(1, H):
            attn = attn + jnp.dot(ctx[hh * Mp:(hh + 1) * Mp, :],
                                  w_out[hh * dk:(hh + 1) * dk, :],
                                  preferred_element_type=jnp.float32)
        x = x + attn + b_attn
        # ---- sublayer 1: x + ffn(norm(x)) ----
        xn = layer_norm(x, ln1_a, ln1_b)
        mid = jnp.maximum(
            jnp.dot(xn, w1, preferred_element_type=jnp.float32) + b1, 0.0)
        return x + jnp.dot(mid, w2, preferred_element_type=jnp.float32) + b2

    h = jax.lax.fori_loop(0, layer_num, encoder_layer, h, unroll=True)
    h = layer_norm(h, enc_a, enc_b)          # final encoder LayerNorm

    # ---- masked mean / max pooling (exact division, matches reference) ----
    pm = pmask_ref[0]                        # [Mp, 1]
    means, maxs = [], []
    for b in range(Bt):
        hb = h[b * L:(b + 1) * L, :]
        mb = pm[b * L:(b + 1) * L, :]
        denom = jnp.sum(mb, axis=0, keepdims=True)                     # [1, 1]
        means.append(jnp.sum(hb * mb, axis=0, keepdims=True) / denom)
        maxs.append(jnp.max(hb + (1.0 - mb) * neg_big, axis=0, keepdims=True))
    mean_pool = jnp.concatenate(means, axis=0)                         # [Bt, D]
    max_pool = jnp.concatenate(maxs, axis=0)                           # [Bt, D]

    # ---- Maxout head (3 identical Linear(2D,1) clones) + eval BatchNorm1d(1) ----
    # The mean/max halves hit separate weight slices, so the [Bt, 2D] lane-axis
    # concat of the pooled features is never materialized.
    wm = wm_ref[...]
    lin = (jnp.dot(mean_pool, wm[0:D, :], preferred_element_type=jnp.float32)
           + jnp.dot(max_pool, wm[D:2 * D, :], preferred_element_type=jnp.float32)
           + wm[2 * D:2 * D + 1, :])                                   # [Bt, 3]
    # TODO(synk): BatchNorm1d(1) is modeled in eval mode (running stats 0/1,
    # affine 1/0); train-mode batch statistics are not reproduced.
    bn_s = jnp.float32(1.0 / math.sqrt(1.0 + 1e-5))
    l0 = lin[:, 0:1]
    l1 = lin[:, 1:2]
    l2 = lin[:, 2:3]
    out = l0 * bn_s                          # BN(layers[0](x))
    out = jnp.maximum(out, l0) * bn_s        # loop over all 3 clones, as in torch
    out = jnp.maximum(out, l1) * bn_s
    out = jnp.maximum(out, l2) * bn_s
    o_ref[0] = out                           # [Bt, 1]


# ------------------------------ parameters ----------------------------------

def init_params(key, d_model, num_head, d_ff, layer_num, vocab_size,
                max_len=64, max_seg=8):
    ks = jax.random.split(key, 12)

    def xavier(k, shape):
        std = math.sqrt(2.0 / (shape[0] + shape[1]))
        return (jax.random.normal(k, shape) * std).astype(jnp.float32)

    ones = jnp.ones((d_model,), jnp.float32)
    zeros = jnp.zeros((d_model,), jnp.float32)
    # rows: ln0_a, ln0_b, ln1_a, ln1_b, enc_ln_a, enc_ln_b
    ln = jnp.stack([ones, zeros, ones, zeros, ones, zeros], axis=0)

    # clones(Linear(2*d_model, 1), 3) => 3 identical copies.
    wm_row = xavier(ks[6], (1, 2 * d_model))
    bm_val = (jax.random.normal(ks[7], (1, 1)) * 0.1).astype(jnp.float32)

    return {
        "d_model": d_model, "num_head": num_head,
        "layer_num": layer_num, "d_ff": d_ff,
        "word_emb": (jax.random.normal(ks[0], (vocab_size, d_model)) * 0.02).astype(jnp.float32),
        "pos_emb": (jax.random.normal(ks[1], (max_len, d_model)) * 0.02).astype(jnp.float32),
        "seg_emb": (jax.random.normal(ks[2], (max_seg, d_model)) * 0.02).astype(jnp.float32),
        # clones(nn.Linear(d_model, d_model), 4): deepcopy => q/k/v/out identical.
        "w_attn": xavier(ks[3], (d_model, d_model)),
        "b_attn": (jax.random.normal(ks[8], (1, d_model)) * 0.1).astype(jnp.float32),
        "ln": ln,                                                    # [6, D]
        "w1": xavier(ks[4], (d_model, d_ff)),
        "b1": (jax.random.normal(ks[9], (1, d_ff)) * 0.1).astype(jnp.float32),
        "w2": xavier(ks[5], (d_ff, d_model)),
        "b2": (jax.random.normal(ks[10], (1, d_model)) * 0.1).astype(jnp.float32),
        "maxout_w": jnp.tile(wm_row, (3, 1)),                        # [3, 2D]
        "maxout_b": jnp.tile(bm_val, (3, 1)),                        # [3, 1]
    }


# ------------------------------ forward pass --------------------------------

def _default_num_blocks():
    """2 'parallel' grid steps on dual-TensorCore (v7x) chips, 1 otherwise."""
    try:
        kind = jax.devices()[0].device_kind.lower()
    except Exception:
        kind = ""
    return 2 if "v7" in kind else 1


def selector_forward(params, x_tok, seg, num_blocks=None):
    B, L = x_tok.shape
    D = params["d_model"]
    H = params["num_head"]
    F = params["d_ff"]
    dk = D // H

    # Grid blocking: v5e/v6e -> one step holding the whole batch (the grid loop
    # is pure serial overhead there); v7x -> two 'parallel' steps, one per TC.
    G = num_blocks if num_blocks is not None else _default_num_blocks()
    G = max(1, min(G, B))
    Bt = -(-B // G)                      # batch elements per grid step
    Bp = G * Bt
    if Bp != B:                          # pad with non-pad token id 1 (stays finite)
        x_tok = jnp.concatenate(
            [x_tok, jnp.ones((Bp - B, L), x_tok.dtype)], axis=0)
        seg = jnp.concatenate([seg, jnp.zeros((Bp - B,), seg.dtype)], axis=0)

    Mp = Bt * L
    MB = H * Mp
    mask = (x_tok != 0).astype(jnp.float32)                      # [Bp, L]

    # TODO(synk): the data-dependent embedding-table gathers stay in plain JAX;
    # the sqrt(D) scale and positional/segment adds are fused in the kernel.
    hw = params["word_emb"][x_tok].reshape(G, Mp, D)
    posL = params["pos_emb"][:L]                                 # [L, D]
    segv = params["seg_emb"][seg].reshape(G, Bt, D)

    # Additive attention bias: 0 where (same head, same batch element, key is a
    # real token); -1e9 elsewhere (pads + off-diagonal (head, batch) blocks).
    idx = jnp.arange(MB)
    h_idx = idx // Mp
    b_idx = (idx // L) % Bt
    l_idx = idx % L
    same_blk = (h_idx[:, None] == h_idx[None, :]) & (b_idx[:, None] == b_idx[None, :])
    key_ok = mask.reshape(G, Bt, L)[:, b_idx, l_idx] > 0.0       # [G, MB]
    attn_bias = jnp.where(same_blk[None] & key_ok[:, None, :],
                          0.0, -1e9).astype(jnp.float32)         # [G, MB, MB]
    pmask = mask.reshape(G, Mp, 1)

    # ---- packed resident weights ----
    # per-head Q/K/V projection weights stacked along sublanes + broadcast bias
    wq_heads = params["w_attn"].reshape(D, H, dk).transpose(1, 0, 2).reshape(H * D, dk)
    bq_bcast = jnp.repeat(params["b_attn"].reshape(H, dk), Mp, axis=0)    # [MB, dk]
    wqb = jnp.concatenate([wq_heads, bq_bcast], axis=0)                   # [H*D+MB, dk]
    # D-wide pack: out-projection, FFN w2, LayerNorm rows, b_attn, b2
    wd = jnp.concatenate([params["w_attn"], params["w2"], params["ln"],
                          params["b_attn"], params["b2"]], axis=0)        # [D+F+8, D]
    wf = jnp.concatenate([params["w1"], params["b1"]], axis=0)            # [D+1, F]
    wm = jnp.concatenate([params["maxout_w"].T, params["maxout_b"].T],
                         axis=0)                                          # [2D+1, 3]

    kernel = functools.partial(selector_kernel, num_head=H,
                               layer_num=params["layer_num"])
    out = pl.pallas_call(
        kernel,
        out_shape=jax.ShapeDtypeStruct((G, Bt, 1), jnp.float32),
        grid=(G,),
        in_specs=[
            pl.BlockSpec((1, Mp, D), lambda g: (g, 0, 0)),       # word emb block
            pl.BlockSpec((L, D), lambda g: (0, 0)),              # pos emb (resident)
            pl.BlockSpec((1, Bt, D), lambda g: (g, 0, 0)),       # seg emb block
            pl.BlockSpec((1, MB, MB), lambda g: (g, 0, 0)),      # attention bias
            pl.BlockSpec((1, Mp, 1), lambda g: (g, 0, 0)),       # pooling mask
            pl.BlockSpec((H * D + MB, dk), lambda g: (0, 0)),    # wqb (resident)
            pl.BlockSpec((D + F + 8, D), lambda g: (0, 0)),      # wd  (resident)
            pl.BlockSpec((D + 1, F), lambda g: (0, 0)),          # wf  (resident)
            pl.BlockSpec((2 * D + 1, 3), lambda g: (0, 0)),      # wm  (resident)
        ],
        out_specs=pl.BlockSpec((1, Bt, 1), lambda g: (g, 0, 0)),
        compiler_params=pltpu.CompilerParams(
            dimension_semantics=("parallel",)),                   # megacore on v7x
    )(hw, posL, segv, attn_bias, pmask, wqb, wd, wf, wm)
    return out.reshape(Bp, 1)[:B]


# --------------------------- pure-JAX reference ------------------------------

def selector_reference(params, x_tok, seg):
    """Plain-JAX mirror of the PyTorch Selector forward (eval mode)."""
    D = params["d_model"]
    H = params["num_head"]
    dk = D // H
    L = x_tok.shape[1]
    mask = (x_tok != 0).astype(jnp.float32)
    h = params["word_emb"][x_tok] * math.sqrt(D)
    h = h + params["pos_emb"][:L][None]
    h = h + params["seg_emb"][seg][:, None, :]

    def ln(x, a, b):
        mu = jnp.mean(x, axis=-1, keepdims=True)
        std = jnp.sqrt(jnp.sum((x - mu) ** 2, axis=-1, keepdims=True) / (D - 1))
        return a * (x - mu) / (std + 1e-6) + b

    lnp = params["ln"]
    wA, bA = params["w_attn"], params["b_attn"]
    for _ in range(params["layer_num"]):
        xn = ln(h, lnp[0], lnp[1])
        q = xn @ wA + bA
        qh = q.reshape(q.shape[0], L, H, dk).transpose(0, 2, 1, 3)
        sc = jnp.einsum("bhqd,bhkd->bhqk", qh, qh) / math.sqrt(dk)
        sc = jnp.where(mask[:, None, None, :] == 0.0, -1e9, sc)
        p = jax.nn.softmax(sc, axis=-1)
        ctx = jnp.einsum("bhqk,bhkd->bhqd", p, qh).transpose(0, 2, 1, 3)
        ctx = ctx.reshape(q.shape)
        h = h + (ctx @ wA + bA)
        xn = ln(h, lnp[2], lnp[3])
        mid = jax.nn.relu(xn @ params["w1"] + params["b1"])
        h = h + (mid @ params["w2"] + params["b2"])
    h = ln(h, lnp[4], lnp[5])
    mean_pool = jnp.sum(h * mask[..., None], axis=1) / jnp.sum(mask, axis=1, keepdims=True)
    max_pool = jnp.max(h + (1.0 - mask[..., None]) * -1e9, axis=1)
    pooling = jnp.concatenate([mean_pool, max_pool], axis=-1)
    lins = pooling @ params["maxout_w"].T + params["maxout_b"][:, 0][None]
    s = 1.0 / math.sqrt(1.0 + 1e-5)
    m = lins[:, 0:1] * s
    for j in range(3):
        m = jnp.maximum(m, lins[:, j:j + 1]) * s
    return m


# ------------------------------------ demo -----------------------------------

if __name__ == "__main__":
    d_model, num_head, d_ff, dropout, layer_num, vocab_size = 32, 4, 64, 0.1, 2, 50
    B, L = 2, 8

    key = jax.random.PRNGKey(0)
    pkey, xkey, skey = jax.random.split(key, 3)

    params = init_params(pkey, d_model, num_head, d_ff, layer_num, vocab_size)
    x_tok = jax.random.randint(xkey, (B, L), 0, vocab_size, dtype=jnp.int32)
    seg = jax.random.randint(skey, (B,), 0, 8, dtype=jnp.int32)

    out = selector_forward(params, x_tok, seg)
    out = jax.block_until_ready(out)
    assert out.shape == (B, 1), out.shape
    assert bool(jnp.all(jnp.isfinite(out))), out

    ref = selector_reference(params, x_tok, seg)
    assert bool(jnp.allclose(out, ref, atol=5e-3, rtol=5e-3)), (out, ref)
    print("KERNEL_OK")
</pallas_src>

<mosaic_0001>
module attributes {stable_mosaic.version = 11 : i64} {
  func.func @selector_kernel(%arg0: i32, %arg1: memref<1x16x32xf32, #tpu.memory_space<vmem>>, %arg2: memref<8x32xf32, #tpu.memory_space<vmem>>, %arg3: memref<1x2x32xf32, #tpu.memory_space<vmem>>, %arg4: memref<1x64x64xf32, #tpu.memory_space<vmem>>, %arg5: memref<1x16x1xf32, #tpu.memory_space<vmem>>, %arg6: memref<192x8xf32, #tpu.memory_space<vmem>>, %arg7: memref<104x32xf32, #tpu.memory_space<vmem>>, %arg8: memref<33x64xf32, #tpu.memory_space<vmem>>, %arg9: memref<65x3xf32, #tpu.memory_space<vmem>>, %arg10: memref<1x2x1xf32, #tpu.memory_space<vmem>>) attributes {dimension_semantics = [#tpu.dimension_semantics<parallel>], iteration_bounds = array<i64: 1>, scalar_prefetch = 0 : i64, scratch_operands = 0 : i64, tpu.core_type = #tpu.core_type<tc>, window_params = [{transform_indices = @transform_0, window_bounds = array<i64: 1, 16, 32>}, {pipeline_mode = #tpu.pipeline_mode<synchronous>, transform_indices = @transform_1, window_bounds = array<i64: 8, 32>}, {transform_indices = @transform_2, window_bounds = array<i64: 1, 2, 32>}, {transform_indices = @transform_3, window_bounds = array<i64: 1, 64, 64>}, {transform_indices = @transform_4, window_bounds = array<i64: 1, 16, 1>}, {pipeline_mode = #tpu.pipeline_mode<synchronous>, transform_indices = @transform_5, window_bounds = array<i64: 192, 8>}, {pipeline_mode = #tpu.pipeline_mode<synchronous>, transform_indices = @transform_6, window_bounds = array<i64: 104, 32>}, {pipeline_mode = #tpu.pipeline_mode<synchronous>, transform_indices = @transform_7, window_bounds = array<i64: 33, 64>}, {pipeline_mode = #tpu.pipeline_mode<synchronous>, transform_indices = @transform_8, window_bounds = array<i64: 65, 3>}, {transform_indices = @transform_9, window_bounds = array<i64: 1, 2, 1>}]} {
    %c0 = arith.constant 0 : index
    %c0_0 = arith.constant 0 : index
    %0 = vector.load %arg2[%c0, %c0_0] : memref<8x32xf32, #tpu.memory_space<vmem>>, vector<8x32xf32>
    %c0_1 = arith.constant 0 : index
    %c0_2 = arith.constant 0 : index
    %c0_3 = arith.constant 0 : index
    %1 = vector.load %arg3[%c0_1, %c0_2, %c0_3] : memref<1x2x32xf32, #tpu.memory_space<vmem>>, vector<1x2x32xf32>
    %2 = vector.shape_cast %1 : vector<1x2x32xf32> to vector<2x32xf32>
    %c0_4 = arith.constant 0 : index
    %c0_5 = arith.constant 0 : index
    %c0_6 = arith.constant 0 : index
    %3 = vector.load %arg1[%c0_4, %c0_5, %c0_6] : memref<1x16x32xf32, #tpu.memory_space<vmem>>, vector<1x16x32xf32>
    %4 = vector.shape_cast %3 : vector<1x16x32xf32> to vector<16x32xf32>
    %cst = arith.constant 5.65685415 : f32
    %5 = vector.broadcast %cst : f32 to vector<16x32xf32>
    %6 = arith.mulf %4, %5 : vector<16x32xf32>
    %7 = vector.extract_strided_slice %6 {offsets = [0, 0], sizes = [8, 32], strides = [1, 1]} : vector<16x32xf32> to vector<8x32xf32>
    %8 = arith.addf %7, %0 : vector<8x32xf32>
    %9 = vector.extract_strided_slice %2 {offsets = [0, 0], sizes = [1, 32], strides = [1, 1]} : vector<2x32xf32> to vector<1x32xf32>
    %10 = vector.broadcast %9 : vector<1x32xf32> to vector<8x32xf32>
    %11 = arith.addf %8, %10 : vector<8x32xf32>
    %12 = vector.extract_strided_slice %6 {offsets = [8, 0], sizes = [8, 32], strides = [1, 1]} : vector<16x32xf32> to vector<8x32xf32>
    %13 = arith.addf %12, %0 : vector<8x32xf32>
    %14 = vector.extract_strided_slice %2 {offsets = [1, 0], sizes = [1, 32], strides = [1, 1]} : vector<2x32xf32> to vector<1x32xf32>
    %15 = vector.broadcast %14 : vector<1x32xf32> to vector<8x32xf32>
    %16 = arith.addf %13, %15 : vector<8x32xf32>
    %17 = tpu.concatenate %11, %16 in 0 : vector<8x32xf32>, vector<8x32xf32> -> vector<16x32xf32>
    %c0_7 = arith.constant 0 : index
    %c0_8 = arith.constant 0 : index
    %18 = vector.load %arg6[%c0_7, %c0_8] : memref<192x8xf32, #tpu.memory_space<vmem>>, vector<192x8xf32>
    %19 = vector.extract_strided_slice %18 {offsets = [128, 0], sizes = [64, 8], strides = [1, 1]} : vector<192x8xf32> to vector<64x8xf32>
    %c0_9 = arith.constant 0 : index
    %c0_10 = arith.constant 0 : index
    %20 = vector.load %arg7[%c0_9, %c0_10] : memref<104x32xf32, #tpu.memory_space<vmem>>, vector<104x32xf32>
    %21 = vector.extract_strided_slice %20 {offsets = [0, 0], sizes = [32, 32], strides = [1, 1]} : vector<104x32xf32> to vector<32x32xf32>
    %22 = vector.extract_strided_slice %20 {offsets = [32, 0], sizes = [64, 32], strides = [1, 1]} : vector<104x32xf32> to vector<64x32xf32>
    %23 = vector.extract_strided_slice %20 {offsets = [96, 0], sizes = [1, 32], strides = [1, 1]} : vector<104x32xf32> to vector<1x32xf32>
    %24 = vector.extract_strided_slice %20 {offsets = [97, 0], sizes = [1, 32], strides = [1, 1]} : vector<104x32xf32> to vector<1x32xf32>
    %25 = vector.extract_strided_slice %20 {offsets = [98, 0], sizes = [1, 32], strides = [1, 1]} : vector<104x32xf32> to vector<1x32xf32>
    %26 = vector.extract_strided_slice %20 {offsets = [99, 0], sizes = [1, 32], strides = [1, 1]} : vector<104x32xf32> to vector<1x32xf32>
    %27 = vector.extract_strided_slice %20 {offsets = [100, 0], sizes = [1, 32], strides = [1, 1]} : vector<104x32xf32> to vector<1x32xf32>
    %28 = vector.extract_strided_slice %20 {offsets = [101, 0], sizes = [1, 32], strides = [1, 1]} : vector<104x32xf32> to vector<1x32xf32>
    %29 = vector.extract_strided_slice %20 {offsets = [102, 0], sizes = [1, 32], strides = [1, 1]} : vector<104x32xf32> to vector<1x32xf32>
    %30 = vector.extract_strided_slice %20 {offsets = [103, 0], sizes = [1, 32], strides = [1, 1]} : vector<104x32xf32> to vector<1x32xf32>
    %c0_11 = arith.constant 0 : index
    %c0_12 = arith.constant 0 : index
    %31 = vector.load %arg8[%c0_11, %c0_12] : memref<33x64xf32, #tpu.memory_space<vmem>>, vector<33x64xf32>
    %32 = vector.extract_strided_slice %31 {offsets = [0, 0], sizes = [32, 64], strides = [1, 1]} : vector<33x64xf32> to vector<32x64xf32>
    %33 = vector.extract_strided_slice %31 {offsets = [32, 0], sizes = [1, 64], strides = [1, 1]} : vector<33x64xf32> to vector<1x64xf32>
    %c0_13 = arith.constant 0 : index
    %c0_14 = arith.constant 0 : index
    %c0_15 = arith.constant 0 : index
    %34 = vector.load %arg4[%c0_13, %c0_14, %c0_15] : memref<1x64x64xf32, #tpu.memory_space<vmem>>, vector<1x64x64xf32>
    %35 = vector.shape_cast %34 : vector<1x64x64xf32> to vector<64x64xf32>
    %cst_16 = arith.constant 0.353553385 : f32
    %c0_i32 = arith.constant 0 : i32
    %cst_17 = arith.constant dense<0.000000e+00> : vector<16xf32>
    %36 = vector.multi_reduction <add>, %17, %cst_17 [1] : vector<16x32xf32> to vector<16xf32>
    %37 = vector.shape_cast %36 : vector<16xf32> to vector<16x1xf32>
    %cst_18 = arith.constant 3.200000e+01 : f32
    %38 = vector.broadcast %cst_18 : f32 to vector<16x1xf32>
    %39 = arith.divf %37, %38 : vector<16x1xf32>
    %40 = vector.broadcast %39 : vector<16x1xf32> to vector<16x32xf32>
    %41 = arith.subf %17, %40 : vector<16x32xf32>
    %42 = arith.mulf %41, %41 : vector<16x32xf32>
    %cst_19 = arith.constant dense<0.000000e+00> : vector<16xf32>
    %43 = vector.multi_reduction <add>, %42, %cst_19 [1] : vector<16x32xf32> to vector<16xf32>
    %44 = vector.shape_cast %43 : vector<16xf32> to vector<16x1xf32>
    %cst_20 = arith.constant 0.0322580636 : f32
    %45 = vector.broadcast %cst_20 : f32 to vector<16x1xf32>
    %46 = arith.mulf %44, %45 : vector<16x1xf32>
    %47 = vector.broadcast %39 : vector<16x1xf32> to vector<16x32xf32>
    %48 = arith.subf %17, %47 : vector<16x32xf32>
    %49 = vector.broadcast %23 : vector<1x32xf32> to vector<16x32xf32>
    %50 = arith.mulf %49, %48 : vector<16x32xf32>
    %51 = math.sqrt %46 : vector<16x1xf32>
    %cst_21 = arith.constant 9.99999997E-7 : f32
    %52 = vector.broadcast %cst_21 : f32 to vector<16x1xf32>
    %53 = arith.addf %51, %52 : vector<16x1xf32>
    %54 = vector.broadcast %53 : vector<16x1xf32> to vector<16x32xf32>
    %55 = arith.divf %50, %54 : vector<16x32xf32>
    %56 = vector.broadcast %24 : vector<1x32xf32> to vector<16x32xf32>
    %57 = arith.addf %55, %56 : vector<16x32xf32>
    %58 = vector.extract_strided_slice %18 {offsets = [0, 0], sizes = [32, 8], strides = [1, 1]} : vector<192x8xf32> to vector<32x8xf32>
    %cst_22 = arith.constant dense<0.000000e+00> : vector<16x8xf32>
    %59 = tpu.matmul %57, %58, %cst_22 {dimension_numbers = #tpu.dot_dimension_numbers<[1], [0], [0], [1], [0, 0, 1, 1], [], []>, precision = #tpu.contract_precision<fp32>} : vector<16x32xf32>, vector<32x8xf32>, vector<16x8xf32> -> vector<16x8xf32>
    %60 = vector.extract_strided_slice %18 {offsets = [32, 0], sizes = [32, 8], strides = [1, 1]} : vector<192x8xf32> to vector<32x8xf32>
    %cst_23 = arith.constant dense<0.000000e+00> : vector<16x8xf32>
    %61 = tpu.matmul %57, %60, %cst_23 {dimension_numbers = #tpu.dot_dimension_numbers<[1], [0], [0], [1], [0, 0, 1, 1], [], []>, precision = #tpu.contract_precision<fp32>} : vector<16x32xf32>, vector<32x8xf32>, vector<16x8xf32> -> vector<16x8xf32>
    %62 = vector.extract_strided_slice %18 {offsets = [64, 0], sizes = [32, 8], strides = [1, 1]} : vector<192x8xf32> to vector<32x8xf32>
    %cst_24 = arith.constant dense<0.000000e+00> : vector<16x8xf32>
    %63 = tpu.matmul %57, %62, %cst_24 {dimension_numbers = #tpu.dot_dimension_numbers<[1], [0], [0], [1], [0, 0, 1, 1], [], []>, precision = #tpu.contract_precision<fp32>} : vector<16x32xf32>, vector<32x8xf32>, vector<16x8xf32> -> vector<16x8xf32>
    %64 = vector.extract_strided_slice %18 {offsets = [96, 0], sizes = [32, 8], strides = [1, 1]} : vector<192x8xf32> to vector<32x8xf32>
    %cst_25 = arith.constant dense<0.000000e+00> : vector<16x8xf32>
    %65 = tpu.matmul %57, %64, %cst_25 {dimension_numbers = #tpu.dot_dimension_numbers<[1], [0], [0], [1], [0, 0, 1, 1], [], []>, precision = #tpu.contract_precision<fp32>} : vector<16x32xf32>, vector<32x8xf32>, vector<16x8xf32> -> vector<16x8xf32>
    %66 = tpu.concatenate %59, %61, %63, %65 in 0 : vector<16x8xf32>, vector<16x8xf32>, vector<16x8xf32>, vector<16x8xf32> -> vector<64x8xf32>
    %67 = arith.addf %66, %19 : vector<64x8xf32>
    %cst_26 = arith.constant dense<0.000000e+00> : vector<64x64xf32>
    %68 = tpu.matmul %67, %67, %cst_26 {dimension_numbers = #tpu.dot_dimension_numbers<[1], [1], [0], [0], [0, 0, 1, 0], [], []>, precision = #tpu.contract_precision<fp32>} : vector<64x8xf32>, vector<64x8xf32>, vector<64x64xf32> -> vector<64x64xf32>
    %69 = vector.broadcast %cst_16 : f32 to vector<64x64xf32>
    %70 = arith.mulf %68, %69 : vector<64x64xf32>
    %71 = arith.addf %70, %35 : vector<64x64xf32>
    %cst_27 = arith.constant dense<0xFF800000> : vector<64xf32>
    %72 = vector.multi_reduction <maximumf>, %71, %cst_27 [1] : vector<64x64xf32> to vector<64xf32>
    %73 = vector.shape_cast %72 : vector<64xf32> to vector<64x1xf32>
    %74 = vector.broadcast %73 : vector<64x1xf32> to vector<64x64xf32>
    %75 = arith.subf %71, %74 : vector<64x64xf32>
    %76 = math.exp %75 : vector<64x64xf32>
    %cst_28 = arith.constant dense<0.000000e+00> : vector<64xf32>
    %77 = vector.multi_reduction <add>, %76, %cst_28 [1] : vector<64x64xf32> to vector<64xf32>
    %78 = vector.shape_cast %77 : vector<64xf32> to vector<64x1xf32>
    %79 = vector.broadcast %78 : vector<64x1xf32> to vector<64x64xf32>
    %80 = arith.divf %76, %79 : vector<64x64xf32>
    %cst_29 = arith.constant dense<0.000000e+00> : vector<64x8xf32>
    %81 = tpu.matmul %80, %67, %cst_29 {dimension_numbers = #tpu.dot_dimension_numbers<[1], [0], [0], [1], [0, 0, 1, 1], [], []>, precision = #tpu.contract_precision<fp32>} : vector<64x64xf32>, vector<64x8xf32>, vector<64x8xf32> -> vector<64x8xf32>
    %82 = vector.extract_strided_slice %81 {offsets = [0, 0], sizes = [16, 8], strides = [1, 1]} : vector<64x8xf32> to vector<16x8xf32>
    %83 = vector.extract_strided_slice %21 {offsets = [0, 0], sizes = [8, 32], strides = [1, 1]} : vector<32x32xf32> to vector<8x32xf32>
    %cst_30 = arith.constant dense<0.000000e+00> : vector<16x32xf32>
    %84 = tpu.matmul %82, %83, %cst_30 {dimension_numbers = #tpu.dot_dimension_numbers<[1], [0], [0], [1], [0, 0, 1, 1], [], []>, precision = #tpu.contract_precision<fp32>} : vector<16x8xf32>, vector<8x32xf32>, vector<16x32xf32> -> vector<16x32xf32>
    %85 = vector.extract_strided_slice %81 {offsets = [16, 0], sizes = [16, 8], strides = [1, 1]} : vector<64x8xf32> to vector<16x8xf32>
    %86 = vector.extract_strided_slice %21 {offsets = [8, 0], sizes = [8, 32], strides = [1, 1]} : vector<32x32xf32> to vector<8x32xf32>
    %cst_31 = arith.constant dense<0.000000e+00> : vector<16x32xf32>
    %87 = tpu.matmul %85, %86, %cst_31 {dimension_numbers = #tpu.dot_dimension_numbers<[1], [0], [0], [1], [0, 0, 1, 1], [], []>, precision = #tpu.contract_precision<fp32>} : vector<16x8xf32>, vector<8x32xf32>, vector<16x32xf32> -> vector<16x32xf32>
    %88 = arith.addf %84, %87 : vector<16x32xf32>
    %89 = vector.extract_strided_slice %81 {offsets = [32, 0], sizes = [16, 8], strides = [1, 1]} : vector<64x8xf32> to vector<16x8xf32>
    %90 = vector.extract_strided_slice %21 {offsets = [16, 0], sizes = [8, 32], strides = [1, 1]} : vector<32x32xf32> to vector<8x32xf32>
    %cst_32 = arith.constant dense<0.000000e+00> : vector<16x32xf32>
    %91 = tpu.matmul %89, %90, %cst_32 {dimension_numbers = #tpu.dot_dimension_numbers<[1], [0], [0], [1], [0, 0, 1, 1], [], []>, precision = #tpu.contract_precision<fp32>} : vector<16x8xf32>, vector<8x32xf32>, vector<16x32xf32> -> vector<16x32xf32>
    %92 = arith.addf %88, %91 : vector<16x32xf32>
    %93 = vector.extract_strided_slice %81 {offsets = [48, 0], sizes = [16, 8], strides = [1, 1]} : vector<64x8xf32> to vector<16x8xf32>
    %94 = vector.extract_strided_slice %21 {offsets = [24, 0], sizes = [8, 32], strides = [1, 1]} : vector<32x32xf32> to vector<8x32xf32>
    %cst_33 = arith.constant dense<0.000000e+00> : vector<16x32xf32>
    %95 = tpu.matmul %93, %94, %cst_33 {dimension_numbers = #tpu.dot_dimension_numbers<[1], [0], [0], [1], [0, 0, 1, 1], [], []>, precision = #tpu.contract_precision<fp32>} : vector<16x8xf32>, vector<8x32xf32>, vector<16x32xf32> -> vector<16x32xf32>
    %96 = arith.addf %92, %95 : vector<16x32xf32>
    %97 = arith.addf %17, %96 : vector<16x32xf32>
    %98 = vector.broadcast %29 : vector<1x32xf32> to vector<16x32xf32>
    %99 = arith.addf %97, %98 : vector<16x32xf32>
    %cst_34 = arith.constant dense<0.000000e+00> : vector<16xf32>
    %100 = vector.multi_reduction <add>, %99, %cst_34 [1] : vector<16x32xf32> to vector<16xf32>
    %101 = vector.shape_cast %100 : vector<16xf32> to vector<16x1xf32>
    %cst_35 = arith.constant 3.200000e+01 : f32
    %102 = vector.broadcast %cst_35 : f32 to vector<16x1xf32>
    %103 = arith.divf %101, %102 : vector<16x1xf32>
    %104 = vector.broadcast %103 : vector<16x1xf32> to vector<16x32xf32>
    %105 = arith.subf %99, %104 : vector<16x32xf32>
    %106 = arith.mulf %105, %105 : vector<16x32xf32>
    %cst_36 = arith.constant dense<0.000000e+00> : vector<16xf32>
    %107 = vector.multi_reduction <add>, %106, %cst_36 [1] : vector<16x32xf32> to vector<16xf32>
    %108 = vector.shape_cast %107 : vector<16xf32> to vector<16x1xf32>
    %cst_37 = arith.constant 0.0322580636 : f32
    %109 = vector.broadcast %cst_37 : f32 to vector<16x1xf32>
    %110 = arith.mulf %108, %109 : vector<16x1xf32>
    %111 = vector.broadcast %103 : vector<16x1xf32> to vector<16x32xf32>
    %112 = arith.subf %99, %111 : vector<16x32xf32>
    %113 = vector.broadcast %25 : vector<1x32xf32> to vector<16x32xf32>
    %114 = arith.mulf %113, %112 : vector<16x32xf32>
    %115 = math.sqrt %110 : vector<16x1xf32>
    %cst_38 = arith.constant 9.99999997E-7 : f32
    %116 = vector.broadcast %cst_38 : f32 to vector<16x1xf32>
    %117 = arith.addf %115, %116 : vector<16x1xf32>
    %118 = vector.broadcast %117 : vector<16x1xf32> to vector<16x32xf32>
    %119 = arith.divf %114, %118 : vector<16x32xf32>
    %120 = vector.broadcast %26 : vector<1x32xf32> to vector<16x32xf32>
    %121 = arith.addf %119, %120 : vector<16x32xf32>
    %cst_39 = arith.constant dense<0.000000e+00> : vector<16x64xf32>
    %122 = tpu.matmul %121, %32, %cst_39 {dimension_numbers = #tpu.dot_dimension_numbers<[1], [0], [0], [1], [0, 0, 1, 1], [], []>, precision = #tpu.contract_precision<fp32>} : vector<16x32xf32>, vector<32x64xf32>, vector<16x64xf32> -> vector<16x64xf32>
    %123 = vector.broadcast %33 : vector<1x64xf32> to vector<16x64xf32>
    %124 = arith.addf %122, %123 : vector<16x64xf32>
    %cst_40 = arith.constant 0.000000e+00 : f32
    %125 = vector.broadcast %cst_40 : f32 to vector<16x64xf32>
    %126 = arith.maximumf %124, %125 : vector<16x64xf32>
    %cst_41 = arith.constant dense<0.000000e+00> : vector<16x32xf32>
    %127 = tpu.matmul %126, %22, %cst_41 {dimension_numbers = #tpu.dot_dimension_numbers<[1], [0], [0], [1], [0, 0, 1, 1], [], []>, precision = #tpu.contract_precision<fp32>} : vector<16x64xf32>, vector<64x32xf32>, vector<16x32xf32> -> vector<16x32xf32>
    %128 = arith.addf %99, %127 : vector<16x32xf32>
    %129 = vector.broadcast %30 : vector<1x32xf32> to vector<16x32xf32>
    %130 = arith.addf %128, %129 : vector<16x32xf32>
    %c1_i32 = arith.constant 1 : i32
    %cst_42 = arith.constant dense<0.000000e+00> : vector<16xf32>
    %131 = vector.multi_reduction <add>, %130, %cst_42 [1] : vector<16x32xf32> to vector<16xf32>
    %132 = vector.shape_cast %131 : vector<16xf32> to vector<16x1xf32>
    %cst_43 = arith.constant 3.200000e+01 : f32
    %133 = vector.broadcast %cst_43 : f32 to vector<16x1xf32>
    %134 = arith.divf %132, %133 : vector<16x1xf32>
    %135 = vector.broadcast %134 : vector<16x1xf32> to vector<16x32xf32>
    %136 = arith.subf %130, %135 : vector<16x32xf32>
    %137 = arith.mulf %136, %136 : vector<16x32xf32>
    %cst_44 = arith.constant dense<0.000000e+00> : vector<16xf32>
    %138 = vector.multi_reduction <add>, %137, %cst_44 [1] : vector<16x32xf32> to vector<16xf32>
    %139 = vector.shape_cast %138 : vector<16xf32> to vector<16x1xf32>
    %cst_45 = arith.constant 0.0322580636 : f32
    %140 = vector.broadcast %cst_45 : f32 to vector<16x1xf32>
    %141 = arith.mulf %139, %140 : vector<16x1xf32>
    %142 = vector.broadcast %134 : vector<16x1xf32> to vector<16x32xf32>
    %143 = arith.subf %130, %142 : vector<16x32xf32>
    %144 = vector.broadcast %23 : vector<1x32xf32> to vector<16x32xf32>
    %145 = arith.mulf %144, %143 : vector<16x32xf32>
    %146 = math.sqrt %141 : vector<16x1xf32>
    %cst_46 = arith.constant 9.99999997E-7 : f32
    %147 = vector.broadcast %cst_46 : f32 to vector<16x1xf32>
    %148 = arith.addf %146, %147 : vector<16x1xf32>
    %149 = vector.broadcast %148 : vector<16x1xf32> to vector<16x32xf32>
    %150 = arith.divf %145, %149 : vector<16x32xf32>
    %151 = vector.broadcast %24 : vector<1x32xf32> to vector<16x32xf32>
    %152 = arith.addf %150, %151 : vector<16x32xf32>
    %153 = vector.extract_strided_slice %18 {offsets = [0, 0], sizes = [32, 8], strides = [1, 1]} : vector<192x8xf32> to vector<32x8xf32>
    %cst_47 = arith.constant dense<0.000000e+00> : vector<16x8xf32>
    %154 = tpu.matmul %152, %153, %cst_47 {dimension_numbers = #tpu.dot_dimension_numbers<[1], [0], [0], [1], [0, 0, 1, 1], [], []>, precision = #tpu.contract_precision<fp32>} : vector<16x32xf32>, vector<32x8xf32>, vector<16x8xf32> -> vector<16x8xf32>
    %155 = vector.extract_strided_slice %18 {offsets = [32, 0], sizes = [32, 8], strides = [1, 1]} : vector<192x8xf32> to vector<32x8xf32>
    %cst_48 = arith.constant dense<0.000000e+00> : vector<16x8xf32>
    %156 = tpu.matmul %152, %155, %cst_48 {dimension_numbers = #tpu.dot_dimension_numbers<[1], [0], [0], [1], [0, 0, 1, 1], [], []>, precision = #tpu.contract_precision<fp32>} : vector<16x32xf32>, vector<32x8xf32>, vector<16x8xf32> -> vector<16x8xf32>
    %157 = vector.extract_strided_slice %18 {offsets = [64, 0], sizes = [32, 8], strides = [1, 1]} : vector<192x8xf32> to vector<32x8xf32>
    %cst_49 = arith.constant dense<0.000000e+00> : vector<16x8xf32>
    %158 = tpu.matmul %152, %157, %cst_49 {dimension_numbers = #tpu.dot_dimension_numbers<[1], [0], [0], [1], [0, 0, 1, 1], [], []>, precision = #tpu.contract_precision<fp32>} : vector<16x32xf32>, vector<32x8xf32>, vector<16x8xf32> -> vector<16x8xf32>
    %159 = vector.extract_strided_slice %18 {offsets = [96, 0], sizes = [32, 8], strides = [1, 1]} : vector<192x8xf32> to vector<32x8xf32>
    %cst_50 = arith.constant dense<0.000000e+00> : vector<16x8xf32>
    %160 = tpu.matmul %152, %159, %cst_50 {dimension_numbers = #tpu.dot_dimension_numbers<[1], [0], [0], [1], [0, 0, 1, 1], [], []>, precision = #tpu.contract_precision<fp32>} : vector<16x32xf32>, vector<32x8xf32>, vector<16x8xf32> -> vector<16x8xf32>
    %161 = tpu.concatenate %154, %156, %158, %160 in 0 : vector<16x8xf32>, vector<16x8xf32>, vector<16x8xf32>, vector<16x8xf32> -> vector<64x8xf32>
    %162 = arith.addf %161, %19 : vector<64x8xf32>
    %cst_51 = arith.constant dense<0.000000e+00> : vector<64x64xf32>
    %163 = tpu.matmul %162, %162, %cst_51 {dimension_numbers = #tpu.dot_dimension_numbers<[1], [1], [0], [0], [0, 0, 1, 0], [], []>, precision = #tpu.contract_precision<fp32>} : vector<64x8xf32>, vector<64x8xf32>, vector<64x64xf32> -> vector<64x64xf32>
    %164 = vector.broadcast %cst_16 : f32 to vector<64x64xf32>
    %165 = arith.mulf %163, %164 : vector<64x64xf32>
    %166 = arith.addf %165, %35 : vector<64x64xf32>
    %cst_52 = arith.constant dense<0xFF800000> : vector<64xf32>
    %167 = vector.multi_reduction <maximumf>, %166, %cst_52 [1] : vector<64x64xf32> to vector<64xf32>
    %168 = vector.shape_cast %167 : vector<64xf32> to vector<64x1xf32>
    %169 = vector.broadcast %168 : vector<64x1xf32> to vector<64x64xf32>
    %170 = arith.subf %166, %169 : vector<64x64xf32>
    %171 = math.exp %170 : vector<64x64xf32>
    %cst_53 = arith.constant dense<0.000000e+00> : vector<64xf32>
    %172 = vector.multi_reduction <add>, %171, %cst_53 [1] : vector<64x64xf32> to vector<64xf32>
    %173 = vector.shape_cast %172 : vector<64xf32> to vector<64x1xf32>
    %174 = vector.broadcast %173 : vector<64x1xf32> to vector<64x64xf32>
    %175 = arith.divf %171, %174 : vector<64x64xf32>
    %cst_54 = arith.constant dense<0.000000e+00> : vector<64x8xf32>
    %176 = tpu.matmul %175, %162, %cst_54 {dimension_numbers = #tpu.dot_dimension_numbers<[1], [0], [0], [1], [0, 0, 1, 1], [], []>, precision = #tpu.contract_precision<fp32>} : vector<64x64xf32>, vector<64x8xf32>, vector<64x8xf32> -> vector<64x8xf32>
    %177 = vector.extract_strided_slice %176 {offsets = [0, 0], sizes = [16, 8], strides = [1, 1]} : vector<64x8xf32> to vector<16x8xf32>
    %178 = vector.extract_strided_slice %21 {offsets = [0, 0], sizes = [8, 32], strides = [1, 1]} : vector<32x32xf32> to vector<8x32xf32>
    %cst_55 = arith.constant dense<0.000000e+00> : vector<16x32xf32>
    %179 = tpu.matmul %177, %178, %cst_55 {dimension_numbers = #tpu.dot_dimension_numbers<[1], [0], [0], [1], [0, 0, 1, 1], [], []>, precision = #tpu.contract_precision<fp32>} : vector<16x8xf32>, vector<8x32xf32>, vector<16x32xf32> -> vector<16x32xf32>
    %180 = vector.extract_strided_slice %176 {offsets = [16, 0], sizes = [16, 8], strides = [1, 1]} : vector<64x8xf32> to vector<16x8xf32>
    %181 = vector.extract_strided_slice %21 {offsets = [8, 0], sizes = [8, 32], strides = [1, 1]} : vector<32x32xf32> to vector<8x32xf32>
    %cst_56 = arith.constant dense<0.000000e+00> : vector<16x32xf32>
    %182 = tpu.matmul %180, %181, %cst_56 {dimension_numbers = #tpu.dot_dimension_numbers<[1], [0], [0], [1], [0, 0, 1, 1], [], []>, precision = #tpu.contract_precision<fp32>} : vector<16x8xf32>, vector<8x32xf32>, vector<16x32xf32> -> vector<16x32xf32>
    %183 = arith.addf %179, %182 : vector<16x32xf32>
    %184 = vector.extract_strided_slice %176 {offsets = [32, 0], sizes = [16, 8], strides = [1, 1]} : vector<64x8xf32> to vector<16x8xf32>
    %185 = vector.extract_strided_slice %21 {offsets = [16, 0], sizes = [8, 32], strides = [1, 1]} : vector<32x32xf32> to vector<8x32xf32>
    %cst_57 = arith.constant dense<0.000000e+00> : vector<16x32xf32>
    %186 = tpu.matmul %184, %185, %cst_57 {dimension_numbers = #tpu.dot_dimension_numbers<[1], [0], [0], [1], [0, 0, 1, 1], [], []>, precision = #tpu.contract_precision<fp32>} : vector<16x8xf32>, vector<8x32xf32>, vector<16x32xf32> -> vector<16x32xf32>
    %187 = arith.addf %183, %186 : vector<16x32xf32>
    %188 = vector.extract_strided_slice %176 {offsets = [48, 0], sizes = [16, 8], strides = [1, 1]} : vector<64x8xf32> to vector<16x8xf32>
    %189 = vector.extract_strided_slice %21 {offsets = [24, 0], sizes = [8, 32], strides = [1, 1]} : vector<32x32xf32> to vector<8x32xf32>
    %cst_58 = arith.constant dense<0.000000e+00> : vector<16x32xf32>
    %190 = tpu.matmul %188, %189, %cst_58 {dimension_numbers = #tpu.dot_dimension_numbers<[1], [0], [0], [1], [0, 0, 1, 1], [], []>, precision = #tpu.contract_precision<fp32>} : vector<16x8xf32>, vector<8x32xf32>, vector<16x32xf32> -> vector<16x32xf32>
    %191 = arith.addf %187, %190 : vector<16x32xf32>
    %192 = arith.addf %130, %191 : vector<16x32xf32>
    %193 = vector.broadcast %29 : vector<1x32xf32> to vector<16x32xf32>
    %194 = arith.addf %192, %193 : vector<16x32xf32>
    %cst_59 = arith.constant dense<0.000000e+00> : vector<16xf32>
    %195 = vector.multi_reduction <add>, %194, %cst_59 [1] : vector<16x32xf32> to vector<16xf32>
    %196 = vector.shape_cast %195 : vector<16xf32> to vector<16x1xf32>
    %cst_60 = arith.constant 3.200000e+01 : f32
    %197 = vector.broadcast %cst_60 : f32 to vector<16x1xf32>
    %198 = arith.divf %196, %197 : vector<16x1xf32>
    %199 = vector.broadcast %198 : vector<16x1xf32> to vector<16x32xf32>
    %200 = arith.subf %194, %199 : vector<16x32xf32>
    %201 = arith.mulf %200, %200 : vector<16x32xf32>
    %cst_61 = arith.constant dense<0.000000e+00> : vector<16xf32>
    %202 = vector.multi_reduction <add>, %201, %cst_61 [1] : vector<16x32xf32> to vector<16xf32>
    %203 = vector.shape_cast %202 : vector<16xf32> to vector<16x1xf32>
    %cst_62 = arith.constant 0.0322580636 : f32
    %204 = vector.broadcast %cst_62 : f32 to vector<16x1xf32>
    %205 = arith.mulf %203, %204 : vector<16x1xf32>
    %206 = vector.broadcast %198 : vector<16x1xf32> to vector<16x32xf32>
    %207 = arith.subf %194, %206 : vector<16x32xf32>
    %208 = vector.broadcast %25 : vector<1x32xf32> to vector<16x32xf32>
    %209 = arith.mulf %208, %207 : vector<16x32xf32>
    %210 = math.sqrt %205 : vector<16x1xf32>
    %cst_63 = arith.constant 9.99999997E-7 : f32
    %211 = vector.broadcast %cst_63 : f32 to vector<16x1xf32>
    %212 = arith.addf %210, %211 : vector<16x1xf32>
    %213 = vector.broadcast %212 : vector<16x1xf32> to vector<16x32xf32>
    %214 = arith.divf %209, %213 : vector<16x32xf32>
    %215 = vector.broadcast %26 : vector<1x32xf32> to vector<16x32xf32>
    %216 = arith.addf %214, %215 : vector<16x32xf32>
    %cst_64 = arith.constant dense<0.000000e+00> : vector<16x64xf32>
    %217 = tpu.matmul %216, %32, %cst_64 {dimension_numbers = #tpu.dot_dimension_numbers<[1], [0], [0], [1], [0, 0, 1, 1], [], []>, precision = #tpu.contract_precision<fp32>} : vector<16x32xf32>, vector<32x64xf32>, vector<16x64xf32> -> vector<16x64xf32>
    %218 = vector.broadcast %33 : vector<1x64xf32> to vector<16x64xf32>
    %219 = arith.addf %217, %218 : vector<16x64xf32>
    %cst_65 = arith.constant 0.000000e+00 : f32
    %220 = vector.broadcast %cst_65 : f32 to vector<16x64xf32>
    %221 = arith.maximumf %219, %220 : vector<16x64xf32>
    %cst_66 = arith.constant dense<0.000000e+00> : vector<16x32xf32>
    %222 = tpu.matmul %221, %22, %cst_66 {dimension_numbers = #tpu.dot_dimension_numbers<[1], [0], [0], [1], [0, 0, 1, 1], [], []>, precision = #tpu.contract_precision<fp32>} : vector<16x64xf32>, vector<64x32xf32>, vector<16x32xf32> -> vector<16x32xf32>
    %223 = arith.addf %194, %222 : vector<16x32xf32>
    %224 = vector.broadcast %30 : vector<1x32xf32> to vector<16x32xf32>
    %225 = arith.addf %223, %224 : vector<16x32xf32>
    %cst_67 = arith.constant dense<0.000000e+00> : vector<16xf32>
    %226 = vector.multi_reduction <add>, %225, %cst_67 [1] : vector<16x32xf32> to vector<16xf32>
    %227 = vector.shape_cast %226 : vector<16xf32> to vector<16x1xf32>
    %cst_68 = arith.constant 3.200000e+01 : f32
    %228 = vector.broadcast %cst_68 : f32 to vector<16x1xf32>
    %229 = arith.divf %227, %228 : vector<16x1xf32>
    %230 = vector.broadcast %229 : vector<16x1xf32> to vector<16x32xf32>
    %231 = arith.subf %225, %230 : vector<16x32xf32>
    %232 = arith.mulf %231, %231 : vector<16x32xf32>
    %cst_69 = arith.constant dense<0.000000e+00> : vector<16xf32>
    %233 = vector.multi_reduction <add>, %232, %cst_69 [1] : vector<16x32xf32> to vector<16xf32>
    %234 = vector.shape_cast %233 : vector<16xf32> to vector<16x1xf32>
    %cst_70 = arith.constant 0.0322580636 : f32
    %235 = vector.broadcast %cst_70 : f32 to vector<16x1xf32>
    %236 = arith.mulf %234, %235 : vector<16x1xf32>
    %237 = vector.broadcast %229 : vector<16x1xf32> to vector<16x32xf32>
    %238 = arith.subf %225, %237 : vector<16x32xf32>
    %239 = vector.broadcast %27 : vector<1x32xf32> to vector<16x32xf32>
    %240 = arith.mulf %239, %238 : vector<16x32xf32>
    %241 = math.sqrt %236 : vector<16x1xf32>
    %cst_71 = arith.constant 9.99999997E-7 : f32
    %242 = vector.broadcast %cst_71 : f32 to vector<16x1xf32>
    %243 = arith.addf %241, %242 : vector<16x1xf32>
    %244 = vector.broadcast %243 : vector<16x1xf32> to vector<16x32xf32>
    %245 = arith.divf %240, %244 : vector<16x32xf32>
    %246 = vector.broadcast %28 : vector<1x32xf32> to vector<16x32xf32>
    %247 = arith.addf %245, %246 : vector<16x32xf32>
    %c0_72 = arith.constant 0 : index
    %c0_73 = arith.constant 0 : index
    %c0_74 = arith.constant 0 : index
    %248 = vector.load %arg5[%c0_72, %c0_73, %c0_74] : memref<1x16x1xf32, #tpu.memory_space<vmem>>, vector<1x16x1xf32>
    %249 = vector.shape_cast %248 : vector<1x16x1xf32> to vector<16x1xf32>
    %250 = vector.extract_strided_slice %247 {offsets = [0, 0], sizes = [8, 32], strides = [1, 1]} : vector<16x32xf32> to vector<8x32xf32>
    %251 = vector.extract_strided_slice %249 {offsets = [0, 0], sizes = [8, 1], strides = [1, 1]} : vector<16x1xf32> to vector<8x1xf32>
    %cst_75 = arith.constant dense<0.000000e+00> : vector<1xf32>
    %252 = vector.multi_reduction <add>, %251, %cst_75 [0] : vector<8x1xf32> to vector<1xf32>
    %253 = vector.shape_cast %252 : vector<1xf32> to vector<1x1xf32>
    %254 = vector.broadcast %251 : vector<8x1xf32> to vector<8x32xf32>
    %255 = arith.mulf %250, %254 : vector<8x32xf32>
    %cst_76 = arith.constant dense<0.000000e+00> : vector<32xf32>
    %256 = vector.multi_reduction <add>, %255, %cst_76 [0] : vector<8x32xf32> to vector<32xf32>
    %257 = vector.shape_cast %256 : vector<32xf32> to vector<1x32xf32>
    %258 = vector.broadcast %253 : vector<1x1xf32> to vector<1x32xf32>
    %259 = arith.divf %257, %258 : vector<1x32xf32>
    %cst_77 = arith.constant 1.000000e+00 : f32
    %260 = vector.broadcast %cst_77 : f32 to vector<8x1xf32>
    %261 = arith.subf %260, %251 : vector<8x1xf32>
    %cst_78 = arith.constant -1.000000e+09 : f32
    %262 = vector.broadcast %cst_78 : f32 to vector<8x1xf32>
    %263 = arith.mulf %261, %262 : vector<8x1xf32>
    %264 = vector.broadcast %263 : vector<8x1xf32> to vector<8x32xf32>
    %265 = arith.addf %250, %264 : vector<8x32xf32>
    %cst_79 = arith.constant dense<0xFF800000> : vector<32xf32>
    %266 = vector.multi_reduction <maximumf>, %265, %cst_79 [0] : vector<8x32xf32> to vector<32xf32>
    %267 = vector.shape_cast %266 : vector<32xf32> to vector<1x32xf32>
    %268 = vector.extract_strided_slice %247 {offsets = [8, 0], sizes = [8, 32], strides = [1, 1]} : vector<16x32xf32> to vector<8x32xf32>
    %269 = vector.extract_strided_slice %249 {offsets = [8, 0], sizes = [8, 1], strides = [1, 1]} : vector<16x1xf32> to vector<8x1xf32>
    %cst_80 = arith.constant dense<0.000000e+00> : vector<1xf32>
    %270 = vector.multi_reduction <add>, %269, %cst_80 [0] : vector<8x1xf32> to vector<1xf32>
    %271 = vector.shape_cast %270 : vector<1xf32> to vector<1x1xf32>
    %272 = vector.broadcast %269 : vector<8x1xf32> to vector<8x32xf32>
    %273 = arith.mulf %268, %272 : vector<8x32xf32>
    %cst_81 = arith.constant dense<0.000000e+00> : vector<32xf32>
    %274 = vector.multi_reduction <add>, %273, %cst_81 [0] : vector<8x32xf32> to vector<32xf32>
    %275 = vector.shape_cast %274 : vector<32xf32> to vector<1x32xf32>
    %276 = vector.broadcast %271 : vector<1x1xf32> to vector<1x32xf32>
    %277 = arith.divf %275, %276 : vector<1x32xf32>
    %cst_82 = arith.constant 1.000000e+00 : f32
    %278 = vector.broadcast %cst_82 : f32 to vector<8x1xf32>
    %279 = arith.subf %278, %269 : vector<8x1xf32>
    %cst_83 = arith.constant -1.000000e+09 : f32
    %280 = vector.broadcast %cst_83 : f32 to vector<8x1xf32>
    %281 = arith.mulf %279, %280 : vector<8x1xf32>
    %282 = vector.broadcast %281 : vector<8x1xf32> to vector<8x32xf32>
    %283 = arith.addf %268, %282 : vector<8x32xf32>
    %cst_84 = arith.constant dense<0xFF800000> : vector<32xf32>
    %284 = vector.multi_reduction <maximumf>, %283, %cst_84 [0] : vector<8x32xf32> to vector<32xf32>
    %285 = vector.shape_cast %284 : vector<32xf32> to vector<1x32xf32>
    %286 = tpu.concatenate %259, %277 in 0 : vector<1x32xf32>, vector<1x32xf32> -> vector<2x32xf32>
    %287 = tpu.concatenate %267, %285 in 0 : vector<1x32xf32>, vector<1x32xf32> -> vector<2x32xf32>
    %c0_85 = arith.constant 0 : index
    %c0_86 = arith.constant 0 : index
    %288 = vector.load %arg9[%c0_85, %c0_86] : memref<65x3xf32, #tpu.memory_space<vmem>>, vector<65x3xf32>
    %289 = vector.extract_strided_slice %288 {offsets = [0, 0], sizes = [32, 3], strides = [1, 1]} : vector<65x3xf32> to vector<32x3xf32>
    %cst_87 = arith.constant dense<0.000000e+00> : vector<2x3xf32>
    %290 = tpu.matmul %286, %289, %cst_87 {dimension_numbers = #tpu.dot_dimension_numbers<[1], [0], [0], [1], [0, 0, 1, 1], [], []>, precision = #tpu.contract_precision<fp32>} : vector<2x32xf32>, vector<32x3xf32>, vector<2x3xf32> -> vector<2x3xf32>
    %291 = vector.extract_strided_slice %288 {offsets = [32, 0], sizes = [32, 3], strides = [1, 1]} : vector<65x3xf32> to vector<32x3xf32>
    %cst_88 = arith.constant dense<0.000000e+00> : vector<2x3xf32>
    %292 = tpu.matmul %287, %291, %cst_88 {dimension_numbers = #tpu.dot_dimension_numbers<[1], [0], [0], [1], [0, 0, 1, 1], [], []>, precision = #tpu.contract_precision<fp32>} : vector<2x32xf32>, vector<32x3xf32>, vector<2x3xf32> -> vector<2x3xf32>
    %293 = arith.addf %290, %292 : vector<2x3xf32>
    %294 = vector.extract_strided_slice %288 {offsets = [64, 0], sizes = [1, 3], strides = [1, 1]} : vector<65x3xf32> to vector<1x3xf32>
    %295 = vector.broadcast %294 : vector<1x3xf32> to vector<2x3xf32>
    %296 = arith.addf %293, %295 : vector<2x3xf32>
    %297 = vector.extract_strided_slice %296 {offsets = [0, 0], sizes = [2, 1], strides = [1, 1]} : vector<2x3xf32> to vector<2x1xf32>
    %298 = vector.extract_strided_slice %296 {offsets = [0, 1], sizes = [2, 1], strides = [1, 1]} : vector<2x3xf32> to vector<2x1xf32>
    %299 = vector.extract_strided_slice %296 {offsets = [0, 2], sizes = [2, 1], strides = [1, 1]} : vector<2x3xf32> to vector<2x1xf32>
    %cst_89 = arith.constant 0.999994993 : f32
    %300 = vector.broadcast %cst_89 : f32 to vector<2x1xf32>
    %301 = arith.mulf %297, %300 : vector<2x1xf32>
    %302 = arith.maximumf %301, %297 : vector<2x1xf32>
    %cst_90 = arith.constant 0.999994993 : f32
    %303 = vector.broadcast %cst_90 : f32 to vector<2x1xf32>
    %304 = arith.mulf %302, %303 : vector<2x1xf32>
    %305 = arith.maximumf %304, %298 : vector<2x1xf32>
    %cst_91 = arith.constant 0.999994993 : f32
    %306 = vector.broadcast %cst_91 : f32 to vector<2x1xf32>
    %307 = arith.mulf %305, %306 : vector<2x1xf32>
    %308 = arith.maximumf %307, %299 : vector<2x1xf32>
    %cst_92 = arith.constant 0.999994993 : f32
    %309 = vector.broadcast %cst_92 : f32 to vector<2x1xf32>
    %310 = arith.mulf %308, %309 : vector<2x1xf32>
    %c0_93 = arith.constant 0 : index
    %c0_94 = arith.constant 0 : index
    %c0_95 = arith.constant 0 : index
    %311 = vector.load %arg10[%c0_93, %c0_94, %c0_95] : memref<1x2x1xf32, #tpu.memory_space<vmem>>, vector<1x2x1xf32>
    %312 = vector.shape_cast %311 : vector<1x2x1xf32> to vector<2x1xf32>
    %313 = vector.shape_cast %310 : vector<2x1xf32> to vector<1x2x1xf32>
    tpu.vector_store %arg10[%c0_93, %c0_94, %c0_95], %313 {strides = array<i32>} : memref<1x2x1xf32, #tpu.memory_space<vmem>>, vector<1x2x1xf32>,
    return
  }
  func.func @transform_0(%arg0: i32) -> (i32, i32, i32) {
    %c0_i32 = arith.constant 0 : i32
    %c0_i32_0 = arith.constant 0 : i32
    %c0_i32_1 = arith.constant 0 : i32
    return %arg0, %c0_i32, %c0_i32_0 : i32, i32, i32
  }
  func.func @transform_1(%arg0: i32) -> (i32, i32) {
    %c0_i32 = arith.constant 0 : i32
    %c0_i32_0 = arith.constant 0 : i32
    %c0_i32_1 = arith.constant 0 : i32
    return %c0_i32, %c0_i32_0 : i32, i32
  }
  func.func @transform_2(%arg0: i32) -> (i32, i32, i32) {
    %c0_i32 = arith.constant 0 : i32
    %c0_i32_0 = arith.constant 0 : i32
    %c0_i32_1 = arith.constant 0 : i32
    return %arg0, %c0_i32, %c0_i32_0 : i32, i32, i32
  }
  func.func @transform_3(%arg0: i32) -> (i32, i32, i32) {
    %c0_i32 = arith.constant 0 : i32
    %c0_i32_0 = arith.constant 0 : i32
    %c0_i32_1 = arith.constant 0 : i32
    return %arg0, %c0_i32, %c0_i32_0 : i32, i32, i32
  }
  func.func @transform_4(%arg0: i32) -> (i32, i32, i32) {
    %c0_i32 = arith.constant 0 : i32
    %c0_i32_0 = arith.constant 0 : i32
    %c0_i32_1 = arith.constant 0 : i32
    return %arg0, %c0_i32, %c0_i32_0 : i32, i32, i32
  }
  func.func @transform_5(%arg0: i32) -> (i32, i32) {
    %c0_i32 = arith.constant 0 : i32
    %c0_i32_0 = arith.constant 0 : i32
    %c0_i32_1 = arith.constant 0 : i32
    return %c0_i32, %c0_i32_0 : i32, i32
  }
  func.func @transform_6(%arg0: i32) -> (i32, i32) {
    %c0_i32 = arith.constant 0 : i32
    %c0_i32_0 = arith.constant 0 : i32
    %c0_i32_1 = arith.constant 0 : i32
    return %c0_i32, %c0_i32_0 : i32, i32
  }
  func.func @transform_7(%arg0: i32) -> (i32, i32) {
    %c0_i32 = arith.constant 0 : i32
    %c0_i32_0 = arith.constant 0 : i32
    %c0_i32_1 = arith.constant 0 : i32
    return %c0_i32, %c0_i32_0 : i32, i32
  }
  func.func @transform_8(%arg0: i32) -> (i32, i32) {
    %c0_i32 = arith.constant 0 : i32
    %c0_i32_0 = arith.constant 0 : i32
    %c0_i32_1 = arith.constant 0 : i32
    return %c0_i32, %c0_i32_0 : i32, i32
  }
  func.func @transform_9(%arg0: i32) -> (i32, i32, i32) {
    %c0_i32 = arith.constant 0 : i32
    %c0_i32_0 = arith.constant 0 : i32
    %c0_i32_1 = arith.constant 0 : i32
    return %arg0, %c0_i32, %c0_i32_0 : i32, i32, i32
  }
}

</mosaic_0001>

<llo_original>
// kernel: tpu_custom_call.1
$region0: #{tpu_custom_call.1}
  #allocation0 [shape = 'u32[]', space=smem, size = 0x4, offset = 0x4, fixed_abs, tag = 'smem constant byte address 0x4 - core index']
  #allocation1 [shape = 'u32[72,128]{1,0:T(1,128)}', space=vmem, size = 0x9000, scoped, tag = 'internal scratch']
  %s0 = inlined_call_operand.vmem [shape: f32[1,16,32], index: 0, kind: input, shape index: {}]
  %s1 = inlined_call_operand.vmem [shape: f32[8,32], index: 1, kind: input, shape index: {}]
  %s2 = inlined_call_operand.vmem [shape: f32[1,2,32], index: 2, kind: input, shape index: {}]
  %s3 = inlined_call_operand.vmem [shape: f32[1,64,64], index: 3, kind: input, shape index: {}]
  %s4 = inlined_call_operand.vmem [shape: f32[1,16,1], index: 4, kind: input, shape index: {}]
  %s5 = inlined_call_operand.vmem [shape: f32[192,8], index: 5, kind: input, shape index: {}]
  %s6 = inlined_call_operand.vmem [shape: f32[104,32], index: 6, kind: input, shape index: {}]
  %s7 = inlined_call_operand.vmem [shape: f32[33,64], index: 7, kind: input, shape index: {}]
  %s8 = inlined_call_operand.vmem [shape: f32[65,3], index: 8, kind: input, shape index: {}]
  %s9 = inlined_call_operand.vmem [shape: f32[1,2,1], index: 9, kind: output, shape index: {}]
  %s10 = sld [smem:[#allocation0]]
  $region46: #{tpu_custom_call.1} parent=0
    _
  %s12 = ssub.s32 1, %s10
  %s13 = scalar_select 0, %s12, %s10
  // Predicated region
  $region2: #{tpu_custom_call.1} parent=0 // pred_check
    _
  $region3: #{tpu_custom_call.1} parent=0 // pred_check_branch
    %15 = sbr.rel (0) target = $region5
  $region4: #{tpu_custom_call.1} parent=0 // pred_region
    _
  $region5: #{tpu_custom_call.1} parent=0 // pred_fallthru
    _
  // Predicated region
  $region6: #{tpu_custom_call.1} parent=0 // pred_check
    _
  $region7: #{tpu_custom_call.1} parent=0 // pred_check_branch
    %17 = sbr.rel (0) target = $region9
  $region8: #{tpu_custom_call.1} parent=0 // pred_region
    _
  $region9: #{tpu_custom_call.1} parent=0 // pred_fallthru
    _
  // Predicated region
  $region10: #{tpu_custom_call.1} parent=0 // pred_check
    _
  $region11: #{tpu_custom_call.1} parent=0 // pred_check_branch
    %19 = sbr.rel (0) target = $region13
  $region12: #{tpu_custom_call.1} parent=0 // pred_region
    _
  $region13: #{tpu_custom_call.1} parent=0 // pred_fallthru
    _
  // Predicated region
  $region14: #{tpu_custom_call.1} parent=0 // pred_check
    _
  $region15: #{tpu_custom_call.1} parent=0 // pred_check_branch
    %21 = sbr.rel (0) target = $region17
  $region16: #{tpu_custom_call.1} parent=0 // pred_region
    _
  $region17: #{tpu_custom_call.1} parent=0 // pred_fallthru
    _
  // Predicated region
  $region18: #{tpu_custom_call.1} parent=0 // pred_check
    _
  $region19: #{tpu_custom_call.1} parent=0 // pred_check_branch
    %23 = sbr.rel (0) target = $region21
  $region20: #{tpu_custom_call.1} parent=0 // pred_region
    _
  $region21: #{tpu_custom_call.1} parent=0 // pred_fallthru
    _
  // Predicated region
  $region22: #{tpu_custom_call.1} parent=0 // pred_check
    _
  $region23: #{tpu_custom_call.1} parent=0 // pred_check_branch
    %25 = sbr.rel (0) target = $region25
  $region24: #{tpu_custom_call.1} parent=0 // pred_region
    _
  $region25: #{tpu_custom_call.1} parent=0 // pred_fallthru
    _
  // Predicated region
  $region26: #{tpu_custom_call.1} parent=0 // pred_check
    _
  $region27: #{tpu_custom_call.1} parent=0 // pred_check_branch
    %27 = sbr.rel (0) target = $region29
  $region28: #{tpu_custom_call.1} parent=0 // pred_region
    _
  $region29: #{tpu_custom_call.1} parent=0 // pred_fallthru
    _
  // Predicated region
  $region30: #{tpu_custom_call.1} parent=0 // pred_check
    _
  $region31: #{tpu_custom_call.1} parent=0 // pred_check_branch
    %29 = sbr.rel (0) target = $region33
  $region32: #{tpu_custom_call.1} parent=0 // pred_region
    _
  $region33: #{tpu_custom_call.1} parent=0 // pred_fallthru
    _
  // Predicated region
  $region34: #{tpu_custom_call.1} parent=0 // pred_check
    _
  $region35: #{tpu_custom_call.1} parent=0 // pred_check_branch
    %31 = sbr.rel (0) target = $region37
  $region36: #{tpu_custom_call.1} parent=0 // pred_region
    _
  $region37: #{tpu_custom_call.1} parent=0 // pred_fallthru
    _
  %v32 = vld [vmem:[%s1] sm:$0xff]
  %v33 = vld [vmem:[%s2] sm:$0x3]
  %v34 = vld [vmem:[%s0] sm:$0xff]
  %v35 = vld [vmem:[%s0 + $0x8] sm:$0xff]
  %v36 = vmul.f32 %v34, 5.656854
  %v37 = vmul.f32 %v35, 5.656854
  %v38 = vadd.f32 %v36, %v32
  %v39 = vperm.slane %v33, 0
  %v40 = vadd.f32 %v38, %v39
  %v41 = vadd.f32 %v37, %v32
  %v42 = vperm.slane %v33, 1
  %v43 = vadd.f32 %v41, %v42
  %v44 = vld [vmem:[%s5] sm:$0xff]
  %v45 = vld [vmem:[%s5 + $0x8] sm:$0xff]
  %v46 = vld [vmem:[%s5 + $0x10] sm:$0xff]
  %v47 = vld [vmem:[%s5 + $0x18] sm:$0xff]
  %v48 = vld [vmem:[%s5 + $0x20] sm:$0xff]
  %v49 = vld [vmem:[%s5 + $0x28] sm:$0xff]
  %v50 = vld [vmem:[%s5 + $0x30] sm:$0xff]
  %v51 = vld [vmem:[%s5 + $0x38] sm:$0xff]
  %v52 = vld [vmem:[%s5 + $0x40] sm:$0xff]
  %v53 = vld [vmem:[%s5 + $0x48] sm:$0xff]
  %v54 = vld [vmem:[%s5 + $0x50] sm:$0xff]
  %v55 = vld [vmem:[%s5 + $0x58] sm:$0xff]
  %v56 = vld [vmem:[%s5 + $0x60] sm:$0xff]
  %v57 = vld [vmem:[%s5 + $0x68] sm:$0xff]
  %v58 = vld [vmem:[%s5 + $0x70] sm:$0xff]
  %v59 = vld [vmem:[%s5 + $0x78] sm:$0xff]
  %v60 = vld [vmem:[%s5 + $0x80] sm:$0xff]
  %v61 = vld [vmem:[%s5 + $0x88] sm:$0xff]
  %v62 = vld [vmem:[%s5 + $0x90] sm:$0xff]
  %v63 = vld [vmem:[%s5 + $0x98] sm:$0xff]
  %v64 = vld [vmem:[%s5 + $0xa0] sm:$0xff]
  %v65 = vld [vmem:[%s5 + $0xa8] sm:$0xff]
  %v66 = vld [vmem:[%s5 + $0xb0] sm:$0xff]
  %v67 = vld [vmem:[%s5 + $0xb8] sm:$0xff]
  %v68 = vld [vmem:[%s6] sm:$0xff]
  %v69 = vld [vmem:[%s6 + $0x8] sm:$0xff]
  %v70 = vld [vmem:[%s6 + $0x10] sm:$0xff]
  %v71 = vld [vmem:[%s6 + $0x18] sm:$0xff]
  %v72 = vld [vmem:[%s6 + $0x20] sm:$0xff]
  %v73 = vld [vmem:[%s6 + $0x28] sm:$0xff]
  %v74 = vld [vmem:[%s6 + $0x30] sm:$0xff]
  %v75 = vld [vmem:[%s6 + $0x38] sm:$0xff]
  %v76 = vld [vmem:[%s6 + $0x40] sm:$0xff]
  %v77 = vld [vmem:[%s6 + $0x48] sm:$0xff]
  %v78 = vld [vmem:[%s6 + $0x50] sm:$0xff]
  %v79 = vld [vmem:[%s6 + $0x58] sm:$0xff]
  %v80 = vld [vmem:[%s6 + $0x60] sm:$0xff]
  %v81 = vld [vmem:[%s7] sm:$0xff]
  %v82 = vld [vmem:[%s7 + $0x8] sm:$0xff]
  %v83 = vld [vmem:[%s7 + $0x10] sm:$0xff]
  %v84 = vld [vmem:[%s7 + $0x18] sm:$0xff]
  %v85 = vld [vmem:[%s7 + $0x20] sm:$0x1]
  %v86 = vld [vmem:[%s3] sm:$0xff]
  %v87 = vld [vmem:[%s3 + $0x8] sm:$0xff]
  %v88 = vld [vmem:[%s3 + $0x10] sm:$0xff]
  %v89 = vld [vmem:[%s3 + $0x18] sm:$0xff]
  %v90 = vld [vmem:[%s3 + $0x20] sm:$0xff]
  %v91 = vld [vmem:[%s3 + $0x28] sm:$0xff]
  %v92 = vld [vmem:[%s3 + $0x30] sm:$0xff]
  %v93 = vld [vmem:[%s3 + $0x38] sm:$0xff]
  %vm94 = vcmask 261120
  %v95 = vsel %vm94, %v40, 0.0
  %96 = vadd.xlane.f32.xlu0 %v95
  %v97 = vpop.xlane.xlu0 %96
  %v98 = vsel %vm94, %v43, 0.0
  %99 = vadd.xlane.f32.xlu0 %v98
  %v100 = vpop.xlane.xlu0 %99
  %v101 = vrcp.pop 32.0
  %v102 = vmul.f32 32.0, %v101
  %v103 = vsub.f32 1.0, %v102
  %v104 = vmul.f32 %v101, %v103
  %v105 = vadd.f32 %v101, %v104
  %vm106 = vweird.f32 %v101
  %v107 = vsel %vm106, %v101, %v105
  %v108 = vmul.f32 %v97, %v107
  %v109 = vmul.f32 %v100, %v107
  %v110 = vsub.f32 %v40, %v108
  %v111 = vsub.f32 %v43, %v109
  %v112 = vmul.f32 %v110, %v110
  %v113 = vmul.f32 %v111, %v111
  %v114 = vsel %vm94, %v112, 0.0
  %115 = vadd.xlane.f32.xlu0 %v114
  %v116 = vpop.xlane.xlu0 %115
  %v117 = vsel %vm94, %v113, 0.0
  %118 = vadd.xlane.f32.xlu0 %v117
  %v119 = vpop.xlane.xlu0 %118
  %v120 = vmul.f32 %v116, 0.032258064
  %v121 = vmul.f32 %v119, 0.032258064
  %v122 = vperm.slane %v80, 0
  %v123 = vmul.f32 %v122, %v110
  %v124 = vmul.f32 %v122, %v111
  %v125 = vrsqrt.pop %v120
  %v126 = vmul.f32 %v125, %v120
  %v127 = vmul.f32 %v126, %v125
  %v128 = vmul.f32 0.5, %v127
  %v129 = vsub.f32 1.5, %v128
  %v130 = vmul.f32 %v125, %v129
  %v131 = vmul.f32 %v120, %v130
  %vm132 = vcmp.eq.f32.partialorder %v120, inf
  %v133 = vsel %vm132, %v120, %v131
  %vm134 = vcmp.eq.f32.partialorder %v120, 0.0
  %v135 = vand.u32 %v120, 2147483648
  %v136 = vsel %vm134, %v135, %v133
  %v137 = vrsqrt.pop %v121
  %v138 = vmul.f32 %v137, %v121
  %v139 = vmul.f32 %v138, %v137
  %v140 = vmul.f32 0.5, %v139
  %v141 = vsub.f32 1.5, %v140
  %v142 = vmul.f32 %v137, %v141
  %v143 = vmul.f32 %v121, %v142
  %vm144 = vcmp.eq.f32.partialorder %v121, inf
  %v145 = vsel %vm144, %v121, %v143
  %vm146 = vcmp.eq.f32.partialorder %v121, 0.0
  %v147 = vand.u32 %v121, 2147483648
  %v148 = vsel %vm146, %v147, %v145
  %v149 = vadd.f32 %v136, 1e-06
  %v150 = vadd.f32 %v148, 1e-06
  %v151 = vrcp.pop %v149
  %v152 = vmul.f32 %v149, %v151
  %v153 = vsub.f32 1.0, %v152
  %v154 = vmul.f32 %v151, %v153
  %v155 = vadd.f32 %v151, %v154
  %vm156 = vweird.f32 %v149
  %vm157 = vweird.f32 %v151
  %vm158 = vmor %vm156, %vm157
  %v159 = vsel %vm158, %v151, %v155
  %v160 = vand.u32 2147483647, %v149
  %vm161 = vcmp.eq.f32.partialorder %v160, 8.507059e+37
  %v162 = vand.u32 %v149, 2147483648
  %v163 = vor.u32 1.1754944e-38, %v162
  %v164 = vsel %vm161, %v163, %v159
  %v165 = vmul.f32 %v123, %v164
  %v166 = vrcp.pop %v150
  %v167 = vmul.f32 %v150, %v166
  %v168 = vsub.f32 1.0, %v167
  %v169 = vmul.f32 %v166, %v168
  %v170 = vadd.f32 %v166, %v169
  %vm171 = vweird.f32 %v150
  %vm172 = vweird.f32 %v166
  %vm173 = vmor %vm171, %vm172
  %v174 = vsel %vm173, %v166, %v170
  %v175 = vand.u32 2147483647, %v150
  %vm176 = vcmp.eq.f32.partialorder %v175, 8.507059e+37
  %v177 = vand.u32 %v150, 2147483648
  %v178 = vor.u32 1.1754944e-38, %v177
  %v179 = vsel %vm176, %v178, %v174
  %v180 = vmul.f32 %v124, %v179
  %v181 = vperm.slane %v80, 1
  %v182 = vadd.f32 %v165, %v181
  %v183 = vadd.f32 %v180, %v181
  %v185 = vsel %vm94, %v182, 0
  %v188 = vsel %vm94, %v183, 0
  %190 = vmatpush.msra.mxu0 0.0
  %191 = vmatpush.msra.mxu0 0.0
  %192 = vmatpush.msra.mxu0 0.0
  %193 = vmatpush.msra.mxu0 0.0
  %194 = vmatpush.msra.mxu0 0.0
  %195 = vmatpush.msra.mxu0 0.0
  %196 = vmatpush.msra.mxu0 0.0
  %197 = vmatpush.msra.mxu0 0.0
  %198 = vmatpush.msra.mxu0 0.0
  %199 = vmatpush.msra.mxu0 0.0
  %200 = vmatpush.msra.mxu0 0.0
  %201 = vmatpush.msra.mxu0 0.0
  %v202 = vand.u32 %v47, 4294901760
  %203 = vmatpush.msra.mxu0 %v202
  %v204 = vand.u32 %v46, 4294901760
  %205 = vmatpush.msra.mxu0 %v204
  %v206 = vand.u32 %v45, 4294901760
  %207 = vmatpush.msra.mxu0 %v206
  %v208 = vand.u32 %v44, 4294901760
  %209 = vmatpush.msra.mxu0 %v208
  %v210 = vand.u32 %v185, 4294901760
  %v211 = vsub.f32 %v185, %v210
  %v212 = vand.u32 %v211, 4294901760
  %v213 = vsub.f32 %v211, %v212
  %v214 = vand.u32 %v213, 4294901760
  %215 = vmatmul.f32.gmra.mxu0 %v214
  %v216 = vpop.f32.mrf.mxu0
  %v217 = vadd.f32 0.0, %v216
  %v218 = vand.u32 %v188, 4294901760
  %v219 = vsub.f32 %v188, %v218
  %v220 = vand.u32 %v219, 4294901760
  %v221 = vsub.f32 %v219, %v220
  %v222 = vand.u32 %v221, 4294901760
  %223 = vmatmul.f32.gmra.mxu0 %v222
  %v224 = vpop.f32.mrf.mxu0
  %v225 = vadd.f32 0.0, %v224
  %226 = vdwg.mxu0
  %227 = vmatpush.msra.mxu0 0.0
  %228 = vmatpush.msra.mxu0 0.0
  %229 = vmatpush.msra.mxu0 0.0
  %230 = vmatpush.msra.mxu0 0.0
  %231 = vmatpush.msra.mxu0 0.0
  %232 = vmatpush.msra.mxu0 0.0
  %233 = vmatpush.msra.mxu0 0.0
  %234 = vmatpush.msra.mxu0 0.0
  %235 = vmatpush.msra.mxu0 0.0
  %236 = vmatpush.msra.mxu0 0.0
  %237 = vmatpush.msra.mxu0 0.0
  %238 = vmatpush.msra.mxu0 0.0
  %v239 = vand.u32 %v47, 4294901760
  %v240 = vsub.f32 %v47, %v239
  %v241 = vand.u32 %v240, 4294901760
  %v242 = vsub.f32 %v240, %v241
  %v243 = vand.u32 %v242, 4294901760
  %244 = vmatpush.msra.mxu0 %v243
  %v245 = vand.u32 %v46, 4294901760
  %v246 = vsub.f32 %v46, %v245
  %v247 = vand.u32 %v246, 4294901760
  %v248 = vsub.f32 %v246, %v247
  %v249 = vand.u32 %v248, 4294901760
  %250 = vmatpush.msra.mxu0 %v249
  %v251 = vand.u32 %v45, 4294901760
  %v252 = vsub.f32 %v45, %v251
  %v253 = vand.u32 %v252, 4294901760
  %v254 = vsub.f32 %v252, %v253
  %v255 = vand.u32 %v254, 4294901760
  %256 = vmatpush.msra.mxu0 %v255
  %v257 = vand.u32 %v44, 4294901760
  %v258 = vsub.f32 %v44, %v257
  %v259 = vand.u32 %v258, 4294901760
  %v260 = vsub.f32 %v258, %v259
  %v261 = vand.u32 %v260, 4294901760
  %262 = vmatpush.msra.mxu0 %v261
  %v263 = vand.u32 %v185, 4294901760
  %264 = vmatmul.f32.gmra.mxu0 %v263
  %v265 = vpop.f32.mrf.mxu0
  %v266 = vadd.f32 %v217, %v265
  %v267 = vand.u32 %v188, 4294901760
  %268 = vmatmul.f32.gmra.mxu0 %v267
  %v269 = vpop.f32.mrf.mxu0
  %v270 = vadd.f32 %v225, %v269
  %271 = vdwg.mxu0
  %272 = vmatpush.msra.mxu0 0.0
  %273 = vmatpush.msra.mxu0 0.0
  %274 = vmatpush.msra.mxu0 0.0
  %275 = vmatpush.msra.mxu0 0.0
  %276 = vmatpush.msra.mxu0 0.0
  %277 = vmatpush.msra.mxu0 0.0
  %278 = vmatpush.msra.mxu0 0.0
  %279 = vmatpush.msra.mxu0 0.0
  %280 = vmatpush.msra.mxu0 0.0
  %281 = vmatpush.msra.mxu0 0.0
  %282 = vmatpush.msra.mxu0 0.0
  %283 = vmatpush.msra.mxu0 0.0
  %v284 = vand.u32 %v47, 4294901760
  %v285 = vsub.f32 %v47, %v284
  %286 = vmatpush.msra.mxu0 %v285
  %v287 = vand.u32 %v46, 4294901760
  %v288 = vsub.f32 %v46, %v287
  %289 = vmatpush.msra.mxu0 %v288
  %v290 = vand.u32 %v45, 4294901760
  %v291 = vsub.f32 %v45, %v290
  %292 = vmatpush.msra.mxu0 %v291
  %v293 = vand.u32 %v44, 4294901760
  %v294 = vsub.f32 %v44, %v293
  %295 = vmatpush.msra.mxu0 %v294
  %v296 = vand.u32 %v185, 4294901760
  %v297 = vsub.f32 %v185, %v296
  %298 = vmatmul.f32.gmra.mxu0 %v297
  %v299 = vpop.f32.mrf.mxu0
  %v300 = vadd.f32 %v266, %v299
  %v301 = vand.u32 %v188, 4294901760
  %v302 = vsub.f32 %v188, %v301
  %303 = vmatmul.f32.gmra.mxu0 %v302
  %v304 = vpop.f32.mrf.mxu0
  %v305 = vadd.f32 %v270, %v304
  %306 = vdwg.mxu0
  %307 = vmatpush.msra.mxu0 0.0
  %308 = vmatpush.msra.mxu0 0.0
  %309 = vmatpush.msra.mxu0 0.0
  %310 = vmatpush.msra.mxu0 0.0
  %311 = vmatpush.msra.mxu0 0.0
  %312 = vmatpush.msra.mxu0 0.0
  %313 = vmatpush.msra.mxu0 0.0
  %314 = vmatpush.msra.mxu0 0.0
  %315 = vmatpush.msra.mxu0 0.0
  %316 = vmatpush.msra.mxu0 0.0
  %317 = vmatpush.msra.mxu0 0.0
  %318 = vmatpush.msra.mxu0 0.0
  %v319 = vand.u32 %v47, 4294901760
  %320 = vmatpush.msra.mxu0 %v319
  %v321 = vand.u32 %v46, 4294901760
  %322 = vmatpush.msra.mxu0 %v321
  %v323 = vand.u32 %v45, 4294901760
  %324 = vmatpush.msra.mxu0 %v323
  %v325 = vand.u32 %v44, 4294901760
  %326 = vmatpush.msra.mxu0 %v325
  %v327 = vand.u32 %v185, 4294901760
  %v328 = vsub.f32 %v185, %v327
  %v329 = vand.u32 %v328, 4294901760
  %330 = vmatmul.f32.gmra.mxu0 %v329
  %v331 = vpop.f32.mrf.mxu0
  %v332 = vadd.f32 %v300, %v331
  %v333 = vand.u32 %v188, 4294901760
  %v334 = vsub.f32 %v188, %v333
  %v335 = vand.u32 %v334, 4294901760
  %336 = vmatmul.f32.gmra.mxu0 %v335
  %v337 = vpop.f32.mrf.mxu0
  %v338 = vadd.f32 %v305, %v337
  %339 = vdwg.mxu0
  %340 = vmatpush.msra.mxu0 0.0
  %341 = vmatpush.msra.mxu0 0.0
  %342 = vmatpush.msra.mxu0 0.0
  %343 = vmatpush.msra.mxu0 0.0
  %344 = vmatpush.msra.mxu0 0.0
  %345 = vmatpush.msra.mxu0 0.0
  %346 = vmatpush.msra.mxu0 0.0
  %347 = vmatpush.msra.mxu0 0.0
  %348 = vmatpush.msra.mxu0 0.0
  %349 = vmatpush.msra.mxu0 0.0
  %350 = vmatpush.msra.mxu0 0.0
  %351 = vmatpush.msra.mxu0 0.0
  %v352 = vand.u32 %v47, 4294901760
  %v353 = vsub.f32 %v47, %v352
  %v354 = vand.u32 %v353, 4294901760
  %355 = vmatpush.msra.mxu0 %v354
  %v356 = vand.u32 %v46, 4294901760
  %v357 = vsub.f32 %v46, %v356
  %v358 = vand.u32 %v357, 4294901760
  %359 = vmatpush.msra.mxu0 %v358
  %v360 = vand.u32 %v45, 4294901760
  %v361 = vsub.f32 %v45, %v360
  %v362 = vand.u32 %v361, 4294901760
  %363 = vmatpush.msra.mxu0 %v362
  %v364 = vand.u32 %v44, 4294901760
  %v365 = vsub.f32 %v44, %v364
  %v366 = vand.u32 %v365, 4294901760
  %367 = vmatpush.msra.mxu0 %v366
  %v368 = vand.u32 %v185, 4294901760
  %369 = vmatmul.f32.gmra.mxu0 %v368
  %v370 = vpop.f32.mrf.mxu0
  %v371 = vadd.f32 %v332, %v370
  %v372 = vand.u32 %v188, 4294901760
  %373 = vmatmul.f32.gmra.mxu0 %v372
  %v374 = vpop.f32.mrf.mxu0
  %v375 = vadd.f32 %v338, %v374
  %376 = vdwg.mxu0
  %377 = vmatpush.msra.mxu0 0.0
  %378 = vmatpush.msra.mxu0 0.0
  %379 = vmatpush.msra.mxu0 0.0
  %380 = vmatpush.msra.mxu0 0.0
  %381 = vmatpush.msra.mxu0 0.0
  %382 = vmatpush.msra.mxu0 0.0
  %383 = vmatpush.msra.mxu0 0.0
  %384 = vmatpush.msra.mxu0 0.0
  %385 = vmatpush.msra.mxu0 0.0
  %386 = vmatpush.msra.mxu0 0.0
  %387 = vmatpush.msra.mxu0 0.0
  %388 = vmatpush.msra.mxu0 0.0
  %v389 = vand.u32 %v47, 4294901760
  %390 = vmatpush.msra.mxu0 %v389
  %v391 = vand.u32 %v46, 4294901760
  %392 = vmatpush.msra.mxu0 %v391
  %v393 = vand.u32 %v45, 4294901760
  %394 = vmatpush.msra.mxu0 %v393
  %v395 = vand.u32 %v44, 4294901760
  %396 = vmatpush.msra.mxu0 %v395
  %v397 = vand.u32 %v185, 4294901760
  %398 = vmatmul.f32.gmra.mxu0 %v397
  %v399 = vpop.f32.mrf.mxu0
  %v400 = vadd.f32 %v371, %v399
  %v401 = vand.u32 %v188, 4294901760
  %402 = vmatmul.f32.gmra.mxu0 %v401
  %v403 = vpop.f32.mrf.mxu0
  %v404 = vadd.f32 %v375, %v403
  %405 = vdwg.mxu0
  %406 = vmatpush.msra.mxu0 0.0
  %407 = vmatpush.msra.mxu0 0.0
  %408 = vmatpush.msra.mxu0 0.0
  %409 = vmatpush.msra.mxu0 0.0
  %410 = vmatpush.msra.mxu0 0.0
  %411 = vmatpush.msra.mxu0 0.0
  %412 = vmatpush.msra.mxu0 0.0
  %413 = vmatpush.msra.mxu0 0.0
  %414 = vmatpush.msra.mxu0 0.0
  %415 = vmatpush.msra.mxu0 0.0
  %416 = vmatpush.msra.mxu0 0.0
  %417 = vmatpush.msra.mxu0 0.0
  %v418 = vand.u32 %v51, 4294901760
  %419 = vmatpush.msra.mxu0 %v418
  %v420 = vand.u32 %v50, 4294901760
  %421 = vmatpush.msra.mxu0 %v420
  %v422 = vand.u32 %v49, 4294901760
  %423 = vmatpush.msra.mxu0 %v422
  %v424 = vand.u32 %v48, 4294901760
  %425 = vmatpush.msra.mxu0 %v424
  %v426 = vand.u32 %v185, 4294901760
  %v427 = vsub.f32 %v185, %v426
  %v428 = vand.u32 %v427, 4294901760
  %v429 = vsub.f32 %v427, %v428
  %v430 = vand.u32 %v429, 4294901760
  %431 = vmatmul.f32.gmra.mxu0 %v430
  %v432 = vpop.f32.mrf.mxu0
  %v433 = vadd.f32 0.0, %v432
  %v434 = vand.u32 %v188, 4294901760
  %v435 = vsub.f32 %v188, %v434
  %v436 = vand.u32 %v435, 4294901760
  %v437 = vsub.f32 %v435, %v436
  %v438 = vand.u32 %v437, 4294901760
  %439 = vmatmul.f32.gmra.mxu0 %v438
  %v440 = vpop.f32.mrf.mxu0
  %v441 = vadd.f32 0.0, %v440
  %442 = vdwg.mxu0
  %443 = vmatpush.msra.mxu0 0.0
  %444 = vmatpush.msra.mxu0 0.0
  %445 = vmatpush.msra.mxu0 0.0
  %446 = vmatpush.msra.mxu0 0.0
  %447 = vmatpush.msra.mxu0 0.0
  %448 = vmatpush.msra.mxu0 0.0
  %449 = vmatpush.msra.mxu0 0.0
  %450 = vmatpush.msra.mxu0 0.0
  %451 = vmatpush.msra.mxu0 0.0
  %452 = vmatpush.msra.mxu0 0.0
  %453 = vmatpush.msra.mxu0 0.0
  %454 = vmatpush.msra.mxu0 0.0
  %v455 = vand.u32 %v51, 4294901760
  %v456 = vsub.f32 %v51, %v455
  %v457 = vand.u32 %v456, 4294901760
  %v458 = vsub.f32 %v456, %v457
  %v459 = vand.u32 %v458, 4294901760
  %460 = vmatpush.msra.mxu0 %v459
  %v461 = vand.u32 %v50, 4294901760
  %v462 = vsub.f32 %v50, %v461
  %v463 = vand.u32 %v462, 4294901760
  %v464 = vsub.f32 %v462, %v463
  %v465 = vand.u32 %v464, 4294901760
  %466 = vmatpush.msra.mxu0 %v465
  %v467 = vand.u32 %v49, 4294901760
  %v468 = vsub.f32 %v49, %v467
  %v469 = vand.u32 %v468, 4294901760
  %v470 = vsub.f32 %v468, %v469
  %v471 = vand.u32 %v470, 4294901760
  %472 = vmatpush.msra.mxu0 %v471
  %v473 = vand.u32 %v48, 4294901760
  %v474 = vsub.f32 %v48, %v473
  %v475 = vand.u32 %v474, 4294901760
  %v476 = vsub.f32 %v474, %v475
  %v477 = vand.u32 %v476, 4294901760
  %478 = vmatpush.msra.mxu0 %v477
  %v479 = vand.u32 %v185, 4294901760
  %480 = vmatmul.f32.gmra.mxu0 %v479
  %v481 = vpop.f32.mrf.mxu0
  %v482 = vadd.f32 %v433, %v481
  %v483 = vand.u32 %v188, 4294901760
  %484 = vmatmul.f32.gmra.mxu0 %v483
  %v485 = vpop.f32.mrf.mxu0
  %v486 = vadd.f32 %v441, %v485
  %487 = vdwg.mxu0
  %488 = vmatpush.msra.mxu0 0.0
  %489 = vmatpush.msra.mxu0 0.0
  %490 = vmatpush.msra.mxu0 0.0
  %491 = vmatpush.msra.mxu0 0.0
  %492 = vmatpush.msra.mxu0 0.0
  %493 = vmatpush.msra.mxu0 0.0
  %494 = vmatpush.msra.mxu0 0.0
  %495 = vmatpush.msra.mxu0 0.0
  %496 = vmatpush.msra.mxu0 0.0
  %497 = vmatpush.msra.mxu0 0.0
  %498 = vmatpush.msra.mxu0 0.0
  %499 = vmatpush.msra.mxu0 0.0
  %v500 = vand.u32 %v51, 4294901760
  %v501 = vsub.f32 %v51, %v500
  %502 = vmatpush.msra.mxu0 %v501
  %v503 = vand.u32 %v50, 4294901760
  %v504 = vsub.f32 %v50, %v503
  %505 = vmatpush.msra.mxu0 %v504
  %v506 = vand.u32 %v49, 4294901760
  %v507 = vsub.f32 %v49, %v506
  %508 = vmatpush.msra.mxu0 %v507
  %v509 = vand.u32 %v48, 4294901760
  %v510 = vsub.f32 %v48, %v509
  %511 = vmatpush.msra.mxu0 %v510
  %v512 = vand.u32 %v185, 4294901760
  %v513 = vsub.f32 %v185, %v512
  %514 = vmatmul.f32.gmra.mxu0 %v513
  %v515 = vpop.f32.mrf.mxu0
  %v516 = vadd.f32 %v482, %v515
  %v517 = vand.u32 %v188, 4294901760
  %v518 = vsub.f32 %v188, %v517
  %519 = vmatmul.f32.gmra.mxu0 %v518
  %v520 = vpop.f32.mrf.mxu0
  %v521 = vadd.f32 %v486, %v520
  %522 = vdwg.mxu0
  %523 = vmatpush.msra.mxu0 0.0
  %524 = vmatpush.msra.mxu0 0.0
  %525 = vmatpush.msra.mxu0 0.0
  %526 = vmatpush.msra.mxu0 0.0
  %527 = vmatpush.msra.mxu0 0.0
  %528 = vmatpush.msra.mxu0 0.0
  %529 = vmatpush.msra.mxu0 0.0
  %530 = vmatpush.msra.mxu0 0.0
  %531 = vmatpush.msra.mxu0 0.0
  %532 = vmatpush.msra.mxu0 0.0
  %533 = vmatpush.msra.mxu0 0.0
  %534 = vmatpush.msra.mxu0 0.0
  %v535 = vand.u32 %v51, 4294901760
  %536 = vmatpush.msra.mxu0 %v535
  %v537 = vand.u32 %v50, 4294901760
  %538 = vmatpush.msra.mxu0 %v537
  %v539 = vand.u32 %v49, 4294901760
  %540 = vmatpush.msra.mxu0 %v539
  %v541 = vand.u32 %v48, 4294901760
  %542 = vmatpush.msra.mxu0 %v541
  %v543 = vand.u32 %v185, 4294901760
  %v544 = vsub.f32 %v185, %v543
  %v545 = vand.u32 %v544, 4294901760
  %546 = vmatmul.f32.gmra.mxu0 %v545
  %v547 = vpop.f32.mrf.mxu0
  %v548 = vadd.f32 %v516, %v547
  %v549 = vand.u32 %v188, 4294901760
  %v550 = vsub.f32 %v188, %v549
  %v551 = vand.u32 %v550, 4294901760
  %552 = vmatmul.f32.gmra.mxu0 %v551
  %v553 = vpop.f32.mrf.mxu0
  %v554 = vadd.f32 %v521, %v553
  %555 = vdwg.mxu0
  %556 = vmatpush.msra.mxu0 0.0
  %557 = vmatpush.msra.mxu0 0.0
  %558 = vmatpush.msra.mxu0 0.0
  %559 = vmatpush.msra.mxu0 0.0
  %560 = vmatpush.msra.mxu0 0.0
  %561 = vmatpush.msra.mxu0 0.0
  %562 = vmatpush.msra.mxu0 0.0
  %563 = vmatpush.msra.mxu0 0.0
  %564 = vmatpush.msra.mxu0 0.0
  %565 = vmatpush.msra.mxu0 0.0
  %566 = vmatpush.msra.mxu0 0.0
  %567 = vmatpush.msra.mxu0 0.0
  %v568 = vand.u32 %v51, 4294901760
  %v569 = vsub.f32 %v51, %v568
  %v570 = vand.u32 %v569, 4294901760
  %571 = vmatpush.msra.mxu0 %v570
  %v572 = vand.u32 %v50, 4294901760
  %v573 = vsub.f32 %v50, %v572
  %v574 = vand.u32 %v573, 4294901760
  %575 = vmatpush.msra.mxu0 %v574
  %v576 = vand.u32 %v49, 4294901760
  %v577 = vsub.f32 %v49, %v576
  %v578 = vand.u32 %v577, 4294901760
  %579 = vmatpush.msra.mxu0 %v578
  %v580 = vand.u32 %v48, 4294901760
  %v581 = vsub.f32 %v48, %v580
  %v582 = vand.u32 %v581, 4294901760
  %583 = vmatpush.msra.mxu0 %v582
  %v584 = vand.u32 %v185, 4294901760
  %585 = vmatmul.f32.gmra.mxu0 %v584
  %v586 = vpop.f32.mrf.mxu0
  %v587 = vadd.f32 %v548, %v586
  %v588 = vand.u32 %v188, 4294901760
  %589 = vmatmul.f32.gmra.mxu0 %v588
  %v590 = vpop.f32.mrf.mxu0
  %v591 = vadd.f32 %v554, %v590
  %592 = vdwg.mxu0
  %593 = vmatpush.msra.mxu0 0.0
  %594 = vmatpush.msra.mxu0 0.0
  %595 = vmatpush.msra.mxu0 0.0
  %596 = vmatpush.msra.mxu0 0.0
  %597 = vmatpush.msra.mxu0 0.0
  %598 = vmatpush.msra.mxu0 0.0
  %599 = vmatpush.msra.mxu0 0.0
  %600 = vmatpush.msra.mxu0 0.0
  %601 = vmatpush.msra.mxu0 0.0
  %602 = vmatpush.msra.mxu0 0.0
  %603 = vmatpush.msra.mxu0 0.0
  %604 = vmatpush.msra.mxu0 0.0
  %v605 = vand.u32 %v51, 4294901760
  %606 = vmatpush.msra.mxu0 %v605
  %v607 = vand.u32 %v50, 4294901760
  %608 = vmatpush.msra.mxu0 %v607
  %v609 = vand.u32 %v49, 4294901760
  %610 = vmatpush.msra.mxu0 %v609
  %v611 = vand.u32 %v48, 4294901760
  %612 = vmatpush.msra.mxu0 %v611
  %v613 = vand.u32 %v185, 4294901760
  %614 = vmatmul.f32.gmra.mxu0 %v613
  %v615 = vpop.f32.mrf.mxu0
  %v616 = vadd.f32 %v587, %v615
  %v617 = vand.u32 %v188, 4294901760
  %618 = vmatmul.f32.gmra.mxu0 %v617
  %v619 = vpop.f32.mrf.mxu0
  %v620 = vadd.f32 %v591, %v619
  %621 = vdwg.mxu0
  %622 = vmatpush.msra.mxu0 0.0
  %623 = vmatpush.msra.mxu0 0.0
  %624 = vmatpush.msra.mxu0 0.0
  %625 = vmatpush.msra.mxu0 0.0
  %626 = vmatpush.msra.mxu0 0.0
  %627 = vmatpush.msra.mxu0 0.0
  %628 = vmatpush.msra.mxu0 0.0
  %629 = vmatpush.msra.mxu0 0.0
  %630 = vmatpush.msra.mxu0 0.0
  %631 = vmatpush.msra.mxu0 0.0
  %632 = vmatpush.msra.mxu0 0.0
  %633 = vmatpush.msra.mxu0 0.0
  %v634 = vand.u32 %v55, 4294901760
  %635 = vmatpush.msra.mxu0 %v634
  %v636 = vand.u32 %v54, 4294901760
  %637 = vmatpush.msra.mxu0 %v636
  %v638 = vand.u32 %v53, 4294901760
  %639 = vmatpush.msra.mxu0 %v638
  %v640 = vand.u32 %v52, 4294901760
  %641 = vmatpush.msra.mxu0 %v640
  %v642 = vand.u32 %v185, 4294901760
  %v643 = vsub.f32 %v185, %v642
  %v644 = vand.u32 %v643, 4294901760
  %v645 = vsub.f32 %v643, %v644
  %v646 = vand.u32 %v645, 4294901760
  %647 = vmatmul.f32.gmra.mxu0 %v646
  %v648 = vpop.f32.mrf.mxu0
  %v649 = vadd.f32 0.0, %v648
  %v650 = vand.u32 %v188, 4294901760
  %v651 = vsub.f32 %v188, %v650
  %v652 = vand.u32 %v651, 4294901760
  %v653 = vsub.f32 %v651, %v652
  %v654 = vand.u32 %v653, 4294901760
  %655 = vmatmul.f32.gmra.mxu0 %v654
  %v656 = vpop.f32.mrf.mxu0
  %v657 = vadd.f32 0.0, %v656
  %658 = vdwg.mxu0
  %659 = vmatpush.msra.mxu0 0.0
  %660 = vmatpush.msra.mxu0 0.0
  %661 = vmatpush.msra.mxu0 0.0
  %662 = vmatpush.msra.mxu0 0.0
  %663 = vmatpush.msra.mxu0 0.0
  %664 = vmatpush.msra.mxu0 0.0
  %665 = vmatpush.msra.mxu0 0.0
  %666 = vmatpush.msra.mxu0 0.0
  %667 = vmatpush.msra.mxu0 0.0
  %668 = vmatpush.msra.mxu0 0.0
  %669 = vmatpush.msra.mxu0 0.0
  %670 = vmatpush.msra.mxu0 0.0
  %v671 = vand.u32 %v55, 4294901760
  %v672 = vsub.f32 %v55, %v671
  %v673 = vand.u32 %v672, 4294901760
  %v674 = vsub.f32 %v672, %v673
  %v675 = vand.u32 %v674, 4294901760
  %676 = vmatpush.msra.mxu0 %v675
  %v677 = vand.u32 %v54, 4294901760
  %v678 = vsub.f32 %v54, %v677
  %v679 = vand.u32 %v678, 4294901760
  %v680 = vsub.f32 %v678, %v679
  %v681 = vand.u32 %v680, 4294901760
  %682 = vmatpush.msra.mxu0 %v681
  %v683 = vand.u32 %v53, 4294901760
  %v684 = vsub.f32 %v53, %v683
  %v685 = vand.u32 %v684, 4294901760
  %v686 = vsub.f32 %v684, %v685
  %v687 = vand.u32 %v686, 4294901760
  %688 = vmatpush.msra.mxu0 %v687
  %v689 = vand.u32 %v52, 4294901760
  %v690 = vsub.f32 %v52, %v689
  %v691 = vand.u32 %v690, 4294901760
  %v692 = vsub.f32 %v690, %v691
  %v693 = vand.u32 %v692, 4294901760
  %694 = vmatpush.msra.mxu0 %v693
  %v695 = vand.u32 %v185, 4294901760
  %696 = vmatmul.f32.gmra.mxu0 %v695
  %v697 = vpop.f32.mrf.mxu0
  %v698 = vadd.f32 %v649, %v697
  %v699 = vand.u32 %v188, 4294901760
  %700 = vmatmul.f32.gmra.mxu0 %v699
  %v701 = vpop.f32.mrf.mxu0
  %v702 = vadd.f32 %v657, %v701
  %703 = vdwg.mxu0
  %704 = vmatpush.msra.mxu0 0.0
  %705 = vmatpush.msra.mxu0 0.0
  %706 = vmatpush.msra.mxu0 0.0
  %707 = vmatpush.msra.mxu0 0.0
  %708 = vmatpush.msra.mxu0 0.0
  %709 = vmatpush.msra.mxu0 0.0
  %710 = vmatpush.msra.mxu0 0.0
  %711 = vmatpush.msra.mxu0 0.0
  %712 = vmatpush.msra.mxu0 0.0
  %713 = vmatpush.msra.mxu0 0.0
  %714 = vmatpush.msra.mxu0 0.0
  %715 = vmatpush.msra.mxu0 0.0
  %v716 = vand.u32 %v55, 4294901760
  %v717 = vsub.f32 %v55, %v716
  %718 = vmatpush.msra.mxu0 %v717
  %v719 = vand.u32 %v54, 4294901760
  %v720 = vsub.f32 %v54, %v719
  %721 = vmatpush.msra.mxu0 %v720
  %v722 = vand.u32 %v53, 4294901760
  %v723 = vsub.f32 %v53, %v722
  %724 = vmatpush.msra.mxu0 %v723
  %v725 = vand.u32 %v52, 4294901760
  %v726 = vsub.f32 %v52, %v725
  %727 = vmatpush.msra.mxu0 %v726
  %v728 = vand.u32 %v185, 4294901760
  %v729 = vsub.f32 %v185, %v728
  %730 = vmatmul.f32.gmra.mxu0 %v729
  %v731 = vpop.f32.mrf.mxu0
  %v732 = vadd.f32 %v698, %v731
  %v733 = vand.u32 %v188, 4294901760
  %v734 = vsub.f32 %v188, %v733
  %735 = vmatmul.f32.gmra.mxu0 %v734
  %v736 = vpop.f32.mrf.mxu0
  %v737 = vadd.f32 %v702, %v736
  %738 = vdwg.mxu0
  %739 = vmatpush.msra.mxu0 0.0
  %740 = vmatpush.msra.mxu0 0.0
  %741 = vmatpush.msra.mxu0 0.0
  %742 = vmatpush.msra.mxu0 0.0
  %743 = vmatpush.msra.mxu0 0.0
  %744 = vmatpush.msra.mxu0 0.0
  %745 = vmatpush.msra.mxu0 0.0
  %746 = vmatpush.msra.mxu0 0.0
  %747 = vmatpush.msra.mxu0 0.0
  %748 = vmatpush.msra.mxu0 0.0
  %749 = vmatpush.msra.mxu0 0.0
  %750 = vmatpush.msra.mxu0 0.0
  %v751 = vand.u32 %v55, 4294901760
  %752 = vmatpush.msra.mxu0 %v751
  %v753 = vand.u32 %v54, 4294901760
  %754 = vmatpush.msra.mxu0 %v753
  %v755 = vand.u32 %v53, 4294901760
  %756 = vmatpush.msra.mxu0 %v755
  %v757 = vand.u32 %v52, 4294901760
  %758 = vmatpush.msra.mxu0 %v757
  %v759 = vand.u32 %v185, 4294901760
  %v760 = vsub.f32 %v185, %v759
  %v761 = vand.u32 %v760, 4294901760
  %762 = vmatmul.f32.gmra.mxu0 %v761
  %v763 = vpop.f32.mrf.mxu0
  %v764 = vadd.f32 %v732, %v763
  %v765 = vand.u32 %v188, 4294901760
  %v766 = vsub.f32 %v188, %v765
  %v767 = vand.u32 %v766, 4294901760
  %768 = vmatmul.f32.gmra.mxu0 %v767
  %v769 = vpop.f32.mrf.mxu0
  %v770 = vadd.f32 %v737, %v769
  %771 = vdwg.mxu0
  %772 = vmatpush.msra.mxu0 0.0
  %773 = vmatpush.msra.mxu0 0.0
  %774 = vmatpush.msra.mxu0 0.0
  %775 = vmatpush.msra.mxu0 0.0
  %776 = vmatpush.msra.mxu0 0.0
  %777 = vmatpush.msra.mxu0 0.0
  %778 = vmatpush.msra.mxu0 0.0
  %779 = vmatpush.msra.mxu0 0.0
  %780 = vmatpush.msra.mxu0 0.0
  %781 = vmatpush.msra.mxu0 0.0
  %782 = vmatpush.msra.mxu0 0.0
  %783 = vmatpush.msra.mxu0 0.0
  %v784 = vand.u32 %v55, 4294901760
  %v785 = vsub.f32 %v55, %v784
  %v786 = vand.u32 %v785, 4294901760
  %787 = vmatpush.msra.mxu0 %v786
  %v788 = vand.u32 %v54, 4294901760
  %v789 = vsub.f32 %v54, %v788
  %v790 = vand.u32 %v789, 4294901760
  %791 = vmatpush.msra.mxu0 %v790
  %v792 = vand.u32 %v53, 4294901760
  %v793 = vsub.f32 %v53, %v792
  %v794 = vand.u32 %v793, 4294901760
  %795 = vmatpush.msra.mxu0 %v794
  %v796 = vand.u32 %v52, 4294901760
  %v797 = vsub.f32 %v52, %v796
  %v798 = vand.u32 %v797, 4294901760
  %799 = vmatpush.msra.mxu0 %v798
  %v800 = vand.u32 %v185, 4294901760
  %801 = vmatmul.f32.gmra.mxu0 %v800
  %v802 = vpop.f32.mrf.mxu0
  %v803 = vadd.f32 %v764, %v802
  %v804 = vand.u32 %v188, 4294901760
  %805 = vmatmul.f32.gmra.mxu0 %v804
  %v806 = vpop.f32.mrf.mxu0
  %v807 = vadd.f32 %v770, %v806
  %808 = vdwg.mxu0
  %809 = vmatpush.msra.mxu0 0.0
  %810 = vmatpush.msra.mxu0 0.0
  %811 = vmatpush.msra.mxu0 0.0
  %812 = vmatpush.msra.mxu0 0.0
  %813 = vmatpush.msra.mxu0 0.0
  %814 = vmatpush.msra.mxu0 0.0
  %815 = vmatpush.msra.mxu0 0.0
  %816 = vmatpush.msra.mxu0 0.0
  %817 = vmatpush.msra.mxu0 0.0
  %818 = vmatpush.msra.mxu0 0.0
  %819 = vmatpush.msra.mxu0 0.0
  %820 = vmatpush.msra.mxu0 0.0
  %v821 = vand.u32 %v55, 4294901760
  %822 = vmatpush.msra.mxu0 %v821
  %v823 = vand.u32 %v54, 4294901760
  %824 = vmatpush.msra.mxu0 %v823
  %v825 = vand.u32 %v53, 4294901760
  %826 = vmatpush.msra.mxu0 %v825
  %v827 = vand.u32 %v52, 4294901760
  %828 = vmatpush.msra.mxu0 %v827
  %v829 = vand.u32 %v185, 4294901760
  %830 = vmatmul.f32.gmra.mxu0 %v829
  %v831 = vpop.f32.mrf.mxu0
  %v832 = vadd.f32 %v803, %v831
  %v833 = vand.u32 %v188, 4294901760
  %834 = vmatmul.f32.gmra.mxu0 %v833
  %v835 = vpop.f32.mrf.mxu0
  %v836 = vadd.f32 %v807, %v835
  %837 = vdwg.mxu0
  %838 = vmatpush.msra.mxu0 0.0
  %839 = vmatpush.msra.mxu0 0.0
  %840 = vmatpush.msra.mxu0 0.0
  %841 = vmatpush.msra.mxu0 0.0
  %842 = vmatpush.msra.mxu0 0.0
  %843 = vmatpush.msra.mxu0 0.0
  %844 = vmatpush.msra.mxu0 0.0
  %845 = vmatpush.msra.mxu0 0.0
  %846 = vmatpush.msra.mxu0 0.0
  %847 = vmatpush.msra.mxu0 0.0
  %848 = vmatpush.msra.mxu0 0.0
  %849 = vmatpush.msra.mxu0 0.0
  %v850 = vand.u32 %v59, 4294901760
  %851 = vmatpush.msra.mxu0 %v850
  %v852 = vand.u32 %v58, 4294901760
  %853 = vmatpush.msra.mxu0 %v852
  %v854 = vand.u32 %v57, 4294901760
  %855 = vmatpush.msra.mxu0 %v854
  %v856 = vand.u32 %v56, 4294901760
  %857 = vmatpush.msra.mxu0 %v856
  %v858 = vand.u32 %v185, 4294901760
  %v859 = vsub.f32 %v185, %v858
  %v860 = vand.u32 %v859, 4294901760
  %v861 = vsub.f32 %v859, %v860
  %v862 = vand.u32 %v861, 4294901760
  %863 = vmatmul.f32.gmra.mxu0 %v862
  %v864 = vpop.f32.mrf.mxu0
  %v865 = vadd.f32 0.0, %v864
  %v866 = vand.u32 %v188, 4294901760
  %v867 = vsub.f32 %v188, %v866
  %v868 = vand.u32 %v867, 4294901760
  %v869 = vsub.f32 %v867, %v868
  %v870 = vand.u32 %v869, 4294901760
  %871 = vmatmul.f32.gmra.mxu0 %v870
  %v872 = vpop.f32.mrf.mxu0
  %v873 = vadd.f32 0.0, %v872
  %874 = vdwg.mxu0
  %875 = vmatpush.msra.mxu0 0.0
  %876 = vmatpush.msra.mxu0 0.0
  %877 = vmatpush.msra.mxu0 0.0
  %878 = vmatpush.msra.mxu0 0.0
  %879 = vmatpush.msra.mxu0 0.0
  %880 = vmatpush.msra.mxu0 0.0
  %881 = vmatpush.msra.mxu0 0.0
  %882 = vmatpush.msra.mxu0 0.0
  %883 = vmatpush.msra.mxu0 0.0
  %884 = vmatpush.msra.mxu0 0.0
  %885 = vmatpush.msra.mxu0 0.0
  %886 = vmatpush.msra.mxu0 0.0
  %v887 = vand.u32 %v59, 4294901760
  %v888 = vsub.f32 %v59, %v887
  %v889 = vand.u32 %v888, 4294901760
  %v890 = vsub.f32 %v888, %v889
  %v891 = vand.u32 %v890, 4294901760
  %892 = vmatpush.msra.mxu0 %v891
  %v893 = vand.u32 %v58, 4294901760
  %v894 = vsub.f32 %v58, %v893
  %v895 = vand.u32 %v894, 4294901760
  %v896 = vsub.f32 %v894, %v895
  %v897 = vand.u32 %v896, 4294901760
  %898 = vmatpush.msra.mxu0 %v897
  %v899 = vand.u32 %v57, 4294901760
  %v900 = vsub.f32 %v57, %v899
  %v901 = vand.u32 %v900, 4294901760
  %v902 = vsub.f32 %v900, %v901
  %v903 = vand.u32 %v902, 4294901760
  %904 = vmatpush.msra.mxu0 %v903
  %v905 = vand.u32 %v56, 4294901760
  %v906 = vsub.f32 %v56, %v905
  %v907 = vand.u32 %v906, 4294901760
  %v908 = vsub.f32 %v906, %v907
  %v909 = vand.u32 %v908, 4294901760
  %910 = vmatpush.msra.mxu0 %v909
  %v911 = vand.u32 %v185, 4294901760
  %912 = vmatmul.f32.gmra.mxu0 %v911
  %v913 = vpop.f32.mrf.mxu0
  %v914 = vadd.f32 %v865, %v913
  %v915 = vand.u32 %v188, 4294901760
  %916 = vmatmul.f32.gmra.mxu0 %v915
  %v917 = vpop.f32.mrf.mxu0
  %v918 = vadd.f32 %v873, %v917
  %919 = vdwg.mxu0
  %920 = vmatpush.msra.mxu0 0.0
  %921 = vmatpush.msra.mxu0 0.0
  %922 = vmatpush.msra.mxu0 0.0
  %923 = vmatpush.msra.mxu0 0.0
  %924 = vmatpush.msra.mxu0 0.0
  %925 = vmatpush.msra.mxu0 0.0
  %926 = vmatpush.msra.mxu0 0.0
  %927 = vmatpush.msra.mxu0 0.0
  %928 = vmatpush.msra.mxu0 0.0
  %929 = vmatpush.msra.mxu0 0.0
  %930 = vmatpush.msra.mxu0 0.0
  %931 = vmatpush.msra.mxu0 0.0
  %v932 = vand.u32 %v59, 4294901760
  %v933 = vsub.f32 %v59, %v932
  %934 = vmatpush.msra.mxu0 %v933
  %v935 = vand.u32 %v58, 4294901760
  %v936 = vsub.f32 %v58, %v935
  %937 = vmatpush.msra.mxu0 %v936
  %v938 = vand.u32 %v57, 4294901760
  %v939 = vsub.f32 %v57, %v938
  %940 = vmatpush.msra.mxu0 %v939
  %v941 = vand.u32 %v56, 4294901760
  %v942 = vsub.f32 %v56, %v941
  %943 = vmatpush.msra.mxu0 %v942
  %v944 = vand.u32 %v185, 4294901760
  %v945 = vsub.f32 %v185, %v944
  %946 = vmatmul.f32.gmra.mxu0 %v945
  %v947 = vpop.f32.mrf.mxu0
  %v948 = vadd.f32 %v914, %v947
  %v949 = vand.u32 %v188, 4294901760
  %v950 = vsub.f32 %v188, %v949
  %951 = vmatmul.f32.gmra.mxu0 %v950
  %v952 = vpop.f32.mrf.mxu0
  %v953 = vadd.f32 %v918, %v952
  %954 = vdwg.mxu0
  %955 = vmatpush.msra.mxu0 0.0
  %956 = vmatpush.msra.mxu0 0.0
  %957 = vmatpush.msra.mxu0 0.0
  %958 = vmatpush.msra.mxu0 0.0
  %959 = vmatpush.msra.mxu0 0.0
  %960 = vmatpush.msra.mxu0 0.0
  %961 = vmatpush.msra.mxu0 0.0
  %962 = vmatpush.msra.mxu0 0.0
  %963 = vmatpush.msra.mxu0 0.0
  %964 = vmatpush.msra.mxu0 0.0
  %965 = vmatpush.msra.mxu0 0.0
  %966 = vmatpush.msra.mxu0 0.0
  %v967 = vand.u32 %v59, 4294901760
  %968 = vmatpush.msra.mxu0 %v967
  %v969 = vand.u32 %v58, 4294901760
  %970 = vmatpush.msra.mxu0 %v969
  %v971 = vand.u32 %v57, 4294901760
  %972 = vmatpush.msra.mxu0 %v971
  %v973 = vand.u32 %v56, 4294901760
  %974 = vmatpush.msra.mxu0 %v973
  %v975 = vand.u32 %v185, 4294901760
  %v976 = vsub.f32 %v185, %v975
  %v977 = vand.u32 %v976, 4294901760
  %978 = vmatmul.f32.gmra.mxu0 %v977
  %v979 = vpop.f32.mrf.mxu0
  %v980 = vadd.f32 %v948, %v979
  %v981 = vand.u32 %v188, 4294901760
  %v982 = vsub.f32 %v188, %v981
  %v983 = vand.u32 %v982, 4294901760
  %984 = vmatmul.f32.gmra.mxu0 %v983
  %v985 = vpop.f32.mrf.mxu0
  %v986 = vadd.f32 %v953, %v985
  %987 = vdwg.mxu0
  %988 = vmatpush.msra.mxu0 0.0
  %989 = vmatpush.msra.mxu0 0.0
  %990 = vmatpush.msra.mxu0 0.0
  %991 = vmatpush.msra.mxu0 0.0
  %992 = vmatpush.msra.mxu0 0.0
  %993 = vmatpush.msra.mxu0 0.0
  %994 = vmatpush.msra.mxu0 0.0
  %995 = vmatpush.msra.mxu0 0.0
  %996 = vmatpush.msra.mxu0 0.0
  %997 = vmatpush.msra.mxu0 0.0
  %998 = vmatpush.msra.mxu0 0.0
  %999 = vmatpush.msra.mxu0 0.0
  %v1000 = vand.u32 %v59, 4294901760
  %v1001 = vsub.f32 %v59, %v1000
  %v1002 = vand.u32 %v1001, 4294901760
  %1003 = vmatpush.msra.mxu0 %v1002
  %v1004 = vand.u32 %v58, 4294901760
  %v1005 = vsub.f32 %v58, %v1004
  %v1006 = vand.u32 %v1005, 4294901760
  %1007 = vmatpush.msra.mxu0 %v1006
  %v1008 = vand.u32 %v57, 4294901760
  %v1009 = vsub.f32 %v57, %v1008
  %v1010 = vand.u32 %v1009, 4294901760
  %1011 = vmatpush.msra.mxu0 %v1010
  %v1012 = vand.u32 %v56, 4294901760
  %v1013 = vsub.f32 %v56, %v1012
  %v1014 = vand.u32 %v1013, 4294901760
  %1015 = vmatpush.msra.mxu0 %v1014
  %v1016 = vand.u32 %v185, 4294901760
  %1017 = vmatmul.f32.gmra.mxu0 %v1016
  %v1018 = vpop.f32.mrf.mxu0
  %v1019 = vadd.f32 %v980, %v1018
  %v1020 = vand.u32 %v188, 4294901760
  %1021 = vmatmul.f32.gmra.mxu0 %v1020
  %v1022 = vpop.f32.mrf.mxu0
  %v1023 = vadd.f32 %v986, %v1022
  %1024 = vdwg.mxu0
  %1025 = vmatpush.msra.mxu0 0.0
  %1026 = vmatpush.msra.mxu0 0.0
  %1027 = vmatpush.msra.mxu0 0.0
  %1028 = vmatpush.msra.mxu0 0.0
  %1029 = vmatpush.msra.mxu0 0.0
  %1030 = vmatpush.msra.mxu0 0.0
  %1031 = vmatpush.msra.mxu0 0.0
  %1032 = vmatpush.msra.mxu0 0.0
  %1033 = vmatpush.msra.mxu0 0.0
  %1034 = vmatpush.msra.mxu0 0.0
  %1035 = vmatpush.msra.mxu0 0.0
  %1036 = vmatpush.msra.mxu0 0.0
  %v1037 = vand.u32 %v59, 4294901760
  %1038 = vmatpush.msra.mxu0 %v1037
  %v1039 = vand.u32 %v58, 4294901760
  %1040 = vmatpush.msra.mxu0 %v1039
  %v1041 = vand.u32 %v57, 4294901760
  %1042 = vmatpush.msra.mxu0 %v1041
  %v1043 = vand.u32 %v56, 4294901760
  %1044 = vmatpush.msra.mxu0 %v1043
  %v1045 = vand.u32 %v185, 4294901760
  %1046 = vmatmul.f32.gmra.mxu0 %v1045
  %v1047 = vpop.f32.mrf.mxu0
  %v1048 = vadd.f32 %v1019, %v1047
  %v1049 = vand.u32 %v188, 4294901760
  %1050 = vmatmul.f32.gmra.mxu0 %v1049
  %v1051 = vpop.f32.mrf.mxu0
  %v1052 = vadd.f32 %v1023, %v1051
  %1053 = vdwg.mxu0
  %v1054 = vadd.f32 %v400, %v60
  %v1055 = vadd.f32 %v404, %v61
  %v1056 = vadd.f32 %v616, %v62
  %v1057 = vadd.f32 %v620, %v63
  %v1058 = vadd.f32 %v832, %v64
  %v1059 = vadd.f32 %v836, %v65
  %v1060 = vadd.f32 %v1048, %v66
  %v1061 = vadd.f32 %v1052, %v67
  %vm1062 = vcmask 64512
  %v1064 = vsel %vm1062, %v1054, 0
  %v1067 = vsel %vm1062, %v1055, 0
  %v1070 = vsel %vm1062, %v1056, 0
  %v1073 = vsel %vm1062, %v1057, 0
  %v1076 = vsel %vm1062, %v1058, 0
  %v1079 = vsel %vm1062, %v1059, 0
  %v1082 = vsel %vm1062, %v1060, 0
  %v1085 = vsel %vm1062, %v1061, 0
  %1087 = vmatpush.xpose.msra.mxu0 0.0
  %1088 = vmatpush.xpose.msra.mxu0 0.0
  %1089 = vmatpush.xpose.msra.mxu0 0.0
  %1090 = vmatpush.xpose.msra.mxu0 0.0
  %1091 = vmatpush.xpose.msra.mxu0 0.0
  %1092 = vmatpush.xpose.msra.mxu0 0.0
  %1093 = vmatpush.xpose.msra.mxu0 0.0
  %1094 = vmatpush.xpose.msra.mxu0 0.0
  %v1095 = vand.u32 %v1085, 4294901760
  %1096 = vmatpush.xpose.msra.mxu0 %v1095
  %v1097 = vand.u32 %v1082, 4294901760
  %1098 = vmatpush.xpose.msra.mxu0 %v1097
  %v1099 = vand.u32 %v1079, 4294901760
  %1100 = vmatpush.xpose.msra.mxu0 %v1099
  %v1101 = vand.u32 %v1076, 4294901760
  %1102 = vmatpush.xpose.msra.mxu0 %v1101
  %v1103 = vand.u32 %v1073, 4294901760
  %1104 = vmatpush.xpose.msra.mxu0 %v1103
  %v1105 = vand.u32 %v1070, 4294901760
  %1106 = vmatpush.xpose.msra.mxu0 %v1105
  %v1107 = vand.u32 %v1067, 4294901760
  %1108 = vmatpush.xpose.msra.mxu0 %v1107
  %v1109 = vand.u32 %v1064, 4294901760
  %1110 = vmatpush.xpose.msra.mxu0 %v1109
  %v1111 = vand.u32 %v1064, 4294901760
  %v1112 = vsub.f32 %v1064, %v1111
  %v1113 = vand.u32 %v1112, 4294901760
  %v1114 = vsub.f32 %v1112, %v1113
  %v1115 = vand.u32 %v1114, 4294901760
  %1116 = vmatmul.f32.gmra.mxu0 %v1115
  %v1117 = vpop.f32.mrf.mxu0
  %v1118 = vadd.f32 0.0, %v1117
  %v1119 = vand.u32 %v1067, 4294901760
  %v1120 = vsub.f32 %v1067, %v1119
  %v1121 = vand.u32 %v1120, 4294901760
  %v1122 = vsub.f32 %v1120, %v1121
  %v1123 = vand.u32 %v1122, 4294901760
  %1124 = vmatmul.f32.gmra.mxu0 %v1123
  %v1125 = vpop.f32.mrf.mxu0
  %v1126 = vadd.f32 0.0, %v1125
  %v1127 = vand.u32 %v1070, 4294901760
  %v1128 = vsub.f32 %v1070, %v1127
  %v1129 = vand.u32 %v1128, 4294901760
  %v1130 = vsub.f32 %v1128, %v1129
  %v1131 = vand.u32 %v1130, 4294901760
  %1132 = vmatmul.f32.gmra.mxu0 %v1131
  %v1133 = vpop.f32.mrf.mxu0
  %v1134 = vadd.f32 0.0, %v1133
  %v1135 = vand.u32 %v1073, 4294901760
  %v1136 = vsub.f32 %v1073, %v1135
  %v1137 = vand.u32 %v1136, 4294901760
  %v1138 = vsub.f32 %v1136, %v1137
  %v1139 = vand.u32 %v1138, 4294901760
  %1140 = vmatmul.f32.gmra.mxu0 %v1139
  %v1141 = vpop.f32.mrf.mxu0
  %v1142 = vadd.f32 0.0, %v1141
  %v1143 = vand.u32 %v1076, 4294901760
  %v1144 = vsub.f32 %v1076, %v1143
  %v1145 = vand.u32 %v1144, 4294901760
  %v1146 = vsub.f32 %v1144, %v1145
  %v1147 = vand.u32 %v1146, 4294901760
  %1148 = vmatmul.f32.gmra.mxu0 %v1147
  %v1149 = vpop.f32.mrf.mxu0
  %v1150 = vadd.f32 0.0, %v1149
  %v1151 = vand.u32 %v1079, 4294901760
  %v1152 = vsub.f32 %v1079, %v1151
  %v1153 = vand.u32 %v1152, 4294901760
  %v1154 = vsub.f32 %v1152, %v1153
  %v1155 = vand.u32 %v1154, 4294901760
  %1156 = vmatmul.f32.gmra.mxu0 %v1155
  %v1157 = vpop.f32.mrf.mxu0
  %v1158 = vadd.f32 0.0, %v1157
  %v1159 = vand.u32 %v1082, 4294901760
  %v1160 = vsub.f32 %v1082, %v1159
  %v1161 = vand.u32 %v1160, 4294901760
  %v1162 = vsub.f32 %v1160, %v1161
  %v1163 = vand.u32 %v1162, 4294901760
  %1164 = vmatmul.f32.gmra.mxu0 %v1163
  %v1165 = vpop.f32.mrf.mxu0
  %v1166 = vadd.f32 0.0, %v1165
  %v1167 = vand.u32 %v1085, 4294901760
  %v1168 = vsub.f32 %v1085, %v1167
  %v1169 = vand.u32 %v1168, 4294901760
  %v1170 = vsub.f32 %v1168, %v1169
  %v1171 = vand.u32 %v1170, 4294901760
  %1172 = vmatmul.f32.gmra.mxu0 %v1171
  %v1173 = vpop.f32.mrf.mxu0
  %v1174 = vadd.f32 0.0, %v1173
  %1175 = vdwg.mxu0
  %1176 = vmatpush.xpose.msra.mxu0 0.0
  %1177 = vmatpush.xpose.msra.mxu0 0.0
  %1178 = vmatpush.xpose.msra.mxu0 0.0
  %1179 = vmatpush.xpose.msra.mxu0 0.0
  %1180 = vmatpush.xpose.msra.mxu0 0.0
  %1181 = vmatpush.xpose.msra.mxu0 0.0
  %1182 = vmatpush.xpose.msra.mxu0 0.0
  %1183 = vmatpush.xpose.msra.mxu0 0.0
  %v1184 = vand.u32 %v1085, 4294901760
  %v1185 = vsub.f32 %v1085, %v1184
  %v1186 = vand.u32 %v1185, 4294901760
  %v1187 = vsub.f32 %v1185, %v1186
  %v1188 = vand.u32 %v1187, 4294901760
  %1189 = vmatpush.xpose.msra.mxu0 %v1188
  %v1190 = vand.u32 %v1082, 4294901760
  %v1191 = vsub.f32 %v1082, %v1190
  %v1192 = vand.u32 %v1191, 4294901760
  %v1193 = vsub.f32 %v1191, %v1192
  %v1194 = vand.u32 %v1193, 4294901760
  %1195 = vmatpush.xpose.msra.mxu0 %v1194
  %v1196 = vand.u32 %v1079, 4294901760
  %v1197 = vsub.f32 %v1079, %v1196
  %v1198 = vand.u32 %v1197, 4294901760
  %v1199 = vsub.f32 %v1197, %v1198
  %v1200 = vand.u32 %v1199, 4294901760
  %1201 = vmatpush.xpose.msra.mxu0 %v1200
  %v1202 = vand.u32 %v1076, 4294901760
  %v1203 = vsub.f32 %v1076, %v1202
  %v1204 = vand.u32 %v1203, 4294901760
  %v1205 = vsub.f32 %v1203, %v1204
  %v1206 = vand.u32 %v1205, 4294901760
  %1207 = vmatpush.xpose.msra.mxu0 %v1206
  %v1208 = vand.u32 %v1073, 4294901760
  %v1209 = vsub.f32 %v1073, %v1208
  %v1210 = vand.u32 %v1209, 4294901760
  %v1211 = vsub.f32 %v1209, %v1210
  %v1212 = vand.u32 %v1211, 4294901760
  %1213 = vmatpush.xpose.msra.mxu0 %v1212
  %v1214 = vand.u32 %v1070, 4294901760
  %v1215 = vsub.f32 %v1070, %v1214
  %v1216 = vand.u32 %v1215, 4294901760
  %v1217 = vsub.f32 %v1215, %v1216
  %v1218 = vand.u32 %v1217, 4294901760
  %1219 = vmatpush.xpose.msra.mxu0 %v1218
  %v1220 = vand.u32 %v1067, 4294901760
  %v1221 = vsub.f32 %v1067, %v1220
  %v1222 = vand.u32 %v1221, 4294901760
  %v1223 = vsub.f32 %v1221, %v1222
  %v1224 = vand.u32 %v1223, 4294901760
  %1225 = vmatpush.xpose.msra.mxu0 %v1224
  %v1226 = vand.u32 %v1064, 4294901760
  %v1227 = vsub.f32 %v1064, %v1226
  %v1228 = vand.u32 %v1227, 4294901760
  %v1229 = vsub.f32 %v1227, %v1228
  %v1230 = vand.u32 %v1229, 4294901760
  %1231 = vmatpush.xpose.msra.mxu0 %v1230
  %v1232 = vand.u32 %v1064, 4294901760
  %1233 = vmatmul.f32.gmra.mxu0 %v1232
  %v1234 = vpop.f32.mrf.mxu0
  %v1235 = vadd.f32 %v1118, %v1234
  %v1236 = vand.u32 %v1067, 4294901760
  %1237 = vmatmul.f32.gmra.mxu0 %v1236
  %v1238 = vpop.f32.mrf.mxu0
  %v1239 = vadd.f32 %v1126, %v1238
  %v1240 = vand.u32 %v1070, 4294901760
  %1241 = vmatmul.f32.gmra.mxu0 %v1240
  %v1242 = vpop.f32.mrf.mxu0
  %v1243 = vadd.f32 %v1134, %v1242
  %v1244 = vand.u32 %v1073, 4294901760
  %1245 = vmatmul.f32.gmra.mxu0 %v1244
  %v1246 = vpop.f32.mrf.mxu0
  %v1247 = vadd.f32 %v1142, %v1246
  %v1248 = vand.u32 %v1076, 4294901760
  %1249 = vmatmul.f32.gmra.mxu0 %v1248
  %v1250 = vpop.f32.mrf.mxu0
  %v1251 = vadd.f32 %v1150, %v1250
  %v1252 = vand.u32 %v1079, 4294901760
  %1253 = vmatmul.f32.gmra.mxu0 %v1252
  %v1254 = vpop.f32.mrf.mxu0
  %v1255 = vadd.f32 %v1158, %v1254
  %v1256 = vand.u32 %v1082, 4294901760
  %1257 = vmatmul.f32.gmra.mxu0 %v1256
  %v1258 = vpop.f32.mrf.mxu0
  %v1259 = vadd.f32 %v1166, %v1258
  %v1260 = vand.u32 %v1085, 4294901760
  %1261 = vmatmul.f32.gmra.mxu0 %v1260
  %v1262 = vpop.f32.mrf.mxu0
  %v1263 = vadd.f32 %v1174, %v1262
  %1264 = vdwg.mxu0
  %1265 = vmatpush.xpose.msra.mxu0 0.0
  %1266 = vmatpush.xpose.msra.mxu0 0.0
  %1267 = vmatpush.xpose.msra.mxu0 0.0
  %1268 = vmatpush.xpose.msra.mxu0 0.0
  %1269 = vmatpush.xpose.msra.mxu0 0.0
  %1270 = vmatpush.xpose.msra.mxu0 0.0
  %1271 = vmatpush.xpose.msra.mxu0 0.0
  %1272 = vmatpush.xpose.msra.mxu0 0.0
  %v1273 = vand.u32 %v1085, 4294901760
  %v1274 = vsub.f32 %v1085, %v1273
  %1275 = vmatpush.xpose.msra.mxu0 %v1274
  %v1276 = vand.u32 %v1082, 4294901760
  %v1277 = vsub.f32 %v1082, %v1276
  %1278 = vmatpush.xpose.msra.mxu0 %v1277
  %v1279 = vand.u32 %v1079, 4294901760
  %v1280 = vsub.f32 %v1079, %v1279
  %1281 = vmatpush.xpose.msra.mxu0 %v1280
  %v1282 = vand.u32 %v1076, 4294901760
  %v1283 = vsub.f32 %v1076, %v1282
  %1284 = vmatpush.xpose.msra.mxu0 %v1283
  %v1285 = vand.u32 %v1073, 4294901760
  %v1286 = vsub.f32 %v1073, %v1285
  %1287 = vmatpush.xpose.msra.mxu0 %v1286
  %v1288 = vand.u32 %v1070, 4294901760
  %v1289 = vsub.f32 %v1070, %v1288
  %1290 = vmatpush.xpose.msra.mxu0 %v1289
  %v1291 = vand.u32 %v1067, 4294901760
  %v1292 = vsub.f32 %v1067, %v1291
  %1293 = vmatpush.xpose.msra.mxu0 %v1292
  %v1294 = vand.u32 %v1064, 4294901760
  %v1295 = vsub.f32 %v1064, %v1294
  %1296 = vmatpush.xpose.msra.mxu0 %v1295
  %v1297 = vand.u32 %v1064, 4294901760
  %v1298 = vsub.f32 %v1064, %v1297
  %1299 = vmatmul.f32.gmra.mxu0 %v1298
  %v1300 = vpop.f32.mrf.mxu0
  %v1301 = vadd.f32 %v1235, %v1300
  %v1302 = vand.u32 %v1067, 4294901760
  %v1303 = vsub.f32 %v1067, %v1302
  %1304 = vmatmul.f32.gmra.mxu0 %v1303
  %v1305 = vpop.f32.mrf.mxu0
  %v1306 = vadd.f32 %v1239, %v1305
  %v1307 = vand.u32 %v1070, 4294901760
  %v1308 = vsub.f32 %v1070, %v1307
  %1309 = vmatmul.f32.gmra.mxu0 %v1308
  %v1310 = vpop.f32.mrf.mxu0
  %v1311 = vadd.f32 %v1243, %v1310
  %v1312 = vand.u32 %v1073, 4294901760
  %v1313 = vsub.f32 %v1073, %v1312
  %1314 = vmatmul.f32.gmra.mxu0 %v1313
  %v1315 = vpop.f32.mrf.mxu0
  %v1316 = vadd.f32 %v1247, %v1315
  %v1317 = vand.u32 %v1076, 4294901760
  %v1318 = vsub.f32 %v1076, %v1317
  %1319 = vmatmul.f32.gmra.mxu0 %v1318
  %v1320 = vpop.f32.mrf.mxu0
  %v1321 = vadd.f32 %v1251, %v1320
  %v1322 = vand.u32 %v1079, 4294901760
  %v1323 = vsub.f32 %v1079, %v1322
  %1324 = vmatmul.f32.gmra.mxu0 %v1323
  %v1325 = vpop.f32.mrf.mxu0
  %v1326 = vadd.f32 %v1255, %v1325
  %v1327 = vand.u32 %v1082, 4294901760
  %v1328 = vsub.f32 %v1082, %v1327
  %1329 = vmatmul.f32.gmra.mxu0 %v1328
  %v1330 = vpop.f32.mrf.mxu0
  %v1331 = vadd.f32 %v1259, %v1330
  %v1332 = vand.u32 %v1085, 4294901760
  %v1333 = vsub.f32 %v1085, %v1332
  %1334 = vmatmul.f32.gmra.mxu0 %v1333
  %v1335 = vpop.f32.mrf.mxu0
  %v1336 = vadd.f32 %v1263, %v1335
  %1337 = vdwg.mxu0
  %1338 = vmatpush.xpose.msra.mxu0 0.0
  %1339 = vmatpush.xpose.msra.mxu0 0.0
  %1340 = vmatpush.xpose.msra.mxu0 0.0
  %1341 = vmatpush.xpose.msra.mxu0 0.0
  %1342 = vmatpush.xpose.msra.mxu0 0.0
  %1343 = vmatpush.xpose.msra.mxu0 0.0
  %1344 = vmatpush.xpose.msra.mxu0 0.0
  %1345 = vmatpush.xpose.msra.mxu0 0.0
  %v1346 = vand.u32 %v1085, 4294901760
  %1347 = vmatpush.xpose.msra.mxu0 %v1346
  %v1348 = vand.u32 %v1082, 4294901760
  %1349 = vmatpush.xpose.msra.mxu0 %v1348
  %v1350 = vand.u32 %v1079, 4294901760
  %1351 = vmatpush.xpose.msra.mxu0 %v1350
  %v1352 = vand.u32 %v1076, 4294901760
  %1353 = vmatpush.xpose.msra.mxu0 %v1352
  %v1354 = vand.u32 %v1073, 4294901760
  %1355 = vmatpush.xpose.msra.mxu0 %v1354
  %v1356 = vand.u32 %v1070, 4294901760
  %1357 = vmatpush.xpose.msra.mxu0 %v1356
  %v1358 = vand.u32 %v1067, 4294901760
  %1359 = vmatpush.xpose.msra.mxu0 %v1358
  %v1360 = vand.u32 %v1064, 4294901760
  %1361 = vmatpush.xpose.msra.mxu0 %v1360
  %v1362 = vand.u32 %v1064, 4294901760
  %v1363 = vsub.f32 %v1064, %v1362
  %v1364 = vand.u32 %v1363, 4294901760
  %1365 = vmatmul.f32.gmra.mxu0 %v1364
  %v1366 = vpop.f32.mrf.mxu0
  %v1367 = vadd.f32 %v1301, %v1366
  %v1368 = vand.u32 %v1067, 4294901760
  %v1369 = vsub.f32 %v1067, %v1368
  %v1370 = vand.u32 %v1369, 4294901760
  %1371 = vmatmul.f32.gmra.mxu0 %v1370
  %v1372 = vpop.f32.mrf.mxu0
  %v1373 = vadd.f32 %v1306, %v1372
  %v1374 = vand.u32 %v1070, 4294901760
  %v1375 = vsub.f32 %v1070, %v1374
  %v1376 = vand.u32 %v1375, 4294901760
  %1377 = vmatmul.f32.gmra.mxu0 %v1376
  %v1378 = vpop.f32.mrf.mxu0
  %v1379 = vadd.f32 %v1311, %v1378
  %v1380 = vand.u32 %v1073, 4294901760
  %v1381 = vsub.f32 %v1073, %v1380
  %v1382 = vand.u32 %v1381, 4294901760
  %1383 = vmatmul.f32.gmra.mxu0 %v1382
  %v1384 = vpop.f32.mrf.mxu0
  %v1385 = vadd.f32 %v1316, %v1384
  %v1386 = vand.u32 %v1076, 4294901760
  %v1387 = vsub.f32 %v1076, %v1386
  %v1388 = vand.u32 %v1387, 4294901760
  %1389 = vmatmul.f32.gmra.mxu0 %v1388
  %v1390 = vpop.f32.mrf.mxu0
  %v1391 = vadd.f32 %v1321, %v1390
  %v1392 = vand.u32 %v1079, 4294901760
  %v1393 = vsub.f32 %v1079, %v1392
  %v1394 = vand.u32 %v1393, 4294901760
  %1395 = vmatmul.f32.gmra.mxu0 %v1394
  %v1396 = vpop.f32.mrf.mxu0
  %v1397 = vadd.f32 %v1326, %v1396
  %v1398 = vand.u32 %v1082, 4294901760
  %v1399 = vsub.f32 %v1082, %v1398
  %v1400 = vand.u32 %v1399, 4294901760
  %1401 = vmatmul.f32.gmra.mxu0 %v1400
  %v1402 = vpop.f32.mrf.mxu0
  %v1403 = vadd.f32 %v1331, %v1402
  %v1404 = vand.u32 %v1085, 4294901760
  %v1405 = vsub.f32 %v1085, %v1404
  %v1406 = vand.u32 %v1405, 4294901760
  %1407 = vmatmul.f32.gmra.mxu0 %v1406
  %v1408 = vpop.f32.mrf.mxu0
  %v1409 = vadd.f32 %v1336, %v1408
  %1410 = vdwg.mxu0
  %1411 = vmatpush.xpose.msra.mxu0 0.0
  %1412 = vmatpush.xpose.msra.mxu0 0.0
  %1413 = vmatpush.xpose.msra.mxu0 0.0
  %1414 = vmatpush.xpose.msra.mxu0 0.0
  %1415 = vmatpush.xpose.msra.mxu0 0.0
  %1416 = vmatpush.xpose.msra.mxu0 0.0
  %1417 = vmatpush.xpose.msra.mxu0 0.0
  %1418 = vmatpush.xpose.msra.mxu0 0.0
  %v1419 = vand.u32 %v1085, 4294901760
  %v1420 = vsub.f32 %v1085, %v1419
  %v1421 = vand.u32 %v1420, 4294901760
  %1422 = vmatpush.xpose.msra.mxu0 %v1421
  %v1423 = vand.u32 %v1082, 4294901760
  %v1424 = vsub.f32 %v1082, %v1423
  %v1425 = vand.u32 %v1424, 4294901760
  %1426 = vmatpush.xpose.msra.mxu0 %v1425
  %v1427 = vand.u32 %v1079, 4294901760
  %v1428 = vsub.f32 %v1079, %v1427
  %v1429 = vand.u32 %v1428, 4294901760
  %1430 = vmatpush.xpose.msra.mxu0 %v1429
  %v1431 = vand.u32 %v1076, 4294901760
  %v1432 = vsub.f32 %v1076, %v1431
  %v1433 = vand.u32 %v1432, 4294901760
  %1434 = vmatpush.xpose.msra.mxu0 %v1433
  %v1435 = vand.u32 %v1073, 4294901760
  %v1436 = vsub.f32 %v1073, %v1435
  %v1437 = vand.u32 %v1436, 4294901760
  %1438 = vmatpush.xpose.msra.mxu0 %v1437
  %v1439 = vand.u32 %v1070, 4294901760
  %v1440 = vsub.f32 %v1070, %v1439
  %v1441 = vand.u32 %v1440, 4294901760
  %1442 = vmatpush.xpose.msra.mxu0 %v1441
  %v1443 = vand.u32 %v1067, 4294901760
  %v1444 = vsub.f32 %v1067, %v1443
  %v1445 = vand.u32 %v1444, 4294901760
  %1446 = vmatpush.xpose.msra.mxu0 %v1445
  %v1447 = vand.u32 %v1064, 4294901760
  %v1448 = vsub.f32 %v1064, %v1447
  %v1449 = vand.u32 %v1448, 4294901760
  %1450 = vmatpush.xpose.msra.mxu0 %v1449
  %v1451 = vand.u32 %v1064, 4294901760
  %1452 = vmatmul.f32.gmra.mxu0 %v1451
  %v1453 = vpop.f32.mrf.mxu0
  %v1454 = vadd.f32 %v1367, %v1453
  %v1455 = vand.u32 %v1067, 4294901760
  %1456 = vmatmul.f32.gmra.mxu0 %v1455
  %v1457 = vpop.f32.mrf.mxu0
  %v1458 = vadd.f32 %v1373, %v1457
  %v1459 = vand.u32 %v1070, 4294901760
  %1460 = vmatmul.f32.gmra.mxu0 %v1459
  %v1461 = vpop.f32.mrf.mxu0
  %v1462 = vadd.f32 %v1379, %v1461
  %v1463 = vand.u32 %v1073, 4294901760
  %1464 = vmatmul.f32.gmra.mxu0 %v1463
  %v1465 = vpop.f32.mrf.mxu0
  %v1466 = vadd.f32 %v1385, %v1465
  %v1467 = vand.u32 %v1076, 4294901760
  %1468 = vmatmul.f32.gmra.mxu0 %v1467
  %v1469 = vpop.f32.mrf.mxu0
  %v1470 = vadd.f32 %v1391, %v1469
  %v1471 = vand.u32 %v1079, 4294901760
  %1472 = vmatmul.f32.gmra.mxu0 %v1471
  %v1473 = vpop.f32.mrf.mxu0
  %v1474 = vadd.f32 %v1397, %v1473
  %v1475 = vand.u32 %v1082, 4294901760
  %1476 = vmatmul.f32.gmra.mxu0 %v1475
  %v1477 = vpop.f32.mrf.mxu0
  %v1478 = vadd.f32 %v1403, %v1477
  %v1479 = vand.u32 %v1085, 4294901760
  %1480 = vmatmul.f32.gmra.mxu0 %v1479
  %v1481 = vpop.f32.mrf.mxu0
  %v1482 = vadd.f32 %v1409, %v1481
  %1483 = vdwg.mxu0
  %1484 = vmatpush.xpose.msra.mxu0 0.0
  %1485 = vmatpush.xpose.msra.mxu0 0.0
  %1486 = vmatpush.xpose.msra.mxu0 0.0
  %1487 = vmatpush.xpose.msra.mxu0 0.0
  %1488 = vmatpush.xpose.msra.mxu0 0.0
  %1489 = vmatpush.xpose.msra.mxu0 0.0
  %1490 = vmatpush.xpose.msra.mxu0 0.0
  %1491 = vmatpush.xpose.msra.mxu0 0.0
  %v1492 = vand.u32 %v1085, 4294901760
  %1493 = vmatpush.xpose.msra.mxu0 %v1492
  %v1494 = vand.u32 %v1082, 4294901760
  %1495 = vmatpush.xpose.msra.mxu0 %v1494
  %v1496 = vand.u32 %v1079, 4294901760
  %1497 = vmatpush.xpose.msra.mxu0 %v1496
  %v1498 = vand.u32 %v1076, 4294901760
  %1499 = vmatpush.xpose.msra.mxu0 %v1498
  %v1500 = vand.u32 %v1073, 4294901760
  %1501 = vmatpush.xpose.msra.mxu0 %v1500
  %v1502 = vand.u32 %v1070, 4294901760
  %1503 = vmatpush.xpose.msra.mxu0 %v1502
  %v1504 = vand.u32 %v1067, 4294901760
  %1505 = vmatpush.xpose.msra.mxu0 %v1504
  %v1506 = vand.u32 %v1064, 4294901760
  %1507 = vmatpush.xpose.msra.mxu0 %v1506
  %v1508 = vand.u32 %v1064, 4294901760
  %1509 = vmatmul.f32.gmra.mxu0 %v1508
  %v1510 = vpop.f32.mrf.mxu0
  %v1511 = vadd.f32 %v1454, %v1510
  %v1512 = vand.u32 %v1067, 4294901760
  %1513 = vmatmul.f32.gmra.mxu0 %v1512
  %v1514 = vpop.f32.mrf.mxu0
  %v1515 = vadd.f32 %v1458, %v1514
  %v1516 = vand.u32 %v1070, 4294901760
  %1517 = vmatmul.f32.gmra.mxu0 %v1516
  %v1518 = vpop.f32.mrf.mxu0
  %v1519 = vadd.f32 %v1462, %v1518
  %v1520 = vand.u32 %v1073, 4294901760
  %1521 = vmatmul.f32.gmra.mxu0 %v1520
  %v1522 = vpop.f32.mrf.mxu0
  %v1523 = vadd.f32 %v1466, %v1522
  %v1524 = vand.u32 %v1076, 4294901760
  %1525 = vmatmul.f32.gmra.mxu0 %v1524
  %v1526 = vpop.f32.mrf.mxu0
  %v1527 = vadd.f32 %v1470, %v1526
  %v1528 = vand.u32 %v1079, 4294901760
  %1529 = vmatmul.f32.gmra.mxu0 %v1528
  %v1530 = vpop.f32.mrf.mxu0
  %v1531 = vadd.f32 %v1474, %v1530
  %v1532 = vand.u32 %v1082, 4294901760
  %1533 = vmatmul.f32.gmra.mxu0 %v1532
  %v1534 = vpop.f32.mrf.mxu0
  %v1535 = vadd.f32 %v1478, %v1534
  %v1536 = vand.u32 %v1085, 4294901760
  %1537 = vmatmul.f32.gmra.mxu0 %v1536
  %v1538 = vpop.f32.mrf.mxu0
  %v1539 = vadd.f32 %v1482, %v1538
  %1540 = vdwg.mxu0
  %v1541 = vmul.f32 %v1511, 0.35355338
  %v1542 = vmul.f32 %v1515, 0.35355338
  %v1543 = vmul.f32 %v1519, 0.35355338
  %v1544 = vmul.f32 %v1523, 0.35355338
  %v1545 = vmul.f32 %v1527, 0.35355338
  %v1546 = vmul.f32 %v1531, 0.35355338
  %v1547 = vmul.f32 %v1535, 0.35355338
  %v1548 = vmul.f32 %v1539, 0.35355338
  %v1549 = vadd.f32 %v1541, %v86
  %v1550 = vadd.f32 %v1542, %v87
  %v1551 = vadd.f32 %v1543, %v88
  %v1552 = vadd.f32 %v1544, %v89
  %v1553 = vadd.f32 %v1545, %v90
  %v1554 = vadd.f32 %v1546, %v91
  %v1555 = vadd.f32 %v1547, %v92
  %v1556 = vadd.f32 %v1548, %v93
  %vm1557 = vcmask 523264
  %v1558 = vsel %vm1557, %v1549, -inf
  %1559 = vmax.xlane.f32.xlu0 %v1558
  %v1560 = vpop.xlane.xlu0 %1559
  %v1561 = vsel %vm1557, %v1550, -inf
  %1562 = vmax.xlane.f32.xlu0 %v1561
  %v1563 = vpop.xlane.xlu0 %1562
  %v1564 = vsel %vm1557, %v1551, -inf
  %1565 = vmax.xlane.f32.xlu0 %v1564
  %v1566 = vpop.xlane.xlu0 %1565
  %v1567 = vsel %vm1557, %v1552, -inf
  %1568 = vmax.xlane.f32.xlu0 %v1567
  %v1569 = vpop.xlane.xlu0 %1568
  %v1570 = vsel %vm1557, %v1553, -inf
  %1571 = vmax.xlane.f32.xlu0 %v1570
  %v1572 = vpop.xlane.xlu0 %1571
  %v1573 = vsel %vm1557, %v1554, -inf
  %1574 = vmax.xlane.f32.xlu0 %v1573
  %v1575 = vpop.xlane.xlu0 %1574
  %v1576 = vsel %vm1557, %v1555, -inf
  %1577 = vmax.xlane.f32.xlu0 %v1576
  %v1578 = vpop.xlane.xlu0 %1577
  %v1579 = vsel %vm1557, %v1556, -inf
  %1580 = vmax.xlane.f32.xlu0 %v1579
  %v1581 = vpop.xlane.xlu0 %1580
  %v1582 = vsub.f32 %v1549, %v1560
  %v1583 = vsub.f32 %v1550, %v1563
  %v1584 = vsub.f32 %v1551, %v1566
  %v1585 = vsub.f32 %v1552, %v1569
  %v1586 = vsub.f32 %v1553, %v1572
  %v1587 = vsub.f32 %v1554, %v1575
  %v1588 = vsub.f32 %v1555, %v1578
  %v1589 = vsub.f32 %v1556, %v1581
  %v1590 = vmul.f32 %v1582, 1.442695
  %v1591 = vpow.pop %v1590
  %v1592 = vmul.f32 %v1583, 1.442695
  %v1593 = vpow.pop %v1592
  %v1594 = vmul.f32 %v1584, 1.442695
  %v1595 = vpow.pop %v1594
  %v1596 = vmul.f32 %v1585, 1.442695
  %v1597 = vpow.pop %v1596
  %v1598 = vmul.f32 %v1586, 1.442695
  %v1599 = vpow.pop %v1598
  %v1600 = vmul.f32 %v1587, 1.442695
  %v1601 = vpow.pop %v1600
  %v1602 = vmul.f32 %v1588, 1.442695
  %v1603 = vpow.pop %v1602
  %v1604 = vmul.f32 %v1589, 1.442695
  %v1605 = vpow.pop %v1604
  %v1606 = vsel %vm1557, %v1591, 0.0
  %1607 = vadd.xlane.f32.xlu0 %v1606
  %v1608 = vpop.xlane.xlu0 %1607
  %v1609 = vsel %vm1557, %v1593, 0.0
  %1610 = vadd.xlane.f32.xlu0 %v1609
  %v1611 = vpop.xlane.xlu0 %1610
  %v1612 = vsel %vm1557, %v1595, 0.0
  %1613 = vadd.xlane.f32.xlu0 %v1612
  %v1614 = vpop.xlane.xlu0 %1613
  %v1615 = vsel %vm1557, %v1597, 0.0
  %1616 = vadd.xlane.f32.xlu0 %v1615
  %v1617 = vpop.xlane.xlu0 %1616
  %v1618 = vsel %vm1557, %v1599, 0.0
  %1619 = vadd.xlane.f32.xlu0 %v1618
  %v1620 = vpop.xlane.xlu0 %1619
  %v1621 = vsel %vm1557, %v1601, 0.0
  %1622 = vadd.xlane.f32.xlu0 %v1621
  %v1623 = vpop.xlane.xlu0 %1622
  %v1624 = vsel %vm1557, %v1603, 0.0
  %1625 = vadd.xlane.f32.xlu0 %v1624
  %v1626 = vpop.xlane.xlu0 %1625
  %v1627 = vsel %vm1557, %v1605, 0.0
  %1628 = vadd.xlane.f32.xlu0 %v1627
  %v1629 = vpop.xlane.xlu0 %1628
  %v1630 = vrcp.pop %v1608
  %v1631 = vmul.f32 %v1608, %v1630
  %v1632 = vsub.f32 1.0, %v1631
  %v1633 = vmul.f32 %v1630, %v1632
  %v1634 = vadd.f32 %v1630, %v1633
  %vm1635 = vweird.f32 %v1608
  %vm1636 = vweird.f32 %v1630
  %vm1637 = vmor %vm1635, %vm1636
  %v1638 = vsel %vm1637, %v1630, %v1634
  %v1639 = vand.u32 2147483647, %v1608
  %vm1640 = vcmp.eq.f32.partialorder %v1639, 8.507059e+37
  %v1641 = vand.u32 %v1608, 2147483648
  %v1642 = vor.u32 1.1754944e-38, %v1641
  %v1643 = vsel %vm1640, %v1642, %v1638
  %v1644 = vmul.f32 %v1591, %v1643
  %v1645 = vrcp.pop %v1611
  %v1646 = vmul.f32 %v1611, %v1645
  %v1647 = vsub.f32 1.0, %v1646
  %v1648 = vmul.f32 %v1645, %v1647
  %v1649 = vadd.f32 %v1645, %v1648
  %vm1650 = vweird.f32 %v1611
  %vm1651 = vweird.f32 %v1645
  %vm1652 = vmor %vm1650, %vm1651
  %v1653 = vsel %vm1652, %v1645, %v1649
  %v1654 = vand.u32 2147483647, %v1611
  %vm1655 = vcmp.eq.f32.partialorder %v1654, 8.507059e+37
  %v1656 = vand.u32 %v1611, 2147483648
  %v1657 = vor.u32 1.1754944e-38, %v1656
  %v1658 = vsel %vm1655, %v1657, %v1653
  %v1659 = vmul.f32 %v1593, %v1658
  %v1660 = vrcp.pop %v1614
  %v1661 = vmul.f32 %v1614, %v1660
  %v1662 = vsub.f32 1.0, %v1661
  %v1663 = vmul.f32 %v1660, %v1662
  %v1664 = vadd.f32 %v1660, %v1663
  %vm1665 = vweird.f32 %v1614
  %vm1666 = vweird.f32 %v1660
  %vm1667 = vmor %vm1665, %vm1666
  %v1668 = vsel %vm1667, %v1660, %v1664
  %v1669 = vand.u32 2147483647, %v1614
  %vm1670 = vcmp.eq.f32.partialorder %v1669, 8.507059e+37
  %v1671 = vand.u32 %v1614, 2147483648
  %v1672 = vor.u32 1.1754944e-38, %v1671
  %v1673 = vsel %vm1670, %v1672, %v1668
  %v1674 = vmul.f32 %v1595, %v1673
  %v1675 = vrcp.pop %v1617
  %v1676 = vmul.f32 %v1617, %v1675
  %v1677 = vsub.f32 1.0, %v1676
  %v1678 = vmul.f32 %v1675, %v1677
  %v1679 = vadd.f32 %v1675, %v1678
  %vm1680 = vweird.f32 %v1617
  %vm1681 = vweird.f32 %v1675
  %vm1682 = vmor %vm1680, %vm1681
  %v1683 = vsel %vm1682, %v1675, %v1679
  %v1684 = vand.u32 2147483647, %v1617
  %vm1685 = vcmp.eq.f32.partialorder %v1684, 8.507059e+37
  %v1686 = vand.u32 %v1617, 2147483648
  %v1687 = vor.u32 1.1754944e-38, %v1686
  %v1688 = vsel %vm1685, %v1687, %v1683
  %v1689 = vmul.f32 %v1597, %v1688
  %v1690 = vrcp.pop %v1620
  %v1691 = vmul.f32 %v1620, %v1690
  %v1692 = vsub.f32 1.0, %v1691
  %v1693 = vmul.f32 %v1690, %v1692
  %v1694 = vadd.f32 %v1690, %v1693
  %vm1695 = vweird.f32 %v1620
  %vm1696 = vweird.f32 %v1690
  %vm1697 = vmor %vm1695, %vm1696
  %v1698 = vsel %vm1697, %v1690, %v1694
  %v1699 = vand.u32 2147483647, %v1620
  %vm1700 = vcmp.eq.f32.partialorder %v1699, 8.507059e+37
  %v1701 = vand.u32 %v1620, 2147483648
  %v1702 = vor.u32 1.1754944e-38, %v1701
  %v1703 = vsel %vm1700, %v1702, %v1698
  %v1704 = vmul.f32 %v1599, %v1703
  %v1705 = vrcp.pop %v1623
  %v1706 = vmul.f32 %v1623, %v1705
  %v1707 = vsub.f32 1.0, %v1706
  %v1708 = vmul.f32 %v1705, %v1707
  %v1709 = vadd.f32 %v1705, %v1708
  %vm1710 = vweird.f32 %v1623
  %vm1711 = vweird.f32 %v1705
  %vm1712 = vmor %vm1710, %vm1711
  %v1713 = vsel %vm1712, %v1705, %v1709
  %v1714 = vand.u32 2147483647, %v1623
  %vm1715 = vcmp.eq.f32.partialorder %v1714, 8.507059e+37
  %v1716 = vand.u32 %v1623, 2147483648
  %v1717 = vor.u32 1.1754944e-38, %v1716
  %v1718 = vsel %vm1715, %v1717, %v1713
  %v1719 = vmul.f32 %v1601, %v1718
  %v1720 = vrcp.pop %v1626
  %v1721 = vmul.f32 %v1626, %v1720
  %v1722 = vsub.f32 1.0, %v1721
  %v1723 = vmul.f32 %v1720, %v1722
  %v1724 = vadd.f32 %v1720, %v1723
  %vm1725 = vweird.f32 %v1626
  %vm1726 = vweird.f32 %v1720
  %vm1727 = vmor %vm1725, %vm1726
  %v1728 = vsel %vm1727, %v1720, %v1724
  %v1729 = vand.u32 2147483647, %v1626
  %vm1730 = vcmp.eq.f32.partialorder %v1729, 8.507059e+37
  %v1731 = vand.u32 %v1626, 2147483648
  %v1732 = vor.u32 1.1754944e-38, %v1731
  %v1733 = vsel %vm1730, %v1732, %v1728
  %v1734 = vmul.f32 %v1603, %v1733
  %v1735 = vrcp.pop %v1629
  %v1736 = vmul.f32 %v1629, %v1735
  %v1737 = vsub.f32 1.0, %v1736
  %v1738 = vmul.f32 %v1735, %v1737
  %v1739 = vadd.f32 %v1735, %v1738
  %vm1740 = vweird.f32 %v1629
  %vm1741 = vweird.f32 %v1735
  %vm1742 = vmor %vm1740, %vm1741
  %v1743 = vsel %vm1742, %v1735, %v1739
  %v1744 = vand.u32 2147483647, %v1629
  %vm1745 = vcmp.eq.f32.partialorder %v1744, 8.507059e+37
  %v1746 = vand.u32 %v1629, 2147483648
  %v1747 = vor.u32 1.1754944e-38, %v1746
  %v1748 = vsel %vm1745, %v1747, %v1743
  %v1749 = vmul.f32 %v1605, %v1748
  %v1751 = vsel %vm1557, %v1644, 0
  %v1754 = vsel %vm1557, %v1659, 0
  %v1757 = vsel %vm1557, %v1674, 0
  %v1760 = vsel %vm1557, %v1689, 0
  %v1763 = vsel %vm1557, %v1704, 0
  %v1766 = vsel %vm1557, %v1719, 0
  %v1769 = vsel %vm1557, %v1734, 0
  %v1772 = vsel %vm1557, %v1749, 0
  %1774 = vmatpush.msra.mxu0 0.0
  %1775 = vmatpush.msra.mxu0 0.0
  %1776 = vmatpush.msra.mxu0 0.0
  %1777 = vmatpush.msra.mxu0 0.0
  %1778 = vmatpush.msra.mxu0 0.0
  %1779 = vmatpush.msra.mxu0 0.0
  %1780 = vmatpush.msra.mxu0 0.0
  %1781 = vmatpush.msra.mxu0 0.0
  %v1782 = vand.u32 %v1061, 4294901760
  %1783 = vmatpush.msra.mxu0 %v1782
  %v1784 = vand.u32 %v1060, 4294901760
  %1785 = vmatpush.msra.mxu0 %v1784
  %v1786 = vand.u32 %v1059, 4294901760
  %1787 = vmatpush.msra.mxu0 %v1786
  %v1788 = vand.u32 %v1058, 4294901760
  %1789 = vmatpush.msra.mxu0 %v1788
  %v1790 = vand.u32 %v1057, 4294901760
  %1791 = vmatpush.msra.mxu0 %v1790
  %v1792 = vand.u32 %v1056, 4294901760
  %1793 = vmatpush.msra.mxu0 %v1792
  %v1794 = vand.u32 %v1055, 4294901760
  %1795 = vmatpush.msra.mxu0 %v1794
  %v1796 = vand.u32 %v1054, 4294901760
  %1797 = vmatpush.msra.mxu0 %v1796
  %v1798 = vand.u32 %v1751, 4294901760
  %v1799 = vsub.f32 %v1751, %v1798
  %v1800 = vand.u32 %v1799, 4294901760
  %v1801 = vsub.f32 %v1799, %v1800
  %v1802 = vand.u32 %v1801, 4294901760
  %1803 = vmatmul.f32.gmra.mxu0 %v1802
  %v1804 = vpop.f32.mrf.mxu0
  %v1805 = vadd.f32 0.0, %v1804
  %v1806 = vand.u32 %v1754, 4294901760
  %v1807 = vsub.f32 %v1754, %v1806
  %v1808 = vand.u32 %v1807, 4294901760
  %v1809 = vsub.f32 %v1807, %v1808
  %v1810 = vand.u32 %v1809, 4294901760
  %1811 = vmatmul.f32.gmra.mxu0 %v1810
  %v1812 = vpop.f32.mrf.mxu0
  %v1813 = vadd.f32 0.0, %v1812
  %v1814 = vand.u32 %v1757, 4294901760
  %v1815 = vsub.f32 %v1757, %v1814
  %v1816 = vand.u32 %v1815, 4294901760
  %v1817 = vsub.f32 %v1815, %v1816
  %v1818 = vand.u32 %v1817, 4294901760
  %1819 = vmatmul.f32.gmra.mxu0 %v1818
  %v1820 = vpop.f32.mrf.mxu0
  %v1821 = vadd.f32 0.0, %v1820
  %v1822 = vand.u32 %v1760, 4294901760
  %v1823 = vsub.f32 %v1760, %v1822
  %v1824 = vand.u32 %v1823, 4294901760
  %v1825 = vsub.f32 %v1823, %v1824
  %v1826 = vand.u32 %v1825, 4294901760
  %1827 = vmatmul.f32.gmra.mxu0 %v1826
  %v1828 = vpop.f32.mrf.mxu0
  %v1829 = vadd.f32 0.0, %v1828
  %v1830 = vand.u32 %v1763, 4294901760
  %v1831 = vsub.f32 %v1763, %v1830
  %v1832 = vand.u32 %v1831, 4294901760
  %v1833 = vsub.f32 %v1831, %v1832
  %v1834 = vand.u32 %v1833, 4294901760
  %1835 = vmatmul.f32.gmra.mxu0 %v1834
  %v1836 = vpop.f32.mrf.mxu0
  %v1837 = vadd.f32 0.0, %v1836
  %v1838 = vand.u32 %v1766, 4294901760
  %v1839 = vsub.f32 %v1766, %v1838
  %v1840 = vand.u32 %v1839, 4294901760
  %v1841 = vsub.f32 %v1839, %v1840
  %v1842 = vand.u32 %v1841, 4294901760
  %1843 = vmatmul.f32.gmra.mxu0 %v1842
  %v1844 = vpop.f32.mrf.mxu0
  %v1845 = vadd.f32 0.0, %v1844
  %v1846 = vand.u32 %v1769, 4294901760
  %v1847 = vsub.f32 %v1769, %v1846
  %v1848 = vand.u32 %v1847, 4294901760
  %v1849 = vsub.f32 %v1847, %v1848
  %v1850 = vand.u32 %v1849, 4294901760
  %1851 = vmatmul.f32.gmra.mxu0 %v1850
  %v1852 = vpop.f32.mrf.mxu0
  %v1853 = vadd.f32 0.0, %v1852
  %v1854 = vand.u32 %v1772, 4294901760
  %v1855 = vsub.f32 %v1772, %v1854
  %v1856 = vand.u32 %v1855, 4294901760
  %v1857 = vsub.f32 %v1855, %v1856
  %v1858 = vand.u32 %v1857, 4294901760
  %1859 = vmatmul.f32.gmra.mxu0 %v1858
  %v1860 = vpop.f32.mrf.mxu0
  %v1861 = vadd.f32 0.0, %v1860
  %1862 = vdwg.mxu0
  %1863 = vmatpush.msra.mxu0 0.0
  %1864 = vmatpush.msra.mxu0 0.0
  %1865 = vmatpush.msra.mxu0 0.0
  %1866 = vmatpush.msra.mxu0 0.0
  %1867 = vmatpush.msra.mxu0 0.0
  %1868 = vmatpush.msra.mxu0 0.0
  %1869 = vmatpush.msra.mxu0 0.0
  %1870 = vmatpush.msra.mxu0 0.0
  %v1871 = vand.u32 %v1061, 4294901760
  %v1872 = vsub.f32 %v1061, %v1871
  %v1873 = vand.u32 %v1872, 4294901760
  %v1874 = vsub.f32 %v1872, %v1873
  %v1875 = vand.u32 %v1874, 4294901760
  %1876 = vmatpush.msra.mxu0 %v1875
  %v1877 = vand.u32 %v1060, 4294901760
  %v1878 = vsub.f32 %v1060, %v1877
  %v1879 = vand.u32 %v1878, 4294901760
  %v1880 = vsub.f32 %v1878, %v1879
  %v1881 = vand.u32 %v1880, 4294901760
  %1882 = vmatpush.msra.mxu0 %v1881
  %v1883 = vand.u32 %v1059, 4294901760
  %v1884 = vsub.f32 %v1059, %v1883
  %v1885 = vand.u32 %v1884, 4294901760
  %v1886 = vsub.f32 %v1884, %v1885
  %v1887 = vand.u32 %v1886, 4294901760
  %1888 = vmatpush.msra.mxu0 %v1887
  %v1889 = vand.u32 %v1058, 4294901760
  %v1890 = vsub.f32 %v1058, %v1889
  %v1891 = vand.u32 %v1890, 4294901760
  %v1892 = vsub.f32 %v1890, %v1891
  %v1893 = vand.u32 %v1892, 4294901760
  %1894 = vmatpush.msra.mxu0 %v1893
  %v1895 = vand.u32 %v1057, 4294901760
  %v1896 = vsub.f32 %v1057, %v1895
  %v1897 = vand.u32 %v1896, 4294901760
  %v1898 = vsub.f32 %v1896, %v1897
  %v1899 = vand.u32 %v1898, 4294901760
  %1900 = vmatpush.msra.mxu0 %v1899
  %v1901 = vand.u32 %v1056, 4294901760
  %v1902 = vsub.f32 %v1056, %v1901
  %v1903 = vand.u32 %v1902, 4294901760
  %v1904 = vsub.f32 %v1902, %v1903
  %v1905 = vand.u32 %v1904, 4294901760
  %1906 = vmatpush.msra.mxu0 %v1905
  %v1907 = vand.u32 %v1055, 4294901760
  %v1908 = vsub.f32 %v1055, %v1907
  %v1909 = vand.u32 %v1908, 4294901760
  %v1910 = vsub.f32 %v1908, %v1909
  %v1911 = vand.u32 %v1910, 4294901760
  %1912 = vmatpush.msra.mxu0 %v1911
  %v1913 = vand.u32 %v1054, 4294901760
  %v1914 = vsub.f32 %v1054, %v1913
  %v1915 = vand.u32 %v1914, 4294901760
  %v1916 = vsub.f32 %v1914, %v1915
  %v1917 = vand.u32 %v1916, 4294901760
  %1918 = vmatpush.msra.mxu0 %v1917
  %v1919 = vand.u32 %v1751, 4294901760
  %1920 = vmatmul.f32.gmra.mxu0 %v1919
  %v1921 = vpop.f32.mrf.mxu0
  %v1922 = vadd.f32 %v1805, %v1921
  %v1923 = vand.u32 %v1754, 4294901760
  %1924 = vmatmul.f32.gmra.mxu0 %v1923
  %v1925 = vpop.f32.mrf.mxu0
  %v1926 = vadd.f32 %v1813, %v1925
  %v1927 = vand.u32 %v1757, 4294901760
  %1928 = vmatmul.f32.gmra.mxu0 %v1927
  %v1929 = vpop.f32.mrf.mxu0
  %v1930 = vadd.f32 %v1821, %v1929
  %v1931 = vand.u32 %v1760, 4294901760
  %1932 = vmatmul.f32.gmra.mxu0 %v1931
  %v1933 = vpop.f32.mrf.mxu0
  %v1934 = vadd.f32 %v1829, %v1933
  %v1935 = vand.u32 %v1763, 4294901760
  %1936 = vmatmul.f32.gmra.mxu0 %v1935
  %v1937 = vpop.f32.mrf.mxu0
  %v1938 = vadd.f32 %v1837, %v1937
  %v1939 = vand.u32 %v1766, 4294901760
  %1940 = vmatmul.f32.gmra.mxu0 %v1939
  %v1941 = vpop.f32.mrf.mxu0
  %v1942 = vadd.f32 %v1845, %v1941
  %v1943 = vand.u32 %v1769, 4294901760
  %1944 = vmatmul.f32.gmra.mxu0 %v1943
  %v1945 = vpop.f32.mrf.mxu0
  %v1946 = vadd.f32 %v1853, %v1945
  %v1947 = vand.u32 %v1772, 4294901760
  %1948 = vmatmul.f32.gmra.mxu0 %v1947
  %v1949 = vpop.f32.mrf.mxu0
  %v1950 = vadd.f32 %v1861, %v1949
  %1951 = vdwg.mxu0
  %1952 = vmatpush.msra.mxu0 0.0
  %1953 = vmatpush.msra.mxu0 0.0
  %1954 = vmatpush.msra.mxu0 0.0
  %1955 = vmatpush.msra.mxu0 0.0
  %1956 = vmatpush.msra.mxu0 0.0
  %1957 = vmatpush.msra.mxu0 0.0
  %1958 = vmatpush.msra.mxu0 0.0
  %1959 = vmatpush.msra.mxu0 0.0
  %v1960 = vand.u32 %v1061, 4294901760
  %v1961 = vsub.f32 %v1061, %v1960
  %1962 = vmatpush.msra.mxu0 %v1961
  %v1963 = vand.u32 %v1060, 4294901760
  %v1964 = vsub.f32 %v1060, %v1963
  %1965 = vmatpush.msra.mxu0 %v1964
  %v1966 = vand.u32 %v1059, 4294901760
  %v1967 = vsub.f32 %v1059, %v1966
  %1968 = vmatpush.msra.mxu0 %v1967
  %v1969 = vand.u32 %v1058, 4294901760
  %v1970 = vsub.f32 %v1058, %v1969
  %1971 = vmatpush.msra.mxu0 %v1970
  %v1972 = vand.u32 %v1057, 4294901760
  %v1973 = vsub.f32 %v1057, %v1972
  %1974 = vmatpush.msra.mxu0 %v1973
  %v1975 = vand.u32 %v1056, 4294901760
  %v1976 = vsub.f32 %v1056, %v1975
  %1977 = vmatpush.msra.mxu0 %v1976
  %v1978 = vand.u32 %v1055, 4294901760
  %v1979 = vsub.f32 %v1055, %v1978
  %1980 = vmatpush.msra.mxu0 %v1979
  %v1981 = vand.u32 %v1054, 4294901760
  %v1982 = vsub.f32 %v1054, %v1981
  %1983 = vmatpush.msra.mxu0 %v1982
  %v1984 = vand.u32 %v1751, 4294901760
  %v1985 = vsub.f32 %v1751, %v1984
  %1986 = vmatmul.f32.gmra.mxu0 %v1985
  %v1987 = vpop.f32.mrf.mxu0
  %v1988 = vadd.f32 %v1922, %v1987
  %v1989 = vand.u32 %v1754, 4294901760
  %v1990 = vsub.f32 %v1754, %v1989
  %1991 = vmatmul.f32.gmra.mxu0 %v1990
  %v1992 = vpop.f32.mrf.mxu0
  %v1993 = vadd.f32 %v1926, %v1992
  %v1994 = vand.u32 %v1757, 4294901760
  %v1995 = vsub.f32 %v1757, %v1994
  %1996 = vmatmul.f32.gmra.mxu0 %v1995
  %v1997 = vpop.f32.mrf.mxu0
  %v1998 = vadd.f32 %v1930, %v1997
  %v1999 = vand.u32 %v1760, 4294901760
  %v2000 = vsub.f32 %v1760, %v1999
  %2001 = vmatmul.f32.gmra.mxu0 %v2000
  %v2002 = vpop.f32.mrf.mxu0
  %v2003 = vadd.f32 %v1934, %v2002
  %v2004 = vand.u32 %v1763, 4294901760
  %v2005 = vsub.f32 %v1763, %v2004
  %2006 = vmatmul.f32.gmra.mxu0 %v2005
  %v2007 = vpop.f32.mrf.mxu0
  %v2008 = vadd.f32 %v1938, %v2007
  %v2009 = vand.u32 %v1766, 4294901760
  %v2010 = vsub.f32 %v1766, %v2009
  %2011 = vmatmul.f32.gmra.mxu0 %v2010
  %v2012 = vpop.f32.mrf.mxu0
  %v2013 = vadd.f32 %v1942, %v2012
  %v2014 = vand.u32 %v1769, 4294901760
  %v2015 = vsub.f32 %v1769, %v2014
  %2016 = vmatmul.f32.gmra.mxu0 %v2015
  %v2017 = vpop.f32.mrf.mxu0
  %v2018 = vadd.f32 %v1946, %v2017
  %v2019 = vand.u32 %v1772, 4294901760
  %v2020 = vsub.f32 %v1772, %v2019
  %2021 = vmatmul.f32.gmra.mxu0 %v2020
  %v2022 = vpop.f32.mrf.mxu0
  %v2023 = vadd.f32 %v1950, %v2022
  %2024 = vdwg.mxu0
  %2025 = vmatpush.msra.mxu0 0.0
  %2026 = vmatpush.msra.mxu0 0.0
  %2027 = vmatpush.msra.mxu0 0.0
  %2028 = vmatpush.msra.mxu0 0.0
  %2029 = vmatpush.msra.mxu0 0.0
  %2030 = vmatpush.msra.mxu0 0.0
  %2031 = vmatpush.msra.mxu0 0.0
  %2032 = vmatpush.msra.mxu0 0.0
  %v2033 = vand.u32 %v1061, 4294901760
  %2034 = vmatpush.msra.mxu0 %v2033
  %v2035 = vand.u32 %v1060, 4294901760
  %2036 = vmatpush.msra.mxu0 %v2035
  %v2037 = vand.u32 %v1059, 4294901760
  %2038 = vmatpush.msra.mxu0 %v2037
  %v2039 = vand.u32 %v1058, 4294901760
  %2040 = vmatpush.msra.mxu0 %v2039
  %v2041 = vand.u32 %v1057, 4294901760
  %2042 = vmatpush.msra.mxu0 %v2041
  %v2043 = vand.u32 %v1056, 4294901760
  %2044 = vmatpush.msra.mxu0 %v2043
  %v2045 = vand.u32 %v1055, 4294901760
  %2046 = vmatpush.msra.mxu0 %v2045
  %v2047 = vand.u32 %v1054, 4294901760
  %2048 = vmatpush.msra.mxu0 %v2047
  %v2049 = vand.u32 %v1751, 4294901760
  %v2050 = vsub.f32 %v1751, %v2049
  %v2051 = vand.u32 %v2050, 4294901760
  %2052 = vmatmul.f32.gmra.mxu0 %v2051
  %v2053 = vpop.f32.mrf.mxu0
  %v2054 = vadd.f32 %v1988, %v2053
  %v2055 = vand.u32 %v1754, 4294901760
  %v2056 = vsub.f32 %v1754, %v2055
  %v2057 = vand.u32 %v2056, 4294901760
  %2058 = vmatmul.f32.gmra.mxu0 %v2057
  %v2059 = vpop.f32.mrf.mxu0
  %v2060 = vadd.f32 %v1993, %v2059
  %v2061 = vand.u32 %v1757, 4294901760
  %v2062 = vsub.f32 %v1757, %v2061
  %v2063 = vand.u32 %v2062, 4294901760
  %2064 = vmatmul.f32.gmra.mxu0 %v2063
  %v2065 = vpop.f32.mrf.mxu0
  %v2066 = vadd.f32 %v1998, %v2065
  %v2067 = vand.u32 %v1760, 4294901760
  %v2068 = vsub.f32 %v1760, %v2067
  %v2069 = vand.u32 %v2068, 4294901760
  %2070 = vmatmul.f32.gmra.mxu0 %v2069
  %v2071 = vpop.f32.mrf.mxu0
  %v2072 = vadd.f32 %v2003, %v2071
  %v2073 = vand.u32 %v1763, 4294901760
  %v2074 = vsub.f32 %v1763, %v2073
  %v2075 = vand.u32 %v2074, 4294901760
  %2076 = vmatmul.f32.gmra.mxu0 %v2075
  %v2077 = vpop.f32.mrf.mxu0
  %v2078 = vadd.f32 %v2008, %v2077
  %v2079 = vand.u32 %v1766, 4294901760
  %v2080 = vsub.f32 %v1766, %v2079
  %v2081 = vand.u32 %v2080, 4294901760
  %2082 = vmatmul.f32.gmra.mxu0 %v2081
  %v2083 = vpop.f32.mrf.mxu0
  %v2084 = vadd.f32 %v2013, %v2083
  %v2085 = vand.u32 %v1769, 4294901760
  %v2086 = vsub.f32 %v1769, %v2085
  %v2087 = vand.u32 %v2086, 4294901760
  %2088 = vmatmul.f32.gmra.mxu0 %v2087
  %v2089 = vpop.f32.mrf.mxu0
  %v2090 = vadd.f32 %v2018, %v2089
  %v2091 = vand.u32 %v1772, 4294901760
  %v2092 = vsub.f32 %v1772, %v2091
  %v2093 = vand.u32 %v2092, 4294901760
  %2094 = vmatmul.f32.gmra.mxu0 %v2093
  %v2095 = vpop.f32.mrf.mxu0
  %v2096 = vadd.f32 %v2023, %v2095
  %2097 = vdwg.mxu0
  %2098 = vmatpush.msra.mxu0 0.0
  %2099 = vmatpush.msra.mxu0 0.0
  %2100 = vmatpush.msra.mxu0 0.0
  %2101 = vmatpush.msra.mxu0 0.0
  %2102 = vmatpush.msra.mxu0 0.0
  %2103 = vmatpush.msra.mxu0 0.0
  %2104 = vmatpush.msra.mxu0 0.0
  %2105 = vmatpush.msra.mxu0 0.0
  %v2106 = vand.u32 %v1061, 4294901760
  %v2107 = vsub.f32 %v1061, %v2106
  %v2108 = vand.u32 %v2107, 4294901760
  %2109 = vmatpush.msra.mxu0 %v2108
  %v2110 = vand.u32 %v1060, 4294901760
  %v2111 = vsub.f32 %v1060, %v2110
  %v2112 = vand.u32 %v2111, 4294901760
  %2113 = vmatpush.msra.mxu0 %v2112
  %v2114 = vand.u32 %v1059, 4294901760
  %v2115 = vsub.f32 %v1059, %v2114
  %v2116 = vand.u32 %v2115, 4294901760
  %2117 = vmatpush.msra.mxu0 %v2116
  %v2118 = vand.u32 %v1058, 4294901760
  %v2119 = vsub.f32 %v1058, %v2118
  %v2120 = vand.u32 %v2119, 4294901760
  %2121 = vmatpush.msra.mxu0 %v2120
  %v2122 = vand.u32 %v1057, 4294901760
  %v2123 = vsub.f32 %v1057, %v2122
  %v2124 = vand.u32 %v2123, 4294901760
  %2125 = vmatpush.msra.mxu0 %v2124
  %v2126 = vand.u32 %v1056, 4294901760
  %v2127 = vsub.f32 %v1056, %v2126
  %v2128 = vand.u32 %v2127, 4294901760
  %2129 = vmatpush.msra.mxu0 %v2128
  %v2130 = vand.u32 %v1055, 4294901760
  %v2131 = vsub.f32 %v1055, %v2130
  %v2132 = vand.u32 %v2131, 4294901760
  %2133 = vmatpush.msra.mxu0 %v2132
  %v2134 = vand.u32 %v1054, 4294901760
  %v2135 = vsub.f32 %v1054, %v2134
  %v2136 = vand.u32 %v2135, 4294901760
  %2137 = vmatpush.msra.mxu0 %v2136
  %v2138 = vand.u32 %v1751, 4294901760
  %2139 = vmatmul.f32.gmra.mxu0 %v2138
  %v2140 = vpop.f32.mrf.mxu0
  %v2141 = vadd.f32 %v2054, %v2140
  %v2142 = vand.u32 %v1754, 4294901760
  %2143 = vmatmul.f32.gmra.mxu0 %v2142
  %v2144 = vpop.f32.mrf.mxu0
  %v2145 = vadd.f32 %v2060, %v2144
  %v2146 = vand.u32 %v1757, 4294901760
  %2147 = vmatmul.f32.gmra.mxu0 %v2146
  %v2148 = vpop.f32.mrf.mxu0
  %v2149 = vadd.f32 %v2066, %v2148
  %v2150 = vand.u32 %v1760, 4294901760
  %2151 = vmatmul.f32.gmra.mxu0 %v2150
  %v2152 = vpop.f32.mrf.mxu0
  %v2153 = vadd.f32 %v2072, %v2152
  %v2154 = vand.u32 %v1763, 4294901760
  %2155 = vmatmul.f32.gmra.mxu0 %v2154
  %v2156 = vpop.f32.mrf.mxu0
  %v2157 = vadd.f32 %v2078, %v2156
  %v2158 = vand.u32 %v1766, 4294901760
  %2159 = vmatmul.f32.gmra.mxu0 %v2158
  %v2160 = vpop.f32.mrf.mxu0
  %v2161 = vadd.f32 %v2084, %v2160
  %v2162 = vand.u32 %v1769, 4294901760
  %2163 = vmatmul.f32.gmra.mxu0 %v2162
  %v2164 = vpop.f32.mrf.mxu0
  %v2165 = vadd.f32 %v2090, %v2164
  %v2166 = vand.u32 %v1772, 4294901760
  %2167 = vmatmul.f32.gmra.mxu0 %v2166
  %v2168 = vpop.f32.mrf.mxu0
  %v2169 = vadd.f32 %v2096, %v2168
  %2170 = vdwg.mxu0
  %2171 = vmatpush.msra.mxu0 0.0
  %2172 = vmatpush.msra.mxu0 0.0
  %2173 = vmatpush.msra.mxu0 0.0
  %2174 = vmatpush.msra.mxu0 0.0
  %2175 = vmatpush.msra.mxu0 0.0
  %2176 = vmatpush.msra.mxu0 0.0
  %2177 = vmatpush.msra.mxu0 0.0
  %2178 = vmatpush.msra.mxu0 0.0
  %v2179 = vand.u32 %v1061, 4294901760
  %2180 = vmatpush.msra.mxu0 %v2179
  %v2181 = vand.u32 %v1060, 4294901760
  %2182 = vmatpush.msra.mxu0 %v2181
  %v2183 = vand.u32 %v1059, 4294901760
  %2184 = vmatpush.msra.mxu0 %v2183
  %v2185 = vand.u32 %v1058, 4294901760
  %2186 = vmatpush.msra.mxu0 %v2185
  %v2187 = vand.u32 %v1057, 4294901760
  %2188 = vmatpush.msra.mxu0 %v2187
  %v2189 = vand.u32 %v1056, 4294901760
  %2190 = vmatpush.msra.mxu0 %v2189
  %v2191 = vand.u32 %v1055, 4294901760
  %2192 = vmatpush.msra.mxu0 %v2191
  %v2193 = vand.u32 %v1054, 4294901760
  %2194 = vmatpush.msra.mxu0 %v2193
  %v2195 = vand.u32 %v1751, 4294901760
  %2196 = vmatmul.f32.gmra.mxu0 %v2195
  %v2197 = vpop.f32.mrf.mxu0
  %v2198 = vadd.f32 %v2141, %v2197
  %v2199 = vand.u32 %v1754, 4294901760
  %2200 = vmatmul.f32.gmra.mxu0 %v2199
  %v2201 = vpop.f32.mrf.mxu0
  %v2202 = vadd.f32 %v2145, %v2201
  %v2203 = vand.u32 %v1757, 4294901760
  %2204 = vmatmul.f32.gmra.mxu0 %v2203
  %v2205 = vpop.f32.mrf.mxu0
  %v2206 = vadd.f32 %v2149, %v2205
  %v2207 = vand.u32 %v1760, 4294901760
  %2208 = vmatmul.f32.gmra.mxu0 %v2207
  %v2209 = vpop.f32.mrf.mxu0
  %v2210 = vadd.f32 %v2153, %v2209
  %v2211 = vand.u32 %v1763, 4294901760
  %2212 = vmatmul.f32.gmra.mxu0 %v2211
  %v2213 = vpop.f32.mrf.mxu0
  %v2214 = vadd.f32 %v2157, %v2213
  %v2215 = vand.u32 %v1766, 4294901760
  %2216 = vmatmul.f32.gmra.mxu0 %v2215
  %v2217 = vpop.f32.mrf.mxu0
  %v2218 = vadd.f32 %v2161, %v2217
  %v2219 = vand.u32 %v1769, 4294901760
  %2220 = vmatmul.f32.gmra.mxu0 %v2219
  %v2221 = vpop.f32.mrf.mxu0
  %v2222 = vadd.f32 %v2165, %v2221
  %v2223 = vand.u32 %v1772, 4294901760
  %2224 = vmatmul.f32.gmra.mxu0 %v2223
  %v2225 = vpop.f32.mrf.mxu0
  %v2226 = vadd.f32 %v2169, %v2225
  %2227 = vdwg.mxu0
  %v2229 = vsel %vm1062, %v2206, 0
  %v2232 = vsel %vm1062, %v2210, 0
  %2234 = vmatpush.msra.mxu0 0.0
  %2235 = vmatpush.msra.mxu0 0.0
  %2236 = vmatpush.msra.mxu0 0.0
  %2237 = vmatpush.msra.mxu0 0.0
  %2238 = vmatpush.msra.mxu0 0.0
  %2239 = vmatpush.msra.mxu0 0.0
  %2240 = vmatpush.msra.mxu0 0.0
  %2241 = vmatpush.msra.mxu0 0.0
  %2242 = vmatpush.msra.mxu0 0.0
  %2243 = vmatpush.msra.mxu0 0.0
  %2244 = vmatpush.msra.mxu0 0.0
  %2245 = vmatpush.msra.mxu0 0.0
  %2246 = vmatpush.msra.mxu0 0.0
  %2247 = vmatpush.msra.mxu0 0.0
  %2248 = vmatpush.msra.mxu0 0.0
  %v2249 = vand.u32 %v69, 4294901760
  %2250 = vmatpush.msra.mxu0 %v2249
  %v2251 = vand.u32 %v2229, 4294901760
  %v2252 = vsub.f32 %v2229, %v2251
  %v2253 = vand.u32 %v2252, 4294901760
  %v2254 = vsub.f32 %v2252, %v2253
  %v2255 = vand.u32 %v2254, 4294901760
  %2256 = vmatmul.f32.gmra.mxu0 %v2255
  %v2257 = vpop.f32.mrf.mxu0
  %v2258 = vadd.f32 0.0, %v2257
  %v2259 = vand.u32 %v2232, 4294901760
  %v2260 = vsub.f32 %v2232, %v2259
  %v2261 = vand.u32 %v2260, 4294901760
  %v2262 = vsub.f32 %v2260, %v2261
  %v2263 = vand.u32 %v2262, 4294901760
  %2264 = vmatmul.f32.gmra.mxu0 %v2263
  %v2265 = vpop.f32.mrf.mxu0
  %v2266 = vadd.f32 0.0, %v2265
  %2267 = vdwg.mxu0
  %2268 = vmatpush.msra.mxu0 0.0
  %2269 = vmatpush.msra.mxu0 0.0
  %2270 = vmatpush.msra.mxu0 0.0
  %2271 = vmatpush.msra.mxu0 0.0
  %2272 = vmatpush.msra.mxu0 0.0
  %2273 = vmatpush.msra.mxu0 0.0
  %2274 = vmatpush.msra.mxu0 0.0
  %2275 = vmatpush.msra.mxu0 0.0
  %2276 = vmatpush.msra.mxu0 0.0
  %2277 = vmatpush.msra.mxu0 0.0
  %2278 = vmatpush.msra.mxu0 0.0
  %2279 = vmatpush.msra.mxu0 0.0
  %2280 = vmatpush.msra.mxu0 0.0
  %2281 = vmatpush.msra.mxu0 0.0
  %2282 = vmatpush.msra.mxu0 0.0
  %v2283 = vand.u32 %v69, 4294901760
  %v2284 = vsub.f32 %v69, %v2283
  %v2285 = vand.u32 %v2284, 4294901760
  %v2286 = vsub.f32 %v2284, %v2285
  %v2287 = vand.u32 %v2286, 4294901760
  %2288 = vmatpush.msra.mxu0 %v2287
  %v2289 = vand.u32 %v2229, 4294901760
  %2290 = vmatmul.f32.gmra.mxu0 %v2289
  %v2291 = vpop.f32.mrf.mxu0
  %v2292 = vadd.f32 %v2258, %v2291
  %v2293 = vand.u32 %v2232, 4294901760
  %2294 = vmatmul.f32.gmra.mxu0 %v2293
  %v2295 = vpop.f32.mrf.mxu0
  %v2296 = vadd.f32 %v2266, %v2295
  %2297 = vdwg.mxu0
  %2298 = vmatpush.msra.mxu0 0.0
  %2299 = vmatpush.msra.mxu0 0.0
  %2300 = vmatpush.msra.mxu0 0.0
  %2301 = vmatpush.msra.mxu0 0.0
  %2302 = vmatpush.msra.mxu0 0.0
  %2303 = vmatpush.msra.mxu0 0.0
  %2304 = vmatpush.msra.mxu0 0.0
  %2305 = vmatpush.msra.mxu0 0.0
  %2306 = vmatpush.msra.mxu0 0.0
  %2307 = vmatpush.msra.mxu0 0.0
  %2308 = vmatpush.msra.mxu0 0.0
  %2309 = vmatpush.msra.mxu0 0.0
  %2310 = vmatpush.msra.mxu0 0.0
  %2311 = vmatpush.msra.mxu0 0.0
  %2312 = vmatpush.msra.mxu0 0.0
  %v2313 = vand.u32 %v69, 4294901760
  %v2314 = vsub.f32 %v69, %v2313
  %2315 = vmatpush.msra.mxu0 %v2314
  %v2316 = vand.u32 %v2229, 4294901760
  %v2317 = vsub.f32 %v2229, %v2316
  %2318 = vmatmul.f32.gmra.mxu0 %v2317
  %v2319 = vpop.f32.mrf.mxu0
  %v2320 = vadd.f32 %v2292, %v2319
  %v2321 = vand.u32 %v2232, 4294901760
  %v2322 = vsub.f32 %v2232, %v2321
  %2323 = vmatmul.f32.gmra.mxu0 %v2322
  %v2324 = vpop.f32.mrf.mxu0
  %v2325 = vadd.f32 %v2296, %v2324
  %2326 = vdwg.mxu0
  %2327 = vmatpush.msra.mxu0 0.0
  %2328 = vmatpush.msra.mxu0 0.0
  %2329 = vmatpush.msra.mxu0 0.0
  %2330 = vmatpush.msra.mxu0 0.0
  %2331 = vmatpush.msra.mxu0 0.0
  %2332 = vmatpush.msra.mxu0 0.0
  %2333 = vmatpush.msra.mxu0 0.0
  %2334 = vmatpush.msra.mxu0 0.0
  %2335 = vmatpush.msra.mxu0 0.0
  %2336 = vmatpush.msra.mxu0 0.0
  %2337 = vmatpush.msra.mxu0 0.0
  %2338 = vmatpush.msra.mxu0 0.0
  %2339 = vmatpush.msra.mxu0 0.0
  %2340 = vmatpush.msra.mxu0 0.0
  %2341 = vmatpush.msra.mxu0 0.0
  %v2342 = vand.u32 %v69, 4294901760
  %2343 = vmatpush.msra.mxu0 %v2342
  %v2344 = vand.u32 %v2229, 4294901760
  %v2345 = vsub.f32 %v2229, %v2344
  %v2346 = vand.u32 %v2345, 4294901760
  %2347 = vmatmul.f32.gmra.mxu0 %v2346
  %v2348 = vpop.f32.mrf.mxu0
  %v2349 = vadd.f32 %v2320, %v2348
  %v2350 = vand.u32 %v2232, 4294901760
  %v2351 = vsub.f32 %v2232, %v2350
  %v2352 = vand.u32 %v2351, 4294901760
  %2353 = vmatmul.f32.gmra.mxu0 %v2352
  %v2354 = vpop.f32.mrf.mxu0
  %v2355 = vadd.f32 %v2325, %v2354
  %2356 = vdwg.mxu0
  %2357 = vmatpush.msra.mxu0 0.0
  %2358 = vmatpush.msra.mxu0 0.0
  %2359 = vmatpush.msra.mxu0 0.0
  %2360 = vmatpush.msra.mxu0 0.0
  %2361 = vmatpush.msra.mxu0 0.0
  %2362 = vmatpush.msra.mxu0 0.0
  %2363 = vmatpush.msra.mxu0 0.0
  %2364 = vmatpush.msra.mxu0 0.0
  %2365 = vmatpush.msra.mxu0 0.0
  %2366 = vmatpush.msra.mxu0 0.0
  %2367 = vmatpush.msra.mxu0 0.0
  %2368 = vmatpush.msra.mxu0 0.0
  %2369 = vmatpush.msra.mxu0 0.0
  %2370 = vmatpush.msra.mxu0 0.0
  %2371 = vmatpush.msra.mxu0 0.0
  %v2372 = vand.u32 %v69, 4294901760
  %v2373 = vsub.f32 %v69, %v2372
  %v2374 = vand.u32 %v2373, 4294901760
  %2375 = vmatpush.msra.mxu0 %v2374
  %v2376 = vand.u32 %v2229, 4294901760
  %2377 = vmatmul.f32.gmra.mxu0 %v2376
  %v2378 = vpop.f32.mrf.mxu0
  %v2379 = vadd.f32 %v2349, %v2378
  %v2380 = vand.u32 %v2232, 4294901760
  %2381 = vmatmul.f32.gmra.mxu0 %v2380
  %v2382 = vpop.f32.mrf.mxu0
  %v2383 = vadd.f32 %v2355, %v2382
  %2384 = vdwg.mxu0
  %2385 = vmatpush.msra.mxu0 0.0
  %2386 = vmatpush.msra.mxu0 0.0
  %2387 = vmatpush.msra.mxu0 0.0
  %2388 = vmatpush.msra.mxu0 0.0
  %2389 = vmatpush.msra.mxu0 0.0
  %2390 = vmatpush.msra.mxu0 0.0
  %2391 = vmatpush.msra.mxu0 0.0
  %2392 = vmatpush.msra.mxu0 0.0
  %2393 = vmatpush.msra.mxu0 0.0
  %2394 = vmatpush.msra.mxu0 0.0
  %2395 = vmatpush.msra.mxu0 0.0
  %2396 = vmatpush.msra.mxu0 0.0
  %2397 = vmatpush.msra.mxu0 0.0
  %2398 = vmatpush.msra.mxu0 0.0
  %2399 = vmatpush.msra.mxu0 0.0
  %v2400 = vand.u32 %v69, 4294901760
  %2401 = vmatpush.msra.mxu0 %v2400
  %v2402 = vand.u32 %v2229, 4294901760
  %2403 = vmatmul.f32.gmra.mxu0 %v2402
  %v2404 = vpop.f32.mrf.mxu0
  %v2405 = vadd.f32 %v2379, %v2404
  %v2406 = vand.u32 %v2232, 4294901760
  %2407 = vmatmul.f32.gmra.mxu0 %v2406
  %v2408 = vpop.f32.mrf.mxu0
  %v2409 = vadd.f32 %v2383, %v2408
  %2410 = vdwg.mxu0
  %v2412 = vsel %vm1062, %v2198, 0
  %v2415 = vsel %vm1062, %v2202, 0
  %2417 = vmatpush.msra.mxu0 0.0
  %2418 = vmatpush.msra.mxu0 0.0
  %2419 = vmatpush.msra.mxu0 0.0
  %2420 = vmatpush.msra.mxu0 0.0
  %2421 = vmatpush.msra.mxu0 0.0
  %2422 = vmatpush.msra.mxu0 0.0
  %2423 = vmatpush.msra.mxu0 0.0
  %2424 = vmatpush.msra.mxu0 0.0
  %2425 = vmatpush.msra.mxu0 0.0
  %2426 = vmatpush.msra.mxu0 0.0
  %2427 = vmatpush.msra.mxu0 0.0
  %2428 = vmatpush.msra.mxu0 0.0
  %2429 = vmatpush.msra.mxu0 0.0
  %2430 = vmatpush.msra.mxu0 0.0
  %2431 = vmatpush.msra.mxu0 0.0
  %v2432 = vand.u32 %v68, 4294901760
  %2433 = vmatpush.msra.mxu0 %v2432
  %v2434 = vand.u32 %v2412, 4294901760
  %v2435 = vsub.f32 %v2412, %v2434
  %v2436 = vand.u32 %v2435, 4294901760
  %v2437 = vsub.f32 %v2435, %v2436
  %v2438 = vand.u32 %v2437, 4294901760
  %2439 = vmatmul.f32.gmra.mxu0 %v2438
  %v2440 = vpop.f32.mrf.mxu0
  %v2441 = vadd.f32 %v2405, %v2440
  %v2442 = vand.u32 %v2415, 4294901760
  %v2443 = vsub.f32 %v2415, %v2442
  %v2444 = vand.u32 %v2443, 4294901760
  %v2445 = vsub.f32 %v2443, %v2444
  %v2446 = vand.u32 %v2445, 4294901760
  %2447 = vmatmul.f32.gmra.mxu0 %v2446
  %v2448 = vpop.f32.mrf.mxu0
  %v2449 = vadd.f32 %v2409, %v2448
  %2450 = vdwg.mxu0
  %2451 = vmatpush.msra.mxu0 0.0
  %2452 = vmatpush.msra.mxu0 0.0
  %2453 = vmatpush.msra.mxu0 0.0
  %2454 = vmatpush.msra.mxu0 0.0
  %2455 = vmatpush.msra.mxu0 0.0
  %2456 = vmatpush.msra.mxu0 0.0
  %2457 = vmatpush.msra.mxu0 0.0
  %2458 = vmatpush.msra.mxu0 0.0
  %2459 = vmatpush.msra.mxu0 0.0
  %2460 = vmatpush.msra.mxu0 0.0
  %2461 = vmatpush.msra.mxu0 0.0
  %2462 = vmatpush.msra.mxu0 0.0
  %2463 = vmatpush.msra.mxu0 0.0
  %2464 = vmatpush.msra.mxu0 0.0
  %2465 = vmatpush.msra.mxu0 0.0
  %v2466 = vand.u32 %v68, 4294901760
  %v2467 = vsub.f32 %v68, %v2466
  %v2468 = vand.u32 %v2467, 4294901760
  %v2469 = vsub.f32 %v2467, %v2468
  %v2470 = vand.u32 %v2469, 4294901760
  %2471 = vmatpush.msra.mxu0 %v2470
  %v2472 = vand.u32 %v2412, 4294901760
  %2473 = vmatmul.f32.gmra.mxu0 %v2472
  %v2474 = vpop.f32.mrf.mxu0
  %v2475 = vadd.f32 %v2441, %v2474
  %v2476 = vand.u32 %v2415, 4294901760
  %2477 = vmatmul.f32.gmra.mxu0 %v2476
  %v2478 = vpop.f32.mrf.mxu0
  %v2479 = vadd.f32 %v2449, %v2478
  %2480 = vdwg.mxu0
  %2481 = vmatpush.msra.mxu0 0.0
  %2482 = vmatpush.msra.mxu0 0.0
  %2483 = vmatpush.msra.mxu0 0.0
  %2484 = vmatpush.msra.mxu0 0.0
  %2485 = vmatpush.msra.mxu0 0.0
  %2486 = vmatpush.msra.mxu0 0.0
  %2487 = vmatpush.msra.mxu0 0.0
  %2488 = vmatpush.msra.mxu0 0.0
  %2489 = vmatpush.msra.mxu0 0.0
  %2490 = vmatpush.msra.mxu0 0.0
  %2491 = vmatpush.msra.mxu0 0.0
  %2492 = vmatpush.msra.mxu0 0.0
  %2493 = vmatpush.msra.mxu0 0.0
  %2494 = vmatpush.msra.mxu0 0.0
  %2495 = vmatpush.msra.mxu0 0.0
  %v2496 = vand.u32 %v68, 4294901760
  %v2497 = vsub.f32 %v68, %v2496
  %2498 = vmatpush.msra.mxu0 %v2497
  %v2499 = vand.u32 %v2412, 4294901760
  %v2500 = vsub.f32 %v2412, %v2499
  %2501 = vmatmul.f32.gmra.mxu0 %v2500
  %v2502 = vpop.f32.mrf.mxu0
  %v2503 = vadd.f32 %v2475, %v2502
  %v2504 = vand.u32 %v2415, 4294901760
  %v2505 = vsub.f32 %v2415, %v2504
  %2506 = vmatmul.f32.gmra.mxu0 %v2505
  %v2507 = vpop.f32.mrf.mxu0
  %v2508 = vadd.f32 %v2479, %v2507
  %2509 = vdwg.mxu0
  %2510 = vmatpush.msra.mxu0 0.0
  %2511 = vmatpush.msra.mxu0 0.0
  %2512 = vmatpush.msra.mxu0 0.0
  %2513 = vmatpush.msra.mxu0 0.0
  %2514 = vmatpush.msra.mxu0 0.0
  %2515 = vmatpush.msra.mxu0 0.0
  %2516 = vmatpush.msra.mxu0 0.0
  %2517 = vmatpush.msra.mxu0 0.0
  %2518 = vmatpush.msra.mxu0 0.0
  %2519 = vmatpush.msra.mxu0 0.0
  %2520 = vmatpush.msra.mxu0 0.0
  %2521 = vmatpush.msra.mxu0 0.0
  %2522 = vmatpush.msra.mxu0 0.0
  %2523 = vmatpush.msra.mxu0 0.0
  %2524 = vmatpush.msra.mxu0 0.0
  %v2525 = vand.u32 %v68, 4294901760
  %2526 = vmatpush.msra.mxu0 %v2525
  %v2527 = vand.u32 %v2412, 4294901760
  %v2528 = vsub.f32 %v2412, %v2527
  %v2529 = vand.u32 %v2528, 4294901760
  %2530 = vmatmul.f32.gmra.mxu0 %v2529
  %v2531 = vpop.f32.mrf.mxu0
  %v2532 = vadd.f32 %v2503, %v2531
  %v2533 = vand.u32 %v2415, 4294901760
  %v2534 = vsub.f32 %v2415, %v2533
  %v2535 = vand.u32 %v2534, 4294901760
  %2536 = vmatmul.f32.gmra.mxu0 %v2535
  %v2537 = vpop.f32.mrf.mxu0
  %v2538 = vadd.f32 %v2508, %v2537
  %2539 = vdwg.mxu0
  %2540 = vmatpush.msra.mxu0 0.0
  %2541 = vmatpush.msra.mxu0 0.0
  %2542 = vmatpush.msra.mxu0 0.0
  %2543 = vmatpush.msra.mxu0 0.0
  %2544 = vmatpush.msra.mxu0 0.0
  %2545 = vmatpush.msra.mxu0 0.0
  %2546 = vmatpush.msra.mxu0 0.0
  %2547 = vmatpush.msra.mxu0 0.0
  %2548 = vmatpush.msra.mxu0 0.0
  %2549 = vmatpush.msra.mxu0 0.0
  %2550 = vmatpush.msra.mxu0 0.0
  %2551 = vmatpush.msra.mxu0 0.0
  %2552 = vmatpush.msra.mxu0 0.0
  %2553 = vmatpush.msra.mxu0 0.0
  %2554 = vmatpush.msra.mxu0 0.0
  %v2555 = vand.u32 %v68, 4294901760
  %v2556 = vsub.f32 %v68, %v2555
  %v2557 = vand.u32 %v2556, 4294901760
  %2558 = vmatpush.msra.mxu0 %v2557
  %v2559 = vand.u32 %v2412, 4294901760
  %2560 = vmatmul.f32.gmra.mxu0 %v2559
  %v2561 = vpop.f32.mrf.mxu0
  %v2562 = vadd.f32 %v2532, %v2561
  %v2563 = vand.u32 %v2415, 4294901760
  %2564 = vmatmul.f32.gmra.mxu0 %v2563
  %v2565 = vpop.f32.mrf.mxu0
  %v2566 = vadd.f32 %v2538, %v2565
  %2567 = vdwg.mxu0
  %2568 = vmatpush.msra.mxu0 0.0
  %2569 = vmatpush.msra.mxu0 0.0
  %2570 = vmatpush.msra.mxu0 0.0
  %2571 = vmatpush.msra.mxu0 0.0
  %2572 = vmatpush.msra.mxu0 0.0
  %2573 = vmatpush.msra.mxu0 0.0
  %2574 = vmatpush.msra.mxu0 0.0
  %2575 = vmatpush.msra.mxu0 0.0
  %2576 = vmatpush.msra.mxu0 0.0
  %2577 = vmatpush.msra.mxu0 0.0
  %2578 = vmatpush.msra.mxu0 0.0
  %2579 = vmatpush.msra.mxu0 0.0
  %2580 = vmatpush.msra.mxu0 0.0
  %2581 = vmatpush.msra.mxu0 0.0
  %2582 = vmatpush.msra.mxu0 0.0
  %v2583 = vand.u32 %v68, 4294901760
  %2584 = vmatpush.msra.mxu0 %v2583
  %v2585 = vand.u32 %v2412, 4294901760
  %2586 = vmatmul.f32.gmra.mxu0 %v2585
  %v2587 = vpop.f32.mrf.mxu0
  %v2588 = vadd.f32 %v2562, %v2587
  %v2589 = vand.u32 %v2415, 4294901760
  %2590 = vmatmul.f32.gmra.mxu0 %v2589
  %v2591 = vpop.f32.mrf.mxu0
  %v2592 = vadd.f32 %v2566, %v2591
  %2593 = vdwg.mxu0
  %v2595 = vsel %vm1062, %v2214, 0
  %v2598 = vsel %vm1062, %v2218, 0
  %2600 = vmatpush.msra.mxu0 0.0
  %2601 = vmatpush.msra.mxu0 0.0
  %2602 = vmatpush.msra.mxu0 0.0
  %2603 = vmatpush.msra.mxu0 0.0
  %2604 = vmatpush.msra.mxu0 0.0
  %2605 = vmatpush.msra.mxu0 0.0
  %2606 = vmatpush.msra.mxu0 0.0
  %2607 = vmatpush.msra.mxu0 0.0
  %2608 = vmatpush.msra.mxu0 0.0
  %2609 = vmatpush.msra.mxu0 0.0
  %2610 = vmatpush.msra.mxu0 0.0
  %2611 = vmatpush.msra.mxu0 0.0
  %2612 = vmatpush.msra.mxu0 0.0
  %2613 = vmatpush.msra.mxu0 0.0
  %2614 = vmatpush.msra.mxu0 0.0
  %v2615 = vand.u32 %v70, 4294901760
  %2616 = vmatpush.msra.mxu0 %v2615
  %v2617 = vand.u32 %v2595, 4294901760
  %v2618 = vsub.f32 %v2595, %v2617
  %v2619 = vand.u32 %v2618, 4294901760
  %v2620 = vsub.f32 %v2618, %v2619
  %v2621 = vand.u32 %v2620, 4294901760
  %2622 = vmatmul.f32.gmra.mxu0 %v2621
  %v2623 = vpop.f32.mrf.mxu0
  %v2624 = vadd.f32 0.0, %v2623
  %v2625 = vand.u32 %v2598, 4294901760
  %v2626 = vsub.f32 %v2598, %v2625
  %v2627 = vand.u32 %v2626, 4294901760
  %v2628 = vsub.f32 %v2626, %v2627
  %v2629 = vand.u32 %v2628, 4294901760
  %2630 = vmatmul.f32.gmra.mxu0 %v2629
  %v2631 = vpop.f32.mrf.mxu0
  %v2632 = vadd.f32 0.0, %v2631
  %2633 = vdwg.mxu0
  %2634 = vmatpush.msra.mxu0 0.0
  %2635 = vmatpush.msra.mxu0 0.0
  %2636 = vmatpush.msra.mxu0 0.0
  %2637 = vmatpush.msra.mxu0 0.0
  %2638 = vmatpush.msra.mxu0 0.0
  %2639 = vmatpush.msra.mxu0 0.0
  %2640 = vmatpush.msra.mxu0 0.0
  %2641 = vmatpush.msra.mxu0 0.0
  %2642 = vmatpush.msra.mxu0 0.0
  %2643 = vmatpush.msra.mxu0 0.0
  %2644 = vmatpush.msra.mxu0 0.0
  %2645 = vmatpush.msra.mxu0 0.0
  %2646 = vmatpush.msra.mxu0 0.0
  %2647 = vmatpush.msra.mxu0 0.0
  %2648 = vmatpush.msra.mxu0 0.0
  %v2649 = vand.u32 %v70, 4294901760
  %v2650 = vsub.f32 %v70, %v2649
  %v2651 = vand.u32 %v2650, 4294901760
  %v2652 = vsub.f32 %v2650, %v2651
  %v2653 = vand.u32 %v2652, 4294901760
  %2654 = vmatpush.msra.mxu0 %v2653
  %v2655 = vand.u32 %v2595, 4294901760
  %2656 = vmatmul.f32.gmra.mxu0 %v2655
  %v2657 = vpop.f32.mrf.mxu0
  %v2658 = vadd.f32 %v2624, %v2657
  %v2659 = vand.u32 %v2598, 4294901760
  %2660 = vmatmul.f32.gmra.mxu0 %v2659
  %v2661 = vpop.f32.mrf.mxu0
  %v2662 = vadd.f32 %v2632, %v2661
  %2663 = vdwg.mxu0
  %2664 = vmatpush.msra.mxu0 0.0
  %2665 = vmatpush.msra.mxu0 0.0
  %2666 = vmatpush.msra.mxu0 0.0
  %2667 = vmatpush.msra.mxu0 0.0
  %2668 = vmatpush.msra.mxu0 0.0
  %2669 = vmatpush.msra.mxu0 0.0
  %2670 = vmatpush.msra.mxu0 0.0
  %2671 = vmatpush.msra.mxu0 0.0
  %2672 = vmatpush.msra.mxu0 0.0
  %2673 = vmatpush.msra.mxu0 0.0
  %2674 = vmatpush.msra.mxu0 0.0
  %2675 = vmatpush.msra.mxu0 0.0
  %2676 = vmatpush.msra.mxu0 0.0
  %2677 = vmatpush.msra.mxu0 0.0
  %2678 = vmatpush.msra.mxu0 0.0
  %v2679 = vand.u32 %v70, 4294901760
  %v2680 = vsub.f32 %v70, %v2679
  %2681 = vmatpush.msra.mxu0 %v2680
  %v2682 = vand.u32 %v2595, 4294901760
  %v2683 = vsub.f32 %v2595, %v2682
  %2684 = vmatmul.f32.gmra.mxu0 %v2683
  %v2685 = vpop.f32.mrf.mxu0
  %v2686 = vadd.f32 %v2658, %v2685
  %v2687 = vand.u32 %v2598, 4294901760
  %v2688 = vsub.f32 %v2598, %v2687
  %2689 = vmatmul.f32.gmra.mxu0 %v2688
  %v2690 = vpop.f32.mrf.mxu0
  %v2691 = vadd.f32 %v2662, %v2690
  %2692 = vdwg.mxu0
  %2693 = vmatpush.msra.mxu0 0.0
  %2694 = vmatpush.msra.mxu0 0.0
  %2695 = vmatpush.msra.mxu0 0.0
  %2696 = vmatpush.msra.mxu0 0.0
  %2697 = vmatpush.msra.mxu0 0.0
  %2698 = vmatpush.msra.mxu0 0.0
  %2699 = vmatpush.msra.mxu0 0.0
  %2700 = vmatpush.msra.mxu0 0.0
  %2701 = vmatpush.msra.mxu0 0.0
  %2702 = vmatpush.msra.mxu0 0.0
  %2703 = vmatpush.msra.mxu0 0.0
  %2704 = vmatpush.msra.mxu0 0.0
  %2705 = vmatpush.msra.mxu0 0.0
  %2706 = vmatpush.msra.mxu0 0.0
  %2707 = vmatpush.msra.mxu0 0.0
  %v2708 = vand.u32 %v70, 4294901760
  %2709 = vmatpush.msra.mxu0 %v2708
  %v2710 = vand.u32 %v2595, 4294901760
  %v2711 = vsub.f32 %v2595, %v2710
  %v2712 = vand.u32 %v2711, 4294901760
  %2713 = vmatmul.f32.gmra.mxu0 %v2712
  %v2714 = vpop.f32.mrf.mxu0
  %v2715 = vadd.f32 %v2686, %v2714
  %v2716 = vand.u32 %v2598, 4294901760
  %v2717 = vsub.f32 %v2598, %v2716
  %v2718 = vand.u32 %v2717, 4294901760
  %2719 = vmatmul.f32.gmra.mxu0 %v2718
  %v2720 = vpop.f32.mrf.mxu0
  %v2721 = vadd.f32 %v2691, %v2720
  %2722 = vdwg.mxu0
  %2723 = vmatpush.msra.mxu0 0.0
  %2724 = vmatpush.msra.mxu0 0.0
  %2725 = vmatpush.msra.mxu0 0.0
  %2726 = vmatpush.msra.mxu0 0.0
  %2727 = vmatpush.msra.mxu0 0.0
  %2728 = vmatpush.msra.mxu0 0.0
  %2729 = vmatpush.msra.mxu0 0.0
  %2730 = vmatpush.msra.mxu0 0.0
  %2731 = vmatpush.msra.mxu0 0.0
  %2732 = vmatpush.msra.mxu0 0.0
  %2733 = vmatpush.msra.mxu0 0.0
  %2734 = vmatpush.msra.mxu0 0.0
  %2735 = vmatpush.msra.mxu0 0.0
  %2736 = vmatpush.msra.mxu0 0.0
  %2737 = vmatpush.msra.mxu0 0.0
  %v2738 = vand.u32 %v70, 4294901760
  %v2739 = vsub.f32 %v70, %v2738
  %v2740 = vand.u32 %v2739, 4294901760
  %2741 = vmatpush.msra.mxu0 %v2740
  %v2742 = vand.u32 %v2595, 4294901760
  %2743 = vmatmul.f32.gmra.mxu0 %v2742
  %v2744 = vpop.f32.mrf.mxu0
  %v2745 = vadd.f32 %v2715, %v2744
  %v2746 = vand.u32 %v2598, 4294901760
  %2747 = vmatmul.f32.gmra.mxu0 %v2746
  %v2748 = vpop.f32.mrf.mxu0
  %v2749 = vadd.f32 %v2721, %v2748
  %2750 = vdwg.mxu0
  %2751 = vmatpush.msra.mxu0 0.0
  %2752 = vmatpush.msra.mxu0 0.0
  %2753 = vmatpush.msra.mxu0 0.0
  %2754 = vmatpush.msra.mxu0 0.0
  %2755 = vmatpush.msra.mxu0 0.0
  %2756 = vmatpush.msra.mxu0 0.0
  %2757 = vmatpush.msra.mxu0 0.0
  %2758 = vmatpush.msra.mxu0 0.0
  %2759 = vmatpush.msra.mxu0 0.0
  %2760 = vmatpush.msra.mxu0 0.0
  %2761 = vmatpush.msra.mxu0 0.0
  %2762 = vmatpush.msra.mxu0 0.0
  %2763 = vmatpush.msra.mxu0 0.0
  %2764 = vmatpush.msra.mxu0 0.0
  %2765 = vmatpush.msra.mxu0 0.0
  %v2766 = vand.u32 %v70, 4294901760
  %2767 = vmatpush.msra.mxu0 %v2766
  %v2768 = vand.u32 %v2595, 4294901760
  %2769 = vmatmul.f32.gmra.mxu0 %v2768
  %v2770 = vpop.f32.mrf.mxu0
  %v2771 = vadd.f32 %v2745, %v2770
  %v2772 = vand.u32 %v2598, 4294901760
  %2773 = vmatmul.f32.gmra.mxu0 %v2772
  %v2774 = vpop.f32.mrf.mxu0
  %v2775 = vadd.f32 %v2749, %v2774
  %2776 = vdwg.mxu0
  %v2777 = vadd.f32 %v2588, %v2771
  %v2778 = vadd.f32 %v2592, %v2775
  %v2780 = vsel %vm1062, %v2222, 0
  %v2783 = vsel %vm1062, %v2226, 0
  %2785 = vmatpush.msra.mxu0 0.0
  %2786 = vmatpush.msra.mxu0 0.0
  %2787 = vmatpush.msra.mxu0 0.0
  %2788 = vmatpush.msra.mxu0 0.0
  %2789 = vmatpush.msra.mxu0 0.0
  %2790 = vmatpush.msra.mxu0 0.0
  %2791 = vmatpush.msra.mxu0 0.0
  %2792 = vmatpush.msra.mxu0 0.0
  %2793 = vmatpush.msra.mxu0 0.0
  %2794 = vmatpush.msra.mxu0 0.0
  %2795 = vmatpush.msra.mxu0 0.0
  %2796 = vmatpush.msra.mxu0 0.0
  %2797 = vmatpush.msra.mxu0 0.0
  %2798 = vmatpush.msra.mxu0 0.0
  %2799 = vmatpush.msra.mxu0 0.0
  %v2800 = vand.u32 %v71, 4294901760
  %2801 = vmatpush.msra.mxu0 %v2800
  %v2802 = vand.u32 %v2780, 4294901760
  %v2803 = vsub.f32 %v2780, %v2802
  %v2804 = vand.u32 %v2803, 4294901760
  %v2805 = vsub.f32 %v2803, %v2804
  %v2806 = vand.u32 %v2805, 4294901760
  %2807 = vmatmul.f32.gmra.mxu0 %v2806
  %v2808 = vpop.f32.mrf.mxu0
  %v2809 = vadd.f32 0.0, %v2808
  %v2810 = vand.u32 %v2783, 4294901760
  %v2811 = vsub.f32 %v2783, %v2810
  %v2812 = vand.u32 %v2811, 4294901760
  %v2813 = vsub.f32 %v2811, %v2812
  %v2814 = vand.u32 %v2813, 4294901760
  %2815 = vmatmul.f32.gmra.mxu0 %v2814
  %v2816 = vpop.f32.mrf.mxu0
  %v2817 = vadd.f32 0.0, %v2816
  %2818 = vdwg.mxu0
  %2819 = vmatpush.msra.mxu0 0.0
  %2820 = vmatpush.msra.mxu0 0.0
  %2821 = vmatpush.msra.mxu0 0.0
  %2822 = vmatpush.msra.mxu0 0.0
  %2823 = vmatpush.msra.mxu0 0.0
  %2824 = vmatpush.msra.mxu0 0.0
  %2825 = vmatpush.msra.mxu0 0.0
  %2826 = vmatpush.msra.mxu0 0.0
  %2827 = vmatpush.msra.mxu0 0.0
  %2828 = vmatpush.msra.mxu0 0.0
  %2829 = vmatpush.msra.mxu0 0.0
  %2830 = vmatpush.msra.mxu0 0.0
  %2831 = vmatpush.msra.mxu0 0.0
  %2832 = vmatpush.msra.mxu0 0.0
  %2833 = vmatpush.msra.mxu0 0.0
  %v2834 = vand.u32 %v71, 4294901760
  %v2835 = vsub.f32 %v71, %v2834
  %v2836 = vand.u32 %v2835, 4294901760
  %v2837 = vsub.f32 %v2835, %v2836
  %v2838 = vand.u32 %v2837, 4294901760
  %2839 = vmatpush.msra.mxu0 %v2838
  %v2840 = vand.u32 %v2780, 4294901760
  %2841 = vmatmul.f32.gmra.mxu0 %v2840
  %v2842 = vpop.f32.mrf.mxu0
  %v2843 = vadd.f32 %v2809, %v2842
  %v2844 = vand.u32 %v2783, 4294901760
  %2845 = vmatmul.f32.gmra.mxu0 %v2844
  %v2846 = vpop.f32.mrf.mxu0
  %v2847 = vadd.f32 %v2817, %v2846
  %2848 = vdwg.mxu0
  %2849 = vmatpush.msra.mxu0 0.0
  %2850 = vmatpush.msra.mxu0 0.0
  %2851 = vmatpush.msra.mxu0 0.0
  %2852 = vmatpush.msra.mxu0 0.0
  %2853 = vmatpush.msra.mxu0 0.0
  %2854 = vmatpush.msra.mxu0 0.0
  %2855 = vmatpush.msra.mxu0 0.0
  %2856 = vmatpush.msra.mxu0 0.0
  %2857 = vmatpush.msra.mxu0 0.0
  %2858 = vmatpush.msra.mxu0 0.0
  %2859 = vmatpush.msra.mxu0 0.0
  %2860 = vmatpush.msra.mxu0 0.0
  %2861 = vmatpush.msra.mxu0 0.0
  %2862 = vmatpush.msra.mxu0 0.0
  %2863 = vmatpush.msra.mxu0 0.0
  %v2864 = vand.u32 %v71, 4294901760
  %v2865 = vsub.f32 %v71, %v2864
  %2866 = vmatpush.msra.mxu0 %v2865
  %v2867 = vand.u32 %v2780, 4294901760
  %v2868 = vsub.f32 %v2780, %v2867
  %2869 = vmatmul.f32.gmra.mxu0 %v2868
  %v2870 = vpop.f32.mrf.mxu0
  %v2871 = vadd.f32 %v2843, %v2870
  %v2872 = vand.u32 %v2783, 4294901760
  %v2873 = vsub.f32 %v2783, %v2872
  %2874 = vmatmul.f32.gmra.mxu0 %v2873
  %v2875 = vpop.f32.mrf.mxu0
  %v2876 = vadd.f32 %v2847, %v2875
  %2877 = vdwg.mxu0
  %2878 = vmatpush.msra.mxu0 0.0
  %2879 = vmatpush.msra.mxu0 0.0
  %2880 = vmatpush.msra.mxu0 0.0
  %2881 = vmatpush.msra.mxu0 0.0
  %2882 = vmatpush.msra.mxu0 0.0
  %2883 = vmatpush.msra.mxu0 0.0
  %2884 = vmatpush.msra.mxu0 0.0
  %2885 = vmatpush.msra.mxu0 0.0
  %2886 = vmatpush.msra.mxu0 0.0
  %2887 = vmatpush.msra.mxu0 0.0
  %2888 = vmatpush.msra.mxu0 0.0
  %2889 = vmatpush.msra.mxu0 0.0
  %2890 = vmatpush.msra.mxu0 0.0
  %2891 = vmatpush.msra.mxu0 0.0
  %2892 = vmatpush.msra.mxu0 0.0
  %v2893 = vand.u32 %v71, 4294901760
  %2894 = vmatpush.msra.mxu0 %v2893
  %v2895 = vand.u32 %v2780, 4294901760
  %v2896 = vsub.f32 %v2780, %v2895
  %v2897 = vand.u32 %v2896, 4294901760
  %2898 = vmatmul.f32.gmra.mxu0 %v2897
  %v2899 = vpop.f32.mrf.mxu0
  %v2900 = vadd.f32 %v2871, %v2899
  %v2901 = vand.u32 %v2783, 4294901760
  %v2902 = vsub.f32 %v2783, %v2901
  %v2903 = vand.u32 %v2902, 4294901760
  %2904 = vmatmul.f32.gmra.mxu0 %v2903
  %v2905 = vpop.f32.mrf.mxu0
  %v2906 = vadd.f32 %v2876, %v2905
  %2907 = vdwg.mxu0
  %2908 = vmatpush.msra.mxu0 0.0
  %2909 = vmatpush.msra.mxu0 0.0
  %2910 = vmatpush.msra.mxu0 0.0
  %2911 = vmatpush.msra.mxu0 0.0
  %2912 = vmatpush.msra.mxu0 0.0
  %2913 = vmatpush.msra.mxu0 0.0
  %2914 = vmatpush.msra.mxu0 0.0
  %2915 = vmatpush.msra.mxu0 0.0
  %2916 = vmatpush.msra.mxu0 0.0
  %2917 = vmatpush.msra.mxu0 0.0
  %2918 = vmatpush.msra.mxu0 0.0
  %2919 = vmatpush.msra.mxu0 0.0
  %2920 = vmatpush.msra.mxu0 0.0
  %2921 = vmatpush.msra.mxu0 0.0
  %2922 = vmatpush.msra.mxu0 0.0
  %v2923 = vand.u32 %v71, 4294901760
  %v2924 = vsub.f32 %v71, %v2923
  %v2925 = vand.u32 %v2924, 4294901760
  %2926 = vmatpush.msra.mxu0 %v2925
  %v2927 = vand.u32 %v2780, 4294901760
  %2928 = vmatmul.f32.gmra.mxu0 %v2927
  %v2929 = vpop.f32.mrf.mxu0
  %v2930 = vadd.f32 %v2900, %v2929
  %v2931 = vand.u32 %v2783, 4294901760
  %2932 = vmatmul.f32.gmra.mxu0 %v2931
  %v2933 = vpop.f32.mrf.mxu0
  %v2934 = vadd.f32 %v2906, %v2933
  %2935 = vdwg.mxu0
  %2936 = vmatpush.msra.mxu0 0.0
  %2937 = vmatpush.msra.mxu0 0.0
  %2938 = vmatpush.msra.mxu0 0.0
  %2939 = vmatpush.msra.mxu0 0.0
  %2940 = vmatpush.msra.mxu0 0.0
  %2941 = vmatpush.msra.mxu0 0.0
  %2942 = vmatpush.msra.mxu0 0.0
  %2943 = vmatpush.msra.mxu0 0.0
  %2944 = vmatpush.msra.mxu0 0.0
  %2945 = vmatpush.msra.mxu0 0.0
  %2946 = vmatpush.msra.mxu0 0.0
  %2947 = vmatpush.msra.mxu0 0.0
  %2948 = vmatpush.msra.mxu0 0.0
  %2949 = vmatpush.msra.mxu0 0.0
  %2950 = vmatpush.msra.mxu0 0.0
  %v2951 = vand.u32 %v71, 4294901760
  %2952 = vmatpush.msra.mxu0 %v2951
  %v2953 = vand.u32 %v2780, 4294901760
  %2954 = vmatmul.f32.gmra.mxu0 %v2953
  %v2955 = vpop.f32.mrf.mxu0
  %v2956 = vadd.f32 %v2930, %v2955
  %v2957 = vand.u32 %v2783, 4294901760
  %2958 = vmatmul.f32.gmra.mxu0 %v2957
  %v2959 = vpop.f32.mrf.mxu0
  %v2960 = vadd.f32 %v2934, %v2959
  %2961 = vdwg.mxu0
  %v2962 = vadd.f32 %v2777, %v2956
  %v2963 = vadd.f32 %v2778, %v2960
  %v2964 = vadd.f32 %v40, %v2962
  %v2965 = vadd.f32 %v43, %v2963
  %v2966 = vperm.slane %v80, 6
  %v2967 = vadd.f32 %v2964, %v2966
  %v2968 = vadd.f32 %v2965, %v2966
  %v2969 = vsel %vm94, %v2967, 0.0
  %2970 = vadd.xlane.f32.xlu0 %v2969
  %v2971 = vpop.xlane.xlu0 %2970
  %v2972 = vsel %vm94, %v2968, 0.0
  %2973 = vadd.xlane.f32.xlu0 %v2972
  %v2974 = vpop.xlane.xlu0 %2973
  %v2975 = vmul.f32 %v2971, %v107
  %v2976 = vmul.f32 %v2974, %v107
  %v2977 = vsub.f32 %v2967, %v2975
  %v2978 = vsub.f32 %v2968, %v2976
  %v2979 = vmul.f32 %v2977, %v2977
  %v2980 = vmul.f32 %v2978, %v2978
  %v2981 = vsel %vm94, %v2979, 0.0
  %2982 = vadd.xlane.f32.xlu0 %v2981
  %v2983 = vpop.xlane.xlu0 %2982
  %v2984 = vsel %vm94, %v2980, 0.0
  %2985 = vadd.xlane.f32.xlu0 %v2984
  %v2986 = vpop.xlane.xlu0 %2985
  %v2987 = vmul.f32 %v2983, 0.032258064
  %v2988 = vmul.f32 %v2986, 0.032258064
  %v2989 = vperm.slane %v80, 2
  %v2990 = vmul.f32 %v2989, %v2977
  %v2991 = vmul.f32 %v2989, %v2978
  %v2992 = vrsqrt.pop %v2987
  %v2993 = vmul.f32 %v2992, %v2987
  %v2994 = vmul.f32 %v2993, %v2992
  %v2995 = vmul.f32 0.5, %v2994
  %v2996 = vsub.f32 1.5, %v2995
  %v2997 = vmul.f32 %v2992, %v2996
  %v2998 = vmul.f32 %v2987, %v2997
  %vm2999 = vcmp.eq.f32.partialorder %v2987, inf
  %v3000 = vsel %vm2999, %v2987, %v2998
  %vm3001 = vcmp.eq.f32.partialorder %v2987, 0.0
  %v3002 = vand.u32 %v2987, 2147483648
  %v3003 = vsel %vm3001, %v3002, %v3000
  %v3004 = vrsqrt.pop %v2988
  %v3005 = vmul.f32 %v3004, %v2988
  %v3006 = vmul.f32 %v3005, %v3004
  %v3007 = vmul.f32 0.5, %v3006
  %v3008 = vsub.f32 1.5, %v3007
  %v3009 = vmul.f32 %v3004, %v3008
  %v3010 = vmul.f32 %v2988, %v3009
  %vm3011 = vcmp.eq.f32.partialorder %v2988, inf
  %v3012 = vsel %vm3011, %v2988, %v3010
  %vm3013 = vcmp.eq.f32.partialorder %v2988, 0.0
  %v3014 = vand.u32 %v2988, 2147483648
  %v3015 = vsel %vm3013, %v3014, %v3012
  %v3016 = vadd.f32 %v3003, 1e-06
  %v3017 = vadd.f32 %v3015, 1e-06
  %v3018 = vrcp.pop %v3016
  %v3019 = vmul.f32 %v3016, %v3018
  %v3020 = vsub.f32 1.0, %v3019
  %v3021 = vmul.f32 %v3018, %v3020
  %v3022 = vadd.f32 %v3018, %v3021
  %vm3023 = vweird.f32 %v3016
  %vm3024 = vweird.f32 %v3018
  %vm3025 = vmor %vm3023, %vm3024
  %v3026 = vsel %vm3025, %v3018, %v3022
  %v3027 = vand.u32 2147483647, %v3016
  %vm3028 = vcmp.eq.f32.partialorder %v3027, 8.507059e+37
  %v3029 = vand.u32 %v3016, 2147483648
  %v3030 = vor.u32 1.1754944e-38, %v3029
  %v3031 = vsel %vm3028, %v3030, %v3026
  %v3032 = vmul.f32 %v2990, %v3031
  %v3033 = vrcp.pop %v3017
  %v3034 = vmul.f32 %v3017, %v3033
  %v3035 = vsub.f32 1.0, %v3034
  %v3036 = vmul.f32 %v3033, %v3035
  %v3037 = vadd.f32 %v3033, %v3036
  %vm3038 = vweird.f32 %v3017
  %vm3039 = vweird.f32 %v3033
  %vm3040 = vmor %vm3038, %vm3039
  %v3041 = vsel %vm3040, %v3033, %v3037
  %v3042 = vand.u32 2147483647, %v3017
  %vm3043 = vcmp.eq.f32.partialorder %v3042, 8.507059e+37
  %v3044 = vand.u32 %v3017, 2147483648
  %v3045 = vor.u32 1.1754944e-38, %v3044
  %v3046 = vsel %vm3043, %v3045, %v3041
  %v3047 = vmul.f32 %v2991, %v3046
  %v3048 = vperm.slane %v80, 3
  %v3049 = vadd.f32 %v3032, %v3048
  %v3050 = vadd.f32 %v3047, %v3048
  %v3051 = vperm.slane %v85, 0
  %v3053 = vsel %vm94, %v3049, 0
  %v3056 = vsel %vm94, %v3050, 0
  %3058 = vmatpush.msra.mxu0 0.0
  %3059 = vmatpush.msra.mxu0 0.0
  %3060 = vmatpush.msra.mxu0 0.0
  %3061 = vmatpush.msra.mxu0 0.0
  %3062 = vmatpush.msra.mxu0 0.0
  %3063 = vmatpush.msra.mxu0 0.0
  %3064 = vmatpush.msra.mxu0 0.0
  %3065 = vmatpush.msra.mxu0 0.0
  %3066 = vmatpush.msra.mxu0 0.0
  %3067 = vmatpush.msra.mxu0 0.0
  %3068 = vmatpush.msra.mxu0 0.0
  %3069 = vmatpush.msra.mxu0 0.0
  %v3070 = vand.u32 %v84, 4294901760
  %3071 = vmatpush.msra.mxu0 %v3070
  %v3072 = vand.u32 %v83, 4294901760
  %3073 = vmatpush.msra.mxu0 %v3072
  %v3074 = vand.u32 %v82, 4294901760
  %3075 = vmatpush.msra.mxu0 %v3074
  %v3076 = vand.u32 %v81, 4294901760
  %3077 = vmatpush.msra.mxu0 %v3076
  %v3078 = vand.u32 %v3053, 4294901760
  %v3079 = vsub.f32 %v3053, %v3078
  %v3080 = vand.u32 %v3079, 4294901760
  %v3081 = vsub.f32 %v3079, %v3080
  %v3082 = vand.u32 %v3081, 4294901760
  %3083 = vmatmul.f32.gmra.mxu0 %v3082
  %v3084 = vpop.f32.mrf.mxu0
  %v3085 = vadd.f32 %v3051, %v3084
  %v3086 = vand.u32 %v3056, 4294901760
  %v3087 = vsub.f32 %v3056, %v3086
  %v3088 = vand.u32 %v3087, 4294901760
  %v3089 = vsub.f32 %v3087, %v3088
  %v3090 = vand.u32 %v3089, 4294901760
  %3091 = vmatmul.f32.gmra.mxu0 %v3090
  %v3092 = vpop.f32.mrf.mxu0
  %v3093 = vadd.f32 %v3051, %v3092
  %3094 = vdwg.mxu0
  %3095 = vmatpush.msra.mxu0 0.0
  %3096 = vmatpush.msra.mxu0 0.0
  %3097 = vmatpush.msra.mxu0 0.0
  %3098 = vmatpush.msra.mxu0 0.0
  %3099 = vmatpush.msra.mxu0 0.0
  %3100 = vmatpush.msra.mxu0 0.0
  %3101 = vmatpush.msra.mxu0 0.0
  %3102 = vmatpush.msra.mxu0 0.0
  %3103 = vmatpush.msra.mxu0 0.0
  %3104 = vmatpush.msra.mxu0 0.0
  %3105 = vmatpush.msra.mxu0 0.0
  %3106 = vmatpush.msra.mxu0 0.0
  %v3107 = vand.u32 %v84, 4294901760
  %v3108 = vsub.f32 %v84, %v3107
  %v3109 = vand.u32 %v3108, 4294901760
  %v3110 = vsub.f32 %v3108, %v3109
  %v3111 = vand.u32 %v3110, 4294901760
  %3112 = vmatpush.msra.mxu0 %v3111
  %v3113 = vand.u32 %v83, 4294901760
  %v3114 = vsub.f32 %v83, %v3113
  %v3115 = vand.u32 %v3114, 4294901760
  %v3116 = vsub.f32 %v3114, %v3115
  %v3117 = vand.u32 %v3116, 4294901760
  %3118 = vmatpush.msra.mxu0 %v3117
  %v3119 = vand.u32 %v82, 4294901760
  %v3120 = vsub.f32 %v82, %v3119
  %v3121 = vand.u32 %v3120, 4294901760
  %v3122 = vsub.f32 %v3120, %v3121
  %v3123 = vand.u32 %v3122, 4294901760
  %3124 = vmatpush.msra.mxu0 %v3123
  %v3125 = vand.u32 %v81, 4294901760
  %v3126 = vsub.f32 %v81, %v3125
  %v3127 = vand.u32 %v3126, 4294901760
  %v3128 = vsub.f32 %v3126, %v3127
  %v3129 = vand.u32 %v3128, 4294901760
  %3130 = vmatpush.msra.mxu0 %v3129
  %v3131 = vand.u32 %v3053, 4294901760
  %3132 = vmatmul.f32.gmra.mxu0 %v3131
  %v3133 = vpop.f32.mrf.mxu0
  %v3134 = vadd.f32 %v3085, %v3133
  %v3135 = vand.u32 %v3056, 4294901760
  %3136 = vmatmul.f32.gmra.mxu0 %v3135
  %v3137 = vpop.f32.mrf.mxu0
  %v3138 = vadd.f32 %v3093, %v3137
  %3139 = vdwg.mxu0
  %3140 = vmatpush.msra.mxu0 0.0
  %3141 = vmatpush.msra.mxu0 0.0
  %3142 = vmatpush.msra.mxu0 0.0
  %3143 = vmatpush.msra.mxu0 0.0
  %3144 = vmatpush.msra.mxu0 0.0
  %3145 = vmatpush.msra.mxu0 0.0
  %3146 = vmatpush.msra.mxu0 0.0
  %3147 = vmatpush.msra.mxu0 0.0
  %3148 = vmatpush.msra.mxu0 0.0
  %3149 = vmatpush.msra.mxu0 0.0
  %3150 = vmatpush.msra.mxu0 0.0
  %3151 = vmatpush.msra.mxu0 0.0
  %v3152 = vand.u32 %v84, 4294901760
  %v3153 = vsub.f32 %v84, %v3152
  %3154 = vmatpush.msra.mxu0 %v3153
  %v3155 = vand.u32 %v83, 4294901760
  %v3156 = vsub.f32 %v83, %v3155
  %3157 = vmatpush.msra.mxu0 %v3156
  %v3158 = vand.u32 %v82, 4294901760
  %v3159 = vsub.f32 %v82, %v3158
  %3160 = vmatpush.msra.mxu0 %v3159
  %v3161 = vand.u32 %v81, 4294901760
  %v3162 = vsub.f32 %v81, %v3161
  %3163 = vmatpush.msra.mxu0 %v3162
  %v3164 = vand.u32 %v3053, 4294901760
  %v3165 = vsub.f32 %v3053, %v3164
  %3166 = vmatmul.f32.gmra.mxu0 %v3165
  %v3167 = vpop.f32.mrf.mxu0
  %v3168 = vadd.f32 %v3134, %v3167
  %v3169 = vand.u32 %v3056, 4294901760
  %v3170 = vsub.f32 %v3056, %v3169
  %3171 = vmatmul.f32.gmra.mxu0 %v3170
  %v3172 = vpop.f32.mrf.mxu0
  %v3173 = vadd.f32 %v3138, %v3172
  %3174 = vdwg.mxu0
  %3175 = vmatpush.msra.mxu0 0.0
  %3176 = vmatpush.msra.mxu0 0.0
  %3177 = vmatpush.msra.mxu0 0.0
  %3178 = vmatpush.msra.mxu0 0.0
  %3179 = vmatpush.msra.mxu0 0.0
  %3180 = vmatpush.msra.mxu0 0.0
  %3181 = vmatpush.msra.mxu0 0.0
  %3182 = vmatpush.msra.mxu0 0.0
  %3183 = vmatpush.msra.mxu0 0.0
  %3184 = vmatpush.msra.mxu0 0.0
  %3185 = vmatpush.msra.mxu0 0.0
  %3186 = vmatpush.msra.mxu0 0.0
  %v3187 = vand.u32 %v84, 4294901760
  %3188 = vmatpush.msra.mxu0 %v3187
  %v3189 = vand.u32 %v83, 4294901760
  %3190 = vmatpush.msra.mxu0 %v3189
  %v3191 = vand.u32 %v82, 4294901760
  %3192 = vmatpush.msra.mxu0 %v3191
  %v3193 = vand.u32 %v81, 4294901760
  %3194 = vmatpush.msra.mxu0 %v3193
  %v3195 = vand.u32 %v3053, 4294901760
  %v3196 = vsub.f32 %v3053, %v3195
  %v3197 = vand.u32 %v3196, 4294901760
  %3198 = vmatmul.f32.gmra.mxu0 %v3197
  %v3199 = vpop.f32.mrf.mxu0
  %v3200 = vadd.f32 %v3168, %v3199
  %v3201 = vand.u32 %v3056, 4294901760
  %v3202 = vsub.f32 %v3056, %v3201
  %v3203 = vand.u32 %v3202, 4294901760
  %3204 = vmatmul.f32.gmra.mxu0 %v3203
  %v3205 = vpop.f32.mrf.mxu0
  %v3206 = vadd.f32 %v3173, %v3205
  %3207 = vdwg.mxu0
  %3208 = vmatpush.msra.mxu0 0.0
  %3209 = vmatpush.msra.mxu0 0.0
  %3210 = vmatpush.msra.mxu0 0.0
  %3211 = vmatpush.msra.mxu0 0.0
  %3212 = vmatpush.msra.mxu0 0.0
  %3213 = vmatpush.msra.mxu0 0.0
  %3214 = vmatpush.msra.mxu0 0.0
  %3215 = vmatpush.msra.mxu0 0.0
  %3216 = vmatpush.msra.mxu0 0.0
  %3217 = vmatpush.msra.mxu0 0.0
  %3218 = vmatpush.msra.mxu0 0.0
  %3219 = vmatpush.msra.mxu0 0.0
  %v3220 = vand.u32 %v84, 4294901760
  %v3221 = vsub.f32 %v84, %v3220
  %v3222 = vand.u32 %v3221, 4294901760
  %3223 = vmatpush.msra.mxu0 %v3222
  %v3224 = vand.u32 %v83, 4294901760
  %v3225 = vsub.f32 %v83, %v3224
  %v3226 = vand.u32 %v3225, 4294901760
  %3227 = vmatpush.msra.mxu0 %v3226
  %v3228 = vand.u32 %v82, 4294901760
  %v3229 = vsub.f32 %v82, %v3228
  %v3230 = vand.u32 %v3229, 4294901760
  %3231 = vmatpush.msra.mxu0 %v3230
  %v3232 = vand.u32 %v81, 4294901760
  %v3233 = vsub.f32 %v81, %v3232
  %v3234 = vand.u32 %v3233, 4294901760
  %3235 = vmatpush.msra.mxu0 %v3234
  %v3236 = vand.u32 %v3053, 4294901760
  %3237 = vmatmul.f32.gmra.mxu0 %v3236
  %v3238 = vpop.f32.mrf.mxu0
  %v3239 = vadd.f32 %v3200, %v3238
  %v3240 = vand.u32 %v3056, 4294901760
  %3241 = vmatmul.f32.gmra.mxu0 %v3240
  %v3242 = vpop.f32.mrf.mxu0
  %v3243 = vadd.f32 %v3206, %v3242
  %3244 = vdwg.mxu0
  %3245 = vmatpush.msra.mxu0 0.0
  %3246 = vmatpush.msra.mxu0 0.0
  %3247 = vmatpush.msra.mxu0 0.0
  %3248 = vmatpush.msra.mxu0 0.0
  %3249 = vmatpush.msra.mxu0 0.0
  %3250 = vmatpush.msra.mxu0 0.0
  %3251 = vmatpush.msra.mxu0 0.0
  %3252 = vmatpush.msra.mxu0 0.0
  %3253 = vmatpush.msra.mxu0 0.0
  %3254 = vmatpush.msra.mxu0 0.0
  %3255 = vmatpush.msra.mxu0 0.0
  %3256 = vmatpush.msra.mxu0 0.0
  %v3257 = vand.u32 %v84, 4294901760
  %3258 = vmatpush.msra.mxu0 %v3257
  %v3259 = vand.u32 %v83, 4294901760
  %3260 = vmatpush.msra.mxu0 %v3259
  %v3261 = vand.u32 %v82, 4294901760
  %3262 = vmatpush.msra.mxu0 %v3261
  %v3263 = vand.u32 %v81, 4294901760
  %3264 = vmatpush.msra.mxu0 %v3263
  %v3265 = vand.u32 %v3053, 4294901760
  %3266 = vmatmul.f32.gmra.mxu0 %v3265
  %v3267 = vpop.f32.mrf.mxu0
  %v3268 = vadd.f32 %v3239, %v3267
  %v3269 = vand.u32 %v3056, 4294901760
  %3270 = vmatmul.f32.gmra.mxu0 %v3269
  %v3271 = vpop.f32.mrf.mxu0
  %v3272 = vadd.f32 %v3243, %v3271
  %3273 = vdwg.mxu0
  %v3274 = vmax.f32 %v3268, 0.0
  %v3275 = vmax.f32 %v3272, 0.0
  %v3277 = vsel %vm1557, %v3274, 0
  %v3280 = vsel %vm1557, %v3275, 0
  %3282 = vmatpush.msra.mxu0 0.0
  %3283 = vmatpush.msra.mxu0 0.0
  %3284 = vmatpush.msra.mxu0 0.0
  %3285 = vmatpush.msra.mxu0 0.0
  %3286 = vmatpush.msra.mxu0 0.0
  %3287 = vmatpush.msra.mxu0 0.0
  %3288 = vmatpush.msra.mxu0 0.0
  %3289 = vmatpush.msra.mxu0 0.0
  %v3290 = vand.u32 %v79, 4294901760
  %3291 = vmatpush.msra.mxu0 %v3290
  %v3292 = vand.u32 %v78, 4294901760
  %3293 = vmatpush.msra.mxu0 %v3292
  %v3294 = vand.u32 %v77, 4294901760
  %3295 = vmatpush.msra.mxu0 %v3294
  %v3296 = vand.u32 %v76, 4294901760
  %3297 = vmatpush.msra.mxu0 %v3296
  %v3298 = vand.u32 %v75, 4294901760
  %3299 = vmatpush.msra.mxu0 %v3298
  %v3300 = vand.u32 %v74, 4294901760
  %3301 = vmatpush.msra.mxu0 %v3300
  %v3302 = vand.u32 %v73, 4294901760
  %3303 = vmatpush.msra.mxu0 %v3302
  %v3304 = vand.u32 %v72, 4294901760
  %3305 = vmatpush.msra.mxu0 %v3304
  %v3306 = vand.u32 %v3277, 4294901760
  %v3307 = vsub.f32 %v3277, %v3306
  %v3308 = vand.u32 %v3307, 4294901760
  %v3309 = vsub.f32 %v3307, %v3308
  %v3310 = vand.u32 %v3309, 4294901760
  %3311 = vmatmul.f32.gmra.mxu0 %v3310
  %v3312 = vpop.f32.mrf.mxu0
  %v3313 = vadd.f32 0.0, %v3312
  %v3314 = vand.u32 %v3280, 4294901760
  %v3315 = vsub.f32 %v3280, %v3314
  %v3316 = vand.u32 %v3315, 4294901760
  %v3317 = vsub.f32 %v3315, %v3316
  %v3318 = vand.u32 %v3317, 4294901760
  %3319 = vmatmul.f32.gmra.mxu0 %v3318
  %v3320 = vpop.f32.mrf.mxu0
  %v3321 = vadd.f32 0.0, %v3320
  %3322 = vdwg.mxu0
  %3323 = vmatpush.msra.mxu0 0.0
  %3324 = vmatpush.msra.mxu0 0.0
  %3325 = vmatpush.msra.mxu0 0.0
  %3326 = vmatpush.msra.mxu0 0.0
  %3327 = vmatpush.msra.mxu0 0.0
  %3328 = vmatpush.msra.mxu0 0.0
  %3329 = vmatpush.msra.mxu0 0.0
  %3330 = vmatpush.msra.mxu0 0.0
  %v3331 = vand.u32 %v79, 4294901760
  %v3332 = vsub.f32 %v79, %v3331
  %v3333 = vand.u32 %v3332, 4294901760
  %v3334 = vsub.f32 %v3332, %v3333
  %v3335 = vand.u32 %v3334, 4294901760
  %3336 = vmatpush.msra.mxu0 %v3335
  %v3337 = vand.u32 %v78, 4294901760
  %v3338 = vsub.f32 %v78, %v3337
  %v3339 = vand.u32 %v3338, 4294901760
  %v3340 = vsub.f32 %v3338, %v3339
  %v3341 = vand.u32 %v3340, 4294901760
  %3342 = vmatpush.msra.mxu0 %v3341
  %v3343 = vand.u32 %v77, 4294901760
  %v3344 = vsub.f32 %v77, %v3343
  %v3345 = vand.u32 %v3344, 4294901760
  %v3346 = vsub.f32 %v3344, %v3345
  %v3347 = vand.u32 %v3346, 4294901760
  %3348 = vmatpush.msra.mxu0 %v3347
  %v3349 = vand.u32 %v76, 4294901760
  %v3350 = vsub.f32 %v76, %v3349
  %v3351 = vand.u32 %v3350, 4294901760
  %v3352 = vsub.f32 %v3350, %v3351
  %v3353 = vand.u32 %v3352, 4294901760
  %3354 = vmatpush.msra.mxu0 %v3353
  %v3355 = vand.u32 %v75, 4294901760
  %v3356 = vsub.f32 %v75, %v3355
  %v3357 = vand.u32 %v3356, 4294901760
  %v3358 = vsub.f32 %v3356, %v3357
  %v3359 = vand.u32 %v3358, 4294901760
  %3360 = vmatpush.msra.mxu0 %v3359
  %v3361 = vand.u32 %v74, 4294901760
  %v3362 = vsub.f32 %v74, %v3361
  %v3363 = vand.u32 %v3362, 4294901760
  %v3364 = vsub.f32 %v3362, %v3363
  %v3365 = vand.u32 %v3364, 4294901760
  %3366 = vmatpush.msra.mxu0 %v3365
  %v3367 = vand.u32 %v73, 4294901760
  %v3368 = vsub.f32 %v73, %v3367
  %v3369 = vand.u32 %v3368, 4294901760
  %v3370 = vsub.f32 %v3368, %v3369
  %v3371 = vand.u32 %v3370, 4294901760
  %3372 = vmatpush.msra.mxu0 %v3371
  %v3373 = vand.u32 %v72, 4294901760
  %v3374 = vsub.f32 %v72, %v3373
  %v3375 = vand.u32 %v3374, 4294901760
  %v3376 = vsub.f32 %v3374, %v3375
  %v3377 = vand.u32 %v3376, 4294901760
  %3378 = vmatpush.msra.mxu0 %v3377
  %v3379 = vand.u32 %v3277, 4294901760
  %3380 = vmatmul.f32.gmra.mxu0 %v3379
  %v3381 = vpop.f32.mrf.mxu0
  %v3382 = vadd.f32 %v3313, %v3381
  %v3383 = vand.u32 %v3280, 4294901760
  %3384 = vmatmul.f32.gmra.mxu0 %v3383
  %v3385 = vpop.f32.mrf.mxu0
  %v3386 = vadd.f32 %v3321, %v3385
  %3387 = vdwg.mxu0
  %3388 = vmatpush.msra.mxu0 0.0
  %3389 = vmatpush.msra.mxu0 0.0
  %3390 = vmatpush.msra.mxu0 0.0
  %3391 = vmatpush.msra.mxu0 0.0
  %3392 = vmatpush.msra.mxu0 0.0
  %3393 = vmatpush.msra.mxu0 0.0
  %3394 = vmatpush.msra.mxu0 0.0
  %3395 = vmatpush.msra.mxu0 0.0
  %v3396 = vand.u32 %v79, 4294901760
  %v3397 = vsub.f32 %v79, %v3396
  %3398 = vmatpush.msra.mxu0 %v3397
  %v3399 = vand.u32 %v78, 4294901760
  %v3400 = vsub.f32 %v78, %v3399
  %3401 = vmatpush.msra.mxu0 %v3400
  %v3402 = vand.u32 %v77, 4294901760
  %v3403 = vsub.f32 %v77, %v3402
  %3404 = vmatpush.msra.mxu0 %v3403
  %v3405 = vand.u32 %v76, 4294901760
  %v3406 = vsub.f32 %v76, %v3405
  %3407 = vmatpush.msra.mxu0 %v3406
  %v3408 = vand.u32 %v75, 4294901760
  %v3409 = vsub.f32 %v75, %v3408
  %3410 = vmatpush.msra.mxu0 %v3409
  %v3411 = vand.u32 %v74, 4294901760
  %v3412 = vsub.f32 %v74, %v3411
  %3413 = vmatpush.msra.mxu0 %v3412
  %v3414 = vand.u32 %v73, 4294901760
  %v3415 = vsub.f32 %v73, %v3414
  %3416 = vmatpush.msra.mxu0 %v3415
  %v3417 = vand.u32 %v72, 4294901760
  %v3418 = vsub.f32 %v72, %v3417
  %3419 = vmatpush.msra.mxu0 %v3418
  %v3420 = vand.u32 %v3277, 4294901760
  %v3421 = vsub.f32 %v3277, %v3420
  %3422 = vmatmul.f32.gmra.mxu0 %v3421
  %v3423 = vpop.f32.mrf.mxu0
  %v3424 = vadd.f32 %v3382, %v3423
  %v3425 = vand.u32 %v3280, 4294901760
  %v3426 = vsub.f32 %v3280, %v3425
  %3427 = vmatmul.f32.gmra.mxu0 %v3426
  %v3428 = vpop.f32.mrf.mxu0
  %v3429 = vadd.f32 %v3386, %v3428
  %3430 = vdwg.mxu0
  %3431 = vmatpush.msra.mxu0 0.0
  %3432 = vmatpush.msra.mxu0 0.0
  %3433 = vmatpush.msra.mxu0 0.0
  %3434 = vmatpush.msra.mxu0 0.0
  %3435 = vmatpush.msra.mxu0 0.0
  %3436 = vmatpush.msra.mxu0 0.0
  %3437 = vmatpush.msra.mxu0 0.0
  %3438 = vmatpush.msra.mxu0 0.0
  %v3439 = vand.u32 %v79, 4294901760
  %3440 = vmatpush.msra.mxu0 %v3439
  %v3441 = vand.u32 %v78, 4294901760
  %3442 = vmatpush.msra.mxu0 %v3441
  %v3443 = vand.u32 %v77, 4294901760
  %3444 = vmatpush.msra.mxu0 %v3443
  %v3445 = vand.u32 %v76, 4294901760
  %3446 = vmatpush.msra.mxu0 %v3445
  %v3447 = vand.u32 %v75, 4294901760
  %3448 = vmatpush.msra.mxu0 %v3447
  %v3449 = vand.u32 %v74, 4294901760
  %3450 = vmatpush.msra.mxu0 %v3449
  %v3451 = vand.u32 %v73, 4294901760
  %3452 = vmatpush.msra.mxu0 %v3451
  %v3453 = vand.u32 %v72, 4294901760
  %3454 = vmatpush.msra.mxu0 %v3453
  %v3455 = vand.u32 %v3277, 4294901760
  %v3456 = vsub.f32 %v3277, %v3455
  %v3457 = vand.u32 %v3456, 4294901760
  %3458 = vmatmul.f32.gmra.mxu0 %v3457
  %v3459 = vpop.f32.mrf.mxu0
  %v3460 = vadd.f32 %v3424, %v3459
  %v3461 = vand.u32 %v3280, 4294901760
  %v3462 = vsub.f32 %v3280, %v3461
  %v3463 = vand.u32 %v3462, 4294901760
  %3464 = vmatmul.f32.gmra.mxu0 %v3463
  %v3465 = vpop.f32.mrf.mxu0
  %v3466 = vadd.f32 %v3429, %v3465
  %3467 = vdwg.mxu0
  %3468 = vmatpush.msra.mxu0 0.0
  %3469 = vmatpush.msra.mxu0 0.0
  %3470 = vmatpush.msra.mxu0 0.0
  %3471 = vmatpush.msra.mxu0 0.0
  %3472 = vmatpush.msra.mxu0 0.0
  %3473 = vmatpush.msra.mxu0 0.0
  %3474 = vmatpush.msra.mxu0 0.0
  %3475 = vmatpush.msra.mxu0 0.0
  %v3476 = vand.u32 %v79, 4294901760
  %v3477 = vsub.f32 %v79, %v3476
  %v3478 = vand.u32 %v3477, 4294901760
  %3479 = vmatpush.msra.mxu0 %v3478
  %v3480 = vand.u32 %v78, 4294901760
  %v3481 = vsub.f32 %v78, %v3480
  %v3482 = vand.u32 %v3481, 4294901760
  %3483 = vmatpush.msra.mxu0 %v3482
  %v3484 = vand.u32 %v77, 4294901760
  %v3485 = vsub.f32 %v77, %v3484
  %v3486 = vand.u32 %v3485, 4294901760
  %3487 = vmatpush.msra.mxu0 %v3486
  %v3488 = vand.u32 %v76, 4294901760
  %v3489 = vsub.f32 %v76, %v3488
  %v3490 = vand.u32 %v3489, 4294901760
  %3491 = vmatpush.msra.mxu0 %v3490
  %v3492 = vand.u32 %v75, 4294901760
  %v3493 = vsub.f32 %v75, %v3492
  %v3494 = vand.u32 %v3493, 4294901760
  %3495 = vmatpush.msra.mxu0 %v3494
  %v3496 = vand.u32 %v74, 4294901760
  %v3497 = vsub.f32 %v74, %v3496
  %v3498 = vand.u32 %v3497, 4294901760
  %3499 = vmatpush.msra.mxu0 %v3498
  %v3500 = vand.u32 %v73, 4294901760
  %v3501 = vsub.f32 %v73, %v3500
  %v3502 = vand.u32 %v3501, 4294901760
  %3503 = vmatpush.msra.mxu0 %v3502
  %v3504 = vand.u32 %v72, 4294901760
  %v3505 = vsub.f32 %v72, %v3504
  %v3506 = vand.u32 %v3505, 4294901760
  %3507 = vmatpush.msra.mxu0 %v3506
  %v3508 = vand.u32 %v3277, 4294901760
  %3509 = vmatmul.f32.gmra.mxu0 %v3508
  %v3510 = vpop.f32.mrf.mxu0
  %v3511 = vadd.f32 %v3460, %v3510
  %v3512 = vand.u32 %v3280, 4294901760
  %3513 = vmatmul.f32.gmra.mxu0 %v3512
  %v3514 = vpop.f32.mrf.mxu0
  %v3515 = vadd.f32 %v3466, %v3514
  %3516 = vdwg.mxu0
  %3517 = vmatpush.msra.mxu0 0.0
  %3518 = vmatpush.msra.mxu0 0.0
  %3519 = vmatpush.msra.mxu0 0.0
  %3520 = vmatpush.msra.mxu0 0.0
  %3521 = vmatpush.msra.mxu0 0.0
  %3522 = vmatpush.msra.mxu0 0.0
  %3523 = vmatpush.msra.mxu0 0.0
  %3524 = vmatpush.msra.mxu0 0.0
  %v3525 = vand.u32 %v79, 4294901760
  %3526 = vmatpush.msra.mxu0 %v3525
  %v3527 = vand.u32 %v78, 4294901760
  %3528 = vmatpush.msra.mxu0 %v3527
  %v3529 = vand.u32 %v77, 4294901760
  %3530 = vmatpush.msra.mxu0 %v3529
  %v3531 = vand.u32 %v76, 4294901760
  %3532 = vmatpush.msra.mxu0 %v3531
  %v3533 = vand.u32 %v75, 4294901760
  %3534 = vmatpush.msra.mxu0 %v3533
  %v3535 = vand.u32 %v74, 4294901760
  %3536 = vmatpush.msra.mxu0 %v3535
  %v3537 = vand.u32 %v73, 4294901760
  %3538 = vmatpush.msra.mxu0 %v3537
  %v3539 = vand.u32 %v72, 4294901760
  %3540 = vmatpush.msra.mxu0 %v3539
  %v3541 = vand.u32 %v3277, 4294901760
  %3542 = vmatmul.f32.gmra.mxu0 %v3541
  %v3543 = vpop.f32.mrf.mxu0
  %v3544 = vadd.f32 %v3511, %v3543
  %v3545 = vand.u32 %v3280, 4294901760
  %3546 = vmatmul.f32.gmra.mxu0 %v3545
  %v3547 = vpop.f32.mrf.mxu0
  %v3548 = vadd.f32 %v3515, %v3547
  %3549 = vdwg.mxu0
  %v3550 = vadd.f32 %v2967, %v3544
  %v3551 = vadd.f32 %v2968, %v3548
  %v3552 = vperm.slane %v80, 7
  %v3553 = vadd.f32 %v3550, %v3552
  %v3554 = vadd.f32 %v3551, %v3552
  %v3555 = vsel %vm94, %v3553, 0.0
  %3556 = vadd.xlane.f32.xlu0 %v3555
  %v3557 = vpop.xlane.xlu0 %3556
  %v3558 = vsel %vm94, %v3554, 0.0
  %3559 = vadd.xlane.f32.xlu0 %v3558
  %v3560 = vpop.xlane.xlu0 %3559
  %v3561 = vmul.f32 %v3557, %v107
  %v3562 = vmul.f32 %v3560, %v107
  %v3563 = vsub.f32 %v3553, %v3561
  %v3564 = vsub.f32 %v3554, %v3562
  %v3565 = vmul.f32 %v3563, %v3563
  %v3566 = vmul.f32 %v3564, %v3564
  %v3567 = vsel %vm94, %v3565, 0.0
  %3568 = vadd.xlane.f32.xlu0 %v3567
  %v3569 = vpop.xlane.xlu0 %3568
  %v3570 = vsel %vm94, %v3566, 0.0
  %3571 = vadd.xlane.f32.xlu0 %v3570
  %v3572 = vpop.xlane.xlu0 %3571
  %v3573 = vmul.f32 %v3569, 0.032258064
  %v3574 = vmul.f32 %v3572, 0.032258064
  %v3575 = vmul.f32 %v122, %v3563
  %v3576 = vmul.f32 %v122, %v3564
  %v3577 = vrsqrt.pop %v3573
  %v3578 = vmul.f32 %v3577, %v3573
  %v3579 = vmul.f32 %v3578, %v3577
  %v3580 = vmul.f32 0.5, %v3579
  %v3581 = vsub.f32 1.5, %v3580
  %v3582 = vmul.f32 %v3577, %v3581
  %v3583 = vmul.f32 %v3573, %v3582
  %vm3584 = vcmp.eq.f32.partialorder %v3573, inf
  %v3585 = vsel %vm3584, %v3573, %v3583
  %vm3586 = vcmp.eq.f32.partialorder %v3573, 0.0
  %v3587 = vand.u32 %v3573, 2147483648
  %v3588 = vsel %vm3586, %v3587, %v3585
  %v3589 = vrsqrt.pop %v3574
  %v3590 = vmul.f32 %v3589, %v3574
  %v3591 = vmul.f32 %v3590, %v3589
  %v3592 = vmul.f32 0.5, %v3591
  %v3593 = vsub.f32 1.5, %v3592
  %v3594 = vmul.f32 %v3589, %v3593
  %v3595 = vmul.f32 %v3574, %v3594
  %vm3596 = vcmp.eq.f32.partialorder %v3574, inf
  %v3597 = vsel %vm3596, %v3574, %v3595
  %vm3598 = vcmp.eq.f32.partialorder %v3574, 0.0
  %v3599 = vand.u32 %v3574, 2147483648
  %v3600 = vsel %vm3598, %v3599, %v3597
  %v3601 = vadd.f32 %v3588, 1e-06
  %v3602 = vadd.f32 %v3600, 1e-06
  %v3603 = vrcp.pop %v3601
  %v3604 = vmul.f32 %v3601, %v3603
  %v3605 = vsub.f32 1.0, %v3604
  %v3606 = vmul.f32 %v3603, %v3605
  %v3607 = vadd.f32 %v3603, %v3606
  %vm3608 = vweird.f32 %v3601
  %vm3609 = vweird.f32 %v3603
  %vm3610 = vmor %vm3608, %vm3609
  %v3611 = vsel %vm3610, %v3603, %v3607
  %v3612 = vand.u32 2147483647, %v3601
  %vm3613 = vcmp.eq.f32.partialorder %v3612, 8.507059e+37
  %v3614 = vand.u32 %v3601, 2147483648
  %v3615 = vor.u32 1.1754944e-38, %v3614
  %v3616 = vsel %vm3613, %v3615, %v3611
  %v3617 = vmul.f32 %v3575, %v3616
  %v3618 = vrcp.pop %v3602
  %v3619 = vmul.f32 %v3602, %v3618
  %v3620 = vsub.f32 1.0, %v3619
  %v3621 = vmul.f32 %v3618, %v3620
  %v3622 = vadd.f32 %v3618, %v3621
  %vm3623 = vweird.f32 %v3602
  %vm3624 = vweird.f32 %v3618
  %vm3625 = vmor %vm3623, %vm3624
  %v3626 = vsel %vm3625, %v3618, %v3622
  %v3627 = vand.u32 2147483647, %v3602
  %vm3628 = vcmp.eq.f32.partialorder %v3627, 8.507059e+37
  %v3629 = vand.u32 %v3602, 2147483648
  %v3630 = vor.u32 1.1754944e-38, %v3629
  %v3631 = vsel %vm3628, %v3630, %v3626
  %v3632 = vmul.f32 %v3576, %v3631
  %v3633 = vadd.f32 %v3617, %v181
  %v3634 = vadd.f32 %v3632, %v181
  %v3636 = vsel %vm94, %v3633, 0
  %v3639 = vsel %vm94, %v3634, 0
  %3641 = vmatpush.msra.mxu0 0.0
  %3642 = vmatpush.msra.mxu0 0.0
  %3643 = vmatpush.msra.mxu0 0.0
  %3644 = vmatpush.msra.mxu0 0.0
  %3645 = vmatpush.msra.mxu0 0.0
  %3646 = vmatpush.msra.mxu0 0.0
  %3647 = vmatpush.msra.mxu0 0.0
  %3648 = vmatpush.msra.mxu0 0.0
  %3649 = vmatpush.msra.mxu0 0.0
  %3650 = vmatpush.msra.mxu0 0.0
  %3651 = vmatpush.msra.mxu0 0.0
  %3652 = vmatpush.msra.mxu0 0.0
  %v3653 = vand.u32 %v47, 4294901760
  %3654 = vmatpush.msra.mxu0 %v3653
  %v3655 = vand.u32 %v46, 4294901760
  %3656 = vmatpush.msra.mxu0 %v3655
  %v3657 = vand.u32 %v45, 4294901760
  %3658 = vmatpush.msra.mxu0 %v3657
  %v3659 = vand.u32 %v44, 4294901760
  %3660 = vmatpush.msra.mxu0 %v3659
  %v3661 = vand.u32 %v3636, 4294901760
  %v3662 = vsub.f32 %v3636, %v3661
  %v3663 = vand.u32 %v3662, 4294901760
  %v3664 = vsub.f32 %v3662, %v3663
  %v3665 = vand.u32 %v3664, 4294901760
  %3666 = vmatmul.f32.gmra.mxu0 %v3665
  %v3667 = vpop.f32.mrf.mxu0
  %v3668 = vadd.f32 0.0, %v3667
  %v3669 = vand.u32 %v3639, 4294901760
  %v3670 = vsub.f32 %v3639, %v3669
  %v3671 = vand.u32 %v3670, 4294901760
  %v3672 = vsub.f32 %v3670, %v3671
  %v3673 = vand.u32 %v3672, 4294901760
  %3674 = vmatmul.f32.gmra.mxu0 %v3673
  %v3675 = vpop.f32.mrf.mxu0
  %v3676 = vadd.f32 0.0, %v3675
  %3677 = vdwg.mxu0
  %3678 = vmatpush.msra.mxu0 0.0
  %3679 = vmatpush.msra.mxu0 0.0
  %3680 = vmatpush.msra.mxu0 0.0
  %3681 = vmatpush.msra.mxu0 0.0
  %3682 = vmatpush.msra.mxu0 0.0
  %3683 = vmatpush.msra.mxu0 0.0
  %3684 = vmatpush.msra.mxu0 0.0
  %3685 = vmatpush.msra.mxu0 0.0
  %3686 = vmatpush.msra.mxu0 0.0
  %3687 = vmatpush.msra.mxu0 0.0
  %3688 = vmatpush.msra.mxu0 0.0
  %3689 = vmatpush.msra.mxu0 0.0
  %v3690 = vand.u32 %v47, 4294901760
  %v3691 = vsub.f32 %v47, %v3690
  %v3692 = vand.u32 %v3691, 4294901760
  %v3693 = vsub.f32 %v3691, %v3692
  %v3694 = vand.u32 %v3693, 4294901760
  %3695 = vmatpush.msra.mxu0 %v3694
  %v3696 = vand.u32 %v46, 4294901760
  %v3697 = vsub.f32 %v46, %v3696
  %v3698 = vand.u32 %v3697, 4294901760
  %v3699 = vsub.f32 %v3697, %v3698
  %v3700 = vand.u32 %v3699, 4294901760
  %3701 = vmatpush.msra.mxu0 %v3700
  %v3702 = vand.u32 %v45, 4294901760
  %v3703 = vsub.f32 %v45, %v3702
  %v3704 = vand.u32 %v3703, 4294901760
  %v3705 = vsub.f32 %v3703, %v3704
  %v3706 = vand.u32 %v3705, 4294901760
  %3707 = vmatpush.msra.mxu0 %v3706
  %v3708 = vand.u32 %v44, 4294901760
  %v3709 = vsub.f32 %v44, %v3708
  %v3710 = vand.u32 %v3709, 4294901760
  %v3711 = vsub.f32 %v3709, %v3710
  %v3712 = vand.u32 %v3711, 4294901760
  %3713 = vmatpush.msra.mxu0 %v3712
  %v3714 = vand.u32 %v3636, 4294901760
  %3715 = vmatmul.f32.gmra.mxu0 %v3714
  %v3716 = vpop.f32.mrf.mxu0
  %v3717 = vadd.f32 %v3668, %v3716
  %v3718 = vand.u32 %v3639, 4294901760
  %3719 = vmatmul.f32.gmra.mxu0 %v3718
  %v3720 = vpop.f32.mrf.mxu0
  %v3721 = vadd.f32 %v3676, %v3720
  %3722 = vdwg.mxu0
  %3723 = vmatpush.msra.mxu0 0.0
  %3724 = vmatpush.msra.mxu0 0.0
  %3725 = vmatpush.msra.mxu0 0.0
  %3726 = vmatpush.msra.mxu0 0.0
  %3727 = vmatpush.msra.mxu0 0.0
  %3728 = vmatpush.msra.mxu0 0.0
  %3729 = vmatpush.msra.mxu0 0.0
  %3730 = vmatpush.msra.mxu0 0.0
  %3731 = vmatpush.msra.mxu0 0.0
  %3732 = vmatpush.msra.mxu0 0.0
  %3733 = vmatpush.msra.mxu0 0.0
  %3734 = vmatpush.msra.mxu0 0.0
  %v3735 = vand.u32 %v47, 4294901760
  %v3736 = vsub.f32 %v47, %v3735
  %3737 = vmatpush.msra.mxu0 %v3736
  %v3738 = vand.u32 %v46, 4294901760
  %v3739 = vsub.f32 %v46, %v3738
  %3740 = vmatpush.msra.mxu0 %v3739
  %v3741 = vand.u32 %v45, 4294901760
  %v3742 = vsub.f32 %v45, %v3741
  %3743 = vmatpush.msra.mxu0 %v3742
  %v3744 = vand.u32 %v44, 4294901760
  %v3745 = vsub.f32 %v44, %v3744
  %3746 = vmatpush.msra.mxu0 %v3745
  %v3747 = vand.u32 %v3636, 4294901760
  %v3748 = vsub.f32 %v3636, %v3747
  %3749 = vmatmul.f32.gmra.mxu0 %v3748
  %v3750 = vpop.f32.mrf.mxu0
  %v3751 = vadd.f32 %v3717, %v3750
  %v3752 = vand.u32 %v3639, 4294901760
  %v3753 = vsub.f32 %v3639, %v3752
  %3754 = vmatmul.f32.gmra.mxu0 %v3753
  %v3755 = vpop.f32.mrf.mxu0
  %v3756 = vadd.f32 %v3721, %v3755
  %3757 = vdwg.mxu0
  %3758 = vmatpush.msra.mxu0 0.0
  %3759 = vmatpush.msra.mxu0 0.0
  %3760 = vmatpush.msra.mxu0 0.0
  %3761 = vmatpush.msra.mxu0 0.0
  %3762 = vmatpush.msra.mxu0 0.0
  %3763 = vmatpush.msra.mxu0 0.0
  %3764 = vmatpush.msra.mxu0 0.0
  %3765 = vmatpush.msra.mxu0 0.0
  %3766 = vmatpush.msra.mxu0 0.0
  %3767 = vmatpush.msra.mxu0 0.0
  %3768 = vmatpush.msra.mxu0 0.0
  %3769 = vmatpush.msra.mxu0 0.0
  %v3770 = vand.u32 %v47, 4294901760
  %3771 = vmatpush.msra.mxu0 %v3770
  %v3772 = vand.u32 %v46, 4294901760
  %3773 = vmatpush.msra.mxu0 %v3772
  %v3774 = vand.u32 %v45, 4294901760
  %3775 = vmatpush.msra.mxu0 %v3774
  %v3776 = vand.u32 %v44, 4294901760
  %3777 = vmatpush.msra.mxu0 %v3776
  %v3778 = vand.u32 %v3636, 4294901760
  %v3779 = vsub.f32 %v3636, %v3778
  %v3780 = vand.u32 %v3779, 4294901760
  %3781 = vmatmul.f32.gmra.mxu0 %v3780
  %v3782 = vpop.f32.mrf.mxu0
  %v3783 = vadd.f32 %v3751, %v3782
  %v3784 = vand.u32 %v3639, 4294901760
  %v3785 = vsub.f32 %v3639, %v3784
  %v3786 = vand.u32 %v3785, 4294901760
  %3787 = vmatmul.f32.gmra.mxu0 %v3786
  %v3788 = vpop.f32.mrf.mxu0
  %v3789 = vadd.f32 %v3756, %v3788
  %3790 = vdwg.mxu0
  %3791 = vmatpush.msra.mxu0 0.0
  %3792 = vmatpush.msra.mxu0 0.0
  %3793 = vmatpush.msra.mxu0 0.0
  %3794 = vmatpush.msra.mxu0 0.0
  %3795 = vmatpush.msra.mxu0 0.0
  %3796 = vmatpush.msra.mxu0 0.0
  %3797 = vmatpush.msra.mxu0 0.0
  %3798 = vmatpush.msra.mxu0 0.0
  %3799 = vmatpush.msra.mxu0 0.0
  %3800 = vmatpush.msra.mxu0 0.0
  %3801 = vmatpush.msra.mxu0 0.0
  %3802 = vmatpush.msra.mxu0 0.0
  %v3803 = vand.u32 %v47, 4294901760
  %v3804 = vsub.f32 %v47, %v3803
  %v3805 = vand.u32 %v3804, 4294901760
  %3806 = vmatpush.msra.mxu0 %v3805
  %v3807 = vand.u32 %v46, 4294901760
  %v3808 = vsub.f32 %v46, %v3807
  %v3809 = vand.u32 %v3808, 4294901760
  %3810 = vmatpush.msra.mxu0 %v3809
  %v3811 = vand.u32 %v45, 4294901760
  %v3812 = vsub.f32 %v45, %v3811
  %v3813 = vand.u32 %v3812, 4294901760
  %3814 = vmatpush.msra.mxu0 %v3813
  %v3815 = vand.u32 %v44, 4294901760
  %v3816 = vsub.f32 %v44, %v3815
  %v3817 = vand.u32 %v3816, 4294901760
  %3818 = vmatpush.msra.mxu0 %v3817
  %v3819 = vand.u32 %v3636, 4294901760
  %3820 = vmatmul.f32.gmra.mxu0 %v3819
  %v3821 = vpop.f32.mrf.mxu0
  %v3822 = vadd.f32 %v3783, %v3821
  %v3823 = vand.u32 %v3639, 4294901760
  %3824 = vmatmul.f32.gmra.mxu0 %v3823
  %v3825 = vpop.f32.mrf.mxu0
  %v3826 = vadd.f32 %v3789, %v3825
  %3827 = vdwg.mxu0
  %3828 = vmatpush.msra.mxu0 0.0
  %3829 = vmatpush.msra.mxu0 0.0
  %3830 = vmatpush.msra.mxu0 0.0
  %3831 = vmatpush.msra.mxu0 0.0
  %3832 = vmatpush.msra.mxu0 0.0
  %3833 = vmatpush.msra.mxu0 0.0
  %3834 = vmatpush.msra.mxu0 0.0
  %3835 = vmatpush.msra.mxu0 0.0
  %3836 = vmatpush.msra.mxu0 0.0
  %3837 = vmatpush.msra.mxu0 0.0
  %3838 = vmatpush.msra.mxu0 0.0
  %3839 = vmatpush.msra.mxu0 0.0
  %v3840 = vand.u32 %v47, 4294901760
  %3841 = vmatpush.msra.mxu0 %v3840
  %v3842 = vand.u32 %v46, 4294901760
  %3843 = vmatpush.msra.mxu0 %v3842
  %v3844 = vand.u32 %v45, 4294901760
  %3845 = vmatpush.msra.mxu0 %v3844
  %v3846 = vand.u32 %v44, 4294901760
  %3847 = vmatpush.msra.mxu0 %v3846
  %v3848 = vand.u32 %v3636, 4294901760
  %3849 = vmatmul.f32.gmra.mxu0 %v3848
  %v3850 = vpop.f32.mrf.mxu0
  %v3851 = vadd.f32 %v3822, %v3850
  %v3852 = vand.u32 %v3639, 4294901760
  %3853 = vmatmul.f32.gmra.mxu0 %v3852
  %v3854 = vpop.f32.mrf.mxu0
  %v3855 = vadd.f32 %v3826, %v3854
  %3856 = vdwg.mxu0
  %3857 = vmatpush.msra.mxu0 0.0
  %3858 = vmatpush.msra.mxu0 0.0
  %3859 = vmatpush.msra.mxu0 0.0
  %3860 = vmatpush.msra.mxu0 0.0
  %3861 = vmatpush.msra.mxu0 0.0
  %3862 = vmatpush.msra.mxu0 0.0
  %3863 = vmatpush.msra.mxu0 0.0
  %3864 = vmatpush.msra.mxu0 0.0
  %3865 = vmatpush.msra.mxu0 0.0
  %3866 = vmatpush.msra.mxu0 0.0
  %3867 = vmatpush.msra.mxu0 0.0
  %3868 = vmatpush.msra.mxu0 0.0
  %v3869 = vand.u32 %v51, 4294901760
  %3870 = vmatpush.msra.mxu0 %v3869
  %v3871 = vand.u32 %v50, 4294901760
  %3872 = vmatpush.msra.mxu0 %v3871
  %v3873 = vand.u32 %v49, 4294901760
  %3874 = vmatpush.msra.mxu0 %v3873
  %v3875 = vand.u32 %v48, 4294901760
  %3876 = vmatpush.msra.mxu0 %v3875
  %v3877 = vand.u32 %v3636, 4294901760
  %v3878 = vsub.f32 %v3636, %v3877
  %v3879 = vand.u32 %v3878, 4294901760
  %v3880 = vsub.f32 %v3878, %v3879
  %v3881 = vand.u32 %v3880, 4294901760
  %3882 = vmatmul.f32.gmra.mxu0 %v3881
  %v3883 = vpop.f32.mrf.mxu0
  %v3884 = vadd.f32 0.0, %v3883
  %v3885 = vand.u32 %v3639, 4294901760
  %v3886 = vsub.f32 %v3639, %v3885
  %v3887 = vand.u32 %v3886, 4294901760
  %v3888 = vsub.f32 %v3886, %v3887
  %v3889 = vand.u32 %v3888, 4294901760
  %3890 = vmatmul.f32.gmra.mxu0 %v3889
  %v3891 = vpop.f32.mrf.mxu0
  %v3892 = vadd.f32 0.0, %v3891
  %3893 = vdwg.mxu0
  %3894 = vmatpush.msra.mxu0 0.0
  %3895 = vmatpush.msra.mxu0 0.0
  %3896 = vmatpush.msra.mxu0 0.0
  %3897 = vmatpush.msra.mxu0 0.0
  %3898 = vmatpush.msra.mxu0 0.0
  %3899 = vmatpush.msra.mxu0 0.0
  %3900 = vmatpush.msra.mxu0 0.0
  %3901 = vmatpush.msra.mxu0 0.0
  %3902 = vmatpush.msra.mxu0 0.0
  %3903 = vmatpush.msra.mxu0 0.0
  %3904 = vmatpush.msra.mxu0 0.0
  %3905 = vmatpush.msra.mxu0 0.0
  %v3906 = vand.u32 %v51, 4294901760
  %v3907 = vsub.f32 %v51, %v3906
  %v3908 = vand.u32 %v3907, 4294901760
  %v3909 = vsub.f32 %v3907, %v3908
  %v3910 = vand.u32 %v3909, 4294901760
  %3911 = vmatpush.msra.mxu0 %v3910
  %v3912 = vand.u32 %v50, 4294901760
  %v3913 = vsub.f32 %v50, %v3912
  %v3914 = vand.u32 %v3913, 4294901760
  %v3915 = vsub.f32 %v3913, %v3914
  %v3916 = vand.u32 %v3915, 4294901760
  %3917 = vmatpush.msra.mxu0 %v3916
  %v3918 = vand.u32 %v49, 4294901760
  %v3919 = vsub.f32 %v49, %v3918
  %v3920 = vand.u32 %v3919, 4294901760
  %v3921 = vsub.f32 %v3919, %v3920
  %v3922 = vand.u32 %v3921, 4294901760
  %3923 = vmatpush.msra.mxu0 %v3922
  %v3924 = vand.u32 %v48, 4294901760
  %v3925 = vsub.f32 %v48, %v3924
  %v3926 = vand.u32 %v3925, 4294901760
  %v3927 = vsub.f32 %v3925, %v3926
  %v3928 = vand.u32 %v3927, 4294901760
  %3929 = vmatpush.msra.mxu0 %v3928
  %v3930 = vand.u32 %v3636, 4294901760
  %3931 = vmatmul.f32.gmra.mxu0 %v3930
  %v3932 = vpop.f32.mrf.mxu0
  %v3933 = vadd.f32 %v3884, %v3932
  %v3934 = vand.u32 %v3639, 4294901760
  %3935 = vmatmul.f32.gmra.mxu0 %v3934
  %v3936 = vpop.f32.mrf.mxu0
  %v3937 = vadd.f32 %v3892, %v3936
  %3938 = vdwg.mxu0
  %3939 = vmatpush.msra.mxu0 0.0
  %3940 = vmatpush.msra.mxu0 0.0
  %3941 = vmatpush.msra.mxu0 0.0
  %3942 = vmatpush.msra.mxu0 0.0
  %3943 = vmatpush.msra.mxu0 0.0
  %3944 = vmatpush.msra.mxu0 0.0
  %3945 = vmatpush.msra.mxu0 0.0
  %3946 = vmatpush.msra.mxu0 0.0
  %3947 = vmatpush.msra.mxu0 0.0
  %3948 = vmatpush.msra.mxu0 0.0
  %3949 = vmatpush.msra.mxu0 0.0
  %3950 = vmatpush.msra.mxu0 0.0
  %v3951 = vand.u32 %v51, 4294901760
  %v3952 = vsub.f32 %v51, %v3951
  %3953 = vmatpush.msra.mxu0 %v3952
  %v3954 = vand.u32 %v50, 4294901760
  %v3955 = vsub.f32 %v50, %v3954
  %3956 = vmatpush.msra.mxu0 %v3955
  %v3957 = vand.u32 %v49, 4294901760
  %v3958 = vsub.f32 %v49, %v3957
  %3959 = vmatpush.msra.mxu0 %v3958
  %v3960 = vand.u32 %v48, 4294901760
  %v3961 = vsub.f32 %v48, %v3960
  %3962 = vmatpush.msra.mxu0 %v3961
  %v3963 = vand.u32 %v3636, 4294901760
  %v3964 = vsub.f32 %v3636, %v3963
  %3965 = vmatmul.f32.gmra.mxu0 %v3964
  %v3966 = vpop.f32.mrf.mxu0
  %v3967 = vadd.f32 %v3933, %v3966
  %v3968 = vand.u32 %v3639, 4294901760
  %v3969 = vsub.f32 %v3639, %v3968
  %3970 = vmatmul.f32.gmra.mxu0 %v3969
  %v3971 = vpop.f32.mrf.mxu0
  %v3972 = vadd.f32 %v3937, %v3971
  %3973 = vdwg.mxu0
  %3974 = vmatpush.msra.mxu0 0.0
  %3975 = vmatpush.msra.mxu0 0.0
  %3976 = vmatpush.msra.mxu0 0.0
  %3977 = vmatpush.msra.mxu0 0.0
  %3978 = vmatpush.msra.mxu0 0.0
  %3979 = vmatpush.msra.mxu0 0.0
  %3980 = vmatpush.msra.mxu0 0.0
  %3981 = vmatpush.msra.mxu0 0.0
  %3982 = vmatpush.msra.mxu0 0.0
  %3983 = vmatpush.msra.mxu0 0.0
  %3984 = vmatpush.msra.mxu0 0.0
  %3985 = vmatpush.msra.mxu0 0.0
  %v3986 = vand.u32 %v51, 4294901760
  %3987 = vmatpush.msra.mxu0 %v3986
  %v3988 = vand.u32 %v50, 4294901760
  %3989 = vmatpush.msra.mxu0 %v3988
  %v3990 = vand.u32 %v49, 4294901760
  %3991 = vmatpush.msra.mxu0 %v3990
  %v3992 = vand.u32 %v48, 4294901760
  %3993 = vmatpush.msra.mxu0 %v3992
  %v3994 = vand.u32 %v3636, 4294901760
  %v3995 = vsub.f32 %v3636, %v3994
  %v3996 = vand.u32 %v3995, 4294901760
  %3997 = vmatmul.f32.gmra.mxu0 %v3996
  %v3998 = vpop.f32.mrf.mxu0
  %v3999 = vadd.f32 %v3967, %v3998
  %v4000 = vand.u32 %v3639, 4294901760
  %v4001 = vsub.f32 %v3639, %v4000
  %v4002 = vand.u32 %v4001, 4294901760
  %4003 = vmatmul.f32.gmra.mxu0 %v4002
  %v4004 = vpop.f32.mrf.mxu0
  %v4005 = vadd.f32 %v3972, %v4004
  %4006 = vdwg.mxu0
  %4007 = vmatpush.msra.mxu0 0.0
  %4008 = vmatpush.msra.mxu0 0.0
  %4009 = vmatpush.msra.mxu0 0.0
  %4010 = vmatpush.msra.mxu0 0.0
  %4011 = vmatpush.msra.mxu0 0.0
  %4012 = vmatpush.msra.mxu0 0.0
  %4013 = vmatpush.msra.mxu0 0.0
  %4014 = vmatpush.msra.mxu0 0.0
  %4015 = vmatpush.msra.mxu0 0.0
  %4016 = vmatpush.msra.mxu0 0.0
  %4017 = vmatpush.msra.mxu0 0.0
  %4018 = vmatpush.msra.mxu0 0.0
  %v4019 = vand.u32 %v51, 4294901760
  %v4020 = vsub.f32 %v51, %v4019
  %v4021 = vand.u32 %v4020, 4294901760
  %4022 = vmatpush.msra.mxu0 %v4021
  %v4023 = vand.u32 %v50, 4294901760
  %v4024 = vsub.f32 %v50, %v4023
  %v4025 = vand.u32 %v4024, 4294901760
  %4026 = vmatpush.msra.mxu0 %v4025
  %v4027 = vand.u32 %v49, 4294901760
  %v4028 = vsub.f32 %v49, %v4027
  %v4029 = vand.u32 %v4028, 4294901760
  %4030 = vmatpush.msra.mxu0 %v4029
  %v4031 = vand.u32 %v48, 4294901760
  %v4032 = vsub.f32 %v48, %v4031
  %v4033 = vand.u32 %v4032, 4294901760
  %4034 = vmatpush.msra.mxu0 %v4033
  %v4035 = vand.u32 %v3636, 4294901760
  %4036 = vmatmul.f32.gmra.mxu0 %v4035
  %v4037 = vpop.f32.mrf.mxu0
  %v4038 = vadd.f32 %v3999, %v4037
  %v4039 = vand.u32 %v3639, 4294901760
  %4040 = vmatmul.f32.gmra.mxu0 %v4039
  %v4041 = vpop.f32.mrf.mxu0
  %v4042 = vadd.f32 %v4005, %v4041
  %4043 = vdwg.mxu0
  %4044 = vmatpush.msra.mxu0 0.0
  %4045 = vmatpush.msra.mxu0 0.0
  %4046 = vmatpush.msra.mxu0 0.0
  %4047 = vmatpush.msra.mxu0 0.0
  %4048 = vmatpush.msra.mxu0 0.0
  %4049 = vmatpush.msra.mxu0 0.0
  %4050 = vmatpush.msra.mxu0 0.0
  %4051 = vmatpush.msra.mxu0 0.0
  %4052 = vmatpush.msra.mxu0 0.0
  %4053 = vmatpush.msra.mxu0 0.0
  %4054 = vmatpush.msra.mxu0 0.0
  %4055 = vmatpush.msra.mxu0 0.0
  %v4056 = vand.u32 %v51, 4294901760
  %4057 = vmatpush.msra.mxu0 %v4056
  %v4058 = vand.u32 %v50, 4294901760
  %4059 = vmatpush.msra.mxu0 %v4058
  %v4060 = vand.u32 %v49, 4294901760
  %4061 = vmatpush.msra.mxu0 %v4060
  %v4062 = vand.u32 %v48, 4294901760
  %4063 = vmatpush.msra.mxu0 %v4062
  %v4064 = vand.u32 %v3636, 4294901760
  %4065 = vmatmul.f32.gmra.mxu0 %v4064
  %v4066 = vpop.f32.mrf.mxu0
  %v4067 = vadd.f32 %v4038, %v4066
  %v4068 = vand.u32 %v3639, 4294901760
  %4069 = vmatmul.f32.gmra.mxu0 %v4068
  %v4070 = vpop.f32.mrf.mxu0
  %v4071 = vadd.f32 %v4042, %v4070
  %4072 = vdwg.mxu0
  %4073 = vmatpush.msra.mxu0 0.0
  %4074 = vmatpush.msra.mxu0 0.0
  %4075 = vmatpush.msra.mxu0 0.0
  %4076 = vmatpush.msra.mxu0 0.0
  %4077 = vmatpush.msra.mxu0 0.0
  %4078 = vmatpush.msra.mxu0 0.0
  %4079 = vmatpush.msra.mxu0 0.0
  %4080 = vmatpush.msra.mxu0 0.0
  %4081 = vmatpush.msra.mxu0 0.0
  %4082 = vmatpush.msra.mxu0 0.0
  %4083 = vmatpush.msra.mxu0 0.0
  %4084 = vmatpush.msra.mxu0 0.0
  %v4085 = vand.u32 %v55, 4294901760
  %4086 = vmatpush.msra.mxu0 %v4085
  %v4087 = vand.u32 %v54, 4294901760
  %4088 = vmatpush.msra.mxu0 %v4087
  %v4089 = vand.u32 %v53, 4294901760
  %4090 = vmatpush.msra.mxu0 %v4089
  %v4091 = vand.u32 %v52, 4294901760
  %4092 = vmatpush.msra.mxu0 %v4091
  %v4093 = vand.u32 %v3636, 4294901760
  %v4094 = vsub.f32 %v3636, %v4093
  %v4095 = vand.u32 %v4094, 4294901760
  %v4096 = vsub.f32 %v4094, %v4095
  %v4097 = vand.u32 %v4096, 4294901760
  %4098 = vmatmul.f32.gmra.mxu0 %v4097
  %v4099 = vpop.f32.mrf.mxu0
  %v4100 = vadd.f32 0.0, %v4099
  %v4101 = vand.u32 %v3639, 4294901760
  %v4102 = vsub.f32 %v3639, %v4101
  %v4103 = vand.u32 %v4102, 4294901760
  %v4104 = vsub.f32 %v4102, %v4103
  %v4105 = vand.u32 %v4104, 4294901760
  %4106 = vmatmul.f32.gmra.mxu0 %v4105
  %v4107 = vpop.f32.mrf.mxu0
  %v4108 = vadd.f32 0.0, %v4107
  %4109 = vdwg.mxu0
  %4110 = vmatpush.msra.mxu0 0.0
  %4111 = vmatpush.msra.mxu0 0.0
  %4112 = vmatpush.msra.mxu0 0.0
  %4113 = vmatpush.msra.mxu0 0.0
  %4114 = vmatpush.msra.mxu0 0.0
  %4115 = vmatpush.msra.mxu0 0.0
  %4116 = vmatpush.msra.mxu0 0.0
  %4117 = vmatpush.msra.mxu0 0.0
  %4118 = vmatpush.msra.mxu0 0.0
  %4119 = vmatpush.msra.mxu0 0.0
  %4120 = vmatpush.msra.mxu0 0.0
  %4121 = vmatpush.msra.mxu0 0.0
  %v4122 = vand.u32 %v55, 4294901760
  %v4123 = vsub.f32 %v55, %v4122
  %v4124 = vand.u32 %v4123, 4294901760
  %v4125 = vsub.f32 %v4123, %v4124
  %v4126 = vand.u32 %v4125, 4294901760
  %4127 = vmatpush.msra.mxu0 %v4126
  %v4128 = vand.u32 %v54, 4294901760
  %v4129 = vsub.f32 %v54, %v4128
  %v4130 = vand.u32 %v4129, 4294901760
  %v4131 = vsub.f32 %v4129, %v4130
  %v4132 = vand.u32 %v4131, 4294901760
  %4133 = vmatpush.msra.mxu0 %v4132
  %v4134 = vand.u32 %v53, 4294901760
  %v4135 = vsub.f32 %v53, %v4134
  %v4136 = vand.u32 %v4135, 4294901760
  %v4137 = vsub.f32 %v4135, %v4136
  %v4138 = vand.u32 %v4137, 4294901760
  %4139 = vmatpush.msra.mxu0 %v4138
  %v4140 = vand.u32 %v52, 4294901760
  %v4141 = vsub.f32 %v52, %v4140
  %v4142 = vand.u32 %v4141, 4294901760
  %v4143 = vsub.f32 %v4141, %v4142
  %v4144 = vand.u32 %v4143, 4294901760
  %4145 = vmatpush.msra.mxu0 %v4144
  %v4146 = vand.u32 %v3636, 4294901760
  %4147 = vmatmul.f32.gmra.mxu0 %v4146
  %v4148 = vpop.f32.mrf.mxu0
  %v4149 = vadd.f32 %v4100, %v4148
  %v4150 = vand.u32 %v3639, 4294901760
  %4151 = vmatmul.f32.gmra.mxu0 %v4150
  %v4152 = vpop.f32.mrf.mxu0
  %v4153 = vadd.f32 %v4108, %v4152
  %4154 = vdwg.mxu0
  %4155 = vmatpush.msra.mxu0 0.0
  %4156 = vmatpush.msra.mxu0 0.0
  %4157 = vmatpush.msra.mxu0 0.0
  %4158 = vmatpush.msra.mxu0 0.0
  %4159 = vmatpush.msra.mxu0 0.0
  %4160 = vmatpush.msra.mxu0 0.0
  %4161 = vmatpush.msra.mxu0 0.0
  %4162 = vmatpush.msra.mxu0 0.0
  %4163 = vmatpush.msra.mxu0 0.0
  %4164 = vmatpush.msra.mxu0 0.0
  %4165 = vmatpush.msra.mxu0 0.0
  %4166 = vmatpush.msra.mxu0 0.0
  %v4167 = vand.u32 %v55, 4294901760
  %v4168 = vsub.f32 %v55, %v4167
  %4169 = vmatpush.msra.mxu0 %v4168
  %v4170 = vand.u32 %v54, 4294901760
  %v4171 = vsub.f32 %v54, %v4170
  %4172 = vmatpush.msra.mxu0 %v4171
  %v4173 = vand.u32 %v53, 4294901760
  %v4174 = vsub.f32 %v53, %v4173
  %4175 = vmatpush.msra.mxu0 %v4174
  %v4176 = vand.u32 %v52, 4294901760
  %v4177 = vsub.f32 %v52, %v4176
  %4178 = vmatpush.msra.mxu0 %v4177
  %v4179 = vand.u32 %v3636, 4294901760
  %v4180 = vsub.f32 %v3636, %v4179
  %4181 = vmatmul.f32.gmra.mxu0 %v4180
  %v4182 = vpop.f32.mrf.mxu0
  %v4183 = vadd.f32 %v4149, %v4182
  %v4184 = vand.u32 %v3639, 4294901760
  %v4185 = vsub.f32 %v3639, %v4184
  %4186 = vmatmul.f32.gmra.mxu0 %v4185
  %v4187 = vpop.f32.mrf.mxu0
  %v4188 = vadd.f32 %v4153, %v4187
  %4189 = vdwg.mxu0
  %4190 = vmatpush.msra.mxu0 0.0
  %4191 = vmatpush.msra.mxu0 0.0
  %4192 = vmatpush.msra.mxu0 0.0
  %4193 = vmatpush.msra.mxu0 0.0
  %4194 = vmatpush.msra.mxu0 0.0
  %4195 = vmatpush.msra.mxu0 0.0
  %4196 = vmatpush.msra.mxu0 0.0
  %4197 = vmatpush.msra.mxu0 0.0
  %4198 = vmatpush.msra.mxu0 0.0
  %4199 = vmatpush.msra.mxu0 0.0
  %4200 = vmatpush.msra.mxu0 0.0
  %4201 = vmatpush.msra.mxu0 0.0
  %v4202 = vand.u32 %v55, 4294901760
  %4203 = vmatpush.msra.mxu0 %v4202
  %v4204 = vand.u32 %v54, 4294901760
  %4205 = vmatpush.msra.mxu0 %v4204
  %v4206 = vand.u32 %v53, 4294901760
  %4207 = vmatpush.msra.mxu0 %v4206
  %v4208 = vand.u32 %v52, 4294901760
  %4209 = vmatpush.msra.mxu0 %v4208
  %v4210 = vand.u32 %v3636, 4294901760
  %v4211 = vsub.f32 %v3636, %v4210
  %v4212 = vand.u32 %v4211, 4294901760
  %4213 = vmatmul.f32.gmra.mxu0 %v4212
  %v4214 = vpop.f32.mrf.mxu0
  %v4215 = vadd.f32 %v4183, %v4214
  %v4216 = vand.u32 %v3639, 4294901760
  %v4217 = vsub.f32 %v3639, %v4216
  %v4218 = vand.u32 %v4217, 4294901760
  %4219 = vmatmul.f32.gmra.mxu0 %v4218
  %v4220 = vpop.f32.mrf.mxu0
  %v4221 = vadd.f32 %v4188, %v4220
  %4222 = vdwg.mxu0
  %4223 = vmatpush.msra.mxu0 0.0
  %4224 = vmatpush.msra.mxu0 0.0
  %4225 = vmatpush.msra.mxu0 0.0
  %4226 = vmatpush.msra.mxu0 0.0
  %4227 = vmatpush.msra.mxu0 0.0
  %4228 = vmatpush.msra.mxu0 0.0
  %4229 = vmatpush.msra.mxu0 0.0
  %4230 = vmatpush.msra.mxu0 0.0
  %4231 = vmatpush.msra.mxu0 0.0
  %4232 = vmatpush.msra.mxu0 0.0
  %4233 = vmatpush.msra.mxu0 0.0
  %4234 = vmatpush.msra.mxu0 0.0
  %v4235 = vand.u32 %v55, 4294901760
  %v4236 = vsub.f32 %v55, %v4235
  %v4237 = vand.u32 %v4236, 4294901760
  %4238 = vmatpush.msra.mxu0 %v4237
  %v4239 = vand.u32 %v54, 4294901760
  %v4240 = vsub.f32 %v54, %v4239
  %v4241 = vand.u32 %v4240, 4294901760
  %4242 = vmatpush.msra.mxu0 %v4241
  %v4243 = vand.u32 %v53, 4294901760
  %v4244 = vsub.f32 %v53, %v4243
  %v4245 = vand.u32 %v4244, 4294901760
  %4246 = vmatpush.msra.mxu0 %v4245
  %v4247 = vand.u32 %v52, 4294901760
  %v4248 = vsub.f32 %v52, %v4247
  %v4249 = vand.u32 %v4248, 4294901760
  %4250 = vmatpush.msra.mxu0 %v4249
  %v4251 = vand.u32 %v3636, 4294901760
  %4252 = vmatmul.f32.gmra.mxu0 %v4251
  %v4253 = vpop.f32.mrf.mxu0
  %v4254 = vadd.f32 %v4215, %v4253
  %v4255 = vand.u32 %v3639, 4294901760
  %4256 = vmatmul.f32.gmra.mxu0 %v4255
  %v4257 = vpop.f32.mrf.mxu0
  %v4258 = vadd.f32 %v4221, %v4257
  %4259 = vdwg.mxu0
  %4260 = vmatpush.msra.mxu0 0.0
  %4261 = vmatpush.msra.mxu0 0.0
  %4262 = vmatpush.msra.mxu0 0.0
  %4263 = vmatpush.msra.mxu0 0.0
  %4264 = vmatpush.msra.mxu0 0.0
  %4265 = vmatpush.msra.mxu0 0.0
  %4266 = vmatpush.msra.mxu0 0.0
  %4267 = vmatpush.msra.mxu0 0.0
  %4268 = vmatpush.msra.mxu0 0.0
  %4269 = vmatpush.msra.mxu0 0.0
  %4270 = vmatpush.msra.mxu0 0.0
  %4271 = vmatpush.msra.mxu0 0.0
  %v4272 = vand.u32 %v55, 4294901760
  %4273 = vmatpush.msra.mxu0 %v4272
  %v4274 = vand.u32 %v54, 4294901760
  %4275 = vmatpush.msra.mxu0 %v4274
  %v4276 = vand.u32 %v53, 4294901760
  %4277 = vmatpush.msra.mxu0 %v4276
  %v4278 = vand.u32 %v52, 4294901760
  %4279 = vmatpush.msra.mxu0 %v4278
  %v4280 = vand.u32 %v3636, 4294901760
  %4281 = vmatmul.f32.gmra.mxu0 %v4280
  %v4282 = vpop.f32.mrf.mxu0
  %v4283 = vadd.f32 %v4254, %v4282
  %v4284 = vand.u32 %v3639, 4294901760
  %4285 = vmatmul.f32.gmra.mxu0 %v4284
  %v4286 = vpop.f32.mrf.mxu0
  %v4287 = vadd.f32 %v4258, %v4286
  %4288 = vdwg.mxu0
  %4289 = vmatpush.msra.mxu0 0.0
  %4290 = vmatpush.msra.mxu0 0.0
  %4291 = vmatpush.msra.mxu0 0.0
  %4292 = vmatpush.msra.mxu0 0.0
  %4293 = vmatpush.msra.mxu0 0.0
  %4294 = vmatpush.msra.mxu0 0.0
  %4295 = vmatpush.msra.mxu0 0.0
  %4296 = vmatpush.msra.mxu0 0.0
  %4297 = vmatpush.msra.mxu0 0.0
  %4298 = vmatpush.msra.mxu0 0.0
  %4299 = vmatpush.msra.mxu0 0.0
  %4300 = vmatpush.msra.mxu0 0.0
  %v4301 = vand.u32 %v59, 4294901760
  %4302 = vmatpush.msra.mxu0 %v4301
  %v4303 = vand.u32 %v58, 4294901760
  %4304 = vmatpush.msra.mxu0 %v4303
  %v4305 = vand.u32 %v57, 4294901760
  %4306 = vmatpush.msra.mxu0 %v4305
  %v4307 = vand.u32 %v56, 4294901760
  %4308 = vmatpush.msra.mxu0 %v4307
  %v4309 = vand.u32 %v3636, 4294901760
  %v4310 = vsub.f32 %v3636, %v4309
  %v4311 = vand.u32 %v4310, 4294901760
  %v4312 = vsub.f32 %v4310, %v4311
  %v4313 = vand.u32 %v4312, 4294901760
  %4314 = vmatmul.f32.gmra.mxu0 %v4313
  %v4315 = vpop.f32.mrf.mxu0
  %v4316 = vadd.f32 0.0, %v4315
  %v4317 = vand.u32 %v3639, 4294901760
  %v4318 = vsub.f32 %v3639, %v4317
  %v4319 = vand.u32 %v4318, 4294901760
  %v4320 = vsub.f32 %v4318, %v4319
  %v4321 = vand.u32 %v4320, 4294901760
  %4322 = vmatmul.f32.gmra.mxu0 %v4321
  %v4323 = vpop.f32.mrf.mxu0
  %v4324 = vadd.f32 0.0, %v4323
  %4325 = vdwg.mxu0
  %4326 = vmatpush.msra.mxu0 0.0
  %4327 = vmatpush.msra.mxu0 0.0
  %4328 = vmatpush.msra.mxu0 0.0
  %4329 = vmatpush.msra.mxu0 0.0
  %4330 = vmatpush.msra.mxu0 0.0
  %4331 = vmatpush.msra.mxu0 0.0
  %4332 = vmatpush.msra.mxu0 0.0
  %4333 = vmatpush.msra.mxu0 0.0
  %4334 = vmatpush.msra.mxu0 0.0
  %4335 = vmatpush.msra.mxu0 0.0
  %4336 = vmatpush.msra.mxu0 0.0
  %4337 = vmatpush.msra.mxu0 0.0
  %v4338 = vand.u32 %v59, 4294901760
  %v4339 = vsub.f32 %v59, %v4338
  %v4340 = vand.u32 %v4339, 4294901760
  %v4341 = vsub.f32 %v4339, %v4340
  %v4342 = vand.u32 %v4341, 4294901760
  %4343 = vmatpush.msra.mxu0 %v4342
  %v4344 = vand.u32 %v58, 4294901760
  %v4345 = vsub.f32 %v58, %v4344
  %v4346 = vand.u32 %v4345, 4294901760
  %v4347 = vsub.f32 %v4345, %v4346
  %v4348 = vand.u32 %v4347, 4294901760
  %4349 = vmatpush.msra.mxu0 %v4348
  %v4350 = vand.u32 %v57, 4294901760
  %v4351 = vsub.f32 %v57, %v4350
  %v4352 = vand.u32 %v4351, 4294901760
  %v4353 = vsub.f32 %v4351, %v4352
  %v4354 = vand.u32 %v4353, 4294901760
  %4355 = vmatpush.msra.mxu0 %v4354
  %v4356 = vand.u32 %v56, 4294901760
  %v4357 = vsub.f32 %v56, %v4356
  %v4358 = vand.u32 %v4357, 4294901760
  %v4359 = vsub.f32 %v4357, %v4358
  %v4360 = vand.u32 %v4359, 4294901760
  %4361 = vmatpush.msra.mxu0 %v4360
  %v4362 = vand.u32 %v3636, 4294901760
  %4363 = vmatmul.f32.gmra.mxu0 %v4362
  %v4364 = vpop.f32.mrf.mxu0
  %v4365 = vadd.f32 %v4316, %v4364
  %v4366 = vand.u32 %v3639, 4294901760
  %4367 = vmatmul.f32.gmra.mxu0 %v4366
  %v4368 = vpop.f32.mrf.mxu0
  %v4369 = vadd.f32 %v4324, %v4368
  %4370 = vdwg.mxu0
  %4371 = vmatpush.msra.mxu0 0.0
  %4372 = vmatpush.msra.mxu0 0.0
  %4373 = vmatpush.msra.mxu0 0.0
  %4374 = vmatpush.msra.mxu0 0.0
  %4375 = vmatpush.msra.mxu0 0.0
  %4376 = vmatpush.msra.mxu0 0.0
  %4377 = vmatpush.msra.mxu0 0.0
  %4378 = vmatpush.msra.mxu0 0.0
  %4379 = vmatpush.msra.mxu0 0.0
  %4380 = vmatpush.msra.mxu0 0.0
  %4381 = vmatpush.msra.mxu0 0.0
  %4382 = vmatpush.msra.mxu0 0.0
  %v4383 = vand.u32 %v59, 4294901760
  %v4384 = vsub.f32 %v59, %v4383
  %4385 = vmatpush.msra.mxu0 %v4384
  %v4386 = vand.u32 %v58, 4294901760
  %v4387 = vsub.f32 %v58, %v4386
  %4388 = vmatpush.msra.mxu0 %v4387
  %v4389 = vand.u32 %v57, 4294901760
  %v4390 = vsub.f32 %v57, %v4389
  %4391 = vmatpush.msra.mxu0 %v4390
  %v4392 = vand.u32 %v56, 4294901760
  %v4393 = vsub.f32 %v56, %v4392
  %4394 = vmatpush.msra.mxu0 %v4393
  %v4395 = vand.u32 %v3636, 4294901760
  %v4396 = vsub.f32 %v3636, %v4395
  %4397 = vmatmul.f32.gmra.mxu0 %v4396
  %v4398 = vpop.f32.mrf.mxu0
  %v4399 = vadd.f32 %v4365, %v4398
  %v4400 = vand.u32 %v3639, 4294901760
  %v4401 = vsub.f32 %v3639, %v4400
  %4402 = vmatmul.f32.gmra.mxu0 %v4401
  %v4403 = vpop.f32.mrf.mxu0
  %v4404 = vadd.f32 %v4369, %v4403
  %4405 = vdwg.mxu0
  %4406 = vmatpush.msra.mxu0 0.0
  %4407 = vmatpush.msra.mxu0 0.0
  %4408 = vmatpush.msra.mxu0 0.0
  %4409 = vmatpush.msra.mxu0 0.0
  %4410 = vmatpush.msra.mxu0 0.0
  %4411 = vmatpush.msra.mxu0 0.0
  %4412 = vmatpush.msra.mxu0 0.0
  %4413 = vmatpush.msra.mxu0 0.0
  %4414 = vmatpush.msra.mxu0 0.0
  %4415 = vmatpush.msra.mxu0 0.0
  %4416 = vmatpush.msra.mxu0 0.0
  %4417 = vmatpush.msra.mxu0 0.0
  %v4418 = vand.u32 %v59, 4294901760
  %4419 = vmatpush.msra.mxu0 %v4418
  %v4420 = vand.u32 %v58, 4294901760
  %4421 = vmatpush.msra.mxu0 %v4420
  %v4422 = vand.u32 %v57, 4294901760
  %4423 = vmatpush.msra.mxu0 %v4422
  %v4424 = vand.u32 %v56, 4294901760
  %4425 = vmatpush.msra.mxu0 %v4424
  %v4426 = vand.u32 %v3636, 4294901760
  %v4427 = vsub.f32 %v3636, %v4426
  %v4428 = vand.u32 %v4427, 4294901760
  %4429 = vmatmul.f32.gmra.mxu0 %v4428
  %v4430 = vpop.f32.mrf.mxu0
  %v4431 = vadd.f32 %v4399, %v4430
  %v4432 = vand.u32 %v3639, 4294901760
  %v4433 = vsub.f32 %v3639, %v4432
  %v4434 = vand.u32 %v4433, 4294901760
  %4435 = vmatmul.f32.gmra.mxu0 %v4434
  %v4436 = vpop.f32.mrf.mxu0
  %v4437 = vadd.f32 %v4404, %v4436
  %4438 = vdwg.mxu0
  %4439 = vmatpush.msra.mxu0 0.0
  %4440 = vmatpush.msra.mxu0 0.0
  %4441 = vmatpush.msra.mxu0 0.0
  %4442 = vmatpush.msra.mxu0 0.0
  %4443 = vmatpush.msra.mxu0 0.0
  %4444 = vmatpush.msra.mxu0 0.0
  %4445 = vmatpush.msra.mxu0 0.0
  %4446 = vmatpush.msra.mxu0 0.0
  %4447 = vmatpush.msra.mxu0 0.0
  %4448 = vmatpush.msra.mxu0 0.0
  %4449 = vmatpush.msra.mxu0 0.0
  %4450 = vmatpush.msra.mxu0 0.0
  %v4451 = vand.u32 %v59, 4294901760
  %v4452 = vsub.f32 %v59, %v4451
  %v4453 = vand.u32 %v4452, 4294901760
  %4454 = vmatpush.msra.mxu0 %v4453
  %v4455 = vand.u32 %v58, 4294901760
  %v4456 = vsub.f32 %v58, %v4455
  %v4457 = vand.u32 %v4456, 4294901760
  %4458 = vmatpush.msra.mxu0 %v4457
  %v4459 = vand.u32 %v57, 4294901760
  %v4460 = vsub.f32 %v57, %v4459
  %v4461 = vand.u32 %v4460, 4294901760
  %4462 = vmatpush.msra.mxu0 %v4461
  %v4463 = vand.u32 %v56, 4294901760
  %v4464 = vsub.f32 %v56, %v4463
  %v4465 = vand.u32 %v4464, 4294901760
  %4466 = vmatpush.msra.mxu0 %v4465
  %v4467 = vand.u32 %v3636, 4294901760
  %4468 = vmatmul.f32.gmra.mxu0 %v4467
  %v4469 = vpop.f32.mrf.mxu0
  %v4470 = vadd.f32 %v4431, %v4469
  %v4471 = vand.u32 %v3639, 4294901760
  %4472 = vmatmul.f32.gmra.mxu0 %v4471
  %v4473 = vpop.f32.mrf.mxu0
  %v4474 = vadd.f32 %v4437, %v4473
  %4475 = vdwg.mxu0
  %4476 = vmatpush.msra.mxu0 0.0
  %4477 = vmatpush.msra.mxu0 0.0
  %4478 = vmatpush.msra.mxu0 0.0
  %4479 = vmatpush.msra.mxu0 0.0
  %4480 = vmatpush.msra.mxu0 0.0
  %4481 = vmatpush.msra.mxu0 0.0
  %4482 = vmatpush.msra.mxu0 0.0
  %4483 = vmatpush.msra.mxu0 0.0
  %4484 = vmatpush.msra.mxu0 0.0
  %4485 = vmatpush.msra.mxu0 0.0
  %4486 = vmatpush.msra.mxu0 0.0
  %4487 = vmatpush.msra.mxu0 0.0
  %v4488 = vand.u32 %v59, 4294901760
  %4489 = vmatpush.msra.mxu0 %v4488
  %v4490 = vand.u32 %v58, 4294901760
  %4491 = vmatpush.msra.mxu0 %v4490
  %v4492 = vand.u32 %v57, 4294901760
  %4493 = vmatpush.msra.mxu0 %v4492
  %v4494 = vand.u32 %v56, 4294901760
  %4495 = vmatpush.msra.mxu0 %v4494
  %v4496 = vand.u32 %v3636, 4294901760
  %4497 = vmatmul.f32.gmra.mxu0 %v4496
  %v4498 = vpop.f32.mrf.mxu0
  %v4499 = vadd.f32 %v4470, %v4498
  %v4500 = vand.u32 %v3639, 4294901760
  %4501 = vmatmul.f32.gmra.mxu0 %v4500
  %v4502 = vpop.f32.mrf.mxu0
  %v4503 = vadd.f32 %v4474, %v4502
  %4504 = vdwg.mxu0
  %v4505 = vadd.f32 %v3851, %v60
  %v4506 = vadd.f32 %v3855, %v61
  %v4507 = vadd.f32 %v4067, %v62
  %v4508 = vadd.f32 %v4071, %v63
  %v4509 = vadd.f32 %v4283, %v64
  %v4510 = vadd.f32 %v4287, %v65
  %v4511 = vadd.f32 %v4499, %v66
  %v4512 = vadd.f32 %v4503, %v67
  %v4514 = vsel %vm1062, %v4505, 0
  %v4517 = vsel %vm1062, %v4506, 0
  %v4520 = vsel %vm1062, %v4507, 0
  %v4523 = vsel %vm1062, %v4508, 0
  %v4526 = vsel %vm1062, %v4509, 0
  %v4529 = vsel %vm1062, %v4510, 0
  %v4532 = vsel %vm1062, %v4511, 0
  %v4535 = vsel %vm1062, %v4512, 0
  %4537 = vmatpush.xpose.msra.mxu0 0.0
  %4538 = vmatpush.xpose.msra.mxu0 0.0
  %4539 = vmatpush.xpose.msra.mxu0 0.0
  %4540 = vmatpush.xpose.msra.mxu0 0.0
  %4541 = vmatpush.xpose.msra.mxu0 0.0
  %4542 = vmatpush.xpose.msra.mxu0 0.0
  %4543 = vmatpush.xpose.msra.mxu0 0.0
  %4544 = vmatpush.xpose.msra.mxu0 0.0
  %v4545 = vand.u32 %v4535, 4294901760
  %4546 = vmatpush.xpose.msra.mxu0 %v4545
  %v4547 = vand.u32 %v4532, 4294901760
  %4548 = vmatpush.xpose.msra.mxu0 %v4547
  %v4549 = vand.u32 %v4529, 4294901760
  %4550 = vmatpush.xpose.msra.mxu0 %v4549
  %v4551 = vand.u32 %v4526, 4294901760
  %4552 = vmatpush.xpose.msra.mxu0 %v4551
  %v4553 = vand.u32 %v4523, 4294901760
  %4554 = vmatpush.xpose.msra.mxu0 %v4553
  %v4555 = vand.u32 %v4520, 4294901760
  %4556 = vmatpush.xpose.msra.mxu0 %v4555
  %v4557 = vand.u32 %v4517, 4294901760
  %4558 = vmatpush.xpose.msra.mxu0 %v4557
  %v4559 = vand.u32 %v4514, 4294901760
  %4560 = vmatpush.xpose.msra.mxu0 %v4559
  %v4561 = vand.u32 %v4514, 4294901760
  %v4562 = vsub.f32 %v4514, %v4561
  %v4563 = vand.u32 %v4562, 4294901760
  %v4564 = vsub.f32 %v4562, %v4563
  %v4565 = vand.u32 %v4564, 4294901760
  %4566 = vmatmul.f32.gmra.mxu0 %v4565
  %v4567 = vpop.f32.mrf.mxu0
  %v4568 = vadd.f32 0.0, %v4567
  %v4569 = vand.u32 %v4517, 4294901760
  %v4570 = vsub.f32 %v4517, %v4569
  %v4571 = vand.u32 %v4570, 4294901760
  %v4572 = vsub.f32 %v4570, %v4571
  %v4573 = vand.u32 %v4572, 4294901760
  %4574 = vmatmul.f32.gmra.mxu0 %v4573
  %v4575 = vpop.f32.mrf.mxu0
  %v4576 = vadd.f32 0.0, %v4575
  %v4577 = vand.u32 %v4520, 4294901760
  %v4578 = vsub.f32 %v4520, %v4577
  %v4579 = vand.u32 %v4578, 4294901760
  %v4580 = vsub.f32 %v4578, %v4579
  %v4581 = vand.u32 %v4580, 4294901760
  %4582 = vmatmul.f32.gmra.mxu0 %v4581
  %v4583 = vpop.f32.mrf.mxu0
  %v4584 = vadd.f32 0.0, %v4583
  %v4585 = vand.u32 %v4523, 4294901760
  %v4586 = vsub.f32 %v4523, %v4585
  %v4587 = vand.u32 %v4586, 4294901760
  %v4588 = vsub.f32 %v4586, %v4587
  %v4589 = vand.u32 %v4588, 4294901760
  %4590 = vmatmul.f32.gmra.mxu0 %v4589
  %v4591 = vpop.f32.mrf.mxu0
  %v4592 = vadd.f32 0.0, %v4591
  %v4593 = vand.u32 %v4526, 4294901760
  %v4594 = vsub.f32 %v4526, %v4593
  %v4595 = vand.u32 %v4594, 4294901760
  %v4596 = vsub.f32 %v4594, %v4595
  %v4597 = vand.u32 %v4596, 4294901760
  %4598 = vmatmul.f32.gmra.mxu0 %v4597
  %v4599 = vpop.f32.mrf.mxu0
  %v4600 = vadd.f32 0.0, %v4599
  %v4601 = vand.u32 %v4529, 4294901760
  %v4602 = vsub.f32 %v4529, %v4601
  %v4603 = vand.u32 %v4602, 4294901760
  %v4604 = vsub.f32 %v4602, %v4603
  %v4605 = vand.u32 %v4604, 4294901760
  %4606 = vmatmul.f32.gmra.mxu0 %v4605
  %v4607 = vpop.f32.mrf.mxu0
  %v4608 = vadd.f32 0.0, %v4607
  %v4609 = vand.u32 %v4532, 4294901760
  %v4610 = vsub.f32 %v4532, %v4609
  %v4611 = vand.u32 %v4610, 4294901760
  %v4612 = vsub.f32 %v4610, %v4611
  %v4613 = vand.u32 %v4612, 4294901760
  %4614 = vmatmul.f32.gmra.mxu0 %v4613
  %v4615 = vpop.f32.mrf.mxu0
  %v4616 = vadd.f32 0.0, %v4615
  %v4617 = vand.u32 %v4535, 4294901760
  %v4618 = vsub.f32 %v4535, %v4617
  %v4619 = vand.u32 %v4618, 4294901760
  %v4620 = vsub.f32 %v4618, %v4619
  %v4621 = vand.u32 %v4620, 4294901760
  %4622 = vmatmul.f32.gmra.mxu0 %v4621
  %v4623 = vpop.f32.mrf.mxu0
  %v4624 = vadd.f32 0.0, %v4623
  %4625 = vdwg.mxu0
  %4626 = vmatpush.xpose.msra.mxu0 0.0
  %4627 = vmatpush.xpose.msra.mxu0 0.0
  %4628 = vmatpush.xpose.msra.mxu0 0.0
  %4629 = vmatpush.xpose.msra.mxu0 0.0
  %4630 = vmatpush.xpose.msra.mxu0 0.0
  %4631 = vmatpush.xpose.msra.mxu0 0.0
  %4632 = vmatpush.xpose.msra.mxu0 0.0
  %4633 = vmatpush.xpose.msra.mxu0 0.0
  %v4634 = vand.u32 %v4535, 4294901760
  %v4635 = vsub.f32 %v4535, %v4634
  %v4636 = vand.u32 %v4635, 4294901760
  %v4637 = vsub.f32 %v4635, %v4636
  %v4638 = vand.u32 %v4637, 4294901760
  %4639 = vmatpush.xpose.msra.mxu0 %v4638
  %v4640 = vand.u32 %v4532, 4294901760
  %v4641 = vsub.f32 %v4532, %v4640
  %v4642 = vand.u32 %v4641, 4294901760
  %v4643 = vsub.f32 %v4641, %v4642
  %v4644 = vand.u32 %v4643, 4294901760
  %4645 = vmatpush.xpose.msra.mxu0 %v4644
  %v4646 = vand.u32 %v4529, 4294901760
  %v4647 = vsub.f32 %v4529, %v4646
  %v4648 = vand.u32 %v4647, 4294901760
  %v4649 = vsub.f32 %v4647, %v4648
  %v4650 = vand.u32 %v4649, 4294901760
  %4651 = vmatpush.xpose.msra.mxu0 %v4650
  %v4652 = vand.u32 %v4526, 4294901760
  %v4653 = vsub.f32 %v4526, %v4652
  %v4654 = vand.u32 %v4653, 4294901760
  %v4655 = vsub.f32 %v4653, %v4654
  %v4656 = vand.u32 %v4655, 4294901760
  %4657 = vmatpush.xpose.msra.mxu0 %v4656
  %v4658 = vand.u32 %v4523, 4294901760
  %v4659 = vsub.f32 %v4523, %v4658
  %v4660 = vand.u32 %v4659, 4294901760
  %v4661 = vsub.f32 %v4659, %v4660
  %v4662 = vand.u32 %v4661, 4294901760
  %4663 = vmatpush.xpose.msra.mxu0 %v4662
  %v4664 = vand.u32 %v4520, 4294901760
  %v4665 = vsub.f32 %v4520, %v4664
  %v4666 = vand.u32 %v4665, 4294901760
  %v4667 = vsub.f32 %v4665, %v4666
  %v4668 = vand.u32 %v4667, 4294901760
  %4669 = vmatpush.xpose.msra.mxu0 %v4668
  %v4670 = vand.u32 %v4517, 4294901760
  %v4671 = vsub.f32 %v4517, %v4670
  %v4672 = vand.u32 %v4671, 4294901760
  %v4673 = vsub.f32 %v4671, %v4672
  %v4674 = vand.u32 %v4673, 4294901760
  %4675 = vmatpush.xpose.msra.mxu0 %v4674
  %v4676 = vand.u32 %v4514, 4294901760
  %v4677 = vsub.f32 %v4514, %v4676
  %v4678 = vand.u32 %v4677, 4294901760
  %v4679 = vsub.f32 %v4677, %v4678
  %v4680 = vand.u32 %v4679, 4294901760
  %4681 = vmatpush.xpose.msra.mxu0 %v4680
  %v4682 = vand.u32 %v4514, 4294901760
  %4683 = vmatmul.f32.gmra.mxu0 %v4682
  %v4684 = vpop.f32.mrf.mxu0
  %v4685 = vadd.f32 %v4568, %v4684
  %v4686 = vand.u32 %v4517, 4294901760
  %4687 = vmatmul.f32.gmra.mxu0 %v4686
  %v4688 = vpop.f32.mrf.mxu0
  %v4689 = vadd.f32 %v4576, %v4688
  %v4690 = vand.u32 %v4520, 4294901760
  %4691 = vmatmul.f32.gmra.mxu0 %v4690
  %v4692 = vpop.f32.mrf.mxu0
  %v4693 = vadd.f32 %v4584, %v4692
  %v4694 = vand.u32 %v4523, 4294901760
  %4695 = vmatmul.f32.gmra.mxu0 %v4694
  %v4696 = vpop.f32.mrf.mxu0
  %v4697 = vadd.f32 %v4592, %v4696
  %v4698 = vand.u32 %v4526, 4294901760
  %4699 = vmatmul.f32.gmra.mxu0 %v4698
  %v4700 = vpop.f32.mrf.mxu0
  %v4701 = vadd.f32 %v4600, %v4700
  %v4702 = vand.u32 %v4529, 4294901760
  %4703 = vmatmul.f32.gmra.mxu0 %v4702
  %v4704 = vpop.f32.mrf.mxu0
  %v4705 = vadd.f32 %v4608, %v4704
  %v4706 = vand.u32 %v4532, 4294901760
  %4707 = vmatmul.f32.gmra.mxu0 %v4706
  %v4708 = vpop.f32.mrf.mxu0
  %v4709 = vadd.f32 %v4616, %v4708
  %v4710 = vand.u32 %v4535, 4294901760
  %4711 = vmatmul.f32.gmra.mxu0 %v4710
  %v4712 = vpop.f32.mrf.mxu0
  %v4713 = vadd.f32 %v4624, %v4712
  %4714 = vdwg.mxu0
  %4715 = vmatpush.xpose.msra.mxu0 0.0
  %4716 = vmatpush.xpose.msra.mxu0 0.0
  %4717 = vmatpush.xpose.msra.mxu0 0.0
  %4718 = vmatpush.xpose.msra.mxu0 0.0
  %4719 = vmatpush.xpose.msra.mxu0 0.0
  %4720 = vmatpush.xpose.msra.mxu0 0.0
  %4721 = vmatpush.xpose.msra.mxu0 0.0
  %4722 = vmatpush.xpose.msra.mxu0 0.0
  %v4723 = vand.u32 %v4535, 4294901760
  %v4724 = vsub.f32 %v4535, %v4723
  %4725 = vmatpush.xpose.msra.mxu0 %v4724
  %v4726 = vand.u32 %v4532, 4294901760
  %v4727 = vsub.f32 %v4532, %v4726
  %4728 = vmatpush.xpose.msra.mxu0 %v4727
  %v4729 = vand.u32 %v4529, 4294901760
  %v4730 = vsub.f32 %v4529, %v4729
  %4731 = vmatpush.xpose.msra.mxu0 %v4730
  %v4732 = vand.u32 %v4526, 4294901760
  %v4733 = vsub.f32 %v4526, %v4732
  %4734 = vmatpush.xpose.msra.mxu0 %v4733
  %v4735 = vand.u32 %v4523, 4294901760
  %v4736 = vsub.f32 %v4523, %v4735
  %4737 = vmatpush.xpose.msra.mxu0 %v4736
  %v4738 = vand.u32 %v4520, 4294901760
  %v4739 = vsub.f32 %v4520, %v4738
  %4740 = vmatpush.xpose.msra.mxu0 %v4739
  %v4741 = vand.u32 %v4517, 4294901760
  %v4742 = vsub.f32 %v4517, %v4741
  %4743 = vmatpush.xpose.msra.mxu0 %v4742
  %v4744 = vand.u32 %v4514, 4294901760
  %v4745 = vsub.f32 %v4514, %v4744
  %4746 = vmatpush.xpose.msra.mxu0 %v4745
  %v4747 = vand.u32 %v4514, 4294901760
  %v4748 = vsub.f32 %v4514, %v4747
  %4749 = vmatmul.f32.gmra.mxu0 %v4748
  %v4750 = vpop.f32.mrf.mxu0
  %v4751 = vadd.f32 %v4685, %v4750
  %v4752 = vand.u32 %v4517, 4294901760
  %v4753 = vsub.f32 %v4517, %v4752
  %4754 = vmatmul.f32.gmra.mxu0 %v4753
  %v4755 = vpop.f32.mrf.mxu0
  %v4756 = vadd.f32 %v4689, %v4755
  %v4757 = vand.u32 %v4520, 4294901760
  %v4758 = vsub.f32 %v4520, %v4757
  %4759 = vmatmul.f32.gmra.mxu0 %v4758
  %v4760 = vpop.f32.mrf.mxu0
  %v4761 = vadd.f32 %v4693, %v4760
  %v4762 = vand.u32 %v4523, 4294901760
  %v4763 = vsub.f32 %v4523, %v4762
  %4764 = vmatmul.f32.gmra.mxu0 %v4763
  %v4765 = vpop.f32.mrf.mxu0
  %v4766 = vadd.f32 %v4697, %v4765
  %v4767 = vand.u32 %v4526, 4294901760
  %v4768 = vsub.f32 %v4526, %v4767
  %4769 = vmatmul.f32.gmra.mxu0 %v4768
  %v4770 = vpop.f32.mrf.mxu0
  %v4771 = vadd.f32 %v4701, %v4770
  %v4772 = vand.u32 %v4529, 4294901760
  %v4773 = vsub.f32 %v4529, %v4772
  %4774 = vmatmul.f32.gmra.mxu0 %v4773
  %v4775 = vpop.f32.mrf.mxu0
  %v4776 = vadd.f32 %v4705, %v4775
  %v4777 = vand.u32 %v4532, 4294901760
  %v4778 = vsub.f32 %v4532, %v4777
  %4779 = vmatmul.f32.gmra.mxu0 %v4778
  %v4780 = vpop.f32.mrf.mxu0
  %v4781 = vadd.f32 %v4709, %v4780
  %v4782 = vand.u32 %v4535, 4294901760
  %v4783 = vsub.f32 %v4535, %v4782
  %4784 = vmatmul.f32.gmra.mxu0 %v4783
  %v4785 = vpop.f32.mrf.mxu0
  %v4786 = vadd.f32 %v4713, %v4785
  %4787 = vdwg.mxu0
  %4788 = vmatpush.xpose.msra.mxu0 0.0
  %4789 = vmatpush.xpose.msra.mxu0 0.0
  %4790 = vmatpush.xpose.msra.mxu0 0.0
  %4791 = vmatpush.xpose.msra.mxu0 0.0
  %4792 = vmatpush.xpose.msra.mxu0 0.0
  %4793 = vmatpush.xpose.msra.mxu0 0.0
  %4794 = vmatpush.xpose.msra.mxu0 0.0
  %4795 = vmatpush.xpose.msra.mxu0 0.0
  %v4796 = vand.u32 %v4535, 4294901760
  %4797 = vmatpush.xpose.msra.mxu0 %v4796
  %v4798 = vand.u32 %v4532, 4294901760
  %4799 = vmatpush.xpose.msra.mxu0 %v4798
  %v4800 = vand.u32 %v4529, 4294901760
  %4801 = vmatpush.xpose.msra.mxu0 %v4800
  %v4802 = vand.u32 %v4526, 4294901760
  %4803 = vmatpush.xpose.msra.mxu0 %v4802
  %v4804 = vand.u32 %v4523, 4294901760
  %4805 = vmatpush.xpose.msra.mxu0 %v4804
  %v4806 = vand.u32 %v4520, 4294901760
  %4807 = vmatpush.xpose.msra.mxu0 %v4806
  %v4808 = vand.u32 %v4517, 4294901760
  %4809 = vmatpush.xpose.msra.mxu0 %v4808
  %v4810 = vand.u32 %v4514, 4294901760
  %4811 = vmatpush.xpose.msra.mxu0 %v4810
  %v4812 = vand.u32 %v4514, 4294901760
  %v4813 = vsub.f32 %v4514, %v4812
  %v4814 = vand.u32 %v4813, 4294901760
  %4815 = vmatmul.f32.gmra.mxu0 %v4814
  %v4816 = vpop.f32.mrf.mxu0
  %v4817 = vadd.f32 %v4751, %v4816
  %v4818 = vand.u32 %v4517, 4294901760
  %v4819 = vsub.f32 %v4517, %v4818
  %v4820 = vand.u32 %v4819, 4294901760
  %4821 = vmatmul.f32.gmra.mxu0 %v4820
  %v4822 = vpop.f32.mrf.mxu0
  %v4823 = vadd.f32 %v4756, %v4822
  %v4824 = vand.u32 %v4520, 4294901760
  %v4825 = vsub.f32 %v4520, %v4824
  %v4826 = vand.u32 %v4825, 4294901760
  %4827 = vmatmul.f32.gmra.mxu0 %v4826
  %v4828 = vpop.f32.mrf.mxu0
  %v4829 = vadd.f32 %v4761, %v4828
  %v4830 = vand.u32 %v4523, 4294901760
  %v4831 = vsub.f32 %v4523, %v4830
  %v4832 = vand.u32 %v4831, 4294901760
  %4833 = vmatmul.f32.gmra.mxu0 %v4832
  %v4834 = vpop.f32.mrf.mxu0
  %v4835 = vadd.f32 %v4766, %v4834
  %v4836 = vand.u32 %v4526, 4294901760
  %v4837 = vsub.f32 %v4526, %v4836
  %v4838 = vand.u32 %v4837, 4294901760
  %4839 = vmatmul.f32.gmra.mxu0 %v4838
  %v4840 = vpop.f32.mrf.mxu0
  %v4841 = vadd.f32 %v4771, %v4840
  %v4842 = vand.u32 %v4529, 4294901760
  %v4843 = vsub.f32 %v4529, %v4842
  %v4844 = vand.u32 %v4843, 4294901760
  %4845 = vmatmul.f32.gmra.mxu0 %v4844
  %v4846 = vpop.f32.mrf.mxu0
  %v4847 = vadd.f32 %v4776, %v4846
  %v4848 = vand.u32 %v4532, 4294901760
  %v4849 = vsub.f32 %v4532, %v4848
  %v4850 = vand.u32 %v4849, 4294901760
  %4851 = vmatmul.f32.gmra.mxu0 %v4850
  %v4852 = vpop.f32.mrf.mxu0
  %v4853 = vadd.f32 %v4781, %v4852
  %v4854 = vand.u32 %v4535, 4294901760
  %v4855 = vsub.f32 %v4535, %v4854
  %v4856 = vand.u32 %v4855, 4294901760
  %4857 = vmatmul.f32.gmra.mxu0 %v4856
  %v4858 = vpop.f32.mrf.mxu0
  %v4859 = vadd.f32 %v4786, %v4858
  %4860 = vdwg.mxu0
  %4861 = vmatpush.xpose.msra.mxu0 0.0
  %4862 = vmatpush.xpose.msra.mxu0 0.0
  %4863 = vmatpush.xpose.msra.mxu0 0.0
  %4864 = vmatpush.xpose.msra.mxu0 0.0
  %4865 = vmatpush.xpose.msra.mxu0 0.0
  %4866 = vmatpush.xpose.msra.mxu0 0.0
  %4867 = vmatpush.xpose.msra.mxu0 0.0
  %4868 = vmatpush.xpose.msra.mxu0 0.0
  %v4869 = vand.u32 %v4535, 4294901760
  %v4870 = vsub.f32 %v4535, %v4869
  %v4871 = vand.u32 %v4870, 4294901760
  %4872 = vmatpush.xpose.msra.mxu0 %v4871
  %v4873 = vand.u32 %v4532, 4294901760
  %v4874 = vsub.f32 %v4532, %v4873
  %v4875 = vand.u32 %v4874, 4294901760
  %4876 = vmatpush.xpose.msra.mxu0 %v4875
  %v4877 = vand.u32 %v4529, 4294901760
  %v4878 = vsub.f32 %v4529, %v4877
  %v4879 = vand.u32 %v4878, 4294901760
  %4880 = vmatpush.xpose.msra.mxu0 %v4879
  %v4881 = vand.u32 %v4526, 4294901760
  %v4882 = vsub.f32 %v4526, %v4881
  %v4883 = vand.u32 %v4882, 4294901760
  %4884 = vmatpush.xpose.msra.mxu0 %v4883
  %v4885 = vand.u32 %v4523, 4294901760
  %v4886 = vsub.f32 %v4523, %v4885
  %v4887 = vand.u32 %v4886, 4294901760
  %4888 = vmatpush.xpose.msra.mxu0 %v4887
  %v4889 = vand.u32 %v4520, 4294901760
  %v4890 = vsub.f32 %v4520, %v4889
  %v4891 = vand.u32 %v4890, 4294901760
  %4892 = vmatpush.xpose.msra.mxu0 %v4891
  %v4893 = vand.u32 %v4517, 4294901760
  %v4894 = vsub.f32 %v4517, %v4893
  %v4895 = vand.u32 %v4894, 4294901760
  %4896 = vmatpush.xpose.msra.mxu0 %v4895
  %v4897 = vand.u32 %v4514, 4294901760
  %v4898 = vsub.f32 %v4514, %v4897
  %v4899 = vand.u32 %v4898, 4294901760
  %4900 = vmatpush.xpose.msra.mxu0 %v4899
  %v4901 = vand.u32 %v4514, 4294901760
  %4902 = vmatmul.f32.gmra.mxu0 %v4901
  %v4903 = vpop.f32.mrf.mxu0
  %v4904 = vadd.f32 %v4817, %v4903
  %v4905 = vand.u32 %v4517, 4294901760
  %4906 = vmatmul.f32.gmra.mxu0 %v4905
  %v4907 = vpop.f32.mrf.mxu0
  %v4908 = vadd.f32 %v4823, %v4907
  %v4909 = vand.u32 %v4520, 4294901760
  %4910 = vmatmul.f32.gmra.mxu0 %v4909
  %v4911 = vpop.f32.mrf.mxu0
  %v4912 = vadd.f32 %v4829, %v4911
  %v4913 = vand.u32 %v4523, 4294901760
  %4914 = vmatmul.f32.gmra.mxu0 %v4913
  %v4915 = vpop.f32.mrf.mxu0
  %v4916 = vadd.f32 %v4835, %v4915
  %v4917 = vand.u32 %v4526, 4294901760
  %4918 = vmatmul.f32.gmra.mxu0 %v4917
  %v4919 = vpop.f32.mrf.mxu0
  %v4920 = vadd.f32 %v4841, %v4919
  %v4921 = vand.u32 %v4529, 4294901760
  %4922 = vmatmul.f32.gmra.mxu0 %v4921
  %v4923 = vpop.f32.mrf.mxu0
  %v4924 = vadd.f32 %v4847, %v4923
  %v4925 = vand.u32 %v4532, 4294901760
  %4926 = vmatmul.f32.gmra.mxu0 %v4925
  %v4927 = vpop.f32.mrf.mxu0
  %v4928 = vadd.f32 %v4853, %v4927
  %v4929 = vand.u32 %v4535, 4294901760
  %4930 = vmatmul.f32.gmra.mxu0 %v4929
  %v4931 = vpop.f32.mrf.mxu0
  %v4932 = vadd.f32 %v4859, %v4931
  %4933 = vdwg.mxu0
  %4934 = vmatpush.xpose.msra.mxu0 0.0
  %4935 = vmatpush.xpose.msra.mxu0 0.0
  %4936 = vmatpush.xpose.msra.mxu0 0.0
  %4937 = vmatpush.xpose.msra.mxu0 0.0
  %4938 = vmatpush.xpose.msra.mxu0 0.0
  %4939 = vmatpush.xpose.msra.mxu0 0.0
  %4940 = vmatpush.xpose.msra.mxu0 0.0
  %4941 = vmatpush.xpose.msra.mxu0 0.0
  %v4942 = vand.u32 %v4535, 4294901760
  %4943 = vmatpush.xpose.msra.mxu0 %v4942
  %v4944 = vand.u32 %v4532, 4294901760
  %4945 = vmatpush.xpose.msra.mxu0 %v4944
  %v4946 = vand.u32 %v4529, 4294901760
  %4947 = vmatpush.xpose.msra.mxu0 %v4946
  %v4948 = vand.u32 %v4526, 4294901760
  %4949 = vmatpush.xpose.msra.mxu0 %v4948
  %v4950 = vand.u32 %v4523, 4294901760
  %4951 = vmatpush.xpose.msra.mxu0 %v4950
  %v4952 = vand.u32 %v4520, 4294901760
  %4953 = vmatpush.xpose.msra.mxu0 %v4952
  %v4954 = vand.u32 %v4517, 4294901760
  %4955 = vmatpush.xpose.msra.mxu0 %v4954
  %v4956 = vand.u32 %v4514, 4294901760
  %4957 = vmatpush.xpose.msra.mxu0 %v4956
  %v4958 = vand.u32 %v4514, 4294901760
  %4959 = vmatmul.f32.gmra.mxu0 %v4958
  %v4960 = vpop.f32.mrf.mxu0
  %v4961 = vadd.f32 %v4904, %v4960
  %v4962 = vand.u32 %v4517, 4294901760
  %4963 = vmatmul.f32.gmra.mxu0 %v4962
  %v4964 = vpop.f32.mrf.mxu0
  %v4965 = vadd.f32 %v4908, %v4964
  %v4966 = vand.u32 %v4520, 4294901760
  %4967 = vmatmul.f32.gmra.mxu0 %v4966
  %v4968 = vpop.f32.mrf.mxu0
  %v4969 = vadd.f32 %v4912, %v4968
  %v4970 = vand.u32 %v4523, 4294901760
  %4971 = vmatmul.f32.gmra.mxu0 %v4970
  %v4972 = vpop.f32.mrf.mxu0
  %v4973 = vadd.f32 %v4916, %v4972
  %v4974 = vand.u32 %v4526, 4294901760
  %4975 = vmatmul.f32.gmra.mxu0 %v4974
  %v4976 = vpop.f32.mrf.mxu0
  %v4977 = vadd.f32 %v4920, %v4976
  %v4978 = vand.u32 %v4529, 4294901760
  %4979 = vmatmul.f32.gmra.mxu0 %v4978
  %v4980 = vpop.f32.mrf.mxu0
  %v4981 = vadd.f32 %v4924, %v4980
  %v4982 = vand.u32 %v4532, 4294901760
  %4983 = vmatmul.f32.gmra.mxu0 %v4982
  %v4984 = vpop.f32.mrf.mxu0
  %v4985 = vadd.f32 %v4928, %v4984
  %v4986 = vand.u32 %v4535, 4294901760
  %4987 = vmatmul.f32.gmra.mxu0 %v4986
  %v4988 = vpop.f32.mrf.mxu0
  %v4989 = vadd.f32 %v4932, %v4988
  %4990 = vdwg.mxu0
  %v4991 = vmul.f32 %v4961, 0.35355338
  %v4992 = vmul.f32 %v4965, 0.35355338
  %v4993 = vmul.f32 %v4969, 0.35355338
  %v4994 = vmul.f32 %v4973, 0.35355338
  %v4995 = vmul.f32 %v4977, 0.35355338
  %v4996 = vmul.f32 %v4981, 0.35355338
  %v4997 = vmul.f32 %v4985, 0.35355338
  %v4998 = vmul.f32 %v4989, 0.35355338
  %v4999 = vadd.f32 %v4991, %v86
  %v5000 = vadd.f32 %v4992, %v87
  %v5001 = vadd.f32 %v4993, %v88
  %v5002 = vadd.f32 %v4994, %v89
  %v5003 = vadd.f32 %v4995, %v90
  %v5004 = vadd.f32 %v4996, %v91
  %v5005 = vadd.f32 %v4997, %v92
  %v5006 = vadd.f32 %v4998, %v93
  %v5007 = vsel %vm1557, %v4999, -inf
  %5008 = vmax.xlane.f32.xlu0 %v5007
  %v5009 = vpop.xlane.xlu0 %5008
  %v5010 = vsel %vm1557, %v5000, -inf
  %5011 = vmax.xlane.f32.xlu0 %v5010
  %v5012 = vpop.xlane.xlu0 %5011
  %v5013 = vsel %vm1557, %v5001, -inf
  %5014 = vmax.xlane.f32.xlu0 %v5013
  %v5015 = vpop.xlane.xlu0 %5014
  %v5016 = vsel %vm1557, %v5002, -inf
  %5017 = vmax.xlane.f32.xlu0 %v5016
  %v5018 = vpop.xlane.xlu0 %5017
  %v5019 = vsel %vm1557, %v5003, -inf
  %5020 = vmax.xlane.f32.xlu0 %v5019
  %v5021 = vpop.xlane.xlu0 %5020
  %v5022 = vsel %vm1557, %v5004, -inf
  %5023 = vmax.xlane.f32.xlu0 %v5022
  %v5024 = vpop.xlane.xlu0 %5023
  %v5025 = vsel %vm1557, %v5005, -inf
  %5026 = vmax.xlane.f32.xlu0 %v5025
  %v5027 = vpop.xlane.xlu0 %5026
  %v5028 = vsel %vm1557, %v5006, -inf
  %5029 = vmax.xlane.f32.xlu0 %v5028
  %v5030 = vpop.xlane.xlu0 %5029
  %v5031 = vsub.f32 %v4999, %v5009
  %v5032 = vsub.f32 %v5000, %v5012
  %v5033 = vsub.f32 %v5001, %v5015
  %v5034 = vsub.f32 %v5002, %v5018
  %v5035 = vsub.f32 %v5003, %v5021
  %v5036 = vsub.f32 %v5004, %v5024
  %v5037 = vsub.f32 %v5005, %v5027
  %v5038 = vsub.f32 %v5006, %v5030
  %v5039 = vmul.f32 %v5031, 1.442695
  %v5040 = vpow.pop %v5039
  %v5041 = vmul.f32 %v5032, 1.442695
  %v5042 = vpow.pop %v5041
  %v5043 = vmul.f32 %v5033, 1.442695
  %v5044 = vpow.pop %v5043
  %v5045 = vmul.f32 %v5034, 1.442695
  %v5046 = vpow.pop %v5045
  %v5047 = vmul.f32 %v5035, 1.442695
  %v5048 = vpow.pop %v5047
  %v5049 = vmul.f32 %v5036, 1.442695
  %v5050 = vpow.pop %v5049
  %v5051 = vmul.f32 %v5037, 1.442695
  %v5052 = vpow.pop %v5051
  %v5053 = vmul.f32 %v5038, 1.442695
  %v5054 = vpow.pop %v5053
  %v5055 = vsel %vm1557, %v5040, 0.0
  %5056 = vadd.xlane.f32.xlu0 %v5055
  %v5057 = vpop.xlane.xlu0 %5056
  %v5058 = vsel %vm1557, %v5042, 0.0
  %5059 = vadd.xlane.f32.xlu0 %v5058
  %v5060 = vpop.xlane.xlu0 %5059
  %v5061 = vsel %vm1557, %v5044, 0.0
  %5062 = vadd.xlane.f32.xlu0 %v5061
  %v5063 = vpop.xlane.xlu0 %5062
  %v5064 = vsel %vm1557, %v5046, 0.0
  %5065 = vadd.xlane.f32.xlu0 %v5064
  %v5066 = vpop.xlane.xlu0 %5065
  %v5067 = vsel %vm1557, %v5048, 0.0
  %5068 = vadd.xlane.f32.xlu0 %v5067
  %v5069 = vpop.xlane.xlu0 %5068
  %v5070 = vsel %vm1557, %v5050, 0.0
  %5071 = vadd.xlane.f32.xlu0 %v5070
  %v5072 = vpop.xlane.xlu0 %5071
  %v5073 = vsel %vm1557, %v5052, 0.0
  %5074 = vadd.xlane.f32.xlu0 %v5073
  %v5075 = vpop.xlane.xlu0 %5074
  %v5076 = vsel %vm1557, %v5054, 0.0
  %5077 = vadd.xlane.f32.xlu0 %v5076
  %v5078 = vpop.xlane.xlu0 %5077
  %v5079 = vrcp.pop %v5057
  %v5080 = vmul.f32 %v5057, %v5079
  %v5081 = vsub.f32 1.0, %v5080
  %v5082 = vmul.f32 %v5079, %v5081
  %v5083 = vadd.f32 %v5079, %v5082
  %vm5084 = vweird.f32 %v5057
  %vm5085 = vweird.f32 %v5079
  %vm5086 = vmor %vm5084, %vm5085
  %v5087 = vsel %vm5086, %v5079, %v5083
  %v5088 = vand.u32 2147483647, %v5057
  %vm5089 = vcmp.eq.f32.partialorder %v5088, 8.507059e+37
  %v5090 = vand.u32 %v5057, 2147483648
  %v5091 = vor.u32 1.1754944e-38, %v5090
  %v5092 = vsel %vm5089, %v5091, %v5087
  %v5093 = vmul.f32 %v5040, %v5092
  %v5094 = vrcp.pop %v5060
  %v5095 = vmul.f32 %v5060, %v5094
  %v5096 = vsub.f32 1.0, %v5095
  %v5097 = vmul.f32 %v5094, %v5096
  %v5098 = vadd.f32 %v5094, %v5097
  %vm5099 = vweird.f32 %v5060
  %vm5100 = vweird.f32 %v5094
  %vm5101 = vmor %vm5099, %vm5100
  %v5102 = vsel %vm5101, %v5094, %v5098
  %v5103 = vand.u32 2147483647, %v5060
  %vm5104 = vcmp.eq.f32.partialorder %v5103, 8.507059e+37
  %v5105 = vand.u32 %v5060, 2147483648
  %v5106 = vor.u32 1.1754944e-38, %v5105
  %v5107 = vsel %vm5104, %v5106, %v5102
  %v5108 = vmul.f32 %v5042, %v5107
  %v5109 = vrcp.pop %v5063
  %v5110 = vmul.f32 %v5063, %v5109
  %v5111 = vsub.f32 1.0, %v5110
  %v5112 = vmul.f32 %v5109, %v5111
  %v5113 = vadd.f32 %v5109, %v5112
  %vm5114 = vweird.f32 %v5063
  %vm5115 = vweird.f32 %v5109
  %vm5116 = vmor %vm5114, %vm5115
  %v5117 = vsel %vm5116, %v5109, %v5113
  %v5118 = vand.u32 2147483647, %v5063
  %vm5119 = vcmp.eq.f32.partialorder %v5118, 8.507059e+37
  %v5120 = vand.u32 %v5063, 2147483648
  %v5121 = vor.u32 1.1754944e-38, %v5120
  %v5122 = vsel %vm5119, %v5121, %v5117
  %v5123 = vmul.f32 %v5044, %v5122
  %v5124 = vrcp.pop %v5066
  %v5125 = vmul.f32 %v5066, %v5124
  %v5126 = vsub.f32 1.0, %v5125
  %v5127 = vmul.f32 %v5124, %v5126
  %v5128 = vadd.f32 %v5124, %v5127
  %vm5129 = vweird.f32 %v5066
  %vm5130 = vweird.f32 %v5124
  %vm5131 = vmor %vm5129, %vm5130
  %v5132 = vsel %vm5131, %v5124, %v5128
  %v5133 = vand.u32 2147483647, %v5066
  %vm5134 = vcmp.eq.f32.partialorder %v5133, 8.507059e+37
  %v5135 = vand.u32 %v5066, 2147483648
  %v5136 = vor.u32 1.1754944e-38, %v5135
  %v5137 = vsel %vm5134, %v5136, %v5132
  %v5138 = vmul.f32 %v5046, %v5137
  %v5139 = vrcp.pop %v5069
  %v5140 = vmul.f32 %v5069, %v5139
  %v5141 = vsub.f32 1.0, %v5140
  %v5142 = vmul.f32 %v5139, %v5141
  %v5143 = vadd.f32 %v5139, %v5142
  %vm5144 = vweird.f32 %v5069
  %vm5145 = vweird.f32 %v5139
  %vm5146 = vmor %vm5144, %vm5145
  %v5147 = vsel %vm5146, %v5139, %v5143
  %v5148 = vand.u32 2147483647, %v5069
  %vm5149 = vcmp.eq.f32.partialorder %v5148, 8.507059e+37
  %v5150 = vand.u32 %v5069, 2147483648
  %v5151 = vor.u32 1.1754944e-38, %v5150
  %v5152 = vsel %vm5149, %v5151, %v5147
  %v5153 = vmul.f32 %v5048, %v5152
  %v5154 = vrcp.pop %v5072
  %v5155 = vmul.f32 %v5072, %v5154
  %v5156 = vsub.f32 1.0, %v5155
  %v5157 = vmul.f32 %v5154, %v5156
  %v5158 = vadd.f32 %v5154, %v5157
  %vm5159 = vweird.f32 %v5072
  %vm5160 = vweird.f32 %v5154
  %vm5161 = vmor %vm5159, %vm5160
  %v5162 = vsel %vm5161, %v5154, %v5158
  %v5163 = vand.u32 2147483647, %v5072
  %vm5164 = vcmp.eq.f32.partialorder %v5163, 8.507059e+37
  %v5165 = vand.u32 %v5072, 2147483648
  %v5166 = vor.u32 1.1754944e-38, %v5165
  %v5167 = vsel %vm5164, %v5166, %v5162
  %v5168 = vmul.f32 %v5050, %v5167
  %v5169 = vrcp.pop %v5075
  %v5170 = vmul.f32 %v5075, %v5169
  %v5171 = vsub.f32 1.0, %v5170
  %v5172 = vmul.f32 %v5169, %v5171
  %v5173 = vadd.f32 %v5169, %v5172
  %vm5174 = vweird.f32 %v5075
  %vm5175 = vweird.f32 %v5169
  %vm5176 = vmor %vm5174, %vm5175
  %v5177 = vsel %vm5176, %v5169, %v5173
  %v5178 = vand.u32 2147483647, %v5075
  %vm5179 = vcmp.eq.f32.partialorder %v5178, 8.507059e+37
  %v5180 = vand.u32 %v5075, 2147483648
  %v5181 = vor.u32 1.1754944e-38, %v5180
  %v5182 = vsel %vm5179, %v5181, %v5177
  %v5183 = vmul.f32 %v5052, %v5182
  %v5184 = vrcp.pop %v5078
  %v5185 = vmul.f32 %v5078, %v5184
  %v5186 = vsub.f32 1.0, %v5185
  %v5187 = vmul.f32 %v5184, %v5186
  %v5188 = vadd.f32 %v5184, %v5187
  %vm5189 = vweird.f32 %v5078
  %vm5190 = vweird.f32 %v5184
  %vm5191 = vmor %vm5189, %vm5190
  %v5192 = vsel %vm5191, %v5184, %v5188
  %v5193 = vand.u32 2147483647, %v5078
  %vm5194 = vcmp.eq.f32.partialorder %v5193, 8.507059e+37
  %v5195 = vand.u32 %v5078, 2147483648
  %v5196 = vor.u32 1.1754944e-38, %v5195
  %v5197 = vsel %vm5194, %v5196, %v5192
  %v5198 = vmul.f32 %v5054, %v5197
  %v5200 = vsel %vm1557, %v5093, 0
  %v5203 = vsel %vm1557, %v5108, 0
  %v5206 = vsel %vm1557, %v5123, 0
  %v5209 = vsel %vm1557, %v5138, 0
  %v5212 = vsel %vm1557, %v5153, 0
  %v5215 = vsel %vm1557, %v5168, 0
  %v5218 = vsel %vm1557, %v5183, 0
  %v5221 = vsel %vm1557, %v5198, 0
  %5223 = vmatpush.msra.mxu0 0.0
  %5224 = vmatpush.msra.mxu0 0.0
  %5225 = vmatpush.msra.mxu0 0.0
  %5226 = vmatpush.msra.mxu0 0.0
  %5227 = vmatpush.msra.mxu0 0.0
  %5228 = vmatpush.msra.mxu0 0.0
  %5229 = vmatpush.msra.mxu0 0.0
  %5230 = vmatpush.msra.mxu0 0.0
  %v5231 = vand.u32 %v4512, 4294901760
  %5232 = vmatpush.msra.mxu0 %v5231
  %v5233 = vand.u32 %v4511, 4294901760
  %5234 = vmatpush.msra.mxu0 %v5233
  %v5235 = vand.u32 %v4510, 4294901760
  %5236 = vmatpush.msra.mxu0 %v5235
  %v5237 = vand.u32 %v4509, 4294901760
  %5238 = vmatpush.msra.mxu0 %v5237
  %v5239 = vand.u32 %v4508, 4294901760
  %5240 = vmatpush.msra.mxu0 %v5239
  %v5241 = vand.u32 %v4507, 4294901760
  %5242 = vmatpush.msra.mxu0 %v5241
  %v5243 = vand.u32 %v4506, 4294901760
  %5244 = vmatpush.msra.mxu0 %v5243
  %v5245 = vand.u32 %v4505, 4294901760
  %5246 = vmatpush.msra.mxu0 %v5245
  %v5247 = vand.u32 %v5200, 4294901760
  %v5248 = vsub.f32 %v5200, %v5247
  %v5249 = vand.u32 %v5248, 4294901760
  %v5250 = vsub.f32 %v5248, %v5249
  %v5251 = vand.u32 %v5250, 4294901760
  %5252 = vmatmul.f32.gmra.mxu0 %v5251
  %v5253 = vpop.f32.mrf.mxu0
  %v5254 = vadd.f32 0.0, %v5253
  %v5255 = vand.u32 %v5203, 4294901760
  %v5256 = vsub.f32 %v5203, %v5255
  %v5257 = vand.u32 %v5256, 4294901760
  %v5258 = vsub.f32 %v5256, %v5257
  %v5259 = vand.u32 %v5258, 4294901760
  %5260 = vmatmul.f32.gmra.mxu0 %v5259
  %v5261 = vpop.f32.mrf.mxu0
  %v5262 = vadd.f32 0.0, %v5261
  %v5263 = vand.u32 %v5206, 4294901760
  %v5264 = vsub.f32 %v5206, %v5263
  %v5265 = vand.u32 %v5264, 4294901760
  %v5266 = vsub.f32 %v5264, %v5265
  %v5267 = vand.u32 %v5266, 4294901760
  %5268 = vmatmul.f32.gmra.mxu0 %v5267
  %v5269 = vpop.f32.mrf.mxu0
  %v5270 = vadd.f32 0.0, %v5269
  %v5271 = vand.u32 %v5209, 4294901760
  %v5272 = vsub.f32 %v5209, %v5271
  %v5273 = vand.u32 %v5272, 4294901760
  %v5274 = vsub.f32 %v5272, %v5273
  %v5275 = vand.u32 %v5274, 4294901760
  %5276 = vmatmul.f32.gmra.mxu0 %v5275
  %v5277 = vpop.f32.mrf.mxu0
  %v5278 = vadd.f32 0.0, %v5277
  %v5279 = vand.u32 %v5212, 4294901760
  %v5280 = vsub.f32 %v5212, %v5279
  %v5281 = vand.u32 %v5280, 4294901760
  %v5282 = vsub.f32 %v5280, %v5281
  %v5283 = vand.u32 %v5282, 4294901760
  %5284 = vmatmul.f32.gmra.mxu0 %v5283
  %v5285 = vpop.f32.mrf.mxu0
  %v5286 = vadd.f32 0.0, %v5285
  %v5287 = vand.u32 %v5215, 4294901760
  %v5288 = vsub.f32 %v5215, %v5287
  %v5289 = vand.u32 %v5288, 4294901760
  %v5290 = vsub.f32 %v5288, %v5289
  %v5291 = vand.u32 %v5290, 4294901760
  %5292 = vmatmul.f32.gmra.mxu0 %v5291
  %v5293 = vpop.f32.mrf.mxu0
  %v5294 = vadd.f32 0.0, %v5293
  %v5295 = vand.u32 %v5218, 4294901760
  %v5296 = vsub.f32 %v5218, %v5295
  %v5297 = vand.u32 %v5296, 4294901760
  %v5298 = vsub.f32 %v5296, %v5297
  %v5299 = vand.u32 %v5298, 4294901760
  %5300 = vmatmul.f32.gmra.mxu0 %v5299
  %v5301 = vpop.f32.mrf.mxu0
  %v5302 = vadd.f32 0.0, %v5301
  %v5303 = vand.u32 %v5221, 4294901760
  %v5304 = vsub.f32 %v5221, %v5303
  %v5305 = vand.u32 %v5304, 4294901760
  %v5306 = vsub.f32 %v5304, %v5305
  %v5307 = vand.u32 %v5306, 4294901760
  %5308 = vmatmul.f32.gmra.mxu0 %v5307
  %v5309 = vpop.f32.mrf.mxu0
  %v5310 = vadd.f32 0.0, %v5309
  %5311 = vdwg.mxu0
  %5312 = vmatpush.msra.mxu0 0.0
  %5313 = vmatpush.msra.mxu0 0.0
  %5314 = vmatpush.msra.mxu0 0.0
  %5315 = vmatpush.msra.mxu0 0.0
  %5316 = vmatpush.msra.mxu0 0.0
  %5317 = vmatpush.msra.mxu0 0.0
  %5318 = vmatpush.msra.mxu0 0.0
  %5319 = vmatpush.msra.mxu0 0.0
  %v5320 = vand.u32 %v4512, 4294901760
  %v5321 = vsub.f32 %v4512, %v5320
  %v5322 = vand.u32 %v5321, 4294901760
  %v5323 = vsub.f32 %v5321, %v5322
  %v5324 = vand.u32 %v5323, 4294901760
  %5325 = vmatpush.msra.mxu0 %v5324
  %v5326 = vand.u32 %v4511, 4294901760
  %v5327 = vsub.f32 %v4511, %v5326
  %v5328 = vand.u32 %v5327, 4294901760
  %v5329 = vsub.f32 %v5327, %v5328
  %v5330 = vand.u32 %v5329, 4294901760
  %5331 = vmatpush.msra.mxu0 %v5330
  %v5332 = vand.u32 %v4510, 4294901760
  %v5333 = vsub.f32 %v4510, %v5332
  %v5334 = vand.u32 %v5333, 4294901760
  %v5335 = vsub.f32 %v5333, %v5334
  %v5336 = vand.u32 %v5335, 4294901760
  %5337 = vmatpush.msra.mxu0 %v5336
  %v5338 = vand.u32 %v4509, 4294901760
  %v5339 = vsub.f32 %v4509, %v5338
  %v5340 = vand.u32 %v5339, 4294901760
  %v5341 = vsub.f32 %v5339, %v5340
  %v5342 = vand.u32 %v5341, 4294901760
  %5343 = vmatpush.msra.mxu0 %v5342
  %v5344 = vand.u32 %v4508, 4294901760
  %v5345 = vsub.f32 %v4508, %v5344
  %v5346 = vand.u32 %v5345, 4294901760
  %v5347 = vsub.f32 %v5345, %v5346
  %v5348 = vand.u32 %v5347, 4294901760
  %5349 = vmatpush.msra.mxu0 %v5348
  %v5350 = vand.u32 %v4507, 4294901760
  %v5351 = vsub.f32 %v4507, %v5350
  %v5352 = vand.u32 %v5351, 4294901760
  %v5353 = vsub.f32 %v5351, %v5352
  %v5354 = vand.u32 %v5353, 4294901760
  %5355 = vmatpush.msra.mxu0 %v5354
  %v5356 = vand.u32 %v4506, 4294901760
  %v5357 = vsub.f32 %v4506, %v5356
  %v5358 = vand.u32 %v5357, 4294901760
  %v5359 = vsub.f32 %v5357, %v5358
  %v5360 = vand.u32 %v5359, 4294901760
  %5361 = vmatpush.msra.mxu0 %v5360
  %v5362 = vand.u32 %v4505, 4294901760
  %v5363 = vsub.f32 %v4505, %v5362
  %v5364 = vand.u32 %v5363, 4294901760
  %v5365 = vsub.f32 %v5363, %v5364
  %v5366 = vand.u32 %v5365, 4294901760
  %5367 = vmatpush.msra.mxu0 %v5366
  %v5368 = vand.u32 %v5200, 4294901760
  %5369 = vmatmul.f32.gmra.mxu0 %v5368
  %v5370 = vpop.f32.mrf.mxu0
  %v5371 = vadd.f32 %v5254, %v5370
  %v5372 = vand.u32 %v5203, 4294901760
  %5373 = vmatmul.f32.gmra.mxu0 %v5372
  %v5374 = vpop.f32.mrf.mxu0
  %v5375 = vadd.f32 %v5262, %v5374
  %v5376 = vand.u32 %v5206, 4294901760
  %5377 = vmatmul.f32.gmra.mxu0 %v5376
  %v5378 = vpop.f32.mrf.mxu0
  %v5379 = vadd.f32 %v5270, %v5378
  %v5380 = vand.u32 %v5209, 4294901760
  %5381 = vmatmul.f32.gmra.mxu0 %v5380
  %v5382 = vpop.f32.mrf.mxu0
  %v5383 = vadd.f32 %v5278, %v5382
  %v5384 = vand.u32 %v5212, 4294901760
  %5385 = vmatmul.f32.gmra.mxu0 %v5384
  %v5386 = vpop.f32.mrf.mxu0
  %v5387 = vadd.f32 %v5286, %v5386
  %v5388 = vand.u32 %v5215, 4294901760
  %5389 = vmatmul.f32.gmra.mxu0 %v5388
  %v5390 = vpop.f32.mrf.mxu0
  %v5391 = vadd.f32 %v5294, %v5390
  %v5392 = vand.u32 %v5218, 4294901760
  %5393 = vmatmul.f32.gmra.mxu0 %v5392
  %v5394 = vpop.f32.mrf.mxu0
  %v5395 = vadd.f32 %v5302, %v5394
  %v5396 = vand.u32 %v5221, 4294901760
  %5397 = vmatmul.f32.gmra.mxu0 %v5396
  %v5398 = vpop.f32.mrf.mxu0
  %v5399 = vadd.f32 %v5310, %v5398
  %5400 = vdwg.mxu0
  %5401 = vmatpush.msra.mxu0 0.0
  %5402 = vmatpush.msra.mxu0 0.0
  %5403 = vmatpush.msra.mxu0 0.0
  %5404 = vmatpush.msra.mxu0 0.0
  %5405 = vmatpush.msra.mxu0 0.0
  %5406 = vmatpush.msra.mxu0 0.0
  %5407 = vmatpush.msra.mxu0 0.0
  %5408 = vmatpush.msra.mxu0 0.0
  %v5409 = vand.u32 %v4512, 4294901760
  %v5410 = vsub.f32 %v4512, %v5409
  %5411 = vmatpush.msra.mxu0 %v5410
  %v5412 = vand.u32 %v4511, 4294901760
  %v5413 = vsub.f32 %v4511, %v5412
  %5414 = vmatpush.msra.mxu0 %v5413
  %v5415 = vand.u32 %v4510, 4294901760
  %v5416 = vsub.f32 %v4510, %v5415
  %5417 = vmatpush.msra.mxu0 %v5416
  %v5418 = vand.u32 %v4509, 4294901760
  %v5419 = vsub.f32 %v4509, %v5418
  %5420 = vmatpush.msra.mxu0 %v5419
  %v5421 = vand.u32 %v4508, 4294901760
  %v5422 = vsub.f32 %v4508, %v5421
  %5423 = vmatpush.msra.mxu0 %v5422
  %v5424 = vand.u32 %v4507, 4294901760
  %v5425 = vsub.f32 %v4507, %v5424
  %5426 = vmatpush.msra.mxu0 %v5425
  %v5427 = vand.u32 %v4506, 4294901760
  %v5428 = vsub.f32 %v4506, %v5427
  %5429 = vmatpush.msra.mxu0 %v5428
  %v5430 = vand.u32 %v4505, 4294901760
  %v5431 = vsub.f32 %v4505, %v5430
  %5432 = vmatpush.msra.mxu0 %v5431
  %v5433 = vand.u32 %v5200, 4294901760
  %v5434 = vsub.f32 %v5200, %v5433
  %5435 = vmatmul.f32.gmra.mxu0 %v5434
  %v5436 = vpop.f32.mrf.mxu0
  %v5437 = vadd.f32 %v5371, %v5436
  %v5438 = vand.u32 %v5203, 4294901760
  %v5439 = vsub.f32 %v5203, %v5438
  %5440 = vmatmul.f32.gmra.mxu0 %v5439
  %v5441 = vpop.f32.mrf.mxu0
  %v5442 = vadd.f32 %v5375, %v5441
  %v5443 = vand.u32 %v5206, 4294901760
  %v5444 = vsub.f32 %v5206, %v5443
  %5445 = vmatmul.f32.gmra.mxu0 %v5444
  %v5446 = vpop.f32.mrf.mxu0
  %v5447 = vadd.f32 %v5379, %v5446
  %v5448 = vand.u32 %v5209, 4294901760
  %v5449 = vsub.f32 %v5209, %v5448
  %5450 = vmatmul.f32.gmra.mxu0 %v5449
  %v5451 = vpop.f32.mrf.mxu0
  %v5452 = vadd.f32 %v5383, %v5451
  %v5453 = vand.u32 %v5212, 4294901760
  %v5454 = vsub.f32 %v5212, %v5453
  %5455 = vmatmul.f32.gmra.mxu0 %v5454
  %v5456 = vpop.f32.mrf.mxu0
  %v5457 = vadd.f32 %v5387, %v5456
  %v5458 = vand.u32 %v5215, 4294901760
  %v5459 = vsub.f32 %v5215, %v5458
  %5460 = vmatmul.f32.gmra.mxu0 %v5459
  %v5461 = vpop.f32.mrf.mxu0
  %v5462 = vadd.f32 %v5391, %v5461
  %v5463 = vand.u32 %v5218, 4294901760
  %v5464 = vsub.f32 %v5218, %v5463
  %5465 = vmatmul.f32.gmra.mxu0 %v5464
  %v5466 = vpop.f32.mrf.mxu0
  %v5467 = vadd.f32 %v5395, %v5466
  %v5468 = vand.u32 %v5221, 4294901760
  %v5469 = vsub.f32 %v5221, %v5468
  %5470 = vmatmul.f32.gmra.mxu0 %v5469
  %v5471 = vpop.f32.mrf.mxu0
  %v5472 = vadd.f32 %v5399, %v5471
  %5473 = vdwg.mxu0
  %5474 = vmatpush.msra.mxu0 0.0
  %5475 = vmatpush.msra.mxu0 0.0
  %5476 = vmatpush.msra.mxu0 0.0
  %5477 = vmatpush.msra.mxu0 0.0
  %5478 = vmatpush.msra.mxu0 0.0
  %5479 = vmatpush.msra.mxu0 0.0
  %5480 = vmatpush.msra.mxu0 0.0
  %5481 = vmatpush.msra.mxu0 0.0
  %v5482 = vand.u32 %v4512, 4294901760
  %5483 = vmatpush.msra.mxu0 %v5482
  %v5484 = vand.u32 %v4511, 4294901760
  %5485 = vmatpush.msra.mxu0 %v5484
  %v5486 = vand.u32 %v4510, 4294901760
  %5487 = vmatpush.msra.mxu0 %v5486
  %v5488 = vand.u32 %v4509, 4294901760
  %5489 = vmatpush.msra.mxu0 %v5488
  %v5490 = vand.u32 %v4508, 4294901760
  %5491 = vmatpush.msra.mxu0 %v5490
  %v5492 = vand.u32 %v4507, 4294901760
  %5493 = vmatpush.msra.mxu0 %v5492
  %v5494 = vand.u32 %v4506, 4294901760
  %5495 = vmatpush.msra.mxu0 %v5494
  %v5496 = vand.u32 %v4505, 4294901760
  %5497 = vmatpush.msra.mxu0 %v5496
  %v5498 = vand.u32 %v5200, 4294901760
  %v5499 = vsub.f32 %v5200, %v5498
  %v5500 = vand.u32 %v5499, 4294901760
  %5501 = vmatmul.f32.gmra.mxu0 %v5500
  %v5502 = vpop.f32.mrf.mxu0
  %v5503 = vadd.f32 %v5437, %v5502
  %v5504 = vand.u32 %v5203, 4294901760
  %v5505 = vsub.f32 %v5203, %v5504
  %v5506 = vand.u32 %v5505, 4294901760
  %5507 = vmatmul.f32.gmra.mxu0 %v5506
  %v5508 = vpop.f32.mrf.mxu0
  %v5509 = vadd.f32 %v5442, %v5508
  %v5510 = vand.u32 %v5206, 4294901760
  %v5511 = vsub.f32 %v5206, %v5510
  %v5512 = vand.u32 %v5511, 4294901760
  %5513 = vmatmul.f32.gmra.mxu0 %v5512
  %v5514 = vpop.f32.mrf.mxu0
  %v5515 = vadd.f32 %v5447, %v5514
  %v5516 = vand.u32 %v5209, 4294901760
  %v5517 = vsub.f32 %v5209, %v5516
  %v5518 = vand.u32 %v5517, 4294901760
  %5519 = vmatmul.f32.gmra.mxu0 %v5518
  %v5520 = vpop.f32.mrf.mxu0
  %v5521 = vadd.f32 %v5452, %v5520
  %v5522 = vand.u32 %v5212, 4294901760
  %v5523 = vsub.f32 %v5212, %v5522
  %v5524 = vand.u32 %v5523, 4294901760
  %5525 = vmatmul.f32.gmra.mxu0 %v5524
  %v5526 = vpop.f32.mrf.mxu0
  %v5527 = vadd.f32 %v5457, %v5526
  %v5528 = vand.u32 %v5215, 4294901760
  %v5529 = vsub.f32 %v5215, %v5528
  %v5530 = vand.u32 %v5529, 4294901760
  %5531 = vmatmul.f32.gmra.mxu0 %v5530
  %v5532 = vpop.f32.mrf.mxu0
  %v5533 = vadd.f32 %v5462, %v5532
  %v5534 = vand.u32 %v5218, 4294901760
  %v5535 = vsub.f32 %v5218, %v5534
  %v5536 = vand.u32 %v5535, 4294901760
  %5537 = vmatmul.f32.gmra.mxu0 %v5536
  %v5538 = vpop.f32.mrf.mxu0
  %v5539 = vadd.f32 %v5467, %v5538
  %v5540 = vand.u32 %v5221, 4294901760
  %v5541 = vsub.f32 %v5221, %v5540
  %v5542 = vand.u32 %v5541, 4294901760
  %5543 = vmatmul.f32.gmra.mxu0 %v5542
  %v5544 = vpop.f32.mrf.mxu0
  %v5545 = vadd.f32 %v5472, %v5544
  %5546 = vdwg.mxu0
  %5547 = vmatpush.msra.mxu0 0.0
  %5548 = vmatpush.msra.mxu0 0.0
  %5549 = vmatpush.msra.mxu0 0.0
  %5550 = vmatpush.msra.mxu0 0.0
  %5551 = vmatpush.msra.mxu0 0.0
  %5552 = vmatpush.msra.mxu0 0.0
  %5553 = vmatpush.msra.mxu0 0.0
  %5554 = vmatpush.msra.mxu0 0.0
  %v5555 = vand.u32 %v4512, 4294901760
  %v5556 = vsub.f32 %v4512, %v5555
  %v5557 = vand.u32 %v5556, 4294901760
  %5558 = vmatpush.msra.mxu0 %v5557
  %v5559 = vand.u32 %v4511, 4294901760
  %v5560 = vsub.f32 %v4511, %v5559
  %v5561 = vand.u32 %v5560, 4294901760
  %5562 = vmatpush.msra.mxu0 %v5561
  %v5563 = vand.u32 %v4510, 4294901760
  %v5564 = vsub.f32 %v4510, %v5563
  %v5565 = vand.u32 %v5564, 4294901760
  %5566 = vmatpush.msra.mxu0 %v5565
  %v5567 = vand.u32 %v4509, 4294901760
  %v5568 = vsub.f32 %v4509, %v5567
  %v5569 = vand.u32 %v5568, 4294901760
  %5570 = vmatpush.msra.mxu0 %v5569
  %v5571 = vand.u32 %v4508, 4294901760
  %v5572 = vsub.f32 %v4508, %v5571
  %v5573 = vand.u32 %v5572, 4294901760
  %5574 = vmatpush.msra.mxu0 %v5573
  %v5575 = vand.u32 %v4507, 4294901760
  %v5576 = vsub.f32 %v4507, %v5575
  %v5577 = vand.u32 %v5576, 4294901760
  %5578 = vmatpush.msra.mxu0 %v5577
  %v5579 = vand.u32 %v4506, 4294901760
  %v5580 = vsub.f32 %v4506, %v5579
  %v5581 = vand.u32 %v5580, 4294901760
  %5582 = vmatpush.msra.mxu0 %v5581
  %v5583 = vand.u32 %v4505, 4294901760
  %v5584 = vsub.f32 %v4505, %v5583
  %v5585 = vand.u32 %v5584, 4294901760
  %5586 = vmatpush.msra.mxu0 %v5585
  %v5587 = vand.u32 %v5200, 4294901760
  %5588 = vmatmul.f32.gmra.mxu0 %v5587
  %v5589 = vpop.f32.mrf.mxu0
  %v5590 = vadd.f32 %v5503, %v5589
  %v5591 = vand.u32 %v5203, 4294901760
  %5592 = vmatmul.f32.gmra.mxu0 %v5591
  %v5593 = vpop.f32.mrf.mxu0
  %v5594 = vadd.f32 %v5509, %v5593
  %v5595 = vand.u32 %v5206, 4294901760
  %5596 = vmatmul.f32.gmra.mxu0 %v5595
  %v5597 = vpop.f32.mrf.mxu0
  %v5598 = vadd.f32 %v5515, %v5597
  %v5599 = vand.u32 %v5209, 4294901760
  %5600 = vmatmul.f32.gmra.mxu0 %v5599
  %v5601 = vpop.f32.mrf.mxu0
  %v5602 = vadd.f32 %v5521, %v5601
  %v5603 = vand.u32 %v5212, 4294901760
  %5604 = vmatmul.f32.gmra.mxu0 %v5603
  %v5605 = vpop.f32.mrf.mxu0
  %v5606 = vadd.f32 %v5527, %v5605
  %v5607 = vand.u32 %v5215, 4294901760
  %5608 = vmatmul.f32.gmra.mxu0 %v5607
  %v5609 = vpop.f32.mrf.mxu0
  %v5610 = vadd.f32 %v5533, %v5609
  %v5611 = vand.u32 %v5218, 4294901760
  %5612 = vmatmul.f32.gmra.mxu0 %v5611
  %v5613 = vpop.f32.mrf.mxu0
  %v5614 = vadd.f32 %v5539, %v5613
  %v5615 = vand.u32 %v5221, 4294901760
  %5616 = vmatmul.f32.gmra.mxu0 %v5615
  %v5617 = vpop.f32.mrf.mxu0
  %v5618 = vadd.f32 %v5545, %v5617
  %5619 = vdwg.mxu0
  %5620 = vmatpush.msra.mxu0 0.0
  %5621 = vmatpush.msra.mxu0 0.0
  %5622 = vmatpush.msra.mxu0 0.0
  %5623 = vmatpush.msra.mxu0 0.0
  %5624 = vmatpush.msra.mxu0 0.0
  %5625 = vmatpush.msra.mxu0 0.0
  %5626 = vmatpush.msra.mxu0 0.0
  %5627 = vmatpush.msra.mxu0 0.0
  %v5628 = vand.u32 %v4512, 4294901760
  %5629 = vmatpush.msra.mxu0 %v5628
  %v5630 = vand.u32 %v4511, 4294901760
  %5631 = vmatpush.msra.mxu0 %v5630
  %v5632 = vand.u32 %v4510, 4294901760
  %5633 = vmatpush.msra.mxu0 %v5632
  %v5634 = vand.u32 %v4509, 4294901760
  %5635 = vmatpush.msra.mxu0 %v5634
  %v5636 = vand.u32 %v4508, 4294901760
  %5637 = vmatpush.msra.mxu0 %v5636
  %v5638 = vand.u32 %v4507, 4294901760
  %5639 = vmatpush.msra.mxu0 %v5638
  %v5640 = vand.u32 %v4506, 4294901760
  %5641 = vmatpush.msra.mxu0 %v5640
  %v5642 = vand.u32 %v4505, 4294901760
  %5643 = vmatpush.msra.mxu0 %v5642
  %v5644 = vand.u32 %v5200, 4294901760
  %5645 = vmatmul.f32.gmra.mxu0 %v5644
  %v5646 = vpop.f32.mrf.mxu0
  %v5647 = vadd.f32 %v5590, %v5646
  %v5648 = vand.u32 %v5203, 4294901760
  %5649 = vmatmul.f32.gmra.mxu0 %v5648
  %v5650 = vpop.f32.mrf.mxu0
  %v5651 = vadd.f32 %v5594, %v5650
  %v5652 = vand.u32 %v5206, 4294901760
  %5653 = vmatmul.f32.gmra.mxu0 %v5652
  %v5654 = vpop.f32.mrf.mxu0
  %v5655 = vadd.f32 %v5598, %v5654
  %v5656 = vand.u32 %v5209, 4294901760
  %5657 = vmatmul.f32.gmra.mxu0 %v5656
  %v5658 = vpop.f32.mrf.mxu0
  %v5659 = vadd.f32 %v5602, %v5658
  %v5660 = vand.u32 %v5212, 4294901760
  %5661 = vmatmul.f32.gmra.mxu0 %v5660
  %v5662 = vpop.f32.mrf.mxu0
  %v5663 = vadd.f32 %v5606, %v5662
  %v5664 = vand.u32 %v5215, 4294901760
  %5665 = vmatmul.f32.gmra.mxu0 %v5664
  %v5666 = vpop.f32.mrf.mxu0
  %v5667 = vadd.f32 %v5610, %v5666
  %v5668 = vand.u32 %v5218, 4294901760
  %5669 = vmatmul.f32.gmra.mxu0 %v5668
  %v5670 = vpop.f32.mrf.mxu0
  %v5671 = vadd.f32 %v5614, %v5670
  %v5672 = vand.u32 %v5221, 4294901760
  %5673 = vmatmul.f32.gmra.mxu0 %v5672
  %v5674 = vpop.f32.mrf.mxu0
  %v5675 = vadd.f32 %v5618, %v5674
  %5676 = vdwg.mxu0
  %v5678 = vsel %vm1062, %v5655, 0
  %v5681 = vsel %vm1062, %v5659, 0
  %5683 = vmatpush.msra.mxu0 0.0
  %5684 = vmatpush.msra.mxu0 0.0
  %5685 = vmatpush.msra.mxu0 0.0
  %5686 = vmatpush.msra.mxu0 0.0
  %5687 = vmatpush.msra.mxu0 0.0
  %5688 = vmatpush.msra.mxu0 0.0
  %5689 = vmatpush.msra.mxu0 0.0
  %5690 = vmatpush.msra.mxu0 0.0
  %5691 = vmatpush.msra.mxu0 0.0
  %5692 = vmatpush.msra.mxu0 0.0
  %5693 = vmatpush.msra.mxu0 0.0
  %5694 = vmatpush.msra.mxu0 0.0
  %5695 = vmatpush.msra.mxu0 0.0
  %5696 = vmatpush.msra.mxu0 0.0
  %5697 = vmatpush.msra.mxu0 0.0
  %v5698 = vand.u32 %v69, 4294901760
  %5699 = vmatpush.msra.mxu0 %v5698
  %v5700 = vand.u32 %v5678, 4294901760
  %v5701 = vsub.f32 %v5678, %v5700
  %v5702 = vand.u32 %v5701, 4294901760
  %v5703 = vsub.f32 %v5701, %v5702
  %v5704 = vand.u32 %v5703, 4294901760
  %5705 = vmatmul.f32.gmra.mxu0 %v5704
  %v5706 = vpop.f32.mrf.mxu0
  %v5707 = vadd.f32 0.0, %v5706
  %v5708 = vand.u32 %v5681, 4294901760
  %v5709 = vsub.f32 %v5681, %v5708
  %v5710 = vand.u32 %v5709, 4294901760
  %v5711 = vsub.f32 %v5709, %v5710
  %v5712 = vand.u32 %v5711, 4294901760
  %5713 = vmatmul.f32.gmra.mxu0 %v5712
  %v5714 = vpop.f32.mrf.mxu0
  %v5715 = vadd.f32 0.0, %v5714
  %5716 = vdwg.mxu0
  %5717 = vmatpush.msra.mxu0 0.0
  %5718 = vmatpush.msra.mxu0 0.0
  %5719 = vmatpush.msra.mxu0 0.0
  %5720 = vmatpush.msra.mxu0 0.0
  %5721 = vmatpush.msra.mxu0 0.0
  %5722 = vmatpush.msra.mxu0 0.0
  %5723 = vmatpush.msra.mxu0 0.0
  %5724 = vmatpush.msra.mxu0 0.0
  %5725 = vmatpush.msra.mxu0 0.0
  %5726 = vmatpush.msra.mxu0 0.0
  %5727 = vmatpush.msra.mxu0 0.0
  %5728 = vmatpush.msra.mxu0 0.0
  %5729 = vmatpush.msra.mxu0 0.0
  %5730 = vmatpush.msra.mxu0 0.0
  %5731 = vmatpush.msra.mxu0 0.0
  %v5732 = vand.u32 %v69, 4294901760
  %v5733 = vsub.f32 %v69, %v5732
  %v5734 = vand.u32 %v5733, 4294901760
  %v5735 = vsub.f32 %v5733, %v5734
  %v5736 = vand.u32 %v5735, 4294901760
  %5737 = vmatpush.msra.mxu0 %v5736
  %v5738 = vand.u32 %v5678, 4294901760
  %5739 = vmatmul.f32.gmra.mxu0 %v5738
  %v5740 = vpop.f32.mrf.mxu0
  %v5741 = vadd.f32 %v5707, %v5740
  %v5742 = vand.u32 %v5681, 4294901760
  %5743 = vmatmul.f32.gmra.mxu0 %v5742
  %v5744 = vpop.f32.mrf.mxu0
  %v5745 = vadd.f32 %v5715, %v5744
  %5746 = vdwg.mxu0
  %5747 = vmatpush.msra.mxu0 0.0
  %5748 = vmatpush.msra.mxu0 0.0
  %5749 = vmatpush.msra.mxu0 0.0
  %5750 = vmatpush.msra.mxu0 0.0
  %5751 = vmatpush.msra.mxu0 0.0
  %5752 = vmatpush.msra.mxu0 0.0
  %5753 = vmatpush.msra.mxu0 0.0
  %5754 = vmatpush.msra.mxu0 0.0
  %5755 = vmatpush.msra.mxu0 0.0
  %5756 = vmatpush.msra.mxu0 0.0
  %5757 = vmatpush.msra.mxu0 0.0
  %5758 = vmatpush.msra.mxu0 0.0
  %5759 = vmatpush.msra.mxu0 0.0
  %5760 = vmatpush.msra.mxu0 0.0
  %5761 = vmatpush.msra.mxu0 0.0
  %v5762 = vand.u32 %v69, 4294901760
  %v5763 = vsub.f32 %v69, %v5762
  %5764 = vmatpush.msra.mxu0 %v5763
  %v5765 = vand.u32 %v5678, 4294901760
  %v5766 = vsub.f32 %v5678, %v5765
  %5767 = vmatmul.f32.gmra.mxu0 %v5766
  %v5768 = vpop.f32.mrf.mxu0
  %v5769 = vadd.f32 %v5741, %v5768
  %v5770 = vand.u32 %v5681, 4294901760
  %v5771 = vsub.f32 %v5681, %v5770
  %5772 = vmatmul.f32.gmra.mxu0 %v5771
  %v5773 = vpop.f32.mrf.mxu0
  %v5774 = vadd.f32 %v5745, %v5773
  %5775 = vdwg.mxu0
  %5776 = vmatpush.msra.mxu0 0.0
  %5777 = vmatpush.msra.mxu0 0.0
  %5778 = vmatpush.msra.mxu0 0.0
  %5779 = vmatpush.msra.mxu0 0.0
  %5780 = vmatpush.msra.mxu0 0.0
  %5781 = vmatpush.msra.mxu0 0.0
  %5782 = vmatpush.msra.mxu0 0.0
  %5783 = vmatpush.msra.mxu0 0.0
  %5784 = vmatpush.msra.mxu0 0.0
  %5785 = vmatpush.msra.mxu0 0.0
  %5786 = vmatpush.msra.mxu0 0.0
  %5787 = vmatpush.msra.mxu0 0.0
  %5788 = vmatpush.msra.mxu0 0.0
  %5789 = vmatpush.msra.mxu0 0.0
  %5790 = vmatpush.msra.mxu0 0.0
  %v5791 = vand.u32 %v69, 4294901760
  %5792 = vmatpush.msra.mxu0 %v5791
  %v5793 = vand.u32 %v5678, 4294901760
  %v5794 = vsub.f32 %v5678, %v5793
  %v5795 = vand.u32 %v5794, 4294901760
  %5796 = vmatmul.f32.gmra.mxu0 %v5795
  %v5797 = vpop.f32.mrf.mxu0
  %v5798 = vadd.f32 %v5769, %v5797
  %v5799 = vand.u32 %v5681, 4294901760
  %v5800 = vsub.f32 %v5681, %v5799
  %v5801 = vand.u32 %v5800, 4294901760
  %5802 = vmatmul.f32.gmra.mxu0 %v5801
  %v5803 = vpop.f32.mrf.mxu0
  %v5804 = vadd.f32 %v5774, %v5803
  %5805 = vdwg.mxu0
  %5806 = vmatpush.msra.mxu0 0.0
  %5807 = vmatpush.msra.mxu0 0.0
  %5808 = vmatpush.msra.mxu0 0.0
  %5809 = vmatpush.msra.mxu0 0.0
  %5810 = vmatpush.msra.mxu0 0.0
  %5811 = vmatpush.msra.mxu0 0.0
  %5812 = vmatpush.msra.mxu0 0.0
  %5813 = vmatpush.msra.mxu0 0.0
  %5814 = vmatpush.msra.mxu0 0.0
  %5815 = vmatpush.msra.mxu0 0.0
  %5816 = vmatpush.msra.mxu0 0.0
  %5817 = vmatpush.msra.mxu0 0.0
  %5818 = vmatpush.msra.mxu0 0.0
  %5819 = vmatpush.msra.mxu0 0.0
  %5820 = vmatpush.msra.mxu0 0.0
  %v5821 = vand.u32 %v69, 4294901760
  %v5822 = vsub.f32 %v69, %v5821
  %v5823 = vand.u32 %v5822, 4294901760
  %5824 = vmatpush.msra.mxu0 %v5823
  %v5825 = vand.u32 %v5678, 4294901760
  %5826 = vmatmul.f32.gmra.mxu0 %v5825
  %v5827 = vpop.f32.mrf.mxu0
  %v5828 = vadd.f32 %v5798, %v5827
  %v5829 = vand.u32 %v5681, 4294901760
  %5830 = vmatmul.f32.gmra.mxu0 %v5829
  %v5831 = vpop.f32.mrf.mxu0
  %v5832 = vadd.f32 %v5804, %v5831
  %5833 = vdwg.mxu0
  %5834 = vmatpush.msra.mxu0 0.0
  %5835 = vmatpush.msra.mxu0 0.0
  %5836 = vmatpush.msra.mxu0 0.0
  %5837 = vmatpush.msra.mxu0 0.0
  %5838 = vmatpush.msra.mxu0 0.0
  %5839 = vmatpush.msra.mxu0 0.0
  %5840 = vmatpush.msra.mxu0 0.0
  %5841 = vmatpush.msra.mxu0 0.0
  %5842 = vmatpush.msra.mxu0 0.0
  %5843 = vmatpush.msra.mxu0 0.0
  %5844 = vmatpush.msra.mxu0 0.0
  %5845 = vmatpush.msra.mxu0 0.0
  %5846 = vmatpush.msra.mxu0 0.0
  %5847 = vmatpush.msra.mxu0 0.0
  %5848 = vmatpush.msra.mxu0 0.0
  %v5849 = vand.u32 %v69, 4294901760
  %5850 = vmatpush.msra.mxu0 %v5849
  %v5851 = vand.u32 %v5678, 4294901760
  %5852 = vmatmul.f32.gmra.mxu0 %v5851
  %v5853 = vpop.f32.mrf.mxu0
  %v5854 = vadd.f32 %v5828, %v5853
  %v5855 = vand.u32 %v5681, 4294901760
  %5856 = vmatmul.f32.gmra.mxu0 %v5855
  %v5857 = vpop.f32.mrf.mxu0
  %v5858 = vadd.f32 %v5832, %v5857
  %5859 = vdwg.mxu0
  %v5861 = vsel %vm1062, %v5647, 0
  %v5864 = vsel %vm1062, %v5651, 0
  %5866 = vmatpush.msra.mxu0 0.0
  %5867 = vmatpush.msra.mxu0 0.0
  %5868 = vmatpush.msra.mxu0 0.0
  %5869 = vmatpush.msra.mxu0 0.0
  %5870 = vmatpush.msra.mxu0 0.0
  %5871 = vmatpush.msra.mxu0 0.0
  %5872 = vmatpush.msra.mxu0 0.0
  %5873 = vmatpush.msra.mxu0 0.0
  %5874 = vmatpush.msra.mxu0 0.0
  %5875 = vmatpush.msra.mxu0 0.0
  %5876 = vmatpush.msra.mxu0 0.0
  %5877 = vmatpush.msra.mxu0 0.0
  %5878 = vmatpush.msra.mxu0 0.0
  %5879 = vmatpush.msra.mxu0 0.0
  %5880 = vmatpush.msra.mxu0 0.0
  %v5881 = vand.u32 %v68, 4294901760
  %5882 = vmatpush.msra.mxu0 %v5881
  %v5883 = vand.u32 %v5861, 4294901760
  %v5884 = vsub.f32 %v5861, %v5883
  %v5885 = vand.u32 %v5884, 4294901760
  %v5886 = vsub.f32 %v5884, %v5885
  %v5887 = vand.u32 %v5886, 4294901760
  %5888 = vmatmul.f32.gmra.mxu0 %v5887
  %v5889 = vpop.f32.mrf.mxu0
  %v5890 = vadd.f32 %v5854, %v5889
  %v5891 = vand.u32 %v5864, 4294901760
  %v5892 = vsub.f32 %v5864, %v5891
  %v5893 = vand.u32 %v5892, 4294901760
  %v5894 = vsub.f32 %v5892, %v5893
  %v5895 = vand.u32 %v5894, 4294901760
  %5896 = vmatmul.f32.gmra.mxu0 %v5895
  %v5897 = vpop.f32.mrf.mxu0
  %v5898 = vadd.f32 %v5858, %v5897
  %5899 = vdwg.mxu0
  %5900 = vmatpush.msra.mxu0 0.0
  %5901 = vmatpush.msra.mxu0 0.0
  %5902 = vmatpush.msra.mxu0 0.0
  %5903 = vmatpush.msra.mxu0 0.0
  %5904 = vmatpush.msra.mxu0 0.0
  %5905 = vmatpush.msra.mxu0 0.0
  %5906 = vmatpush.msra.mxu0 0.0
  %5907 = vmatpush.msra.mxu0 0.0
  %5908 = vmatpush.msra.mxu0 0.0
  %5909 = vmatpush.msra.mxu0 0.0
  %5910 = vmatpush.msra.mxu0 0.0
  %5911 = vmatpush.msra.mxu0 0.0
  %5912 = vmatpush.msra.mxu0 0.0
  %5913 = vmatpush.msra.mxu0 0.0
  %5914 = vmatpush.msra.mxu0 0.0
  %v5915 = vand.u32 %v68, 4294901760
  %v5916 = vsub.f32 %v68, %v5915
  %v5917 = vand.u32 %v5916, 4294901760
  %v5918 = vsub.f32 %v5916, %v5917
  %v5919 = vand.u32 %v5918, 4294901760
  %5920 = vmatpush.msra.mxu0 %v5919
  %v5921 = vand.u32 %v5861, 4294901760
  %5922 = vmatmul.f32.gmra.mxu0 %v5921
  %v5923 = vpop.f32.mrf.mxu0
  %v5924 = vadd.f32 %v5890, %v5923
  %v5925 = vand.u32 %v5864, 4294901760
  %5926 = vmatmul.f32.gmra.mxu0 %v5925
  %v5927 = vpop.f32.mrf.mxu0
  %v5928 = vadd.f32 %v5898, %v5927
  %5929 = vdwg.mxu0
  %5930 = vmatpush.msra.mxu0 0.0
  %5931 = vmatpush.msra.mxu0 0.0
  %5932 = vmatpush.msra.mxu0 0.0
  %5933 = vmatpush.msra.mxu0 0.0
  %5934 = vmatpush.msra.mxu0 0.0
  %5935 = vmatpush.msra.mxu0 0.0
  %5936 = vmatpush.msra.mxu0 0.0
  %5937 = vmatpush.msra.mxu0 0.0
  %5938 = vmatpush.msra.mxu0 0.0
  %5939 = vmatpush.msra.mxu0 0.0
  %5940 = vmatpush.msra.mxu0 0.0
  %5941 = vmatpush.msra.mxu0 0.0
  %5942 = vmatpush.msra.mxu0 0.0
  %5943 = vmatpush.msra.mxu0 0.0
  %5944 = vmatpush.msra.mxu0 0.0
  %v5945 = vand.u32 %v68, 4294901760
  %v5946 = vsub.f32 %v68, %v5945
  %5947 = vmatpush.msra.mxu0 %v5946
  %v5948 = vand.u32 %v5861, 4294901760
  %v5949 = vsub.f32 %v5861, %v5948
  %5950 = vmatmul.f32.gmra.mxu0 %v5949
  %v5951 = vpop.f32.mrf.mxu0
  %v5952 = vadd.f32 %v5924, %v5951
  %v5953 = vand.u32 %v5864, 4294901760
  %v5954 = vsub.f32 %v5864, %v5953
  %5955 = vmatmul.f32.gmra.mxu0 %v5954
  %v5956 = vpop.f32.mrf.mxu0
  %v5957 = vadd.f32 %v5928, %v5956
  %5958 = vdwg.mxu0
  %5959 = vmatpush.msra.mxu0 0.0
  %5960 = vmatpush.msra.mxu0 0.0
  %5961 = vmatpush.msra.mxu0 0.0
  %5962 = vmatpush.msra.mxu0 0.0
  %5963 = vmatpush.msra.mxu0 0.0
  %5964 = vmatpush.msra.mxu0 0.0
  %5965 = vmatpush.msra.mxu0 0.0
  %5966 = vmatpush.msra.mxu0 0.0
  %5967 = vmatpush.msra.mxu0 0.0
  %5968 = vmatpush.msra.mxu0 0.0
  %5969 = vmatpush.msra.mxu0 0.0
  %5970 = vmatpush.msra.mxu0 0.0
  %5971 = vmatpush.msra.mxu0 0.0
  %5972 = vmatpush.msra.mxu0 0.0
  %5973 = vmatpush.msra.mxu0 0.0
  %v5974 = vand.u32 %v68, 4294901760
  %5975 = vmatpush.msra.mxu0 %v5974
  %v5976 = vand.u32 %v5861, 4294901760
  %v5977 = vsub.f32 %v5861, %v5976
  %v5978 = vand.u32 %v5977, 4294901760
  %5979 = vmatmul.f32.gmra.mxu0 %v5978
  %v5980 = vpop.f32.mrf.mxu0
  %v5981 = vadd.f32 %v5952, %v5980
  %v5982 = vand.u32 %v5864, 4294901760
  %v5983 = vsub.f32 %v5864, %v5982
  %v5984 = vand.u32 %v5983, 4294901760
  %5985 = vmatmul.f32.gmra.mxu0 %v5984
  %v5986 = vpop.f32.mrf.mxu0
  %v5987 = vadd.f32 %v5957, %v5986
  %5988 = vdwg.mxu0
  %5989 = vmatpush.msra.mxu0 0.0
  %5990 = vmatpush.msra.mxu0 0.0
  %5991 = vmatpush.msra.mxu0 0.0
  %5992 = vmatpush.msra.mxu0 0.0
  %5993 = vmatpush.msra.mxu0 0.0
  %5994 = vmatpush.msra.mxu0 0.0
  %5995 = vmatpush.msra.mxu0 0.0
  %5996 = vmatpush.msra.mxu0 0.0
  %5997 = vmatpush.msra.mxu0 0.0
  %5998 = vmatpush.msra.mxu0 0.0
  %5999 = vmatpush.msra.mxu0 0.0
  %6000 = vmatpush.msra.mxu0 0.0
  %6001 = vmatpush.msra.mxu0 0.0
  %6002 = vmatpush.msra.mxu0 0.0
  %6003 = vmatpush.msra.mxu0 0.0
  %v6004 = vand.u32 %v68, 4294901760
  %v6005 = vsub.f32 %v68, %v6004
  %v6006 = vand.u32 %v6005, 4294901760
  %6007 = vmatpush.msra.mxu0 %v6006
  %v6008 = vand.u32 %v5861, 4294901760
  %6009 = vmatmul.f32.gmra.mxu0 %v6008
  %v6010 = vpop.f32.mrf.mxu0
  %v6011 = vadd.f32 %v5981, %v6010
  %v6012 = vand.u32 %v5864, 4294901760
  %6013 = vmatmul.f32.gmra.mxu0 %v6012
  %v6014 = vpop.f32.mrf.mxu0
  %v6015 = vadd.f32 %v5987, %v6014
  %6016 = vdwg.mxu0
  %6017 = vmatpush.msra.mxu0 0.0
  %6018 = vmatpush.msra.mxu0 0.0
  %6019 = vmatpush.msra.mxu0 0.0
  %6020 = vmatpush.msra.mxu0 0.0
  %6021 = vmatpush.msra.mxu0 0.0
  %6022 = vmatpush.msra.mxu0 0.0
  %6023 = vmatpush.msra.mxu0 0.0
  %6024 = vmatpush.msra.mxu0 0.0
  %6025 = vmatpush.msra.mxu0 0.0
  %6026 = vmatpush.msra.mxu0 0.0
  %6027 = vmatpush.msra.mxu0 0.0
  %6028 = vmatpush.msra.mxu0 0.0
  %6029 = vmatpush.msra.mxu0 0.0
  %6030 = vmatpush.msra.mxu0 0.0
  %6031 = vmatpush.msra.mxu0 0.0
  %v6032 = vand.u32 %v68, 4294901760
  %6033 = vmatpush.msra.mxu0 %v6032
  %v6034 = vand.u32 %v5861, 4294901760
  %6035 = vmatmul.f32.gmra.mxu0 %v6034
  %v6036 = vpop.f32.mrf.mxu0
  %v6037 = vadd.f32 %v6011, %v6036
  %v6038 = vand.u32 %v5864, 4294901760
  %6039 = vmatmul.f32.gmra.mxu0 %v6038
  %v6040 = vpop.f32.mrf.mxu0
  %v6041 = vadd.f32 %v6015, %v6040
  %6042 = vdwg.mxu0
  %v6044 = vsel %vm1062, %v5663, 0
  %v6047 = vsel %vm1062, %v5667, 0
  %6049 = vmatpush.msra.mxu0 0.0
  %6050 = vmatpush.msra.mxu0 0.0
  %6051 = vmatpush.msra.mxu0 0.0
  %6052 = vmatpush.msra.mxu0 0.0
  %6053 = vmatpush.msra.mxu0 0.0
  %6054 = vmatpush.msra.mxu0 0.0
  %6055 = vmatpush.msra.mxu0 0.0
  %6056 = vmatpush.msra.mxu0 0.0
  %6057 = vmatpush.msra.mxu0 0.0
  %6058 = vmatpush.msra.mxu0 0.0
  %6059 = vmatpush.msra.mxu0 0.0
  %6060 = vmatpush.msra.mxu0 0.0
  %6061 = vmatpush.msra.mxu0 0.0
  %6062 = vmatpush.msra.mxu0 0.0
  %6063 = vmatpush.msra.mxu0 0.0
  %v6064 = vand.u32 %v70, 4294901760
  %6065 = vmatpush.msra.mxu0 %v6064
  %v6066 = vand.u32 %v6044, 4294901760
  %v6067 = vsub.f32 %v6044, %v6066
  %v6068 = vand.u32 %v6067, 4294901760
  %v6069 = vsub.f32 %v6067, %v6068
  %v6070 = vand.u32 %v6069, 4294901760
  %6071 = vmatmul.f32.gmra.mxu0 %v6070
  %v6072 = vpop.f32.mrf.mxu0
  %v6073 = vadd.f32 0.0, %v6072
  %v6074 = vand.u32 %v6047, 4294901760
  %v6075 = vsub.f32 %v6047, %v6074
  %v6076 = vand.u32 %v6075, 4294901760
  %v6077 = vsub.f32 %v6075, %v6076
  %v6078 = vand.u32 %v6077, 4294901760
  %6079 = vmatmul.f32.gmra.mxu0 %v6078
  %v6080 = vpop.f32.mrf.mxu0
  %v6081 = vadd.f32 0.0, %v6080
  %6082 = vdwg.mxu0
  %6083 = vmatpush.msra.mxu0 0.0
  %6084 = vmatpush.msra.mxu0 0.0
  %6085 = vmatpush.msra.mxu0 0.0
  %6086 = vmatpush.msra.mxu0 0.0
  %6087 = vmatpush.msra.mxu0 0.0
  %6088 = vmatpush.msra.mxu0 0.0
  %6089 = vmatpush.msra.mxu0 0.0
  %6090 = vmatpush.msra.mxu0 0.0
  %6091 = vmatpush.msra.mxu0 0.0
  %6092 = vmatpush.msra.mxu0 0.0
  %6093 = vmatpush.msra.mxu0 0.0
  %6094 = vmatpush.msra.mxu0 0.0
  %6095 = vmatpush.msra.mxu0 0.0
  %6096 = vmatpush.msra.mxu0 0.0
  %6097 = vmatpush.msra.mxu0 0.0
  %v6098 = vand.u32 %v70, 4294901760
  %v6099 = vsub.f32 %v70, %v6098
  %v6100 = vand.u32 %v6099, 4294901760
  %v6101 = vsub.f32 %v6099, %v6100
  %v6102 = vand.u32 %v6101, 4294901760
  %6103 = vmatpush.msra.mxu0 %v6102
  %v6104 = vand.u32 %v6044, 4294901760
  %6105 = vmatmul.f32.gmra.mxu0 %v6104
  %v6106 = vpop.f32.mrf.mxu0
  %v6107 = vadd.f32 %v6073, %v6106
  %v6108 = vand.u32 %v6047, 4294901760
  %6109 = vmatmul.f32.gmra.mxu0 %v6108
  %v6110 = vpop.f32.mrf.mxu0
  %v6111 = vadd.f32 %v6081, %v6110
  %6112 = vdwg.mxu0
  %6113 = vmatpush.msra.mxu0 0.0
  %6114 = vmatpush.msra.mxu0 0.0
  %6115 = vmatpush.msra.mxu0 0.0
  %6116 = vmatpush.msra.mxu0 0.0
  %6117 = vmatpush.msra.mxu0 0.0
  %6118 = vmatpush.msra.mxu0 0.0
  %6119 = vmatpush.msra.mxu0 0.0
  %6120 = vmatpush.msra.mxu0 0.0
  %6121 = vmatpush.msra.mxu0 0.0
  %6122 = vmatpush.msra.mxu0 0.0
  %6123 = vmatpush.msra.mxu0 0.0
  %6124 = vmatpush.msra.mxu0 0.0
  %6125 = vmatpush.msra.mxu0 0.0
  %6126 = vmatpush.msra.mxu0 0.0
  %6127 = vmatpush.msra.mxu0 0.0
  %v6128 = vand.u32 %v70, 4294901760
  %v6129 = vsub.f32 %v70, %v6128
  %6130 = vmatpush.msra.mxu0 %v6129
  %v6131 = vand.u32 %v6044, 4294901760
  %v6132 = vsub.f32 %v6044, %v6131
  %6133 = vmatmul.f32.gmra.mxu0 %v6132
  %v6134 = vpop.f32.mrf.mxu0
  %v6135 = vadd.f32 %v6107, %v6134
  %v6136 = vand.u32 %v6047, 4294901760
  %v6137 = vsub.f32 %v6047, %v6136
  %6138 = vmatmul.f32.gmra.mxu0 %v6137
  %v6139 = vpop.f32.mrf.mxu0
  %v6140 = vadd.f32 %v6111, %v6139
  %6141 = vdwg.mxu0
  %6142 = vmatpush.msra.mxu0 0.0
  %6143 = vmatpush.msra.mxu0 0.0
  %6144 = vmatpush.msra.mxu0 0.0
  %6145 = vmatpush.msra.mxu0 0.0
  %6146 = vmatpush.msra.mxu0 0.0
  %6147 = vmatpush.msra.mxu0 0.0
  %6148 = vmatpush.msra.mxu0 0.0
  %6149 = vmatpush.msra.mxu0 0.0
  %6150 = vmatpush.msra.mxu0 0.0
  %6151 = vmatpush.msra.mxu0 0.0
  %6152 = vmatpush.msra.mxu0 0.0
  %6153 = vmatpush.msra.mxu0 0.0
  %6154 = vmatpush.msra.mxu0 0.0
  %6155 = vmatpush.msra.mxu0 0.0
  %6156 = vmatpush.msra.mxu0 0.0
  %v6157 = vand.u32 %v70, 4294901760
  %6158 = vmatpush.msra.mxu0 %v6157
  %v6159 = vand.u32 %v6044, 4294901760
  %v6160 = vsub.f32 %v6044, %v6159
  %v6161 = vand.u32 %v6160, 4294901760
  %6162 = vmatmul.f32.gmra.mxu0 %v6161
  %v6163 = vpop.f32.mrf.mxu0
  %v6164 = vadd.f32 %v6135, %v6163
  %v6165 = vand.u32 %v6047, 4294901760
  %v6166 = vsub.f32 %v6047, %v6165
  %v6167 = vand.u32 %v6166, 4294901760
  %6168 = vmatmul.f32.gmra.mxu0 %v6167
  %v6169 = vpop.f32.mrf.mxu0
  %v6170 = vadd.f32 %v6140, %v6169
  %6171 = vdwg.mxu0
  %6172 = vmatpush.msra.mxu0 0.0
  %6173 = vmatpush.msra.mxu0 0.0
  %6174 = vmatpush.msra.mxu0 0.0
  %6175 = vmatpush.msra.mxu0 0.0
  %6176 = vmatpush.msra.mxu0 0.0
  %6177 = vmatpush.msra.mxu0 0.0
  %6178 = vmatpush.msra.mxu0 0.0
  %6179 = vmatpush.msra.mxu0 0.0
  %6180 = vmatpush.msra.mxu0 0.0
  %6181 = vmatpush.msra.mxu0 0.0
  %6182 = vmatpush.msra.mxu0 0.0
  %6183 = vmatpush.msra.mxu0 0.0
  %6184 = vmatpush.msra.mxu0 0.0
  %6185 = vmatpush.msra.mxu0 0.0
  %6186 = vmatpush.msra.mxu0 0.0
  %v6187 = vand.u32 %v70, 4294901760
  %v6188 = vsub.f32 %v70, %v6187
  %v6189 = vand.u32 %v6188, 4294901760
  %6190 = vmatpush.msra.mxu0 %v6189
  %v6191 = vand.u32 %v6044, 4294901760
  %6192 = vmatmul.f32.gmra.mxu0 %v6191
  %v6193 = vpop.f32.mrf.mxu0
  %v6194 = vadd.f32 %v6164, %v6193
  %v6195 = vand.u32 %v6047, 4294901760
  %6196 = vmatmul.f32.gmra.mxu0 %v6195
  %v6197 = vpop.f32.mrf.mxu0
  %v6198 = vadd.f32 %v6170, %v6197
  %6199 = vdwg.mxu0
  %6200 = vmatpush.msra.mxu0 0.0
  %6201 = vmatpush.msra.mxu0 0.0
  %6202 = vmatpush.msra.mxu0 0.0
  %6203 = vmatpush.msra.mxu0 0.0
  %6204 = vmatpush.msra.mxu0 0.0
  %6205 = vmatpush.msra.mxu0 0.0
  %6206 = vmatpush.msra.mxu0 0.0
  %6207 = vmatpush.msra.mxu0 0.0
  %6208 = vmatpush.msra.mxu0 0.0
  %6209 = vmatpush.msra.mxu0 0.0
  %6210 = vmatpush.msra.mxu0 0.0
  %6211 = vmatpush.msra.mxu0 0.0
  %6212 = vmatpush.msra.mxu0 0.0
  %6213 = vmatpush.msra.mxu0 0.0
  %6214 = vmatpush.msra.mxu0 0.0
  %v6215 = vand.u32 %v70, 4294901760
  %6216 = vmatpush.msra.mxu0 %v6215
  %v6217 = vand.u32 %v6044, 4294901760
  %6218 = vmatmul.f32.gmra.mxu0 %v6217
  %v6219 = vpop.f32.mrf.mxu0
  %v6220 = vadd.f32 %v6194, %v6219
  %v6221 = vand.u32 %v6047, 4294901760
  %6222 = vmatmul.f32.gmra.mxu0 %v6221
  %v6223 = vpop.f32.mrf.mxu0
  %v6224 = vadd.f32 %v6198, %v6223
  %6225 = vdwg.mxu0
  %v6226 = vadd.f32 %v6037, %v6220
  %v6227 = vadd.f32 %v6041, %v6224
  %v6229 = vsel %vm1062, %v5671, 0
  %v6232 = vsel %vm1062, %v5675, 0
  %6234 = vmatpush.msra.mxu0 0.0
  %6235 = vmatpush.msra.mxu0 0.0
  %6236 = vmatpush.msra.mxu0 0.0
  %6237 = vmatpush.msra.mxu0 0.0
  %6238 = vmatpush.msra.mxu0 0.0
  %6239 = vmatpush.msra.mxu0 0.0
  %6240 = vmatpush.msra.mxu0 0.0
  %6241 = vmatpush.msra.mxu0 0.0
  %6242 = vmatpush.msra.mxu0 0.0
  %6243 = vmatpush.msra.mxu0 0.0
  %6244 = vmatpush.msra.mxu0 0.0
  %6245 = vmatpush.msra.mxu0 0.0
  %6246 = vmatpush.msra.mxu0 0.0
  %6247 = vmatpush.msra.mxu0 0.0
  %6248 = vmatpush.msra.mxu0 0.0
  %v6249 = vand.u32 %v71, 4294901760
  %6250 = vmatpush.msra.mxu0 %v6249
  %v6251 = vand.u32 %v6229, 4294901760
  %v6252 = vsub.f32 %v6229, %v6251
  %v6253 = vand.u32 %v6252, 4294901760
  %v6254 = vsub.f32 %v6252, %v6253
  %v6255 = vand.u32 %v6254, 4294901760
  %6256 = vmatmul.f32.gmra.mxu0 %v6255
  %v6257 = vpop.f32.mrf.mxu0
  %v6258 = vadd.f32 0.0, %v6257
  %v6259 = vand.u32 %v6232, 4294901760
  %v6260 = vsub.f32 %v6232, %v6259
  %v6261 = vand.u32 %v6260, 4294901760
  %v6262 = vsub.f32 %v6260, %v6261
  %v6263 = vand.u32 %v6262, 4294901760
  %6264 = vmatmul.f32.gmra.mxu0 %v6263
  %v6265 = vpop.f32.mrf.mxu0
  %v6266 = vadd.f32 0.0, %v6265
  %6267 = vdwg.mxu0
  %6268 = vmatpush.msra.mxu0 0.0
  %6269 = vmatpush.msra.mxu0 0.0
  %6270 = vmatpush.msra.mxu0 0.0
  %6271 = vmatpush.msra.mxu0 0.0
  %6272 = vmatpush.msra.mxu0 0.0
  %6273 = vmatpush.msra.mxu0 0.0
  %6274 = vmatpush.msra.mxu0 0.0
  %6275 = vmatpush.msra.mxu0 0.0
  %6276 = vmatpush.msra.mxu0 0.0
  %6277 = vmatpush.msra.mxu0 0.0
  %6278 = vmatpush.msra.mxu0 0.0
  %6279 = vmatpush.msra.mxu0 0.0
  %6280 = vmatpush.msra.mxu0 0.0
  %6281 = vmatpush.msra.mxu0 0.0
  %6282 = vmatpush.msra.mxu0 0.0
  %v6283 = vand.u32 %v71, 4294901760
  %v6284 = vsub.f32 %v71, %v6283
  %v6285 = vand.u32 %v6284, 4294901760
  %v6286 = vsub.f32 %v6284, %v6285
  %v6287 = vand.u32 %v6286, 4294901760
  %6288 = vmatpush.msra.mxu0 %v6287
  %v6289 = vand.u32 %v6229, 4294901760
  %6290 = vmatmul.f32.gmra.mxu0 %v6289
  %v6291 = vpop.f32.mrf.mxu0
  %v6292 = vadd.f32 %v6258, %v6291
  %v6293 = vand.u32 %v6232, 4294901760
  %6294 = vmatmul.f32.gmra.mxu0 %v6293
  %v6295 = vpop.f32.mrf.mxu0
  %v6296 = vadd.f32 %v6266, %v6295
  %6297 = vdwg.mxu0
  %6298 = vmatpush.msra.mxu0 0.0
  %6299 = vmatpush.msra.mxu0 0.0
  %6300 = vmatpush.msra.mxu0 0.0
  %6301 = vmatpush.msra.mxu0 0.0
  %6302 = vmatpush.msra.mxu0 0.0
  %6303 = vmatpush.msra.mxu0 0.0
  %6304 = vmatpush.msra.mxu0 0.0
  %6305 = vmatpush.msra.mxu0 0.0
  %6306 = vmatpush.msra.mxu0 0.0
  %6307 = vmatpush.msra.mxu0 0.0
  %6308 = vmatpush.msra.mxu0 0.0
  %6309 = vmatpush.msra.mxu0 0.0
  %6310 = vmatpush.msra.mxu0 0.0
  %6311 = vmatpush.msra.mxu0 0.0
  %6312 = vmatpush.msra.mxu0 0.0
  %v6313 = vand.u32 %v71, 4294901760
  %v6314 = vsub.f32 %v71, %v6313
  %6315 = vmatpush.msra.mxu0 %v6314
  %v6316 = vand.u32 %v6229, 4294901760
  %v6317 = vsub.f32 %v6229, %v6316
  %6318 = vmatmul.f32.gmra.mxu0 %v6317
  %v6319 = vpop.f32.mrf.mxu0
  %v6320 = vadd.f32 %v6292, %v6319
  %v6321 = vand.u32 %v6232, 4294901760
  %v6322 = vsub.f32 %v6232, %v6321
  %6323 = vmatmul.f32.gmra.mxu0 %v6322
  %v6324 = vpop.f32.mrf.mxu0
  %v6325 = vadd.f32 %v6296, %v6324
  %6326 = vdwg.mxu0
  %6327 = vmatpush.msra.mxu0 0.0
  %6328 = vmatpush.msra.mxu0 0.0
  %6329 = vmatpush.msra.mxu0 0.0
  %6330 = vmatpush.msra.mxu0 0.0
  %6331 = vmatpush.msra.mxu0 0.0
  %6332 = vmatpush.msra.mxu0 0.0
  %6333 = vmatpush.msra.mxu0 0.0
  %6334 = vmatpush.msra.mxu0 0.0
  %6335 = vmatpush.msra.mxu0 0.0
  %6336 = vmatpush.msra.mxu0 0.0
  %6337 = vmatpush.msra.mxu0 0.0
  %6338 = vmatpush.msra.mxu0 0.0
  %6339 = vmatpush.msra.mxu0 0.0
  %6340 = vmatpush.msra.mxu0 0.0
  %6341 = vmatpush.msra.mxu0 0.0
  %v6342 = vand.u32 %v71, 4294901760
  %6343 = vmatpush.msra.mxu0 %v6342
  %v6344 = vand.u32 %v6229, 4294901760
  %v6345 = vsub.f32 %v6229, %v6344
  %v6346 = vand.u32 %v6345, 4294901760
  %6347 = vmatmul.f32.gmra.mxu0 %v6346
  %v6348 = vpop.f32.mrf.mxu0
  %v6349 = vadd.f32 %v6320, %v6348
  %v6350 = vand.u32 %v6232, 4294901760
  %v6351 = vsub.f32 %v6232, %v6350
  %v6352 = vand.u32 %v6351, 4294901760
  %6353 = vmatmul.f32.gmra.mxu0 %v6352
  %v6354 = vpop.f32.mrf.mxu0
  %v6355 = vadd.f32 %v6325, %v6354
  %6356 = vdwg.mxu0
  %6357 = vmatpush.msra.mxu0 0.0
  %6358 = vmatpush.msra.mxu0 0.0
  %6359 = vmatpush.msra.mxu0 0.0
  %6360 = vmatpush.msra.mxu0 0.0
  %6361 = vmatpush.msra.mxu0 0.0
  %6362 = vmatpush.msra.mxu0 0.0
  %6363 = vmatpush.msra.mxu0 0.0
  %6364 = vmatpush.msra.mxu0 0.0
  %6365 = vmatpush.msra.mxu0 0.0
  %6366 = vmatpush.msra.mxu0 0.0
  %6367 = vmatpush.msra.mxu0 0.0
  %6368 = vmatpush.msra.mxu0 0.0
  %6369 = vmatpush.msra.mxu0 0.0
  %6370 = vmatpush.msra.mxu0 0.0
  %6371 = vmatpush.msra.mxu0 0.0
  %v6372 = vand.u32 %v71, 4294901760
  %v6373 = vsub.f32 %v71, %v6372
  %v6374 = vand.u32 %v6373, 4294901760
  %6375 = vmatpush.msra.mxu0 %v6374
  %v6376 = vand.u32 %v6229, 4294901760
  %6377 = vmatmul.f32.gmra.mxu0 %v6376
  %v6378 = vpop.f32.mrf.mxu0
  %v6379 = vadd.f32 %v6349, %v6378
  %v6380 = vand.u32 %v6232, 4294901760
  %6381 = vmatmul.f32.gmra.mxu0 %v6380
  %v6382 = vpop.f32.mrf.mxu0
  %v6383 = vadd.f32 %v6355, %v6382
  %6384 = vdwg.mxu0
  %6385 = vmatpush.msra.mxu0 0.0
  %6386 = vmatpush.msra.mxu0 0.0
  %6387 = vmatpush.msra.mxu0 0.0
  %6388 = vmatpush.msra.mxu0 0.0
  %6389 = vmatpush.msra.mxu0 0.0
  %6390 = vmatpush.msra.mxu0 0.0
  %6391 = vmatpush.msra.mxu0 0.0
  %6392 = vmatpush.msra.mxu0 0.0
  %6393 = vmatpush.msra.mxu0 0.0
  %6394 = vmatpush.msra.mxu0 0.0
  %6395 = vmatpush.msra.mxu0 0.0
  %6396 = vmatpush.msra.mxu0 0.0
  %6397 = vmatpush.msra.mxu0 0.0
  %6398 = vmatpush.msra.mxu0 0.0
  %6399 = vmatpush.msra.mxu0 0.0
  %v6400 = vand.u32 %v71, 4294901760
  %6401 = vmatpush.msra.mxu0 %v6400
  %v6402 = vand.u32 %v6229, 4294901760
  %6403 = vmatmul.f32.gmra.mxu0 %v6402
  %v6404 = vpop.f32.mrf.mxu0
  %v6405 = vadd.f32 %v6379, %v6404
  %v6406 = vand.u32 %v6232, 4294901760
  %6407 = vmatmul.f32.gmra.mxu0 %v6406
  %v6408 = vpop.f32.mrf.mxu0
  %v6409 = vadd.f32 %v6383, %v6408
  %6410 = vdwg.mxu0
  %v6411 = vadd.f32 %v6226, %v6405
  %v6412 = vadd.f32 %v6227, %v6409
  %v6413 = vadd.f32 %v3553, %v6411
  %v6414 = vadd.f32 %v3554, %v6412
  %v6415 = vadd.f32 %v6413, %v2966
  %v6416 = vadd.f32 %v6414, %v2966
  %v6417 = vsel %vm94, %v6415, 0.0
  %6418 = vadd.xlane.f32.xlu0 %v6417
  %v6419 = vpop.xlane.xlu0 %6418
  %v6420 = vsel %vm94, %v6416, 0.0
  %6421 = vadd.xlane.f32.xlu0 %v6420
  %v6422 = vpop.xlane.xlu0 %6421
  %v6423 = vmul.f32 %v6419, %v107
  %v6424 = vmul.f32 %v6422, %v107
  %v6425 = vsub.f32 %v6415, %v6423
  %v6426 = vsub.f32 %v6416, %v6424
  %v6427 = vmul.f32 %v6425, %v6425
  %v6428 = vmul.f32 %v6426, %v6426
  %v6429 = vsel %vm94, %v6427, 0.0
  %6430 = vadd.xlane.f32.xlu0 %v6429
  %v6431 = vpop.xlane.xlu0 %6430
  %v6432 = vsel %vm94, %v6428, 0.0
  %6433 = vadd.xlane.f32.xlu0 %v6432
  %v6434 = vpop.xlane.xlu0 %6433
  %v6435 = vmul.f32 %v6431, 0.032258064
  %v6436 = vmul.f32 %v6434, 0.032258064
  %v6437 = vmul.f32 %v2989, %v6425
  %v6438 = vmul.f32 %v2989, %v6426
  %v6439 = vrsqrt.pop %v6435
  %v6440 = vmul.f32 %v6439, %v6435
  %v6441 = vmul.f32 %v6440, %v6439
  %v6442 = vmul.f32 0.5, %v6441
  %v6443 = vsub.f32 1.5, %v6442
  %v6444 = vmul.f32 %v6439, %v6443
  %v6445 = vmul.f32 %v6435, %v6444
  %vm6446 = vcmp.eq.f32.partialorder %v6435, inf
  %v6447 = vsel %vm6446, %v6435, %v6445
  %vm6448 = vcmp.eq.f32.partialorder %v6435, 0.0
  %v6449 = vand.u32 %v6435, 2147483648
  %v6450 = vsel %vm6448, %v6449, %v6447
  %v6451 = vrsqrt.pop %v6436
  %v6452 = vmul.f32 %v6451, %v6436
  %v6453 = vmul.f32 %v6452, %v6451
  %v6454 = vmul.f32 0.5, %v6453
  %v6455 = vsub.f32 1.5, %v6454
  %v6456 = vmul.f32 %v6451, %v6455
  %v6457 = vmul.f32 %v6436, %v6456
  %vm6458 = vcmp.eq.f32.partialorder %v6436, inf
  %v6459 = vsel %vm6458, %v6436, %v6457
  %vm6460 = vcmp.eq.f32.partialorder %v6436, 0.0
  %v6461 = vand.u32 %v6436, 2147483648
  %v6462 = vsel %vm6460, %v6461, %v6459
  %v6463 = vadd.f32 %v6450, 1e-06
  %v6464 = vadd.f32 %v6462, 1e-06
  %v6465 = vrcp.pop %v6463
  %v6466 = vmul.f32 %v6463, %v6465
  %v6467 = vsub.f32 1.0, %v6466
  %v6468 = vmul.f32 %v6465, %v6467
  %v6469 = vadd.f32 %v6465, %v6468
  %vm6470 = vweird.f32 %v6463
  %vm6471 = vweird.f32 %v6465
  %vm6472 = vmor %vm6470, %vm6471
  %v6473 = vsel %vm6472, %v6465, %v6469
  %v6474 = vand.u32 2147483647, %v6463
  %vm6475 = vcmp.eq.f32.partialorder %v6474, 8.507059e+37
  %v6476 = vand.u32 %v6463, 2147483648
  %v6477 = vor.u32 1.1754944e-38, %v6476
  %v6478 = vsel %vm6475, %v6477, %v6473
  %v6479 = vmul.f32 %v6437, %v6478
  %v6480 = vrcp.pop %v6464
  %v6481 = vmul.f32 %v6464, %v6480
  %v6482 = vsub.f32 1.0, %v6481
  %v6483 = vmul.f32 %v6480, %v6482
  %v6484 = vadd.f32 %v6480, %v6483
  %vm6485 = vweird.f32 %v6464
  %vm6486 = vweird.f32 %v6480
  %vm6487 = vmor %vm6485, %vm6486
  %v6488 = vsel %vm6487, %v6480, %v6484
  %v6489 = vand.u32 2147483647, %v6464
  %vm6490 = vcmp.eq.f32.partialorder %v6489, 8.507059e+37
  %v6491 = vand.u32 %v6464, 2147483648
  %v6492 = vor.u32 1.1754944e-38, %v6491
  %v6493 = vsel %vm6490, %v6492, %v6488
  %v6494 = vmul.f32 %v6438, %v6493
  %v6495 = vadd.f32 %v6479, %v3048
  %v6496 = vadd.f32 %v6494, %v3048
  %v6498 = vsel %vm94, %v6495, 0
  %v6501 = vsel %vm94, %v6496, 0
  %6503 = vmatpush.msra.mxu0 0.0
  %6504 = vmatpush.msra.mxu0 0.0
  %6505 = vmatpush.msra.mxu0 0.0
  %6506 = vmatpush.msra.mxu0 0.0
  %6507 = vmatpush.msra.mxu0 0.0
  %6508 = vmatpush.msra.mxu0 0.0
  %6509 = vmatpush.msra.mxu0 0.0
  %6510 = vmatpush.msra.mxu0 0.0
  %6511 = vmatpush.msra.mxu0 0.0
  %6512 = vmatpush.msra.mxu0 0.0
  %6513 = vmatpush.msra.mxu0 0.0
  %6514 = vmatpush.msra.mxu0 0.0
  %v6515 = vand.u32 %v84, 4294901760
  %6516 = vmatpush.msra.mxu0 %v6515
  %v6517 = vand.u32 %v83, 4294901760
  %6518 = vmatpush.msra.mxu0 %v6517
  %v6519 = vand.u32 %v82, 4294901760
  %6520 = vmatpush.msra.mxu0 %v6519
  %v6521 = vand.u32 %v81, 4294901760
  %6522 = vmatpush.msra.mxu0 %v6521
  %v6523 = vand.u32 %v6498, 4294901760
  %v6524 = vsub.f32 %v6498, %v6523
  %v6525 = vand.u32 %v6524, 4294901760
  %v6526 = vsub.f32 %v6524, %v6525
  %v6527 = vand.u32 %v6526, 4294901760
  %6528 = vmatmul.f32.gmra.mxu0 %v6527
  %v6529 = vpop.f32.mrf.mxu0
  %v6530 = vadd.f32 %v3051, %v6529
  %v6531 = vand.u32 %v6501, 4294901760
  %v6532 = vsub.f32 %v6501, %v6531
  %v6533 = vand.u32 %v6532, 4294901760
  %v6534 = vsub.f32 %v6532, %v6533
  %v6535 = vand.u32 %v6534, 4294901760
  %6536 = vmatmul.f32.gmra.mxu0 %v6535
  %v6537 = vpop.f32.mrf.mxu0
  %v6538 = vadd.f32 %v3051, %v6537
  %6539 = vdwg.mxu0
  %6540 = vmatpush.msra.mxu0 0.0
  %6541 = vmatpush.msra.mxu0 0.0
  %6542 = vmatpush.msra.mxu0 0.0
  %6543 = vmatpush.msra.mxu0 0.0
  %6544 = vmatpush.msra.mxu0 0.0
  %6545 = vmatpush.msra.mxu0 0.0
  %6546 = vmatpush.msra.mxu0 0.0
  %6547 = vmatpush.msra.mxu0 0.0
  %6548 = vmatpush.msra.mxu0 0.0
  %6549 = vmatpush.msra.mxu0 0.0
  %6550 = vmatpush.msra.mxu0 0.0
  %6551 = vmatpush.msra.mxu0 0.0
  %v6552 = vand.u32 %v84, 4294901760
  %v6553 = vsub.f32 %v84, %v6552
  %v6554 = vand.u32 %v6553, 4294901760
  %v6555 = vsub.f32 %v6553, %v6554
  %v6556 = vand.u32 %v6555, 4294901760
  %6557 = vmatpush.msra.mxu0 %v6556
  %v6558 = vand.u32 %v83, 4294901760
  %v6559 = vsub.f32 %v83, %v6558
  %v6560 = vand.u32 %v6559, 4294901760
  %v6561 = vsub.f32 %v6559, %v6560
  %v6562 = vand.u32 %v6561, 4294901760
  %6563 = vmatpush.msra.mxu0 %v6562
  %v6564 = vand.u32 %v82, 4294901760
  %v6565 = vsub.f32 %v82, %v6564
  %v6566 = vand.u32 %v6565, 4294901760
  %v6567 = vsub.f32 %v6565, %v6566
  %v6568 = vand.u32 %v6567, 4294901760
  %6569 = vmatpush.msra.mxu0 %v6568
  %v6570 = vand.u32 %v81, 4294901760
  %v6571 = vsub.f32 %v81, %v6570
  %v6572 = vand.u32 %v6571, 4294901760
  %v6573 = vsub.f32 %v6571, %v6572
  %v6574 = vand.u32 %v6573, 4294901760
  %6575 = vmatpush.msra.mxu0 %v6574
  %v6576 = vand.u32 %v6498, 4294901760
  %6577 = vmatmul.f32.gmra.mxu0 %v6576
  %v6578 = vpop.f32.mrf.mxu0
  %v6579 = vadd.f32 %v6530, %v6578
  %v6580 = vand.u32 %v6501, 4294901760
  %6581 = vmatmul.f32.gmra.mxu0 %v6580
  %v6582 = vpop.f32.mrf.mxu0
  %v6583 = vadd.f32 %v6538, %v6582
  %6584 = vdwg.mxu0
  %6585 = vmatpush.msra.mxu0 0.0
  %6586 = vmatpush.msra.mxu0 0.0
  %6587 = vmatpush.msra.mxu0 0.0
  %6588 = vmatpush.msra.mxu0 0.0
  %6589 = vmatpush.msra.mxu0 0.0
  %6590 = vmatpush.msra.mxu0 0.0
  %6591 = vmatpush.msra.mxu0 0.0
  %6592 = vmatpush.msra.mxu0 0.0
  %6593 = vmatpush.msra.mxu0 0.0
  %6594 = vmatpush.msra.mxu0 0.0
  %6595 = vmatpush.msra.mxu0 0.0
  %6596 = vmatpush.msra.mxu0 0.0
  %v6597 = vand.u32 %v84, 4294901760
  %v6598 = vsub.f32 %v84, %v6597
  %6599 = vmatpush.msra.mxu0 %v6598
  %v6600 = vand.u32 %v83, 4294901760
  %v6601 = vsub.f32 %v83, %v6600
  %6602 = vmatpush.msra.mxu0 %v6601
  %v6603 = vand.u32 %v82, 4294901760
  %v6604 = vsub.f32 %v82, %v6603
  %6605 = vmatpush.msra.mxu0 %v6604
  %v6606 = vand.u32 %v81, 4294901760
  %v6607 = vsub.f32 %v81, %v6606
  %6608 = vmatpush.msra.mxu0 %v6607
  %v6609 = vand.u32 %v6498, 4294901760
  %v6610 = vsub.f32 %v6498, %v6609
  %6611 = vmatmul.f32.gmra.mxu0 %v6610
  %v6612 = vpop.f32.mrf.mxu0
  %v6613 = vadd.f32 %v6579, %v6612
  %v6614 = vand.u32 %v6501, 4294901760
  %v6615 = vsub.f32 %v6501, %v6614
  %6616 = vmatmul.f32.gmra.mxu0 %v6615
  %v6617 = vpop.f32.mrf.mxu0
  %v6618 = vadd.f32 %v6583, %v6617
  %6619 = vdwg.mxu0
  %6620 = vmatpush.msra.mxu0 0.0
  %6621 = vmatpush.msra.mxu0 0.0
  %6622 = vmatpush.msra.mxu0 0.0
  %6623 = vmatpush.msra.mxu0 0.0
  %6624 = vmatpush.msra.mxu0 0.0
  %6625 = vmatpush.msra.mxu0 0.0
  %6626 = vmatpush.msra.mxu0 0.0
  %6627 = vmatpush.msra.mxu0 0.0
  %6628 = vmatpush.msra.mxu0 0.0
  %6629 = vmatpush.msra.mxu0 0.0
  %6630 = vmatpush.msra.mxu0 0.0
  %6631 = vmatpush.msra.mxu0 0.0
  %v6632 = vand.u32 %v84, 4294901760
  %6633 = vmatpush.msra.mxu0 %v6632
  %v6634 = vand.u32 %v83, 4294901760
  %6635 = vmatpush.msra.mxu0 %v6634
  %v6636 = vand.u32 %v82, 4294901760
  %6637 = vmatpush.msra.mxu0 %v6636
  %v6638 = vand.u32 %v81, 4294901760
  %6639 = vmatpush.msra.mxu0 %v6638
  %v6640 = vand.u32 %v6498, 4294901760
  %v6641 = vsub.f32 %v6498, %v6640
  %v6642 = vand.u32 %v6641, 4294901760
  %6643 = vmatmul.f32.gmra.mxu0 %v6642
  %v6644 = vpop.f32.mrf.mxu0
  %v6645 = vadd.f32 %v6613, %v6644
  %v6646 = vand.u32 %v6501, 4294901760
  %v6647 = vsub.f32 %v6501, %v6646
  %v6648 = vand.u32 %v6647, 4294901760
  %6649 = vmatmul.f32.gmra.mxu0 %v6648
  %v6650 = vpop.f32.mrf.mxu0
  %v6651 = vadd.f32 %v6618, %v6650
  %6652 = vdwg.mxu0
  %6653 = vmatpush.msra.mxu0 0.0
  %6654 = vmatpush.msra.mxu0 0.0
  %6655 = vmatpush.msra.mxu0 0.0
  %6656 = vmatpush.msra.mxu0 0.0
  %6657 = vmatpush.msra.mxu0 0.0
  %6658 = vmatpush.msra.mxu0 0.0
  %6659 = vmatpush.msra.mxu0 0.0
  %6660 = vmatpush.msra.mxu0 0.0
  %6661 = vmatpush.msra.mxu0 0.0
  %6662 = vmatpush.msra.mxu0 0.0
  %6663 = vmatpush.msra.mxu0 0.0
  %6664 = vmatpush.msra.mxu0 0.0
  %v6665 = vand.u32 %v84, 4294901760
  %v6666 = vsub.f32 %v84, %v6665
  %v6667 = vand.u32 %v6666, 4294901760
  %6668 = vmatpush.msra.mxu0 %v6667
  %v6669 = vand.u32 %v83, 4294901760
  %v6670 = vsub.f32 %v83, %v6669
  %v6671 = vand.u32 %v6670, 4294901760
  %6672 = vmatpush.msra.mxu0 %v6671
  %v6673 = vand.u32 %v82, 4294901760
  %v6674 = vsub.f32 %v82, %v6673
  %v6675 = vand.u32 %v6674, 4294901760
  %6676 = vmatpush.msra.mxu0 %v6675
  %v6677 = vand.u32 %v81, 4294901760
  %v6678 = vsub.f32 %v81, %v6677
  %v6679 = vand.u32 %v6678, 4294901760
  %6680 = vmatpush.msra.mxu0 %v6679
  %v6681 = vand.u32 %v6498, 4294901760
  %6682 = vmatmul.f32.gmra.mxu0 %v6681
  %v6683 = vpop.f32.mrf.mxu0
  %v6684 = vadd.f32 %v6645, %v6683
  %v6685 = vand.u32 %v6501, 4294901760
  %6686 = vmatmul.f32.gmra.mxu0 %v6685
  %v6687 = vpop.f32.mrf.mxu0
  %v6688 = vadd.f32 %v6651, %v6687
  %6689 = vdwg.mxu0
  %6690 = vmatpush.msra.mxu0 0.0
  %6691 = vmatpush.msra.mxu0 0.0
  %6692 = vmatpush.msra.mxu0 0.0
  %6693 = vmatpush.msra.mxu0 0.0
  %6694 = vmatpush.msra.mxu0 0.0
  %6695 = vmatpush.msra.mxu0 0.0
  %6696 = vmatpush.msra.mxu0 0.0
  %6697 = vmatpush.msra.mxu0 0.0
  %6698 = vmatpush.msra.mxu0 0.0
  %6699 = vmatpush.msra.mxu0 0.0
  %6700 = vmatpush.msra.mxu0 0.0
  %6701 = vmatpush.msra.mxu0 0.0
  %v6702 = vand.u32 %v84, 4294901760
  %6703 = vmatpush.msra.mxu0 %v6702
  %v6704 = vand.u32 %v83, 4294901760
  %6705 = vmatpush.msra.mxu0 %v6704
  %v6706 = vand.u32 %v82, 4294901760
  %6707 = vmatpush.msra.mxu0 %v6706
  %v6708 = vand.u32 %v81, 4294901760
  %6709 = vmatpush.msra.mxu0 %v6708
  %v6710 = vand.u32 %v6498, 4294901760
  %6711 = vmatmul.f32.gmra.mxu0 %v6710
  %v6712 = vpop.f32.mrf.mxu0
  %v6713 = vadd.f32 %v6684, %v6712
  %v6714 = vand.u32 %v6501, 4294901760
  %6715 = vmatmul.f32.gmra.mxu0 %v6714
  %v6716 = vpop.f32.mrf.mxu0
  %v6717 = vadd.f32 %v6688, %v6716
  %6718 = vdwg.mxu0
  %v6719 = vmax.f32 %v6713, 0.0
  %v6720 = vmax.f32 %v6717, 0.0
  %v6722 = vsel %vm1557, %v6719, 0
  %v6725 = vsel %vm1557, %v6720, 0
  %6727 = vmatpush.msra.mxu0 0.0
  %6728 = vmatpush.msra.mxu0 0.0
  %6729 = vmatpush.msra.mxu0 0.0
  %6730 = vmatpush.msra.mxu0 0.0
  %6731 = vmatpush.msra.mxu0 0.0
  %6732 = vmatpush.msra.mxu0 0.0
  %6733 = vmatpush.msra.mxu0 0.0
  %6734 = vmatpush.msra.mxu0 0.0
  %v6735 = vand.u32 %v79, 4294901760
  %6736 = vmatpush.msra.mxu0 %v6735
  %v6737 = vand.u32 %v78, 4294901760
  %6738 = vmatpush.msra.mxu0 %v6737
  %v6739 = vand.u32 %v77, 4294901760
  %6740 = vmatpush.msra.mxu0 %v6739
  %v6741 = vand.u32 %v76, 4294901760
  %6742 = vmatpush.msra.mxu0 %v6741
  %v6743 = vand.u32 %v75, 4294901760
  %6744 = vmatpush.msra.mxu0 %v6743
  %v6745 = vand.u32 %v74, 4294901760
  %6746 = vmatpush.msra.mxu0 %v6745
  %v6747 = vand.u32 %v73, 4294901760
  %6748 = vmatpush.msra.mxu0 %v6747
  %v6749 = vand.u32 %v72, 4294901760
  %6750 = vmatpush.msra.mxu0 %v6749
  %v6751 = vand.u32 %v6722, 4294901760
  %v6752 = vsub.f32 %v6722, %v6751
  %v6753 = vand.u32 %v6752, 4294901760
  %v6754 = vsub.f32 %v6752, %v6753
  %v6755 = vand.u32 %v6754, 4294901760
  %6756 = vmatmul.f32.gmra.mxu0 %v6755
  %v6757 = vpop.f32.mrf.mxu0
  %v6758 = vadd.f32 0.0, %v6757
  %v6759 = vand.u32 %v6725, 4294901760
  %v6760 = vsub.f32 %v6725, %v6759
  %v6761 = vand.u32 %v6760, 4294901760
  %v6762 = vsub.f32 %v6760, %v6761
  %v6763 = vand.u32 %v6762, 4294901760
  %6764 = vmatmul.f32.gmra.mxu0 %v6763
  %v6765 = vpop.f32.mrf.mxu0
  %v6766 = vadd.f32 0.0, %v6765
  %6767 = vdwg.mxu0
  %6768 = vmatpush.msra.mxu0 0.0
  %6769 = vmatpush.msra.mxu0 0.0
  %6770 = vmatpush.msra.mxu0 0.0
  %6771 = vmatpush.msra.mxu0 0.0
  %6772 = vmatpush.msra.mxu0 0.0
  %6773 = vmatpush.msra.mxu0 0.0
  %6774 = vmatpush.msra.mxu0 0.0
  %6775 = vmatpush.msra.mxu0 0.0
  %v6776 = vand.u32 %v79, 4294901760
  %v6777 = vsub.f32 %v79, %v6776
  %v6778 = vand.u32 %v6777, 4294901760
  %v6779 = vsub.f32 %v6777, %v6778
  %v6780 = vand.u32 %v6779, 4294901760
  %6781 = vmatpush.msra.mxu0 %v6780
  %v6782 = vand.u32 %v78, 4294901760
  %v6783 = vsub.f32 %v78, %v6782
  %v6784 = vand.u32 %v6783, 4294901760
  %v6785 = vsub.f32 %v6783, %v6784
  %v6786 = vand.u32 %v6785, 4294901760
  %6787 = vmatpush.msra.mxu0 %v6786
  %v6788 = vand.u32 %v77, 4294901760
  %v6789 = vsub.f32 %v77, %v6788
  %v6790 = vand.u32 %v6789, 4294901760
  %v6791 = vsub.f32 %v6789, %v6790
  %v6792 = vand.u32 %v6791, 4294901760
  %6793 = vmatpush.msra.mxu0 %v6792
  %v6794 = vand.u32 %v76, 4294901760
  %v6795 = vsub.f32 %v76, %v6794
  %v6796 = vand.u32 %v6795, 4294901760
  %v6797 = vsub.f32 %v6795, %v6796
  %v6798 = vand.u32 %v6797, 4294901760
  %6799 = vmatpush.msra.mxu0 %v6798
  %v6800 = vand.u32 %v75, 4294901760
  %v6801 = vsub.f32 %v75, %v6800
  %v6802 = vand.u32 %v6801, 4294901760
  %v6803 = vsub.f32 %v6801, %v6802
  %v6804 = vand.u32 %v6803, 4294901760
  %6805 = vmatpush.msra.mxu0 %v6804
  %v6806 = vand.u32 %v74, 4294901760
  %v6807 = vsub.f32 %v74, %v6806
  %v6808 = vand.u32 %v6807, 4294901760
  %v6809 = vsub.f32 %v6807, %v6808
  %v6810 = vand.u32 %v6809, 4294901760
  %6811 = vmatpush.msra.mxu0 %v6810
  %v6812 = vand.u32 %v73, 4294901760
  %v6813 = vsub.f32 %v73, %v6812
  %v6814 = vand.u32 %v6813, 4294901760
  %v6815 = vsub.f32 %v6813, %v6814
  %v6816 = vand.u32 %v6815, 4294901760
  %6817 = vmatpush.msra.mxu0 %v6816
  %v6818 = vand.u32 %v72, 4294901760
  %v6819 = vsub.f32 %v72, %v6818
  %v6820 = vand.u32 %v6819, 4294901760
  %v6821 = vsub.f32 %v6819, %v6820
  %v6822 = vand.u32 %v6821, 4294901760
  %6823 = vmatpush.msra.mxu0 %v6822
  %v6824 = vand.u32 %v6722, 4294901760
  %6825 = vmatmul.f32.gmra.mxu0 %v6824
  %v6826 = vpop.f32.mrf.mxu0
  %v6827 = vadd.f32 %v6758, %v6826
  %v6828 = vand.u32 %v6725, 4294901760
  %6829 = vmatmul.f32.gmra.mxu0 %v6828
  %v6830 = vpop.f32.mrf.mxu0
  %v6831 = vadd.f32 %v6766, %v6830
  %6832 = vdwg.mxu0
  %6833 = vmatpush.msra.mxu0 0.0
  %6834 = vmatpush.msra.mxu0 0.0
  %6835 = vmatpush.msra.mxu0 0.0
  %6836 = vmatpush.msra.mxu0 0.0
  %6837 = vmatpush.msra.mxu0 0.0
  %6838 = vmatpush.msra.mxu0 0.0
  %6839 = vmatpush.msra.mxu0 0.0
  %6840 = vmatpush.msra.mxu0 0.0
  %v6841 = vand.u32 %v79, 4294901760
  %v6842 = vsub.f32 %v79, %v6841
  %6843 = vmatpush.msra.mxu0 %v6842
  %v6844 = vand.u32 %v78, 4294901760
  %v6845 = vsub.f32 %v78, %v6844
  %6846 = vmatpush.msra.mxu0 %v6845
  %v6847 = vand.u32 %v77, 4294901760
  %v6848 = vsub.f32 %v77, %v6847
  %6849 = vmatpush.msra.mxu0 %v6848
  %v6850 = vand.u32 %v76, 4294901760
  %v6851 = vsub.f32 %v76, %v6850
  %6852 = vmatpush.msra.mxu0 %v6851
  %v6853 = vand.u32 %v75, 4294901760
  %v6854 = vsub.f32 %v75, %v6853
  %6855 = vmatpush.msra.mxu0 %v6854
  %v6856 = vand.u32 %v74, 4294901760
  %v6857 = vsub.f32 %v74, %v6856
  %6858 = vmatpush.msra.mxu0 %v6857
  %v6859 = vand.u32 %v73, 4294901760
  %v6860 = vsub.f32 %v73, %v6859
  %6861 = vmatpush.msra.mxu0 %v6860
  %v6862 = vand.u32 %v72, 4294901760
  %v6863 = vsub.f32 %v72, %v6862
  %6864 = vmatpush.msra.mxu0 %v6863
  %v6865 = vand.u32 %v6722, 4294901760
  %v6866 = vsub.f32 %v6722, %v6865
  %6867 = vmatmul.f32.gmra.mxu0 %v6866
  %v6868 = vpop.f32.mrf.mxu0
  %v6869 = vadd.f32 %v6827, %v6868
  %v6870 = vand.u32 %v6725, 4294901760
  %v6871 = vsub.f32 %v6725, %v6870
  %6872 = vmatmul.f32.gmra.mxu0 %v6871
  %v6873 = vpop.f32.mrf.mxu0
  %v6874 = vadd.f32 %v6831, %v6873
  %6875 = vdwg.mxu0
  %6876 = vmatpush.msra.mxu0 0.0
  %6877 = vmatpush.msra.mxu0 0.0
  %6878 = vmatpush.msra.mxu0 0.0
  %6879 = vmatpush.msra.mxu0 0.0
  %6880 = vmatpush.msra.mxu0 0.0
  %6881 = vmatpush.msra.mxu0 0.0
  %6882 = vmatpush.msra.mxu0 0.0
  %6883 = vmatpush.msra.mxu0 0.0
  %v6884 = vand.u32 %v79, 4294901760
  %6885 = vmatpush.msra.mxu0 %v6884
  %v6886 = vand.u32 %v78, 4294901760
  %6887 = vmatpush.msra.mxu0 %v6886
  %v6888 = vand.u32 %v77, 4294901760
  %6889 = vmatpush.msra.mxu0 %v6888
  %v6890 = vand.u32 %v76, 4294901760
  %6891 = vmatpush.msra.mxu0 %v6890
  %v6892 = vand.u32 %v75, 4294901760
  %6893 = vmatpush.msra.mxu0 %v6892
  %v6894 = vand.u32 %v74, 4294901760
  %6895 = vmatpush.msra.mxu0 %v6894
  %v6896 = vand.u32 %v73, 4294901760
  %6897 = vmatpush.msra.mxu0 %v6896
  %v6898 = vand.u32 %v72, 4294901760
  %6899 = vmatpush.msra.mxu0 %v6898
  %v6900 = vand.u32 %v6722, 4294901760
  %v6901 = vsub.f32 %v6722, %v6900
  %v6902 = vand.u32 %v6901, 4294901760
  %6903 = vmatmul.f32.gmra.mxu0 %v6902
  %v6904 = vpop.f32.mrf.mxu0
  %v6905 = vadd.f32 %v6869, %v6904
  %v6906 = vand.u32 %v6725, 4294901760
  %v6907 = vsub.f32 %v6725, %v6906
  %v6908 = vand.u32 %v6907, 4294901760
  %6909 = vmatmul.f32.gmra.mxu0 %v6908
  %v6910 = vpop.f32.mrf.mxu0
  %v6911 = vadd.f32 %v6874, %v6910
  %6912 = vdwg.mxu0
  %6913 = vmatpush.msra.mxu0 0.0
  %6914 = vmatpush.msra.mxu0 0.0
  %6915 = vmatpush.msra.mxu0 0.0
  %6916 = vmatpush.msra.mxu0 0.0
  %6917 = vmatpush.msra.mxu0 0.0
  %6918 = vmatpush.msra.mxu0 0.0
  %6919 = vmatpush.msra.mxu0 0.0
  %6920 = vmatpush.msra.mxu0 0.0
  %v6921 = vand.u32 %v79, 4294901760
  %v6922 = vsub.f32 %v79, %v6921
  %v6923 = vand.u32 %v6922, 4294901760
  %6924 = vmatpush.msra.mxu0 %v6923
  %v6925 = vand.u32 %v78, 4294901760
  %v6926 = vsub.f32 %v78, %v6925
  %v6927 = vand.u32 %v6926, 4294901760
  %6928 = vmatpush.msra.mxu0 %v6927
  %v6929 = vand.u32 %v77, 4294901760
  %v6930 = vsub.f32 %v77, %v6929
  %v6931 = vand.u32 %v6930, 4294901760
  %6932 = vmatpush.msra.mxu0 %v6931
  %v6933 = vand.u32 %v76, 4294901760
  %v6934 = vsub.f32 %v76, %v6933
  %v6935 = vand.u32 %v6934, 4294901760
  %6936 = vmatpush.msra.mxu0 %v6935
  %v6937 = vand.u32 %v75, 4294901760
  %v6938 = vsub.f32 %v75, %v6937
  %v6939 = vand.u32 %v6938, 4294901760
  %6940 = vmatpush.msra.mxu0 %v6939
  %v6941 = vand.u32 %v74, 4294901760
  %v6942 = vsub.f32 %v74, %v6941
  %v6943 = vand.u32 %v6942, 4294901760
  %6944 = vmatpush.msra.mxu0 %v6943
  %v6945 = vand.u32 %v73, 4294901760
  %v6946 = vsub.f32 %v73, %v6945
  %v6947 = vand.u32 %v6946, 4294901760
  %6948 = vmatpush.msra.mxu0 %v6947
  %v6949 = vand.u32 %v72, 4294901760
  %v6950 = vsub.f32 %v72, %v6949
  %v6951 = vand.u32 %v6950, 4294901760
  %6952 = vmatpush.msra.mxu0 %v6951
  %v6953 = vand.u32 %v6722, 4294901760
  %6954 = vmatmul.f32.gmra.mxu0 %v6953
  %v6955 = vpop.f32.mrf.mxu0
  %v6956 = vadd.f32 %v6905, %v6955
  %v6957 = vand.u32 %v6725, 4294901760
  %6958 = vmatmul.f32.gmra.mxu0 %v6957
  %v6959 = vpop.f32.mrf.mxu0
  %v6960 = vadd.f32 %v6911, %v6959
  %6961 = vdwg.mxu0
  %6962 = vmatpush.msra.mxu0 0.0
  %6963 = vmatpush.msra.mxu0 0.0
  %6964 = vmatpush.msra.mxu0 0.0
  %6965 = vmatpush.msra.mxu0 0.0
  %6966 = vmatpush.msra.mxu0 0.0
  %6967 = vmatpush.msra.mxu0 0.0
  %6968 = vmatpush.msra.mxu0 0.0
  %6969 = vmatpush.msra.mxu0 0.0
  %v6970 = vand.u32 %v79, 4294901760
  %6971 = vmatpush.msra.mxu0 %v6970
  %v6972 = vand.u32 %v78, 4294901760
  %6973 = vmatpush.msra.mxu0 %v6972
  %v6974 = vand.u32 %v77, 4294901760
  %6975 = vmatpush.msra.mxu0 %v6974
  %v6976 = vand.u32 %v76, 4294901760
  %6977 = vmatpush.msra.mxu0 %v6976
  %v6978 = vand.u32 %v75, 4294901760
  %6979 = vmatpush.msra.mxu0 %v6978
  %v6980 = vand.u32 %v74, 4294901760
  %6981 = vmatpush.msra.mxu0 %v6980
  %v6982 = vand.u32 %v73, 4294901760
  %6983 = vmatpush.msra.mxu0 %v6982
  %v6984 = vand.u32 %v72, 4294901760
  %6985 = vmatpush.msra.mxu0 %v6984
  %v6986 = vand.u32 %v6722, 4294901760
  %6987 = vmatmul.f32.gmra.mxu0 %v6986
  %v6988 = vpop.f32.mrf.mxu0
  %v6989 = vadd.f32 %v6956, %v6988
  %v6990 = vand.u32 %v6725, 4294901760
  %6991 = vmatmul.f32.gmra.mxu0 %v6990
  %v6992 = vpop.f32.mrf.mxu0
  %v6993 = vadd.f32 %v6960, %v6992
  %6994 = vdwg.mxu0
  %v6995 = vadd.f32 %v6415, %v6989
  %v6996 = vadd.f32 %v6416, %v6993
  %v6997 = vadd.f32 %v6995, %v3552
  %v6998 = vadd.f32 %v6996, %v3552
  %v6999 = vsel %vm94, %v6997, 0.0
  %7000 = vadd.xlane.f32.xlu0 %v6999
  %v7001 = vpop.xlane.xlu0 %7000
  %v7002 = vsel %vm94, %v6998, 0.0
  %7003 = vadd.xlane.f32.xlu0 %v7002
  %v7004 = vpop.xlane.xlu0 %7003
  %v7005 = vmul.f32 %v7001, %v107
  %v7006 = vmul.f32 %v7004, %v107
  %v7007 = vsub.f32 %v6997, %v7005
  %v7008 = vsub.f32 %v6998, %v7006
  %v7009 = vmul.f32 %v7007, %v7007
  %v7010 = vmul.f32 %v7008, %v7008
  %v7011 = vsel %vm94, %v7009, 0.0
  %7012 = vadd.xlane.f32.xlu0 %v7011
  %v7013 = vpop.xlane.xlu0 %7012
  %v7014 = vsel %vm94, %v7010, 0.0
  %7015 = vadd.xlane.f32.xlu0 %v7014
  %v7016 = vpop.xlane.xlu0 %7015
  %v7017 = vmul.f32 %v7013, 0.032258064
  %v7018 = vmul.f32 %v7016, 0.032258064
  %v7019 = vperm.slane %v80, 4
  %v7020 = vmul.f32 %v7019, %v7007
  %v7021 = vmul.f32 %v7019, %v7008
  %v7022 = vrsqrt.pop %v7017
  %v7023 = vmul.f32 %v7022, %v7017
  %v7024 = vmul.f32 %v7023, %v7022
  %v7025 = vmul.f32 0.5, %v7024
  %v7026 = vsub.f32 1.5, %v7025
  %v7027 = vmul.f32 %v7022, %v7026
  %v7028 = vmul.f32 %v7017, %v7027
  %vm7029 = vcmp.eq.f32.partialorder %v7017, inf
  %v7030 = vsel %vm7029, %v7017, %v7028
  %vm7031 = vcmp.eq.f32.partialorder %v7017, 0.0
  %v7032 = vand.u32 %v7017, 2147483648
  %v7033 = vsel %vm7031, %v7032, %v7030
  %v7034 = vrsqrt.pop %v7018
  %v7035 = vmul.f32 %v7034, %v7018
  %v7036 = vmul.f32 %v7035, %v7034
  %v7037 = vmul.f32 0.5, %v7036
  %v7038 = vsub.f32 1.5, %v7037
  %v7039 = vmul.f32 %v7034, %v7038
  %v7040 = vmul.f32 %v7018, %v7039
  %vm7041 = vcmp.eq.f32.partialorder %v7018, inf
  %v7042 = vsel %vm7041, %v7018, %v7040
  %vm7043 = vcmp.eq.f32.partialorder %v7018, 0.0
  %v7044 = vand.u32 %v7018, 2147483648
  %v7045 = vsel %vm7043, %v7044, %v7042
  %v7046 = vadd.f32 %v7033, 1e-06
  %v7047 = vadd.f32 %v7045, 1e-06
  %v7048 = vrcp.pop %v7046
  %v7049 = vmul.f32 %v7046, %v7048
  %v7050 = vsub.f32 1.0, %v7049
  %v7051 = vmul.f32 %v7048, %v7050
  %v7052 = vadd.f32 %v7048, %v7051
  %vm7053 = vweird.f32 %v7046
  %vm7054 = vweird.f32 %v7048
  %vm7055 = vmor %vm7053, %vm7054
  %v7056 = vsel %vm7055, %v7048, %v7052
  %v7057 = vand.u32 2147483647, %v7046
  %vm7058 = vcmp.eq.f32.partialorder %v7057, 8.507059e+37
  %v7059 = vand.u32 %v7046, 2147483648
  %v7060 = vor.u32 1.1754944e-38, %v7059
  %v7061 = vsel %vm7058, %v7060, %v7056
  %v7062 = vmul.f32 %v7020, %v7061
  %v7063 = vrcp.pop %v7047
  %v7064 = vmul.f32 %v7047, %v7063
  %v7065 = vsub.f32 1.0, %v7064
  %v7066 = vmul.f32 %v7063, %v7065
  %v7067 = vadd.f32 %v7063, %v7066
  %vm7068 = vweird.f32 %v7047
  %vm7069 = vweird.f32 %v7063
  %vm7070 = vmor %vm7068, %vm7069
  %v7071 = vsel %vm7070, %v7063, %v7067
  %v7072 = vand.u32 2147483647, %v7047
  %vm7073 = vcmp.eq.f32.partialorder %v7072, 8.507059e+37
  %v7074 = vand.u32 %v7047, 2147483648
  %v7075 = vor.u32 1.1754944e-38, %v7074
  %v7076 = vsel %vm7073, %v7075, %v7071
  %v7077 = vmul.f32 %v7021, %v7076
  %v7078 = vperm.slane %v80, 5
  %v7079 = vadd.f32 %v7062, %v7078
  %v7080 = vadd.f32 %v7077, %v7078
  %v7081 = vld [vmem:[%s4] sm:$0xff]
  %v7082 = vld [vmem:[%s4 + $0x8] sm:$0xff]
  %vm7083 = vcmask 7168
  %v7084 = vsel %vm7083, %v7081, 0.0
  %v7085 = vrot.slane %v7084, 4
  %v7086 = vadd.f32 %v7084, %v7085
  %v7087 = vrot.slane %v7086, 2
  %v7088 = vadd.f32 %v7086, %v7087
  %v7089 = vrot.slane %v7088, 1
  %v7090 = vadd.f32 %v7088, %v7089
  %7092 = vset.pattern.permute.xlu0 0
  %7093 = vperm.xlu0 %7092, %v7081
  %v7094 = vpop.permute.xlu0 %7093
  %v7096 = vmul.f32 %v7079, %v7094
  %v7097 = vsel %vm94, %v7096, 0.0
  %v7098 = vrot.slane %v7097, 4
  %v7099 = vadd.f32 %v7097, %v7098
  %v7100 = vrot.slane %v7099, 2
  %v7101 = vadd.f32 %v7099, %v7100
  %v7102 = vrot.slane %v7101, 1
  %v7103 = vadd.f32 %v7101, %v7102
  %7105 = vset.pattern.permute.xlu0 0
  %7106 = vperm.xlu0 %7105, %v7090
  %v7107 = vpop.permute.xlu0 %7106
  %v7109 = vrcp.pop %v7107
  %v7110 = vmul.f32 %v7107, %v7109
  %v7111 = vsub.f32 1.0, %v7110
  %v7112 = vmul.f32 %v7109, %v7111
  %v7113 = vadd.f32 %v7109, %v7112
  %vm7114 = vweird.f32 %v7107
  %vm7115 = vweird.f32 %v7109
  %vm7116 = vmor %vm7114, %vm7115
  %v7117 = vsel %vm7116, %v7109, %v7113
  %v7118 = vand.u32 2147483647, %v7107
  %vm7119 = vcmp.eq.f32.partialorder %v7118, 8.507059e+37
  %v7120 = vand.u32 %v7107, 2147483648
  %v7121 = vor.u32 1.1754944e-38, %v7120
  %v7122 = vsel %vm7119, %v7121, %v7117
  %v7123 = vmul.f32 %v7103, %v7122
  %v7124 = vsub.f32 1.0, %v7081
  %v7125 = vmul.f32 %v7124, -1e+09
  %7127 = vset.pattern.permute.xlu0 0
  %7128 = vperm.xlu0 %7127, %v7125
  %v7129 = vpop.permute.xlu0 %7128
  %v7131 = vadd.f32 %v7079, %v7129
  %v7132 = vsel %vm94, %v7131, -inf
  %v7133 = vrot.slane %v7132, 4
  %v7134 = vmax.f32 %v7132, %v7133
  %v7135 = vrot.slane %v7134, 2
  %v7136 = vmax.f32 %v7134, %v7135
  %v7137 = vrot.slane %v7136, 1
  %v7138 = vmax.f32 %v7136, %v7137
  %v7139 = vsel %vm7083, %v7082, 0.0
  %v7140 = vrot.slane %v7139, 4
  %v7141 = vadd.f32 %v7139, %v7140
  %v7142 = vrot.slane %v7141, 2
  %v7143 = vadd.f32 %v7141, %v7142
  %v7144 = vrot.slane %v7143, 1
  %v7145 = vadd.f32 %v7143, %v7144
  %7147 = vset.pattern.permute.xlu0 0
  %7148 = vperm.xlu0 %7147, %v7082
  %v7149 = vpop.permute.xlu0 %7148
  %v7151 = vmul.f32 %v7080, %v7149
  %v7152 = vsel %vm94, %v7151, 0.0
  %v7153 = vrot.slane %v7152, 4
  %v7154 = vadd.f32 %v7152, %v7153
  %v7155 = vrot.slane %v7154, 2
  %v7156 = vadd.f32 %v7154, %v7155
  %v7157 = vrot.slane %v7156, 1
  %v7158 = vadd.f32 %v7156, %v7157
  %7160 = vset.pattern.permute.xlu0 0
  %7161 = vperm.xlu0 %7160, %v7145
  %v7162 = vpop.permute.xlu0 %7161
  %v7164 = vrcp.pop %v7162
  %v7165 = vmul.f32 %v7162, %v7164
  %v7166 = vsub.f32 1.0, %v7165
  %v7167 = vmul.f32 %v7164, %v7166
  %v7168 = vadd.f32 %v7164, %v7167
  %vm7169 = vweird.f32 %v7162
  %vm7170 = vweird.f32 %v7164
  %vm7171 = vmor %vm7169, %vm7170
  %v7172 = vsel %vm7171, %v7164, %v7168
  %v7173 = vand.u32 2147483647, %v7162
  %vm7174 = vcmp.eq.f32.partialorder %v7173, 8.507059e+37
  %v7175 = vand.u32 %v7162, 2147483648
  %v7176 = vor.u32 1.1754944e-38, %v7175
  %v7177 = vsel %vm7174, %v7176, %v7172
  %v7178 = vmul.f32 %v7158, %v7177
  %v7179 = vsub.f32 1.0, %v7082
  %v7180 = vmul.f32 %v7179, -1e+09
  %7182 = vset.pattern.permute.xlu0 0
  %7183 = vperm.xlu0 %7182, %v7180
  %v7184 = vpop.permute.xlu0 %7183
  %v7186 = vadd.f32 %v7080, %v7184
  %v7187 = vsel %vm94, %v7186, -inf
  %v7188 = vrot.slane %v7187, 4
  %v7189 = vmax.f32 %v7187, %v7188
  %v7190 = vrot.slane %v7189, 2
  %v7191 = vmax.f32 %v7189, %v7190
  %v7192 = vrot.slane %v7191, 1
  %v7193 = vmax.f32 %v7191, %v7192
  %vm7194 = vcmask 1040384
  %v7195 = vsel %vm7194, %v7123, %v7178
  %v7196 = vsel %vm7194, %v7138, %v7193
  %v7197 = vld [vmem:[%s8] sm:$0xff]
  %v7198 = vld [vmem:[%s8 + $0x8] sm:$0xff]
  %v7199 = vld [vmem:[%s8 + $0x10] sm:$0xff]
  %v7200 = vld [vmem:[%s8 + $0x18] sm:$0xff]
  %v7201 = vld [vmem:[%s8 + $0x20] sm:$0xff]
  %v7202 = vld [vmem:[%s8 + $0x28] sm:$0xff]
  %v7203 = vld [vmem:[%s8 + $0x30] sm:$0xff]
  %v7204 = vld [vmem:[%s8 + $0x38] sm:$0xff]
  %v7205 = vld [vmem:[%s8 + $0x40] sm:$0x1]
  %v7207 = vsel %vm94, %v7196, 0
  %7209 = vmatpush.msra.mxu0 0.0
  %7210 = vmatpush.msra.mxu0 0.0
  %7211 = vmatpush.msra.mxu0 0.0
  %7212 = vmatpush.msra.mxu0 0.0
  %7213 = vmatpush.msra.mxu0 0.0
  %7214 = vmatpush.msra.mxu0 0.0
  %7215 = vmatpush.msra.mxu0 0.0
  %7216 = vmatpush.msra.mxu0 0.0
  %7217 = vmatpush.msra.mxu0 0.0
  %7218 = vmatpush.msra.mxu0 0.0
  %7219 = vmatpush.msra.mxu0 0.0
  %7220 = vmatpush.msra.mxu0 0.0
  %v7221 = vand.u32 %v7204, 4294901760
  %7222 = vmatpush.msra.mxu0 %v7221
  %v7223 = vand.u32 %v7203, 4294901760
  %7224 = vmatpush.msra.mxu0 %v7223
  %v7225 = vand.u32 %v7202, 4294901760
  %7226 = vmatpush.msra.mxu0 %v7225
  %v7227 = vand.u32 %v7201, 4294901760
  %7228 = vmatpush.msra.mxu0 %v7227
  %v7229 = vand.u32 %v7207, 4294901760
  %v7230 = vsub.f32 %v7207, %v7229
  %v7231 = vand.u32 %v7230, 4294901760
  %v7232 = vsub.f32 %v7230, %v7231
  %v7233 = vand.u32 %v7232, 4294901760
  %7234 = vmatmul.f32.gmra.mxu0 %v7233
  %v7235 = vpop.f32.mrf.mxu0
  %v7236 = vadd.f32 0.0, %v7235
  %7237 = vdwg.mxu0
  %7238 = vmatpush.msra.mxu0 0.0
  %7239 = vmatpush.msra.mxu0 0.0
  %7240 = vmatpush.msra.mxu0 0.0
  %7241 = vmatpush.msra.mxu0 0.0
  %7242 = vmatpush.msra.mxu0 0.0
  %7243 = vmatpush.msra.mxu0 0.0
  %7244 = vmatpush.msra.mxu0 0.0
  %7245 = vmatpush.msra.mxu0 0.0
  %7246 = vmatpush.msra.mxu0 0.0
  %7247 = vmatpush.msra.mxu0 0.0
  %7248 = vmatpush.msra.mxu0 0.0
  %7249 = vmatpush.msra.mxu0 0.0
  %v7250 = vand.u32 %v7204, 4294901760
  %v7251 = vsub.f32 %v7204, %v7250
  %v7252 = vand.u32 %v7251, 4294901760
  %v7253 = vsub.f32 %v7251, %v7252
  %v7254 = vand.u32 %v7253, 4294901760
  %7255 = vmatpush.msra.mxu0 %v7254
  %v7256 = vand.u32 %v7203, 4294901760
  %v7257 = vsub.f32 %v7203, %v7256
  %v7258 = vand.u32 %v7257, 4294901760
  %v7259 = vsub.f32 %v7257, %v7258
  %v7260 = vand.u32 %v7259, 4294901760
  %7261 = vmatpush.msra.mxu0 %v7260
  %v7262 = vand.u32 %v7202, 4294901760
  %v7263 = vsub.f32 %v7202, %v7262
  %v7264 = vand.u32 %v7263, 4294901760
  %v7265 = vsub.f32 %v7263, %v7264
  %v7266 = vand.u32 %v7265, 4294901760
  %7267 = vmatpush.msra.mxu0 %v7266
  %v7268 = vand.u32 %v7201, 4294901760
  %v7269 = vsub.f32 %v7201, %v7268
  %v7270 = vand.u32 %v7269, 4294901760
  %v7271 = vsub.f32 %v7269, %v7270
  %v7272 = vand.u32 %v7271, 4294901760
  %7273 = vmatpush.msra.mxu0 %v7272
  %v7274 = vand.u32 %v7207, 4294901760
  %7275 = vmatmul.f32.gmra.mxu0 %v7274
  %v7276 = vpop.f32.mrf.mxu0
  %v7277 = vadd.f32 %v7236, %v7276
  %7278 = vdwg.mxu0
  %7279 = vmatpush.msra.mxu0 0.0
  %7280 = vmatpush.msra.mxu0 0.0
  %7281 = vmatpush.msra.mxu0 0.0
  %7282 = vmatpush.msra.mxu0 0.0
  %7283 = vmatpush.msra.mxu0 0.0
  %7284 = vmatpush.msra.mxu0 0.0
  %7285 = vmatpush.msra.mxu0 0.0
  %7286 = vmatpush.msra.mxu0 0.0
  %7287 = vmatpush.msra.mxu0 0.0
  %7288 = vmatpush.msra.mxu0 0.0
  %7289 = vmatpush.msra.mxu0 0.0
  %7290 = vmatpush.msra.mxu0 0.0
  %v7291 = vand.u32 %v7204, 4294901760
  %v7292 = vsub.f32 %v7204, %v7291
  %7293 = vmatpush.msra.mxu0 %v7292
  %v7294 = vand.u32 %v7203, 4294901760
  %v7295 = vsub.f32 %v7203, %v7294
  %7296 = vmatpush.msra.mxu0 %v7295
  %v7297 = vand.u32 %v7202, 4294901760
  %v7298 = vsub.f32 %v7202, %v7297
  %7299 = vmatpush.msra.mxu0 %v7298
  %v7300 = vand.u32 %v7201, 4294901760
  %v7301 = vsub.f32 %v7201, %v7300
  %7302 = vmatpush.msra.mxu0 %v7301
  %v7303 = vand.u32 %v7207, 4294901760
  %v7304 = vsub.f32 %v7207, %v7303
  %7305 = vmatmul.f32.gmra.mxu0 %v7304
  %v7306 = vpop.f32.mrf.mxu0
  %v7307 = vadd.f32 %v7277, %v7306
  %7308 = vdwg.mxu0
  %7309 = vmatpush.msra.mxu0 0.0
  %7310 = vmatpush.msra.mxu0 0.0
  %7311 = vmatpush.msra.mxu0 0.0
  %7312 = vmatpush.msra.mxu0 0.0
  %7313 = vmatpush.msra.mxu0 0.0
  %7314 = vmatpush.msra.mxu0 0.0
  %7315 = vmatpush.msra.mxu0 0.0
  %7316 = vmatpush.msra.mxu0 0.0
  %7317 = vmatpush.msra.mxu0 0.0
  %7318 = vmatpush.msra.mxu0 0.0
  %7319 = vmatpush.msra.mxu0 0.0
  %7320 = vmatpush.msra.mxu0 0.0
  %v7321 = vand.u32 %v7204, 4294901760
  %7322 = vmatpush.msra.mxu0 %v7321
  %v7323 = vand.u32 %v7203, 4294901760
  %7324 = vmatpush.msra.mxu0 %v7323
  %v7325 = vand.u32 %v7202, 4294901760
  %7326 = vmatpush.msra.mxu0 %v7325
  %v7327 = vand.u32 %v7201, 4294901760
  %7328 = vmatpush.msra.mxu0 %v7327
  %v7329 = vand.u32 %v7207, 4294901760
  %v7330 = vsub.f32 %v7207, %v7329
  %v7331 = vand.u32 %v7330, 4294901760
  %7332 = vmatmul.f32.gmra.mxu0 %v7331
  %v7333 = vpop.f32.mrf.mxu0
  %v7334 = vadd.f32 %v7307, %v7333
  %7335 = vdwg.mxu0
  %7336 = vmatpush.msra.mxu0 0.0
  %7337 = vmatpush.msra.mxu0 0.0
  %7338 = vmatpush.msra.mxu0 0.0
  %7339 = vmatpush.msra.mxu0 0.0
  %7340 = vmatpush.msra.mxu0 0.0
  %7341 = vmatpush.msra.mxu0 0.0
  %7342 = vmatpush.msra.mxu0 0.0
  %7343 = vmatpush.msra.mxu0 0.0
  %7344 = vmatpush.msra.mxu0 0.0
  %7345 = vmatpush.msra.mxu0 0.0
  %7346 = vmatpush.msra.mxu0 0.0
  %7347 = vmatpush.msra.mxu0 0.0
  %v7348 = vand.u32 %v7204, 4294901760
  %v7349 = vsub.f32 %v7204, %v7348
  %v7350 = vand.u32 %v7349, 4294901760
  %7351 = vmatpush.msra.mxu0 %v7350
  %v7352 = vand.u32 %v7203, 4294901760
  %v7353 = vsub.f32 %v7203, %v7352
  %v7354 = vand.u32 %v7353, 4294901760
  %7355 = vmatpush.msra.mxu0 %v7354
  %v7356 = vand.u32 %v7202, 4294901760
  %v7357 = vsub.f32 %v7202, %v7356
  %v7358 = vand.u32 %v7357, 4294901760
  %7359 = vmatpush.msra.mxu0 %v7358
  %v7360 = vand.u32 %v7201, 4294901760
  %v7361 = vsub.f32 %v7201, %v7360
  %v7362 = vand.u32 %v7361, 4294901760
  %7363 = vmatpush.msra.mxu0 %v7362
  %v7364 = vand.u32 %v7207, 4294901760
  %7365 = vmatmul.f32.gmra.mxu0 %v7364
  %v7366 = vpop.f32.mrf.mxu0
  %v7367 = vadd.f32 %v7334, %v7366
  %7368 = vdwg.mxu0
  %7369 = vmatpush.msra.mxu0 0.0
  %7370 = vmatpush.msra.mxu0 0.0
  %7371 = vmatpush.msra.mxu0 0.0
  %7372 = vmatpush.msra.mxu0 0.0
  %7373 = vmatpush.msra.mxu0 0.0
  %7374 = vmatpush.msra.mxu0 0.0
  %7375 = vmatpush.msra.mxu0 0.0
  %7376 = vmatpush.msra.mxu0 0.0
  %7377 = vmatpush.msra.mxu0 0.0
  %7378 = vmatpush.msra.mxu0 0.0
  %7379 = vmatpush.msra.mxu0 0.0
  %7380 = vmatpush.msra.mxu0 0.0
  %v7381 = vand.u32 %v7204, 4294901760
  %7382 = vmatpush.msra.mxu0 %v7381
  %v7383 = vand.u32 %v7203, 4294901760
  %7384 = vmatpush.msra.mxu0 %v7383
  %v7385 = vand.u32 %v7202, 4294901760
  %7386 = vmatpush.msra.mxu0 %v7385
  %v7387 = vand.u32 %v7201, 4294901760
  %7388 = vmatpush.msra.mxu0 %v7387
  %v7389 = vand.u32 %v7207, 4294901760
  %7390 = vmatmul.f32.gmra.mxu0 %v7389
  %v7391 = vpop.f32.mrf.mxu0
  %v7392 = vadd.f32 %v7367, %v7391
  %7393 = vdwg.mxu0
  %v7395 = vsel %vm94, %v7195, 0
  %7397 = vmatpush.msra.mxu0 0.0
  %7398 = vmatpush.msra.mxu0 0.0
  %7399 = vmatpush.msra.mxu0 0.0
  %7400 = vmatpush.msra.mxu0 0.0
  %7401 = vmatpush.msra.mxu0 0.0
  %7402 = vmatpush.msra.mxu0 0.0
  %7403 = vmatpush.msra.mxu0 0.0
  %7404 = vmatpush.msra.mxu0 0.0
  %7405 = vmatpush.msra.mxu0 0.0
  %7406 = vmatpush.msra.mxu0 0.0
  %7407 = vmatpush.msra.mxu0 0.0
  %7408 = vmatpush.msra.mxu0 0.0
  %v7409 = vand.u32 %v7200, 4294901760
  %7410 = vmatpush.msra.mxu0 %v7409
  %v7411 = vand.u32 %v7199, 4294901760
  %7412 = vmatpush.msra.mxu0 %v7411
  %v7413 = vand.u32 %v7198, 4294901760
  %7414 = vmatpush.msra.mxu0 %v7413
  %v7415 = vand.u32 %v7197, 4294901760
  %7416 = vmatpush.msra.mxu0 %v7415
  %v7417 = vand.u32 %v7395, 4294901760
  %v7418 = vsub.f32 %v7395, %v7417
  %v7419 = vand.u32 %v7418, 4294901760
  %v7420 = vsub.f32 %v7418, %v7419
  %v7421 = vand.u32 %v7420, 4294901760
  %7422 = vmatmul.f32.gmra.mxu0 %v7421
  %v7423 = vpop.f32.mrf.mxu0
  %v7424 = vadd.f32 %v7392, %v7423
  %7425 = vdwg.mxu0
  %7426 = vmatpush.msra.mxu0 0.0
  %7427 = vmatpush.msra.mxu0 0.0
  %7428 = vmatpush.msra.mxu0 0.0
  %7429 = vmatpush.msra.mxu0 0.0
  %7430 = vmatpush.msra.mxu0 0.0
  %7431 = vmatpush.msra.mxu0 0.0
  %7432 = vmatpush.msra.mxu0 0.0
  %7433 = vmatpush.msra.mxu0 0.0
  %7434 = vmatpush.msra.mxu0 0.0
  %7435 = vmatpush.msra.mxu0 0.0
  %7436 = vmatpush.msra.mxu0 0.0
  %7437 = vmatpush.msra.mxu0 0.0
  %v7438 = vand.u32 %v7200, 4294901760
  %v7439 = vsub.f32 %v7200, %v7438
  %v7440 = vand.u32 %v7439, 4294901760
  %v7441 = vsub.f32 %v7439, %v7440
  %v7442 = vand.u32 %v7441, 4294901760
  %7443 = vmatpush.msra.mxu0 %v7442
  %v7444 = vand.u32 %v7199, 4294901760
  %v7445 = vsub.f32 %v7199, %v7444
  %v7446 = vand.u32 %v7445, 4294901760
  %v7447 = vsub.f32 %v7445, %v7446
  %v7448 = vand.u32 %v7447, 4294901760
  %7449 = vmatpush.msra.mxu0 %v7448
  %v7450 = vand.u32 %v7198, 4294901760
  %v7451 = vsub.f32 %v7198, %v7450
  %v7452 = vand.u32 %v7451, 4294901760
  %v7453 = vsub.f32 %v7451, %v7452
  %v7454 = vand.u32 %v7453, 4294901760
  %7455 = vmatpush.msra.mxu0 %v7454
  %v7456 = vand.u32 %v7197, 4294901760
  %v7457 = vsub.f32 %v7197, %v7456
  %v7458 = vand.u32 %v7457, 4294901760
  %v7459 = vsub.f32 %v7457, %v7458
  %v7460 = vand.u32 %v7459, 4294901760
  %7461 = vmatpush.msra.mxu0 %v7460
  %v7462 = vand.u32 %v7395, 4294901760
  %7463 = vmatmul.f32.gmra.mxu0 %v7462
  %v7464 = vpop.f32.mrf.mxu0
  %v7465 = vadd.f32 %v7424, %v7464
  %7466 = vdwg.mxu0
  %7467 = vmatpush.msra.mxu0 0.0
  %7468 = vmatpush.msra.mxu0 0.0
  %7469 = vmatpush.msra.mxu0 0.0
  %7470 = vmatpush.msra.mxu0 0.0
  %7471 = vmatpush.msra.mxu0 0.0
  %7472 = vmatpush.msra.mxu0 0.0
  %7473 = vmatpush.msra.mxu0 0.0
  %7474 = vmatpush.msra.mxu0 0.0
  %7475 = vmatpush.msra.mxu0 0.0
  %7476 = vmatpush.msra.mxu0 0.0
  %7477 = vmatpush.msra.mxu0 0.0
  %7478 = vmatpush.msra.mxu0 0.0
  %v7479 = vand.u32 %v7200, 4294901760
  %v7480 = vsub.f32 %v7200, %v7479
  %7481 = vmatpush.msra.mxu0 %v7480
  %v7482 = vand.u32 %v7199, 4294901760
  %v7483 = vsub.f32 %v7199, %v7482
  %7484 = vmatpush.msra.mxu0 %v7483
  %v7485 = vand.u32 %v7198, 4294901760
  %v7486 = vsub.f32 %v7198, %v7485
  %7487 = vmatpush.msra.mxu0 %v7486
  %v7488 = vand.u32 %v7197, 4294901760
  %v7489 = vsub.f32 %v7197, %v7488
  %7490 = vmatpush.msra.mxu0 %v7489
  %v7491 = vand.u32 %v7395, 4294901760
  %v7492 = vsub.f32 %v7395, %v7491
  %7493 = vmatmul.f32.gmra.mxu0 %v7492
  %v7494 = vpop.f32.mrf.mxu0
  %v7495 = vadd.f32 %v7465, %v7494
  %7496 = vdwg.mxu0
  %7497 = vmatpush.msra.mxu0 0.0
  %7498 = vmatpush.msra.mxu0 0.0
  %7499 = vmatpush.msra.mxu0 0.0
  %7500 = vmatpush.msra.mxu0 0.0
  %7501 = vmatpush.msra.mxu0 0.0
  %7502 = vmatpush.msra.mxu0 0.0
  %7503 = vmatpush.msra.mxu0 0.0
  %7504 = vmatpush.msra.mxu0 0.0
  %7505 = vmatpush.msra.mxu0 0.0
  %7506 = vmatpush.msra.mxu0 0.0
  %7507 = vmatpush.msra.mxu0 0.0
  %7508 = vmatpush.msra.mxu0 0.0
  %v7509 = vand.u32 %v7200, 4294901760
  %7510 = vmatpush.msra.mxu0 %v7509
  %v7511 = vand.u32 %v7199, 4294901760
  %7512 = vmatpush.msra.mxu0 %v7511
  %v7513 = vand.u32 %v7198, 4294901760
  %7514 = vmatpush.msra.mxu0 %v7513
  %v7515 = vand.u32 %v7197, 4294901760
  %7516 = vmatpush.msra.mxu0 %v7515
  %v7517 = vand.u32 %v7395, 4294901760
  %v7518 = vsub.f32 %v7395, %v7517
  %v7519 = vand.u32 %v7518, 4294901760
  %7520 = vmatmul.f32.gmra.mxu0 %v7519
  %v7521 = vpop.f32.mrf.mxu0
  %v7522 = vadd.f32 %v7495, %v7521
  %7523 = vdwg.mxu0
  %7524 = vmatpush.msra.mxu0 0.0
  %7525 = vmatpush.msra.mxu0 0.0
  %7526 = vmatpush.msra.mxu0 0.0
  %7527 = vmatpush.msra.mxu0 0.0
  %7528 = vmatpush.msra.mxu0 0.0
  %7529 = vmatpush.msra.mxu0 0.0
  %7530 = vmatpush.msra.mxu0 0.0
  %7531 = vmatpush.msra.mxu0 0.0
  %7532 = vmatpush.msra.mxu0 0.0
  %7533 = vmatpush.msra.mxu0 0.0
  %7534 = vmatpush.msra.mxu0 0.0
  %7535 = vmatpush.msra.mxu0 0.0
  %v7536 = vand.u32 %v7200, 4294901760
  %v7537 = vsub.f32 %v7200, %v7536
  %v7538 = vand.u32 %v7537, 4294901760
  %7539 = vmatpush.msra.mxu0 %v7538
  %v7540 = vand.u32 %v7199, 4294901760
  %v7541 = vsub.f32 %v7199, %v7540
  %v7542 = vand.u32 %v7541, 4294901760
  %7543 = vmatpush.msra.mxu0 %v7542
  %v7544 = vand.u32 %v7198, 4294901760
  %v7545 = vsub.f32 %v7198, %v7544
  %v7546 = vand.u32 %v7545, 4294901760
  %7547 = vmatpush.msra.mxu0 %v7546
  %v7548 = vand.u32 %v7197, 4294901760
  %v7549 = vsub.f32 %v7197, %v7548
  %v7550 = vand.u32 %v7549, 4294901760
  %7551 = vmatpush.msra.mxu0 %v7550
  %v7552 = vand.u32 %v7395, 4294901760
  %7553 = vmatmul.f32.gmra.mxu0 %v7552
  %v7554 = vpop.f32.mrf.mxu0
  %v7555 = vadd.f32 %v7522, %v7554
  %7556 = vdwg.mxu0
  %7557 = vmatpush.msra.mxu0 0.0
  %7558 = vmatpush.msra.mxu0 0.0
  %7559 = vmatpush.msra.mxu0 0.0
  %7560 = vmatpush.msra.mxu0 0.0
  %7561 = vmatpush.msra.mxu0 0.0
  %7562 = vmatpush.msra.mxu0 0.0
  %7563 = vmatpush.msra.mxu0 0.0
  %7564 = vmatpush.msra.mxu0 0.0
  %7565 = vmatpush.msra.mxu0 0.0
  %7566 = vmatpush.msra.mxu0 0.0
  %7567 = vmatpush.msra.mxu0 0.0
  %7568 = vmatpush.msra.mxu0 0.0
  %v7569 = vand.u32 %v7200, 4294901760
  %7570 = vmatpush.msra.mxu0 %v7569
  %v7571 = vand.u32 %v7199, 4294901760
  %7572 = vmatpush.msra.mxu0 %v7571
  %v7573 = vand.u32 %v7198, 4294901760
  %7574 = vmatpush.msra.mxu0 %v7573
  %v7575 = vand.u32 %v7197, 4294901760
  %7576 = vmatpush.msra.mxu0 %v7575
  %v7577 = vand.u32 %v7395, 4294901760
  %7578 = vmatmul.f32.gmra.mxu0 %v7577
  %v7579 = vpop.f32.mrf.mxu0
  %v7580 = vadd.f32 %v7555, %v7579
  %7581 = vdwg.mxu0
  %v7582 = vperm.slane %v7205, 0
  %v7583 = vadd.f32 %v7580, %v7582
  %v7584 = vmul.f32 %v7583, 0.999995
  %v7585 = vmax.f32 %v7584, %v7583
  %v7586 = vmul.f32 %v7585, 0.999995
  %7588 = vrot.lane.b32.xlu0 %v7583, 127
  %v7589 = vpop.permute.xlu0 %7588
  %v7591 = vmax.f32 %v7586, %v7589
  %v7592 = vmul.f32 %v7591, 0.999995
  %7593 = vrot.lane.b32.xlu0 %v7583, 126
  %v7594 = vpop.permute.xlu0 %7593
  %v7596 = vmax.f32 %v7592, %v7594
  %v7597 = vmul.f32 %v7596, 0.999995
  %vm7598 = vcmask 1024
  %7599 = vst.msk [vmem:[%s9] sm:$0x3] %vm7598, %v7597
  // Predicated region
  $region38: #{tpu_custom_call.1} parent=0 // pred_check
    _
  $region39: #{tpu_custom_call.1} parent=0 // pred_check_branch
    %7601 = sbr.rel (0) target = $region41
  $region40: #{tpu_custom_call.1} parent=0 // pred_region
    _
  $region41: #{tpu_custom_call.1} parent=0 // pred_fallthru
    _
  // Predicated region
  $region42: #{tpu_custom_call.1} parent=0 // pred_check
    _
  $region43: #{tpu_custom_call.1} parent=0 // pred_check_branch
    %7603 = sbr.rel (0) target = $region45
  $region44: #{tpu_custom_call.1} parent=0 // pred_region
    _
  $region45: #{tpu_custom_call.1} parent=0 // pred_fallthru
    _

</llo_original>
